<compile_context>
chip_gen: v7x
topology: tpu7x:2x2x1
jax: 0.10.0
libtpu: 0.0.40
codegen_flags: <defaults>
</compile_context>

<pallas_src>
import jax
import jax.numpy as jnp
from jax.experimental import pallas as pl
from jax.experimental.pallas import tpu as pltpu

F32 = jnp.float32
BF16 = jnp.bfloat16
EPS = 1e-5
LANES = 128


# ----------------------------------------------------------------------------
# Architecture description: ordered list of (name, K, cin, cout).
# K == 0 marks a BatchNorm (gamma/beta); K == 1 with name "head" is the fused
# Linear (fc_mu | fc_logvar).
# ----------------------------------------------------------------------------
def _arch(input_channels, base_channels, latent_dim):
    a = [("conv1", 3, input_channels, base_channels)]
    c = base_channels
    for s in range(1, 5):
        a += [(f"rb{s}_conv1", 3, c, c), (f"rb{s}_bn1", 0, c, c),
              (f"rb{s}_conv2", 3, c, c), (f"rb{s}_bn2", 0, c, c)]
        if s < 4:
            a.append((f"ds{s}", 4, c, 2 * c))
            c *= 2
    a.append(("head", 1, c, 2 * latent_dim))
    return a


# ----------------------------------------------------------------------------
# Host-side parameter packing into two lane-padded slabs.
#   weight slab : (R, 128) bf16, each conv's (K*cin, cout) block 8-row aligned
#   vector slab : (N, 128) f32,  conv biases, BN gammas/betas, head bias
# ----------------------------------------------------------------------------
def pack_params(params, arch):
    w_rows, v_rows = [], []
    w_off, v_off = {}, {}
    wcur = 0
    for name, K, cin, cout in arch:
        assert cout <= LANES, "channel count above 128 lanes not supported"
        if K == 0:                                        # BatchNorm: gamma, beta
            g, b = params[name]
            v_off[name] = (len(v_rows), len(v_rows) + 1)
            v_rows.append(jnp.pad(g, (0, LANES - cout)))
            v_rows.append(jnp.pad(b, (0, LANES - cout)))
        else:                                             # conv / linear: weight, bias
            w, b = params[name]                           # (K*cin, cout), (cout,)
            rows = K * cin
            pad_rows = (-rows) % 8                        # sublane-align every block
            w_off[name] = wcur
            w_rows.append(jnp.pad(w, ((0, pad_rows), (0, LANES - cout))))
            wcur += rows + pad_rows
            v_off[name] = len(v_rows)
            v_rows.append(jnp.pad(b, (0, LANES - cout)))
    w_slab = jnp.concatenate(w_rows, axis=0).astype(BF16)
    v_slab = jnp.stack(v_rows, axis=0).astype(F32)
    return w_slab, v_slab, w_off, v_off


# ----------------------------------------------------------------------------
# Fully fused encoder kernel.
# ----------------------------------------------------------------------------
def make_encoder_kernel(B, L0, input_channels, base_channels, latent2, w_off, v_off):
    bc = base_channels

    def kernel(x_ref, w_ref, v_ref, o_ref, ds1_s, ds2_s, ds3_s):
        # ---- static-offset slab accessors -------------------------------------
        def w_tap(name, k, cin, cout):
            r0 = w_off[name] + k * cin
            return w_ref[r0:r0 + cin, 0:cout]                    # bf16 (cin, cout)

        def vec(idx, c):
            return v_ref[idx:idx + 1, 0:c]                       # f32 (1, c)

        def mxu(a_f32, w_bf16):
            return jnp.dot(a_f32.astype(BF16), w_bf16, preferred_element_type=F32)

        # ---- kernel_size=3, stride=1, padding=1 conv (per-tap shift+accumulate)
        def conv_s1(x3, name, cin, cout):
            b_, l_, _ = x3.shape
            z = jnp.zeros((b_, 1, cin), F32)
            xp = jnp.concatenate([z, x3, z], axis=1)             # halo lives in VMEM only
            y = None
            for k in range(3):
                tap = xp[:, k:k + l_, :].reshape(b_ * l_, cin)
                if cin == 1:                                     # conv1: rank-1 -> VPU broadcast
                    d = tap * w_tap(name, k, cin, cout).astype(F32)
                else:
                    d = mxu(tap, w_tap(name, k, cin, cout))
                y = d if y is None else y + d
            return y + vec(v_off[name], cout)

        # ---- training-mode BatchNorm1d on a (B*L, C) tile, single-pass stats --
        def batchnorm(y2, name):
            gi, bi = v_off[name]
            c = y2.shape[1]
            inv_n = 1.0 / y2.shape[0]
            s = jnp.sum(y2, axis=0, keepdims=True)
            ss = jnp.sum(y2 * y2, axis=0, keepdims=True)
            mean = s * inv_n
            var = jnp.maximum(ss * inv_n - mean * mean, 0.0)     # biased variance
            scale = jax.lax.rsqrt(var + EPS) * vec(gi, c)
            return (y2 - mean) * scale + vec(bi, c)

        # ---- kernel_size=4, stride=2, padding=1 downsample conv ---------------
        # Even/odd phases via sublane-strided reads of a VMEM scratch (no O(L^2)
        # selection matmuls, no per-batch loop); batch folding keeps parity.
        def conv_ds(h2, name, cin, cout, lc, scratch):
            lout = lc // 2
            scratch[...] = h2                                    # (B*lc, cin) f32
            ev = scratch[pl.ds(0, B * lout, 2), :].reshape(B, lout, cin)   # x[2j]
            od = scratch[pl.ds(1, B * lout, 2), :].reshape(B, lout, cin)   # x[2j+1]
            z = jnp.zeros((B, 1, cin), F32)
            taps = (jnp.concatenate([z, od[:, :lout - 1, :]], axis=1),     # x[2j-1]
                    ev,                                                    # x[2j]
                    od,                                                    # x[2j+1]
                    jnp.concatenate([ev[:, 1:, :], z], axis=1))            # x[2j+2]
            y = None
            for k in range(4):
                d = mxu(taps[k].reshape(B * lout, cin), w_tap(name, k, cin, cout))
                y = d if y is None else y + d
            return y + vec(v_off[name], cout)

        # ---- forward pass ------------------------------------------------------
        x = x_ref[...]                                           # (B, L0, Cin) f32
        h = jnp.maximum(conv_s1(x, "conv1", input_channels, bc), 0.0)   # (B*L0, bc)

        lc, cc = L0, bc
        ds_scratch = (ds1_s, ds2_s, ds3_s)
        for s in range(1, 5):
            # ResBlock1D: relu(bn2(conv2(relu(bn1(conv1(h))))) + h)
            t = conv_s1(h.reshape(B, lc, cc), f"rb{s}_conv1", cc, cc)
            t = jnp.maximum(batchnorm(t, f"rb{s}_bn1"), 0.0)
            t = conv_s1(t.reshape(B, lc, cc), f"rb{s}_conv2", cc, cc)
            h = jnp.maximum(batchnorm(t, f"rb{s}_bn2") + h, 0.0)
            if s < 4:
                h = conv_ds(h, f"ds{s}", cc, 2 * cc, lc, ds_scratch[s - 1])
                lc //= 2
                cc *= 2

        pooled = jnp.mean(h.reshape(B, lc, cc), axis=1)          # global avg pool: (B, cc)
        # Fused mu|logvar head -> lane-dense (cc, 128) matmul, unmasked store.
        o_ref[...] = mxu(pooled, w_tap("head", 0, cc, latent2)) + vec(v_off["head"], latent2)

    return kernel


# ----------------------------------------------------------------------------
# Wrapper: one pallas_call for the whole network.
# ----------------------------------------------------------------------------
def encoder_forward(x_ncl, params):
    """x_ncl: PyTorch-layout input (B, Cin, L). Returns (mu, logvar)."""
    x = jnp.transpose(x_ncl, (0, 2, 1)).astype(F32)              # (B, L, Cin)
    B, L, cin = x.shape
    assert L % 8 == 0 and L >= 8, "L must be divisible by 8 (three stride-2 stages)"

    bc = params["conv1"][0].shape[1]
    latent2 = params["head"][0].shape[1]
    arch = _arch(cin, bc, latent2 // 2)
    w_slab, v_slab, w_off, v_off = pack_params(params, arch)

    kernel = make_encoder_kernel(B, L, cin, bc, latent2, w_off, v_off)

    out = pl.pallas_call(
        kernel,
        out_shape=jax.ShapeDtypeStruct((B, latent2), F32),
        grid=(1,),
        in_specs=[
            pl.BlockSpec((B, L, cin), lambda i: (0, 0, 0)),
            pl.BlockSpec(w_slab.shape, lambda i: (0, 0)),
            pl.BlockSpec(v_slab.shape, lambda i: (0, 0)),
        ],
        out_specs=pl.BlockSpec((B, latent2), lambda i: (0, 0)),
        scratch_shapes=[
            pltpu.VMEM((B * L, bc), F32),          # downsample-1 even/odd staging
            pltpu.VMEM((B * L // 2, 2 * bc), F32),  # downsample-2
            pltpu.VMEM((B * L // 4, 4 * bc), F32),  # downsample-3
        ],
        compiler_params=pltpu.CompilerParams(
            dimension_semantics=("arbitrary",),
            vmem_limit_bytes=48 * 1024 * 1024),
    )(x, w_slab, v_slab)

    latent = latent2 // 2
    return out[:, :latent], out[:, latent:]


# ----------------------------------------------------------------------------
# Parameter init (deterministic, PyTorch-style uniform fan-in bounds).
# Conv weights stored as (K*Cin, Cout) tap-major, biases as (Cout,), BN as
# (gamma, beta); the mu/logvar Linears are fused into one (Cin, 2*latent).
# ----------------------------------------------------------------------------
def init_params(key, input_channels=1, base_channels=16, latent_dim=64):
    arch = _arch(input_channels, base_channels, latent_dim)
    keys = jax.random.split(key, len(arch))
    params = {}
    for k_i, (name, K, cin, cout) in zip(keys, arch):
        if K == 0:                                       # BatchNorm1d defaults
            params[name] = (jnp.ones((cout,), F32), jnp.zeros((cout,), F32))
        else:
            bound = 1.0 / (K * cin) ** 0.5
            kw, kb = jax.random.split(k_i)
            w = jax.random.uniform(kw, (K * cin, cout), F32, -bound, bound)
            b = jax.random.uniform(kb, (cout,), F32, -bound, bound)
            params[name] = (w, b)
    return params


# ----------------------------------------------------------------------------
# Pure-JAX f32 reference (independent formulation) for a numeric cross-check.
# ----------------------------------------------------------------------------
def _ref_conv(x, w_flat, b, K, stride, pad):
    B, L, C = x.shape
    Cout = w_flat.shape[1]
    w = w_flat.reshape(K, C, Cout)
    xp = jnp.pad(x, ((0, 0), (pad, pad), (0, 0)))
    Lout = (L + 2 * pad - K) // stride + 1
    y = jnp.zeros((B, Lout, Cout), F32)
    for k in range(K):
        xk = xp[:, k:k + (Lout - 1) * stride + 1:stride, :]
        y = y + jnp.einsum("blc,cd->bld", xk, w[k])
    return y + b.reshape(1, 1, Cout)


def _ref_bn(y, g, be):
    mean = jnp.mean(y, axis=(0, 1), keepdims=True)
    var = jnp.mean(jnp.square(y - mean), axis=(0, 1), keepdims=True)
    return (y - mean) * jax.lax.rsqrt(var + EPS) * g.reshape(1, 1, -1) + be.reshape(1, 1, -1)


def encoder_reference(x_ncl, p):
    x = jnp.transpose(x_ncl, (0, 2, 1)).astype(F32)
    h = jnp.maximum(_ref_conv(x, *p["conv1"], 3, 1, 1), 0.0)
    for s in range(1, 5):
        t = _ref_conv(h, *p[f"rb{s}_conv1"], 3, 1, 1)
        t = jnp.maximum(_ref_bn(t, *p[f"rb{s}_bn1"]), 0.0)
        t = _ref_conv(t, *p[f"rb{s}_conv2"], 3, 1, 1)
        h = jnp.maximum(_ref_bn(t, *p[f"rb{s}_bn2"]) + h, 0.0)
        if s < 4:
            h = _ref_conv(h, *p[f"ds{s}"], 4, 2, 1)
    pooled = jnp.mean(h, axis=1)
    out = pooled @ p["head"][0] + p["head"][1]
    latent = out.shape[1] // 2
    return out[:, :latent], out[:, latent:]


if __name__ == "__main__":
    key = jax.random.PRNGKey(0)
    k_x, k_p = jax.random.split(key)

    B, L = 2, 64                       # small sequence instead of 1024; divisible by 8
    base_channels, latent_dim = 16, 64

    # PyTorch-style NCL input (B, 1, L)
    x_ncl = jax.random.normal(k_x, (B, 1, L), dtype=F32)
    params = init_params(k_p, input_channels=1,
                         base_channels=base_channels, latent_dim=latent_dim)

    mu, logvar = jax.jit(encoder_forward)(x_ncl, params)
    jax.block_until_ready((mu, logvar))

    assert mu.shape == (B, latent_dim) and logvar.shape == (B, latent_dim)
    assert mu.dtype == F32 and logvar.dtype == F32
    assert bool(jnp.all(jnp.isfinite(mu))) and bool(jnp.all(jnp.isfinite(logvar)))

    # Numeric cross-check against the independent f32 reference.
    # Kernel matmuls run with bf16 operands -> looser tolerance than pure f32.
    mu_ref, lv_ref = encoder_reference(x_ncl, params)
    assert jnp.allclose(mu, mu_ref, atol=6e-2, rtol=6e-2), \
        float(jnp.max(jnp.abs(mu - mu_ref)))
    assert jnp.allclose(logvar, lv_ref, atol=6e-2, rtol=6e-2), \
        float(jnp.max(jnp.abs(logvar - lv_ref)))

    print("KERNEL_OK")
</pallas_src>

<mosaic_0001>
module attributes {stable_mosaic.version = 11 : i64} {
  func.func @kernel(%arg0: i32, %arg1: memref<2x64x1xf32, #tpu.memory_space<vmem>>, %arg2: memref<2024x128xbf16, #tpu.memory_space<vmem>>, %arg3: memref<29x128xf32, #tpu.memory_space<vmem>>, %arg4: memref<2x128xf32, #tpu.memory_space<vmem>>, %arg5: memref<128x16xf32, #tpu.memory_space<vmem>>, %arg6: memref<64x32xf32, #tpu.memory_space<vmem>>, %arg7: memref<32x64xf32, #tpu.memory_space<vmem>>) attributes {dimension_semantics = [#tpu.dimension_semantics<arbitrary>], iteration_bounds = array<i64: 1>, scalar_prefetch = 0 : i64, scratch_operands = 3 : i64, tpu.core_type = #tpu.core_type<tc>, window_params = [{pipeline_mode = #tpu.pipeline_mode<synchronous>, transform_indices = @transform_0, window_bounds = array<i64: 2, 64, 1>}, {pipeline_mode = #tpu.pipeline_mode<synchronous>, transform_indices = @transform_1, window_bounds = array<i64: 2024, 128>}, {pipeline_mode = #tpu.pipeline_mode<synchronous>, transform_indices = @transform_2, window_bounds = array<i64: 29, 128>}, {pipeline_mode = #tpu.pipeline_mode<synchronous>, transform_indices = @transform_3, window_bounds = array<i64: 2, 128>}]} {
    %c0 = arith.constant 0 : index
    %c0_0 = arith.constant 0 : index
    %c0_1 = arith.constant 0 : index
    %0 = vector.load %arg1[%c0, %c0_0, %c0_1] : memref<2x64x1xf32, #tpu.memory_space<vmem>>, vector<2x64x1xf32>
    %cst = arith.constant 0.000000e+00 : f32
    %1 = vector.broadcast %cst : f32 to vector<2x1x1xf32>
    %2 = tpu.concatenate %1, %0, %1 in 1 : vector<2x1x1xf32>, vector<2x64x1xf32>, vector<2x1x1xf32> -> vector<2x66x1xf32>
    %3 = vector.extract_strided_slice %2 {offsets = [0, 0, 0], sizes = [2, 64, 1], strides = [1, 1, 1]} : vector<2x66x1xf32> to vector<2x64x1xf32>
    %4 = vector.shape_cast %3 : vector<2x64x1xf32> to vector<128x1xf32>
    %c0_2 = arith.constant 0 : index
    %c0_3 = arith.constant 0 : index
    %5 = vector.load %arg2[%c0_2, %c0_3] : memref<2024x128xbf16, #tpu.memory_space<vmem>>, vector<1x16xbf16>
    %6 = arith.extf %5 : vector<1x16xbf16> to vector<1x16xf32>
    %7 = vector.broadcast %4 : vector<128x1xf32> to vector<128x16xf32>
    %8 = vector.broadcast %6 : vector<1x16xf32> to vector<128x16xf32>
    %9 = arith.mulf %7, %8 : vector<128x16xf32>
    %10 = vector.extract_strided_slice %2 {offsets = [0, 1, 0], sizes = [2, 64, 1], strides = [1, 1, 1]} : vector<2x66x1xf32> to vector<2x64x1xf32>
    %11 = vector.shape_cast %10 : vector<2x64x1xf32> to vector<128x1xf32>
    %c1 = arith.constant 1 : index
    %c0_4 = arith.constant 0 : index
    %12 = vector.load %arg2[%c1, %c0_4] : memref<2024x128xbf16, #tpu.memory_space<vmem>>, vector<1x16xbf16>
    %13 = arith.extf %12 : vector<1x16xbf16> to vector<1x16xf32>
    %14 = vector.broadcast %11 : vector<128x1xf32> to vector<128x16xf32>
    %15 = vector.broadcast %13 : vector<1x16xf32> to vector<128x16xf32>
    %16 = arith.mulf %14, %15 : vector<128x16xf32>
    %17 = arith.addf %9, %16 : vector<128x16xf32>
    %18 = vector.extract_strided_slice %2 {offsets = [0, 2, 0], sizes = [2, 64, 1], strides = [1, 1, 1]} : vector<2x66x1xf32> to vector<2x64x1xf32>
    %19 = vector.shape_cast %18 : vector<2x64x1xf32> to vector<128x1xf32>
    %c2 = arith.constant 2 : index
    %c0_5 = arith.constant 0 : index
    %20 = vector.load %arg2[%c2, %c0_5] : memref<2024x128xbf16, #tpu.memory_space<vmem>>, vector<1x16xbf16>
    %21 = arith.extf %20 : vector<1x16xbf16> to vector<1x16xf32>
    %22 = vector.broadcast %19 : vector<128x1xf32> to vector<128x16xf32>
    %23 = vector.broadcast %21 : vector<1x16xf32> to vector<128x16xf32>
    %24 = arith.mulf %22, %23 : vector<128x16xf32>
    %25 = arith.addf %17, %24 : vector<128x16xf32>
    %c0_6 = arith.constant 0 : index
    %c0_7 = arith.constant 0 : index
    %26 = vector.load %arg3[%c0_6, %c0_7] : memref<29x128xf32, #tpu.memory_space<vmem>>, vector<1x16xf32>
    %27 = vector.broadcast %26 : vector<1x16xf32> to vector<128x16xf32>
    %28 = arith.addf %25, %27 : vector<128x16xf32>
    %cst_8 = arith.constant 0.000000e+00 : f32
    %29 = vector.broadcast %cst_8 : f32 to vector<128x16xf32>
    %30 = arith.maximumf %28, %29 : vector<128x16xf32>
    %31 = vector.shape_cast %30 : vector<128x16xf32> to vector<2x64x16xf32>
    %cst_9 = arith.constant 0.000000e+00 : f32
    %32 = vector.broadcast %cst_9 : f32 to vector<2x1x16xf32>
    %33 = tpu.concatenate %32, %31, %32 in 1 : vector<2x1x16xf32>, vector<2x64x16xf32>, vector<2x1x16xf32> -> vector<2x66x16xf32>
    %34 = vector.extract_strided_slice %33 {offsets = [0, 0, 0], sizes = [2, 64, 16], strides = [1, 1, 1]} : vector<2x66x16xf32> to vector<2x64x16xf32>
    %35 = vector.shape_cast %34 : vector<2x64x16xf32> to vector<128x16xf32>
    %c8 = arith.constant 8 : index
    %c0_10 = arith.constant 0 : index
    %36 = vector.load %arg2[%c8, %c0_10] : memref<2024x128xbf16, #tpu.memory_space<vmem>>, vector<16x16xbf16>
    %37 = arith.truncf %35 : vector<128x16xf32> to vector<128x16xbf16>
    %cst_11 = arith.constant dense<0.000000e+00> : vector<128x16xf32>
    %38 = tpu.matmul %37, %36, %cst_11 {dimension_numbers = #tpu.dot_dimension_numbers<[1], [0], [0], [1], [0, 0, 1, 1], [], []>} : vector<128x16xbf16>, vector<16x16xbf16>, vector<128x16xf32> -> vector<128x16xf32>
    %39 = vector.extract_strided_slice %33 {offsets = [0, 1, 0], sizes = [2, 64, 16], strides = [1, 1, 1]} : vector<2x66x16xf32> to vector<2x64x16xf32>
    %40 = vector.shape_cast %39 : vector<2x64x16xf32> to vector<128x16xf32>
    %c24 = arith.constant 24 : index
    %c0_12 = arith.constant 0 : index
    %41 = vector.load %arg2[%c24, %c0_12] : memref<2024x128xbf16, #tpu.memory_space<vmem>>, vector<16x16xbf16>
    %42 = arith.truncf %40 : vector<128x16xf32> to vector<128x16xbf16>
    %cst_13 = arith.constant dense<0.000000e+00> : vector<128x16xf32>
    %43 = tpu.matmul %42, %41, %cst_13 {dimension_numbers = #tpu.dot_dimension_numbers<[1], [0], [0], [1], [0, 0, 1, 1], [], []>} : vector<128x16xbf16>, vector<16x16xbf16>, vector<128x16xf32> -> vector<128x16xf32>
    %44 = arith.addf %38, %43 : vector<128x16xf32>
    %45 = vector.extract_strided_slice %33 {offsets = [0, 2, 0], sizes = [2, 64, 16], strides = [1, 1, 1]} : vector<2x66x16xf32> to vector<2x64x16xf32>
    %46 = vector.shape_cast %45 : vector<2x64x16xf32> to vector<128x16xf32>
    %c40 = arith.constant 40 : index
    %c0_14 = arith.constant 0 : index
    %47 = vector.load %arg2[%c40, %c0_14] : memref<2024x128xbf16, #tpu.memory_space<vmem>>, vector<16x16xbf16>
    %48 = arith.truncf %46 : vector<128x16xf32> to vector<128x16xbf16>
    %cst_15 = arith.constant dense<0.000000e+00> : vector<128x16xf32>
    %49 = tpu.matmul %48, %47, %cst_15 {dimension_numbers = #tpu.dot_dimension_numbers<[1], [0], [0], [1], [0, 0, 1, 1], [], []>} : vector<128x16xbf16>, vector<16x16xbf16>, vector<128x16xf32> -> vector<128x16xf32>
    %50 = arith.addf %44, %49 : vector<128x16xf32>
    %c1_16 = arith.constant 1 : index
    %c0_17 = arith.constant 0 : index
    %51 = vector.load %arg3[%c1_16, %c0_17] : memref<29x128xf32, #tpu.memory_space<vmem>>, vector<1x16xf32>
    %52 = vector.broadcast %51 : vector<1x16xf32> to vector<128x16xf32>
    %53 = arith.addf %50, %52 : vector<128x16xf32>
    %cst_18 = arith.constant dense<0.000000e+00> : vector<16xf32>
    %54 = vector.multi_reduction <add>, %53, %cst_18 [0] : vector<128x16xf32> to vector<16xf32>
    %55 = vector.shape_cast %54 : vector<16xf32> to vector<1x16xf32>
    %56 = arith.mulf %53, %53 : vector<128x16xf32>
    %cst_19 = arith.constant dense<0.000000e+00> : vector<16xf32>
    %57 = vector.multi_reduction <add>, %56, %cst_19 [0] : vector<128x16xf32> to vector<16xf32>
    %58 = vector.shape_cast %57 : vector<16xf32> to vector<1x16xf32>
    %cst_20 = arith.constant 7.812500e-03 : f32
    %59 = vector.broadcast %cst_20 : f32 to vector<1x16xf32>
    %60 = arith.mulf %55, %59 : vector<1x16xf32>
    %cst_21 = arith.constant 7.812500e-03 : f32
    %61 = vector.broadcast %cst_21 : f32 to vector<1x16xf32>
    %62 = arith.mulf %58, %61 : vector<1x16xf32>
    %63 = arith.mulf %60, %60 : vector<1x16xf32>
    %64 = arith.subf %62, %63 : vector<1x16xf32>
    %cst_22 = arith.constant 0.000000e+00 : f32
    %65 = vector.broadcast %cst_22 : f32 to vector<1x16xf32>
    %66 = arith.maximumf %64, %65 : vector<1x16xf32>
    %cst_23 = arith.constant 9.99999974E-6 : f32
    %67 = vector.broadcast %cst_23 : f32 to vector<1x16xf32>
    %68 = arith.addf %66, %67 : vector<1x16xf32>
    %69 = math.rsqrt %68 : vector<1x16xf32>
    %c2_24 = arith.constant 2 : index
    %c0_25 = arith.constant 0 : index
    %70 = vector.load %arg3[%c2_24, %c0_25] : memref<29x128xf32, #tpu.memory_space<vmem>>, vector<1x16xf32>
    %71 = arith.mulf %69, %70 : vector<1x16xf32>
    %72 = vector.broadcast %60 : vector<1x16xf32> to vector<128x16xf32>
    %73 = arith.subf %53, %72 : vector<128x16xf32>
    %74 = vector.broadcast %71 : vector<1x16xf32> to vector<128x16xf32>
    %75 = arith.mulf %73, %74 : vector<128x16xf32>
    %c3 = arith.constant 3 : index
    %c0_26 = arith.constant 0 : index
    %76 = vector.load %arg3[%c3, %c0_26] : memref<29x128xf32, #tpu.memory_space<vmem>>, vector<1x16xf32>
    %77 = vector.broadcast %76 : vector<1x16xf32> to vector<128x16xf32>
    %78 = arith.addf %75, %77 : vector<128x16xf32>
    %cst_27 = arith.constant 0.000000e+00 : f32
    %79 = vector.broadcast %cst_27 : f32 to vector<128x16xf32>
    %80 = arith.maximumf %78, %79 : vector<128x16xf32>
    %81 = vector.shape_cast %80 : vector<128x16xf32> to vector<2x64x16xf32>
    %cst_28 = arith.constant 0.000000e+00 : f32
    %82 = vector.broadcast %cst_28 : f32 to vector<2x1x16xf32>
    %83 = tpu.concatenate %82, %81, %82 in 1 : vector<2x1x16xf32>, vector<2x64x16xf32>, vector<2x1x16xf32> -> vector<2x66x16xf32>
    %84 = vector.extract_strided_slice %83 {offsets = [0, 0, 0], sizes = [2, 64, 16], strides = [1, 1, 1]} : vector<2x66x16xf32> to vector<2x64x16xf32>
    %85 = vector.shape_cast %84 : vector<2x64x16xf32> to vector<128x16xf32>
    %c56 = arith.constant 56 : index
    %c0_29 = arith.constant 0 : index
    %86 = vector.load %arg2[%c56, %c0_29] : memref<2024x128xbf16, #tpu.memory_space<vmem>>, vector<16x16xbf16>
    %87 = arith.truncf %85 : vector<128x16xf32> to vector<128x16xbf16>
    %cst_30 = arith.constant dense<0.000000e+00> : vector<128x16xf32>
    %88 = tpu.matmul %87, %86, %cst_30 {dimension_numbers = #tpu.dot_dimension_numbers<[1], [0], [0], [1], [0, 0, 1, 1], [], []>} : vector<128x16xbf16>, vector<16x16xbf16>, vector<128x16xf32> -> vector<128x16xf32>
    %89 = vector.extract_strided_slice %83 {offsets = [0, 1, 0], sizes = [2, 64, 16], strides = [1, 1, 1]} : vector<2x66x16xf32> to vector<2x64x16xf32>
    %90 = vector.shape_cast %89 : vector<2x64x16xf32> to vector<128x16xf32>
    %c72 = arith.constant 72 : index
    %c0_31 = arith.constant 0 : index
    %91 = vector.load %arg2[%c72, %c0_31] : memref<2024x128xbf16, #tpu.memory_space<vmem>>, vector<16x16xbf16>
    %92 = arith.truncf %90 : vector<128x16xf32> to vector<128x16xbf16>
    %cst_32 = arith.constant dense<0.000000e+00> : vector<128x16xf32>
    %93 = tpu.matmul %92, %91, %cst_32 {dimension_numbers = #tpu.dot_dimension_numbers<[1], [0], [0], [1], [0, 0, 1, 1], [], []>} : vector<128x16xbf16>, vector<16x16xbf16>, vector<128x16xf32> -> vector<128x16xf32>
    %94 = arith.addf %88, %93 : vector<128x16xf32>
    %95 = vector.extract_strided_slice %83 {offsets = [0, 2, 0], sizes = [2, 64, 16], strides = [1, 1, 1]} : vector<2x66x16xf32> to vector<2x64x16xf32>
    %96 = vector.shape_cast %95 : vector<2x64x16xf32> to vector<128x16xf32>
    %c88 = arith.constant 88 : index
    %c0_33 = arith.constant 0 : index
    %97 = vector.load %arg2[%c88, %c0_33] : memref<2024x128xbf16, #tpu.memory_space<vmem>>, vector<16x16xbf16>
    %98 = arith.truncf %96 : vector<128x16xf32> to vector<128x16xbf16>
    %cst_34 = arith.constant dense<0.000000e+00> : vector<128x16xf32>
    %99 = tpu.matmul %98, %97, %cst_34 {dimension_numbers = #tpu.dot_dimension_numbers<[1], [0], [0], [1], [0, 0, 1, 1], [], []>} : vector<128x16xbf16>, vector<16x16xbf16>, vector<128x16xf32> -> vector<128x16xf32>
    %100 = arith.addf %94, %99 : vector<128x16xf32>
    %c4 = arith.constant 4 : index
    %c0_35 = arith.constant 0 : index
    %101 = vector.load %arg3[%c4, %c0_35] : memref<29x128xf32, #tpu.memory_space<vmem>>, vector<1x16xf32>
    %102 = vector.broadcast %101 : vector<1x16xf32> to vector<128x16xf32>
    %103 = arith.addf %100, %102 : vector<128x16xf32>
    %cst_36 = arith.constant dense<0.000000e+00> : vector<16xf32>
    %104 = vector.multi_reduction <add>, %103, %cst_36 [0] : vector<128x16xf32> to vector<16xf32>
    %105 = vector.shape_cast %104 : vector<16xf32> to vector<1x16xf32>
    %106 = arith.mulf %103, %103 : vector<128x16xf32>
    %cst_37 = arith.constant dense<0.000000e+00> : vector<16xf32>
    %107 = vector.multi_reduction <add>, %106, %cst_37 [0] : vector<128x16xf32> to vector<16xf32>
    %108 = vector.shape_cast %107 : vector<16xf32> to vector<1x16xf32>
    %cst_38 = arith.constant 7.812500e-03 : f32
    %109 = vector.broadcast %cst_38 : f32 to vector<1x16xf32>
    %110 = arith.mulf %105, %109 : vector<1x16xf32>
    %cst_39 = arith.constant 7.812500e-03 : f32
    %111 = vector.broadcast %cst_39 : f32 to vector<1x16xf32>
    %112 = arith.mulf %108, %111 : vector<1x16xf32>
    %113 = arith.mulf %110, %110 : vector<1x16xf32>
    %114 = arith.subf %112, %113 : vector<1x16xf32>
    %cst_40 = arith.constant 0.000000e+00 : f32
    %115 = vector.broadcast %cst_40 : f32 to vector<1x16xf32>
    %116 = arith.maximumf %114, %115 : vector<1x16xf32>
    %cst_41 = arith.constant 9.99999974E-6 : f32
    %117 = vector.broadcast %cst_41 : f32 to vector<1x16xf32>
    %118 = arith.addf %116, %117 : vector<1x16xf32>
    %119 = math.rsqrt %118 : vector<1x16xf32>
    %c5 = arith.constant 5 : index
    %c0_42 = arith.constant 0 : index
    %120 = vector.load %arg3[%c5, %c0_42] : memref<29x128xf32, #tpu.memory_space<vmem>>, vector<1x16xf32>
    %121 = arith.mulf %119, %120 : vector<1x16xf32>
    %122 = vector.broadcast %110 : vector<1x16xf32> to vector<128x16xf32>
    %123 = arith.subf %103, %122 : vector<128x16xf32>
    %124 = vector.broadcast %121 : vector<1x16xf32> to vector<128x16xf32>
    %125 = arith.mulf %123, %124 : vector<128x16xf32>
    %c6 = arith.constant 6 : index
    %c0_43 = arith.constant 0 : index
    %126 = vector.load %arg3[%c6, %c0_43] : memref<29x128xf32, #tpu.memory_space<vmem>>, vector<1x16xf32>
    %127 = vector.broadcast %126 : vector<1x16xf32> to vector<128x16xf32>
    %128 = arith.addf %125, %127 : vector<128x16xf32>
    %129 = arith.addf %128, %30 : vector<128x16xf32>
    %cst_44 = arith.constant 0.000000e+00 : f32
    %130 = vector.broadcast %cst_44 : f32 to vector<128x16xf32>
    %131 = arith.maximumf %129, %130 : vector<128x16xf32>
    %c0_45 = arith.constant 0 : index
    %c0_46 = arith.constant 0 : index
    %132 = vector.load %arg5[%c0_45, %c0_46] : memref<128x16xf32, #tpu.memory_space<vmem>>, vector<128x16xf32>
    tpu.vector_store %arg5[%c0_45, %c0_46], %131 {strides = array<i32>} : memref<128x16xf32, #tpu.memory_space<vmem>>, vector<128x16xf32>,
    %c0_47 = arith.constant 0 : index
    %c0_48 = arith.constant 0 : index
    %133 = tpu.strided_load %arg5[%c0_47, %c0_48] {strides = array<i32: 2, 1>} : memref<128x16xf32, #tpu.memory_space<vmem>>, vector<64x16xf32>
    %134 = vector.shape_cast %133 : vector<64x16xf32> to vector<2x32x16xf32>
    %c1_49 = arith.constant 1 : index
    %c0_50 = arith.constant 0 : index
    %135 = tpu.strided_load %arg5[%c1_49, %c0_50] {strides = array<i32: 2, 1>} : memref<128x16xf32, #tpu.memory_space<vmem>>, vector<64x16xf32>
    %136 = vector.shape_cast %135 : vector<64x16xf32> to vector<2x32x16xf32>
    %cst_51 = arith.constant 0.000000e+00 : f32
    %137 = vector.broadcast %cst_51 : f32 to vector<2x1x16xf32>
    %138 = vector.extract_strided_slice %136 {offsets = [0, 0, 0], sizes = [2, 31, 16], strides = [1, 1, 1]} : vector<2x32x16xf32> to vector<2x31x16xf32>
    %139 = tpu.concatenate %137, %138 in 1 : vector<2x1x16xf32>, vector<2x31x16xf32> -> vector<2x32x16xf32>
    %140 = vector.extract_strided_slice %134 {offsets = [0, 1, 0], sizes = [2, 31, 16], strides = [1, 1, 1]} : vector<2x32x16xf32> to vector<2x31x16xf32>
    %141 = tpu.concatenate %140, %137 in 1 : vector<2x31x16xf32>, vector<2x1x16xf32> -> vector<2x32x16xf32>
    %142 = vector.shape_cast %139 : vector<2x32x16xf32> to vector<64x16xf32>
    %c104 = arith.constant 104 : index
    %c0_52 = arith.constant 0 : index
    %143 = vector.load %arg2[%c104, %c0_52] : memref<2024x128xbf16, #tpu.memory_space<vmem>>, vector<16x32xbf16>
    %144 = arith.truncf %142 : vector<64x16xf32> to vector<64x16xbf16>
    %cst_53 = arith.constant dense<0.000000e+00> : vector<64x32xf32>
    %145 = tpu.matmul %144, %143, %cst_53 {dimension_numbers = #tpu.dot_dimension_numbers<[1], [0], [0], [1], [0, 0, 1, 1], [], []>} : vector<64x16xbf16>, vector<16x32xbf16>, vector<64x32xf32> -> vector<64x32xf32>
    %146 = vector.shape_cast %134 : vector<2x32x16xf32> to vector<64x16xf32>
    %c120 = arith.constant 120 : index
    %c0_54 = arith.constant 0 : index
    %147 = vector.load %arg2[%c120, %c0_54] : memref<2024x128xbf16, #tpu.memory_space<vmem>>, vector<16x32xbf16>
    %148 = arith.truncf %146 : vector<64x16xf32> to vector<64x16xbf16>
    %cst_55 = arith.constant dense<0.000000e+00> : vector<64x32xf32>
    %149 = tpu.matmul %148, %147, %cst_55 {dimension_numbers = #tpu.dot_dimension_numbers<[1], [0], [0], [1], [0, 0, 1, 1], [], []>} : vector<64x16xbf16>, vector<16x32xbf16>, vector<64x32xf32> -> vector<64x32xf32>
    %150 = arith.addf %145, %149 : vector<64x32xf32>
    %151 = vector.shape_cast %136 : vector<2x32x16xf32> to vector<64x16xf32>
    %c136 = arith.constant 136 : index
    %c0_56 = arith.constant 0 : index
    %152 = vector.load %arg2[%c136, %c0_56] : memref<2024x128xbf16, #tpu.memory_space<vmem>>, vector<16x32xbf16>
    %153 = arith.truncf %151 : vector<64x16xf32> to vector<64x16xbf16>
    %cst_57 = arith.constant dense<0.000000e+00> : vector<64x32xf32>
    %154 = tpu.matmul %153, %152, %cst_57 {dimension_numbers = #tpu.dot_dimension_numbers<[1], [0], [0], [1], [0, 0, 1, 1], [], []>} : vector<64x16xbf16>, vector<16x32xbf16>, vector<64x32xf32> -> vector<64x32xf32>
    %155 = arith.addf %150, %154 : vector<64x32xf32>
    %156 = vector.shape_cast %141 : vector<2x32x16xf32> to vector<64x16xf32>
    %c152 = arith.constant 152 : index
    %c0_58 = arith.constant 0 : index
    %157 = vector.load %arg2[%c152, %c0_58] : memref<2024x128xbf16, #tpu.memory_space<vmem>>, vector<16x32xbf16>
    %158 = arith.truncf %156 : vector<64x16xf32> to vector<64x16xbf16>
    %cst_59 = arith.constant dense<0.000000e+00> : vector<64x32xf32>
    %159 = tpu.matmul %158, %157, %cst_59 {dimension_numbers = #tpu.dot_dimension_numbers<[1], [0], [0], [1], [0, 0, 1, 1], [], []>} : vector<64x16xbf16>, vector<16x32xbf16>, vector<64x32xf32> -> vector<64x32xf32>
    %160 = arith.addf %155, %159 : vector<64x32xf32>
    %c7 = arith.constant 7 : index
    %c0_60 = arith.constant 0 : index
    %161 = vector.load %arg3[%c7, %c0_60] : memref<29x128xf32, #tpu.memory_space<vmem>>, vector<1x32xf32>
    %162 = vector.broadcast %161 : vector<1x32xf32> to vector<64x32xf32>
    %163 = arith.addf %160, %162 : vector<64x32xf32>
    %164 = vector.shape_cast %163 : vector<64x32xf32> to vector<2x32x32xf32>
    %cst_61 = arith.constant 0.000000e+00 : f32
    %165 = vector.broadcast %cst_61 : f32 to vector<2x1x32xf32>
    %166 = tpu.concatenate %165, %164, %165 in 1 : vector<2x1x32xf32>, vector<2x32x32xf32>, vector<2x1x32xf32> -> vector<2x34x32xf32>
    %167 = vector.extract_strided_slice %166 {offsets = [0, 0, 0], sizes = [2, 32, 32], strides = [1, 1, 1]} : vector<2x34x32xf32> to vector<2x32x32xf32>
    %168 = vector.shape_cast %167 : vector<2x32x32xf32> to vector<64x32xf32>
    %c168 = arith.constant 168 : index
    %c0_62 = arith.constant 0 : index
    %169 = vector.load %arg2[%c168, %c0_62] : memref<2024x128xbf16, #tpu.memory_space<vmem>>, vector<32x32xbf16>
    %170 = arith.truncf %168 : vector<64x32xf32> to vector<64x32xbf16>
    %cst_63 = arith.constant dense<0.000000e+00> : vector<64x32xf32>
    %171 = tpu.matmul %170, %169, %cst_63 {dimension_numbers = #tpu.dot_dimension_numbers<[1], [0], [0], [1], [0, 0, 1, 1], [], []>} : vector<64x32xbf16>, vector<32x32xbf16>, vector<64x32xf32> -> vector<64x32xf32>
    %172 = vector.extract_strided_slice %166 {offsets = [0, 1, 0], sizes = [2, 32, 32], strides = [1, 1, 1]} : vector<2x34x32xf32> to vector<2x32x32xf32>
    %173 = vector.shape_cast %172 : vector<2x32x32xf32> to vector<64x32xf32>
    %c200 = arith.constant 200 : index
    %c0_64 = arith.constant 0 : index
    %174 = vector.load %arg2[%c200, %c0_64] : memref<2024x128xbf16, #tpu.memory_space<vmem>>, vector<32x32xbf16>
    %175 = arith.truncf %173 : vector<64x32xf32> to vector<64x32xbf16>
    %cst_65 = arith.constant dense<0.000000e+00> : vector<64x32xf32>
    %176 = tpu.matmul %175, %174, %cst_65 {dimension_numbers = #tpu.dot_dimension_numbers<[1], [0], [0], [1], [0, 0, 1, 1], [], []>} : vector<64x32xbf16>, vector<32x32xbf16>, vector<64x32xf32> -> vector<64x32xf32>
    %177 = arith.addf %171, %176 : vector<64x32xf32>
    %178 = vector.extract_strided_slice %166 {offsets = [0, 2, 0], sizes = [2, 32, 32], strides = [1, 1, 1]} : vector<2x34x32xf32> to vector<2x32x32xf32>
    %179 = vector.shape_cast %178 : vector<2x32x32xf32> to vector<64x32xf32>
    %c232 = arith.constant 232 : index
    %c0_66 = arith.constant 0 : index
    %180 = vector.load %arg2[%c232, %c0_66] : memref<2024x128xbf16, #tpu.memory_space<vmem>>, vector<32x32xbf16>
    %181 = arith.truncf %179 : vector<64x32xf32> to vector<64x32xbf16>
    %cst_67 = arith.constant dense<0.000000e+00> : vector<64x32xf32>
    %182 = tpu.matmul %181, %180, %cst_67 {dimension_numbers = #tpu.dot_dimension_numbers<[1], [0], [0], [1], [0, 0, 1, 1], [], []>} : vector<64x32xbf16>, vector<32x32xbf16>, vector<64x32xf32> -> vector<64x32xf32>
    %183 = arith.addf %177, %182 : vector<64x32xf32>
    %c8_68 = arith.constant 8 : index
    %c0_69 = arith.constant 0 : index
    %184 = vector.load %arg3[%c8_68, %c0_69] : memref<29x128xf32, #tpu.memory_space<vmem>>, vector<1x32xf32>
    %185 = vector.broadcast %184 : vector<1x32xf32> to vector<64x32xf32>
    %186 = arith.addf %183, %185 : vector<64x32xf32>
    %cst_70 = arith.constant dense<0.000000e+00> : vector<32xf32>
    %187 = vector.multi_reduction <add>, %186, %cst_70 [0] : vector<64x32xf32> to vector<32xf32>
    %188 = vector.shape_cast %187 : vector<32xf32> to vector<1x32xf32>
    %189 = arith.mulf %186, %186 : vector<64x32xf32>
    %cst_71 = arith.constant dense<0.000000e+00> : vector<32xf32>
    %190 = vector.multi_reduction <add>, %189, %cst_71 [0] : vector<64x32xf32> to vector<32xf32>
    %191 = vector.shape_cast %190 : vector<32xf32> to vector<1x32xf32>
    %cst_72 = arith.constant 1.562500e-02 : f32
    %192 = vector.broadcast %cst_72 : f32 to vector<1x32xf32>
    %193 = arith.mulf %188, %192 : vector<1x32xf32>
    %cst_73 = arith.constant 1.562500e-02 : f32
    %194 = vector.broadcast %cst_73 : f32 to vector<1x32xf32>
    %195 = arith.mulf %191, %194 : vector<1x32xf32>
    %196 = arith.mulf %193, %193 : vector<1x32xf32>
    %197 = arith.subf %195, %196 : vector<1x32xf32>
    %cst_74 = arith.constant 0.000000e+00 : f32
    %198 = vector.broadcast %cst_74 : f32 to vector<1x32xf32>
    %199 = arith.maximumf %197, %198 : vector<1x32xf32>
    %cst_75 = arith.constant 9.99999974E-6 : f32
    %200 = vector.broadcast %cst_75 : f32 to vector<1x32xf32>
    %201 = arith.addf %199, %200 : vector<1x32xf32>
    %202 = math.rsqrt %201 : vector<1x32xf32>
    %c9 = arith.constant 9 : index
    %c0_76 = arith.constant 0 : index
    %203 = vector.load %arg3[%c9, %c0_76] : memref<29x128xf32, #tpu.memory_space<vmem>>, vector<1x32xf32>
    %204 = arith.mulf %202, %203 : vector<1x32xf32>
    %205 = vector.broadcast %193 : vector<1x32xf32> to vector<64x32xf32>
    %206 = arith.subf %186, %205 : vector<64x32xf32>
    %207 = vector.broadcast %204 : vector<1x32xf32> to vector<64x32xf32>
    %208 = arith.mulf %206, %207 : vector<64x32xf32>
    %c10 = arith.constant 10 : index
    %c0_77 = arith.constant 0 : index
    %209 = vector.load %arg3[%c10, %c0_77] : memref<29x128xf32, #tpu.memory_space<vmem>>, vector<1x32xf32>
    %210 = vector.broadcast %209 : vector<1x32xf32> to vector<64x32xf32>
    %211 = arith.addf %208, %210 : vector<64x32xf32>
    %cst_78 = arith.constant 0.000000e+00 : f32
    %212 = vector.broadcast %cst_78 : f32 to vector<64x32xf32>
    %213 = arith.maximumf %211, %212 : vector<64x32xf32>
    %214 = vector.shape_cast %213 : vector<64x32xf32> to vector<2x32x32xf32>
    %cst_79 = arith.constant 0.000000e+00 : f32
    %215 = vector.broadcast %cst_79 : f32 to vector<2x1x32xf32>
    %216 = tpu.concatenate %215, %214, %215 in 1 : vector<2x1x32xf32>, vector<2x32x32xf32>, vector<2x1x32xf32> -> vector<2x34x32xf32>
    %217 = vector.extract_strided_slice %216 {offsets = [0, 0, 0], sizes = [2, 32, 32], strides = [1, 1, 1]} : vector<2x34x32xf32> to vector<2x32x32xf32>
    %218 = vector.shape_cast %217 : vector<2x32x32xf32> to vector<64x32xf32>
    %c264 = arith.constant 264 : index
    %c0_80 = arith.constant 0 : index
    %219 = vector.load %arg2[%c264, %c0_80] : memref<2024x128xbf16, #tpu.memory_space<vmem>>, vector<32x32xbf16>
    %220 = arith.truncf %218 : vector<64x32xf32> to vector<64x32xbf16>
    %cst_81 = arith.constant dense<0.000000e+00> : vector<64x32xf32>
    %221 = tpu.matmul %220, %219, %cst_81 {dimension_numbers = #tpu.dot_dimension_numbers<[1], [0], [0], [1], [0, 0, 1, 1], [], []>} : vector<64x32xbf16>, vector<32x32xbf16>, vector<64x32xf32> -> vector<64x32xf32>
    %222 = vector.extract_strided_slice %216 {offsets = [0, 1, 0], sizes = [2, 32, 32], strides = [1, 1, 1]} : vector<2x34x32xf32> to vector<2x32x32xf32>
    %223 = vector.shape_cast %222 : vector<2x32x32xf32> to vector<64x32xf32>
    %c296 = arith.constant 296 : index
    %c0_82 = arith.constant 0 : index
    %224 = vector.load %arg2[%c296, %c0_82] : memref<2024x128xbf16, #tpu.memory_space<vmem>>, vector<32x32xbf16>
    %225 = arith.truncf %223 : vector<64x32xf32> to vector<64x32xbf16>
    %cst_83 = arith.constant dense<0.000000e+00> : vector<64x32xf32>
    %226 = tpu.matmul %225, %224, %cst_83 {dimension_numbers = #tpu.dot_dimension_numbers<[1], [0], [0], [1], [0, 0, 1, 1], [], []>} : vector<64x32xbf16>, vector<32x32xbf16>, vector<64x32xf32> -> vector<64x32xf32>
    %227 = arith.addf %221, %226 : vector<64x32xf32>
    %228 = vector.extract_strided_slice %216 {offsets = [0, 2, 0], sizes = [2, 32, 32], strides = [1, 1, 1]} : vector<2x34x32xf32> to vector<2x32x32xf32>
    %229 = vector.shape_cast %228 : vector<2x32x32xf32> to vector<64x32xf32>
    %c328 = arith.constant 328 : index
    %c0_84 = arith.constant 0 : index
    %230 = vector.load %arg2[%c328, %c0_84] : memref<2024x128xbf16, #tpu.memory_space<vmem>>, vector<32x32xbf16>
    %231 = arith.truncf %229 : vector<64x32xf32> to vector<64x32xbf16>
    %cst_85 = arith.constant dense<0.000000e+00> : vector<64x32xf32>
    %232 = tpu.matmul %231, %230, %cst_85 {dimension_numbers = #tpu.dot_dimension_numbers<[1], [0], [0], [1], [0, 0, 1, 1], [], []>} : vector<64x32xbf16>, vector<32x32xbf16>, vector<64x32xf32> -> vector<64x32xf32>
    %233 = arith.addf %227, %232 : vector<64x32xf32>
    %c11 = arith.constant 11 : index
    %c0_86 = arith.constant 0 : index
    %234 = vector.load %arg3[%c11, %c0_86] : memref<29x128xf32, #tpu.memory_space<vmem>>, vector<1x32xf32>
    %235 = vector.broadcast %234 : vector<1x32xf32> to vector<64x32xf32>
    %236 = arith.addf %233, %235 : vector<64x32xf32>
    %cst_87 = arith.constant dense<0.000000e+00> : vector<32xf32>
    %237 = vector.multi_reduction <add>, %236, %cst_87 [0] : vector<64x32xf32> to vector<32xf32>
    %238 = vector.shape_cast %237 : vector<32xf32> to vector<1x32xf32>
    %239 = arith.mulf %236, %236 : vector<64x32xf32>
    %cst_88 = arith.constant dense<0.000000e+00> : vector<32xf32>
    %240 = vector.multi_reduction <add>, %239, %cst_88 [0] : vector<64x32xf32> to vector<32xf32>
    %241 = vector.shape_cast %240 : vector<32xf32> to vector<1x32xf32>
    %cst_89 = arith.constant 1.562500e-02 : f32
    %242 = vector.broadcast %cst_89 : f32 to vector<1x32xf32>
    %243 = arith.mulf %238, %242 : vector<1x32xf32>
    %cst_90 = arith.constant 1.562500e-02 : f32
    %244 = vector.broadcast %cst_90 : f32 to vector<1x32xf32>
    %245 = arith.mulf %241, %244 : vector<1x32xf32>
    %246 = arith.mulf %243, %243 : vector<1x32xf32>
    %247 = arith.subf %245, %246 : vector<1x32xf32>
    %cst_91 = arith.constant 0.000000e+00 : f32
    %248 = vector.broadcast %cst_91 : f32 to vector<1x32xf32>
    %249 = arith.maximumf %247, %248 : vector<1x32xf32>
    %cst_92 = arith.constant 9.99999974E-6 : f32
    %250 = vector.broadcast %cst_92 : f32 to vector<1x32xf32>
    %251 = arith.addf %249, %250 : vector<1x32xf32>
    %252 = math.rsqrt %251 : vector<1x32xf32>
    %c12 = arith.constant 12 : index
    %c0_93 = arith.constant 0 : index
    %253 = vector.load %arg3[%c12, %c0_93] : memref<29x128xf32, #tpu.memory_space<vmem>>, vector<1x32xf32>
    %254 = arith.mulf %252, %253 : vector<1x32xf32>
    %255 = vector.broadcast %243 : vector<1x32xf32> to vector<64x32xf32>
    %256 = arith.subf %236, %255 : vector<64x32xf32>
    %257 = vector.broadcast %254 : vector<1x32xf32> to vector<64x32xf32>
    %258 = arith.mulf %256, %257 : vector<64x32xf32>
    %c13 = arith.constant 13 : index
    %c0_94 = arith.constant 0 : index
    %259 = vector.load %arg3[%c13, %c0_94] : memref<29x128xf32, #tpu.memory_space<vmem>>, vector<1x32xf32>
    %260 = vector.broadcast %259 : vector<1x32xf32> to vector<64x32xf32>
    %261 = arith.addf %258, %260 : vector<64x32xf32>
    %262 = arith.addf %261, %163 : vector<64x32xf32>
    %cst_95 = arith.constant 0.000000e+00 : f32
    %263 = vector.broadcast %cst_95 : f32 to vector<64x32xf32>
    %264 = arith.maximumf %262, %263 : vector<64x32xf32>
    %c0_96 = arith.constant 0 : index
    %c0_97 = arith.constant 0 : index
    %265 = vector.load %arg6[%c0_96, %c0_97] : memref<64x32xf32, #tpu.memory_space<vmem>>, vector<64x32xf32>
    tpu.vector_store %arg6[%c0_96, %c0_97], %264 {strides = array<i32>} : memref<64x32xf32, #tpu.memory_space<vmem>>, vector<64x32xf32>,
    %c0_98 = arith.constant 0 : index
    %c0_99 = arith.constant 0 : index
    %266 = tpu.strided_load %arg6[%c0_98, %c0_99] {strides = array<i32: 2, 1>} : memref<64x32xf32, #tpu.memory_space<vmem>>, vector<32x32xf32>
    %267 = vector.shape_cast %266 : vector<32x32xf32> to vector<2x16x32xf32>
    %c1_100 = arith.constant 1 : index
    %c0_101 = arith.constant 0 : index
    %268 = tpu.strided_load %arg6[%c1_100, %c0_101] {strides = array<i32: 2, 1>} : memref<64x32xf32, #tpu.memory_space<vmem>>, vector<32x32xf32>
    %269 = vector.shape_cast %268 : vector<32x32xf32> to vector<2x16x32xf32>
    %cst_102 = arith.constant 0.000000e+00 : f32
    %270 = vector.broadcast %cst_102 : f32 to vector<2x1x32xf32>
    %271 = vector.extract_strided_slice %269 {offsets = [0, 0, 0], sizes = [2, 15, 32], strides = [1, 1, 1]} : vector<2x16x32xf32> to vector<2x15x32xf32>
    %272 = tpu.concatenate %270, %271 in 1 : vector<2x1x32xf32>, vector<2x15x32xf32> -> vector<2x16x32xf32>
    %273 = vector.extract_strided_slice %267 {offsets = [0, 1, 0], sizes = [2, 15, 32], strides = [1, 1, 1]} : vector<2x16x32xf32> to vector<2x15x32xf32>
    %274 = tpu.concatenate %273, %270 in 1 : vector<2x15x32xf32>, vector<2x1x32xf32> -> vector<2x16x32xf32>
    %275 = vector.shape_cast %272 : vector<2x16x32xf32> to vector<32x32xf32>
    %c360 = arith.constant 360 : index
    %c0_103 = arith.constant 0 : index
    %276 = vector.load %arg2[%c360, %c0_103] : memref<2024x128xbf16, #tpu.memory_space<vmem>>, vector<32x64xbf16>
    %277 = arith.truncf %275 : vector<32x32xf32> to vector<32x32xbf16>
    %cst_104 = arith.constant dense<0.000000e+00> : vector<32x64xf32>
    %278 = tpu.matmul %277, %276, %cst_104 {dimension_numbers = #tpu.dot_dimension_numbers<[1], [0], [0], [1], [0, 0, 1, 1], [], []>} : vector<32x32xbf16>, vector<32x64xbf16>, vector<32x64xf32> -> vector<32x64xf32>
    %279 = vector.shape_cast %267 : vector<2x16x32xf32> to vector<32x32xf32>
    %c392 = arith.constant 392 : index
    %c0_105 = arith.constant 0 : index
    %280 = vector.load %arg2[%c392, %c0_105] : memref<2024x128xbf16, #tpu.memory_space<vmem>>, vector<32x64xbf16>
    %281 = arith.truncf %279 : vector<32x32xf32> to vector<32x32xbf16>
    %cst_106 = arith.constant dense<0.000000e+00> : vector<32x64xf32>
    %282 = tpu.matmul %281, %280, %cst_106 {dimension_numbers = #tpu.dot_dimension_numbers<[1], [0], [0], [1], [0, 0, 1, 1], [], []>} : vector<32x32xbf16>, vector<32x64xbf16>, vector<32x64xf32> -> vector<32x64xf32>
    %283 = arith.addf %278, %282 : vector<32x64xf32>
    %284 = vector.shape_cast %269 : vector<2x16x32xf32> to vector<32x32xf32>
    %c424 = arith.constant 424 : index
    %c0_107 = arith.constant 0 : index
    %285 = vector.load %arg2[%c424, %c0_107] : memref<2024x128xbf16, #tpu.memory_space<vmem>>, vector<32x64xbf16>
    %286 = arith.truncf %284 : vector<32x32xf32> to vector<32x32xbf16>
    %cst_108 = arith.constant dense<0.000000e+00> : vector<32x64xf32>
    %287 = tpu.matmul %286, %285, %cst_108 {dimension_numbers = #tpu.dot_dimension_numbers<[1], [0], [0], [1], [0, 0, 1, 1], [], []>} : vector<32x32xbf16>, vector<32x64xbf16>, vector<32x64xf32> -> vector<32x64xf32>
    %288 = arith.addf %283, %287 : vector<32x64xf32>
    %289 = vector.shape_cast %274 : vector<2x16x32xf32> to vector<32x32xf32>
    %c456 = arith.constant 456 : index
    %c0_109 = arith.constant 0 : index
    %290 = vector.load %arg2[%c456, %c0_109] : memref<2024x128xbf16, #tpu.memory_space<vmem>>, vector<32x64xbf16>
    %291 = arith.truncf %289 : vector<32x32xf32> to vector<32x32xbf16>
    %cst_110 = arith.constant dense<0.000000e+00> : vector<32x64xf32>
    %292 = tpu.matmul %291, %290, %cst_110 {dimension_numbers = #tpu.dot_dimension_numbers<[1], [0], [0], [1], [0, 0, 1, 1], [], []>} : vector<32x32xbf16>, vector<32x64xbf16>, vector<32x64xf32> -> vector<32x64xf32>
    %293 = arith.addf %288, %292 : vector<32x64xf32>
    %c14 = arith.constant 14 : index
    %c0_111 = arith.constant 0 : index
    %294 = vector.load %arg3[%c14, %c0_111] : memref<29x128xf32, #tpu.memory_space<vmem>>, vector<1x64xf32>
    %295 = vector.broadcast %294 : vector<1x64xf32> to vector<32x64xf32>
    %296 = arith.addf %293, %295 : vector<32x64xf32>
    %297 = vector.shape_cast %296 : vector<32x64xf32> to vector<2x16x64xf32>
    %cst_112 = arith.constant 0.000000e+00 : f32
    %298 = vector.broadcast %cst_112 : f32 to vector<2x1x64xf32>
    %299 = tpu.concatenate %298, %297, %298 in 1 : vector<2x1x64xf32>, vector<2x16x64xf32>, vector<2x1x64xf32> -> vector<2x18x64xf32>
    %300 = vector.extract_strided_slice %299 {offsets = [0, 0, 0], sizes = [2, 16, 64], strides = [1, 1, 1]} : vector<2x18x64xf32> to vector<2x16x64xf32>
    %301 = vector.shape_cast %300 : vector<2x16x64xf32> to vector<32x64xf32>
    %c488 = arith.constant 488 : index
    %c0_113 = arith.constant 0 : index
    %302 = vector.load %arg2[%c488, %c0_113] : memref<2024x128xbf16, #tpu.memory_space<vmem>>, vector<64x64xbf16>
    %303 = arith.truncf %301 : vector<32x64xf32> to vector<32x64xbf16>
    %cst_114 = arith.constant dense<0.000000e+00> : vector<32x64xf32>
    %304 = tpu.matmul %303, %302, %cst_114 {dimension_numbers = #tpu.dot_dimension_numbers<[1], [0], [0], [1], [0, 0, 1, 1], [], []>} : vector<32x64xbf16>, vector<64x64xbf16>, vector<32x64xf32> -> vector<32x64xf32>
    %305 = vector.extract_strided_slice %299 {offsets = [0, 1, 0], sizes = [2, 16, 64], strides = [1, 1, 1]} : vector<2x18x64xf32> to vector<2x16x64xf32>
    %306 = vector.shape_cast %305 : vector<2x16x64xf32> to vector<32x64xf32>
    %c552 = arith.constant 552 : index
    %c0_115 = arith.constant 0 : index
    %307 = vector.load %arg2[%c552, %c0_115] : memref<2024x128xbf16, #tpu.memory_space<vmem>>, vector<64x64xbf16>
    %308 = arith.truncf %306 : vector<32x64xf32> to vector<32x64xbf16>
    %cst_116 = arith.constant dense<0.000000e+00> : vector<32x64xf32>
    %309 = tpu.matmul %308, %307, %cst_116 {dimension_numbers = #tpu.dot_dimension_numbers<[1], [0], [0], [1], [0, 0, 1, 1], [], []>} : vector<32x64xbf16>, vector<64x64xbf16>, vector<32x64xf32> -> vector<32x64xf32>
    %310 = arith.addf %304, %309 : vector<32x64xf32>
    %311 = vector.extract_strided_slice %299 {offsets = [0, 2, 0], sizes = [2, 16, 64], strides = [1, 1, 1]} : vector<2x18x64xf32> to vector<2x16x64xf32>
    %312 = vector.shape_cast %311 : vector<2x16x64xf32> to vector<32x64xf32>
    %c616 = arith.constant 616 : index
    %c0_117 = arith.constant 0 : index
    %313 = vector.load %arg2[%c616, %c0_117] : memref<2024x128xbf16, #tpu.memory_space<vmem>>, vector<64x64xbf16>
    %314 = arith.truncf %312 : vector<32x64xf32> to vector<32x64xbf16>
    %cst_118 = arith.constant dense<0.000000e+00> : vector<32x64xf32>
    %315 = tpu.matmul %314, %313, %cst_118 {dimension_numbers = #tpu.dot_dimension_numbers<[1], [0], [0], [1], [0, 0, 1, 1], [], []>} : vector<32x64xbf16>, vector<64x64xbf16>, vector<32x64xf32> -> vector<32x64xf32>
    %316 = arith.addf %310, %315 : vector<32x64xf32>
    %c15 = arith.constant 15 : index
    %c0_119 = arith.constant 0 : index
    %317 = vector.load %arg3[%c15, %c0_119] : memref<29x128xf32, #tpu.memory_space<vmem>>, vector<1x64xf32>
    %318 = vector.broadcast %317 : vector<1x64xf32> to vector<32x64xf32>
    %319 = arith.addf %316, %318 : vector<32x64xf32>
    %cst_120 = arith.constant dense<0.000000e+00> : vector<64xf32>
    %320 = vector.multi_reduction <add>, %319, %cst_120 [0] : vector<32x64xf32> to vector<64xf32>
    %321 = vector.shape_cast %320 : vector<64xf32> to vector<1x64xf32>
    %322 = arith.mulf %319, %319 : vector<32x64xf32>
    %cst_121 = arith.constant dense<0.000000e+00> : vector<64xf32>
    %323 = vector.multi_reduction <add>, %322, %cst_121 [0] : vector<32x64xf32> to vector<64xf32>
    %324 = vector.shape_cast %323 : vector<64xf32> to vector<1x64xf32>
    %cst_122 = arith.constant 3.125000e-02 : f32
    %325 = vector.broadcast %cst_122 : f32 to vector<1x64xf32>
    %326 = arith.mulf %321, %325 : vector<1x64xf32>
    %cst_123 = arith.constant 3.125000e-02 : f32
    %327 = vector.broadcast %cst_123 : f32 to vector<1x64xf32>
    %328 = arith.mulf %324, %327 : vector<1x64xf32>
    %329 = arith.mulf %326, %326 : vector<1x64xf32>
    %330 = arith.subf %328, %329 : vector<1x64xf32>
    %cst_124 = arith.constant 0.000000e+00 : f32
    %331 = vector.broadcast %cst_124 : f32 to vector<1x64xf32>
    %332 = arith.maximumf %330, %331 : vector<1x64xf32>
    %cst_125 = arith.constant 9.99999974E-6 : f32
    %333 = vector.broadcast %cst_125 : f32 to vector<1x64xf32>
    %334 = arith.addf %332, %333 : vector<1x64xf32>
    %335 = math.rsqrt %334 : vector<1x64xf32>
    %c16 = arith.constant 16 : index
    %c0_126 = arith.constant 0 : index
    %336 = vector.load %arg3[%c16, %c0_126] : memref<29x128xf32, #tpu.memory_space<vmem>>, vector<1x64xf32>
    %337 = arith.mulf %335, %336 : vector<1x64xf32>
    %338 = vector.broadcast %326 : vector<1x64xf32> to vector<32x64xf32>
    %339 = arith.subf %319, %338 : vector<32x64xf32>
    %340 = vector.broadcast %337 : vector<1x64xf32> to vector<32x64xf32>
    %341 = arith.mulf %339, %340 : vector<32x64xf32>
    %c17 = arith.constant 17 : index
    %c0_127 = arith.constant 0 : index
    %342 = vector.load %arg3[%c17, %c0_127] : memref<29x128xf32, #tpu.memory_space<vmem>>, vector<1x64xf32>
    %343 = vector.broadcast %342 : vector<1x64xf32> to vector<32x64xf32>
    %344 = arith.addf %341, %343 : vector<32x64xf32>
    %cst_128 = arith.constant 0.000000e+00 : f32
    %345 = vector.broadcast %cst_128 : f32 to vector<32x64xf32>
    %346 = arith.maximumf %344, %345 : vector<32x64xf32>
    %347 = vector.shape_cast %346 : vector<32x64xf32> to vector<2x16x64xf32>
    %cst_129 = arith.constant 0.000000e+00 : f32
    %348 = vector.broadcast %cst_129 : f32 to vector<2x1x64xf32>
    %349 = tpu.concatenate %348, %347, %348 in 1 : vector<2x1x64xf32>, vector<2x16x64xf32>, vector<2x1x64xf32> -> vector<2x18x64xf32>
    %350 = vector.extract_strided_slice %349 {offsets = [0, 0, 0], sizes = [2, 16, 64], strides = [1, 1, 1]} : vector<2x18x64xf32> to vector<2x16x64xf32>
    %351 = vector.shape_cast %350 : vector<2x16x64xf32> to vector<32x64xf32>
    %c680 = arith.constant 680 : index
    %c0_130 = arith.constant 0 : index
    %352 = vector.load %arg2[%c680, %c0_130] : memref<2024x128xbf16, #tpu.memory_space<vmem>>, vector<64x64xbf16>
    %353 = arith.truncf %351 : vector<32x64xf32> to vector<32x64xbf16>
    %cst_131 = arith.constant dense<0.000000e+00> : vector<32x64xf32>
    %354 = tpu.matmul %353, %352, %cst_131 {dimension_numbers = #tpu.dot_dimension_numbers<[1], [0], [0], [1], [0, 0, 1, 1], [], []>} : vector<32x64xbf16>, vector<64x64xbf16>, vector<32x64xf32> -> vector<32x64xf32>
    %355 = vector.extract_strided_slice %349 {offsets = [0, 1, 0], sizes = [2, 16, 64], strides = [1, 1, 1]} : vector<2x18x64xf32> to vector<2x16x64xf32>
    %356 = vector.shape_cast %355 : vector<2x16x64xf32> to vector<32x64xf32>
    %c744 = arith.constant 744 : index
    %c0_132 = arith.constant 0 : index
    %357 = vector.load %arg2[%c744, %c0_132] : memref<2024x128xbf16, #tpu.memory_space<vmem>>, vector<64x64xbf16>
    %358 = arith.truncf %356 : vector<32x64xf32> to vector<32x64xbf16>
    %cst_133 = arith.constant dense<0.000000e+00> : vector<32x64xf32>
    %359 = tpu.matmul %358, %357, %cst_133 {dimension_numbers = #tpu.dot_dimension_numbers<[1], [0], [0], [1], [0, 0, 1, 1], [], []>} : vector<32x64xbf16>, vector<64x64xbf16>, vector<32x64xf32> -> vector<32x64xf32>
    %360 = arith.addf %354, %359 : vector<32x64xf32>
    %361 = vector.extract_strided_slice %349 {offsets = [0, 2, 0], sizes = [2, 16, 64], strides = [1, 1, 1]} : vector<2x18x64xf32> to vector<2x16x64xf32>
    %362 = vector.shape_cast %361 : vector<2x16x64xf32> to vector<32x64xf32>
    %c808 = arith.constant 808 : index
    %c0_134 = arith.constant 0 : index
    %363 = vector.load %arg2[%c808, %c0_134] : memref<2024x128xbf16, #tpu.memory_space<vmem>>, vector<64x64xbf16>
    %364 = arith.truncf %362 : vector<32x64xf32> to vector<32x64xbf16>
    %cst_135 = arith.constant dense<0.000000e+00> : vector<32x64xf32>
    %365 = tpu.matmul %364, %363, %cst_135 {dimension_numbers = #tpu.dot_dimension_numbers<[1], [0], [0], [1], [0, 0, 1, 1], [], []>} : vector<32x64xbf16>, vector<64x64xbf16>, vector<32x64xf32> -> vector<32x64xf32>
    %366 = arith.addf %360, %365 : vector<32x64xf32>
    %c18 = arith.constant 18 : index
    %c0_136 = arith.constant 0 : index
    %367 = vector.load %arg3[%c18, %c0_136] : memref<29x128xf32, #tpu.memory_space<vmem>>, vector<1x64xf32>
    %368 = vector.broadcast %367 : vector<1x64xf32> to vector<32x64xf32>
    %369 = arith.addf %366, %368 : vector<32x64xf32>
    %cst_137 = arith.constant dense<0.000000e+00> : vector<64xf32>
    %370 = vector.multi_reduction <add>, %369, %cst_137 [0] : vector<32x64xf32> to vector<64xf32>
    %371 = vector.shape_cast %370 : vector<64xf32> to vector<1x64xf32>
    %372 = arith.mulf %369, %369 : vector<32x64xf32>
    %cst_138 = arith.constant dense<0.000000e+00> : vector<64xf32>
    %373 = vector.multi_reduction <add>, %372, %cst_138 [0] : vector<32x64xf32> to vector<64xf32>
    %374 = vector.shape_cast %373 : vector<64xf32> to vector<1x64xf32>
    %cst_139 = arith.constant 3.125000e-02 : f32
    %375 = vector.broadcast %cst_139 : f32 to vector<1x64xf32>
    %376 = arith.mulf %371, %375 : vector<1x64xf32>
    %cst_140 = arith.constant 3.125000e-02 : f32
    %377 = vector.broadcast %cst_140 : f32 to vector<1x64xf32>
    %378 = arith.mulf %374, %377 : vector<1x64xf32>
    %379 = arith.mulf %376, %376 : vector<1x64xf32>
    %380 = arith.subf %378, %379 : vector<1x64xf32>
    %cst_141 = arith.constant 0.000000e+00 : f32
    %381 = vector.broadcast %cst_141 : f32 to vector<1x64xf32>
    %382 = arith.maximumf %380, %381 : vector<1x64xf32>
    %cst_142 = arith.constant 9.99999974E-6 : f32
    %383 = vector.broadcast %cst_142 : f32 to vector<1x64xf32>
    %384 = arith.addf %382, %383 : vector<1x64xf32>
    %385 = math.rsqrt %384 : vector<1x64xf32>
    %c19 = arith.constant 19 : index
    %c0_143 = arith.constant 0 : index
    %386 = vector.load %arg3[%c19, %c0_143] : memref<29x128xf32, #tpu.memory_space<vmem>>, vector<1x64xf32>
    %387 = arith.mulf %385, %386 : vector<1x64xf32>
    %388 = vector.broadcast %376 : vector<1x64xf32> to vector<32x64xf32>
    %389 = arith.subf %369, %388 : vector<32x64xf32>
    %390 = vector.broadcast %387 : vector<1x64xf32> to vector<32x64xf32>
    %391 = arith.mulf %389, %390 : vector<32x64xf32>
    %c20 = arith.constant 20 : index
    %c0_144 = arith.constant 0 : index
    %392 = vector.load %arg3[%c20, %c0_144] : memref<29x128xf32, #tpu.memory_space<vmem>>, vector<1x64xf32>
    %393 = vector.broadcast %392 : vector<1x64xf32> to vector<32x64xf32>
    %394 = arith.addf %391, %393 : vector<32x64xf32>
    %395 = arith.addf %394, %296 : vector<32x64xf32>
    %cst_145 = arith.constant 0.000000e+00 : f32
    %396 = vector.broadcast %cst_145 : f32 to vector<32x64xf32>
    %397 = arith.maximumf %395, %396 : vector<32x64xf32>
    %c0_146 = arith.constant 0 : index
    %c0_147 = arith.constant 0 : index
    %398 = vector.load %arg7[%c0_146, %c0_147] : memref<32x64xf32, #tpu.memory_space<vmem>>, vector<32x64xf32>
    tpu.vector_store %arg7[%c0_146, %c0_147], %397 {strides = array<i32>} : memref<32x64xf32, #tpu.memory_space<vmem>>, vector<32x64xf32>,
    %c0_148 = arith.constant 0 : index
    %c0_149 = arith.constant 0 : index
    %399 = tpu.strided_load %arg7[%c0_148, %c0_149] {strides = array<i32: 2, 1>} : memref<32x64xf32, #tpu.memory_space<vmem>>, vector<16x64xf32>
    %400 = vector.shape_cast %399 : vector<16x64xf32> to vector<2x8x64xf32>
    %c1_150 = arith.constant 1 : index
    %c0_151 = arith.constant 0 : index
    %401 = tpu.strided_load %arg7[%c1_150, %c0_151] {strides = array<i32: 2, 1>} : memref<32x64xf32, #tpu.memory_space<vmem>>, vector<16x64xf32>
    %402 = vector.shape_cast %401 : vector<16x64xf32> to vector<2x8x64xf32>
    %cst_152 = arith.constant 0.000000e+00 : f32
    %403 = vector.broadcast %cst_152 : f32 to vector<2x1x64xf32>
    %404 = vector.extract_strided_slice %402 {offsets = [0, 0, 0], sizes = [2, 7, 64], strides = [1, 1, 1]} : vector<2x8x64xf32> to vector<2x7x64xf32>
    %405 = tpu.concatenate %403, %404 in 1 : vector<2x1x64xf32>, vector<2x7x64xf32> -> vector<2x8x64xf32>
    %406 = vector.extract_strided_slice %400 {offsets = [0, 1, 0], sizes = [2, 7, 64], strides = [1, 1, 1]} : vector<2x8x64xf32> to vector<2x7x64xf32>
    %407 = tpu.concatenate %406, %403 in 1 : vector<2x7x64xf32>, vector<2x1x64xf32> -> vector<2x8x64xf32>
    %408 = vector.shape_cast %405 : vector<2x8x64xf32> to vector<16x64xf32>
    %c872 = arith.constant 872 : index
    %c0_153 = arith.constant 0 : index
    %409 = vector.load %arg2[%c872, %c0_153] : memref<2024x128xbf16, #tpu.memory_space<vmem>>, vector<64x128xbf16>
    %410 = arith.truncf %408 : vector<16x64xf32> to vector<16x64xbf16>
    %cst_154 = arith.constant dense<0.000000e+00> : vector<16x128xf32>
    %411 = tpu.matmul %410, %409, %cst_154 {dimension_numbers = #tpu.dot_dimension_numbers<[1], [0], [0], [1], [0, 0, 1, 1], [], []>} : vector<16x64xbf16>, vector<64x128xbf16>, vector<16x128xf32> -> vector<16x128xf32>
    %412 = vector.shape_cast %400 : vector<2x8x64xf32> to vector<16x64xf32>
    %c936 = arith.constant 936 : index
    %c0_155 = arith.constant 0 : index
    %413 = vector.load %arg2[%c936, %c0_155] : memref<2024x128xbf16, #tpu.memory_space<vmem>>, vector<64x128xbf16>
    %414 = arith.truncf %412 : vector<16x64xf32> to vector<16x64xbf16>
    %cst_156 = arith.constant dense<0.000000e+00> : vector<16x128xf32>
    %415 = tpu.matmul %414, %413, %cst_156 {dimension_numbers = #tpu.dot_dimension_numbers<[1], [0], [0], [1], [0, 0, 1, 1], [], []>} : vector<16x64xbf16>, vector<64x128xbf16>, vector<16x128xf32> -> vector<16x128xf32>
    %416 = arith.addf %411, %415 : vector<16x128xf32>
    %417 = vector.shape_cast %402 : vector<2x8x64xf32> to vector<16x64xf32>
    %c1000 = arith.constant 1000 : index
    %c0_157 = arith.constant 0 : index
    %418 = vector.load %arg2[%c1000, %c0_157] : memref<2024x128xbf16, #tpu.memory_space<vmem>>, vector<64x128xbf16>
    %419 = arith.truncf %417 : vector<16x64xf32> to vector<16x64xbf16>
    %cst_158 = arith.constant dense<0.000000e+00> : vector<16x128xf32>
    %420 = tpu.matmul %419, %418, %cst_158 {dimension_numbers = #tpu.dot_dimension_numbers<[1], [0], [0], [1], [0, 0, 1, 1], [], []>} : vector<16x64xbf16>, vector<64x128xbf16>, vector<16x128xf32> -> vector<16x128xf32>
    %421 = arith.addf %416, %420 : vector<16x128xf32>
    %422 = vector.shape_cast %407 : vector<2x8x64xf32> to vector<16x64xf32>
    %c1064 = arith.constant 1064 : index
    %c0_159 = arith.constant 0 : index
    %423 = vector.load %arg2[%c1064, %c0_159] : memref<2024x128xbf16, #tpu.memory_space<vmem>>, vector<64x128xbf16>
    %424 = arith.truncf %422 : vector<16x64xf32> to vector<16x64xbf16>
    %cst_160 = arith.constant dense<0.000000e+00> : vector<16x128xf32>
    %425 = tpu.matmul %424, %423, %cst_160 {dimension_numbers = #tpu.dot_dimension_numbers<[1], [0], [0], [1], [0, 0, 1, 1], [], []>} : vector<16x64xbf16>, vector<64x128xbf16>, vector<16x128xf32> -> vector<16x128xf32>
    %426 = arith.addf %421, %425 : vector<16x128xf32>
    %c21 = arith.constant 21 : index
    %c0_161 = arith.constant 0 : index
    %427 = vector.load %arg3[%c21, %c0_161] : memref<29x128xf32, #tpu.memory_space<vmem>>, vector<1x128xf32>
    %428 = vector.broadcast %427 : vector<1x128xf32> to vector<16x128xf32>
    %429 = arith.addf %426, %428 : vector<16x128xf32>
    %430 = vector.shape_cast %429 : vector<16x128xf32> to vector<2x8x128xf32>
    %cst_162 = arith.constant 0.000000e+00 : f32
    %431 = vector.broadcast %cst_162 : f32 to vector<2x1x128xf32>
    %432 = tpu.concatenate %431, %430, %431 in 1 : vector<2x1x128xf32>, vector<2x8x128xf32>, vector<2x1x128xf32> -> vector<2x10x128xf32>
    %433 = vector.extract_strided_slice %432 {offsets = [0, 0, 0], sizes = [2, 8, 128], strides = [1, 1, 1]} : vector<2x10x128xf32> to vector<2x8x128xf32>
    %434 = vector.shape_cast %433 : vector<2x8x128xf32> to vector<16x128xf32>
    %c1128 = arith.constant 1128 : index
    %c0_163 = arith.constant 0 : index
    %435 = vector.load %arg2[%c1128, %c0_163] : memref<2024x128xbf16, #tpu.memory_space<vmem>>, vector<128x128xbf16>
    %436 = arith.truncf %434 : vector<16x128xf32> to vector<16x128xbf16>
    %cst_164 = arith.constant dense<0.000000e+00> : vector<16x128xf32>
    %437 = tpu.matmul %436, %435, %cst_164 {dimension_numbers = #tpu.dot_dimension_numbers<[1], [0], [0], [1], [0, 0, 1, 1], [], []>} : vector<16x128xbf16>, vector<128x128xbf16>, vector<16x128xf32> -> vector<16x128xf32>
    %438 = vector.extract_strided_slice %432 {offsets = [0, 1, 0], sizes = [2, 8, 128], strides = [1, 1, 1]} : vector<2x10x128xf32> to vector<2x8x128xf32>
    %439 = vector.shape_cast %438 : vector<2x8x128xf32> to vector<16x128xf32>
    %c1256 = arith.constant 1256 : index
    %c0_165 = arith.constant 0 : index
    %440 = vector.load %arg2[%c1256, %c0_165] : memref<2024x128xbf16, #tpu.memory_space<vmem>>, vector<128x128xbf16>
    %441 = arith.truncf %439 : vector<16x128xf32> to vector<16x128xbf16>
    %cst_166 = arith.constant dense<0.000000e+00> : vector<16x128xf32>
    %442 = tpu.matmul %441, %440, %cst_166 {dimension_numbers = #tpu.dot_dimension_numbers<[1], [0], [0], [1], [0, 0, 1, 1], [], []>} : vector<16x128xbf16>, vector<128x128xbf16>, vector<16x128xf32> -> vector<16x128xf32>
    %443 = arith.addf %437, %442 : vector<16x128xf32>
    %444 = vector.extract_strided_slice %432 {offsets = [0, 2, 0], sizes = [2, 8, 128], strides = [1, 1, 1]} : vector<2x10x128xf32> to vector<2x8x128xf32>
    %445 = vector.shape_cast %444 : vector<2x8x128xf32> to vector<16x128xf32>
    %c1384 = arith.constant 1384 : index
    %c0_167 = arith.constant 0 : index
    %446 = vector.load %arg2[%c1384, %c0_167] : memref<2024x128xbf16, #tpu.memory_space<vmem>>, vector<128x128xbf16>
    %447 = arith.truncf %445 : vector<16x128xf32> to vector<16x128xbf16>
    %cst_168 = arith.constant dense<0.000000e+00> : vector<16x128xf32>
    %448 = tpu.matmul %447, %446, %cst_168 {dimension_numbers = #tpu.dot_dimension_numbers<[1], [0], [0], [1], [0, 0, 1, 1], [], []>} : vector<16x128xbf16>, vector<128x128xbf16>, vector<16x128xf32> -> vector<16x128xf32>
    %449 = arith.addf %443, %448 : vector<16x128xf32>
    %c22 = arith.constant 22 : index
    %c0_169 = arith.constant 0 : index
    %450 = vector.load %arg3[%c22, %c0_169] : memref<29x128xf32, #tpu.memory_space<vmem>>, vector<1x128xf32>
    %451 = vector.broadcast %450 : vector<1x128xf32> to vector<16x128xf32>
    %452 = arith.addf %449, %451 : vector<16x128xf32>
    %cst_170 = arith.constant dense<0.000000e+00> : vector<128xf32>
    %453 = vector.multi_reduction <add>, %452, %cst_170 [0] : vector<16x128xf32> to vector<128xf32>
    %454 = vector.shape_cast %453 : vector<128xf32> to vector<1x128xf32>
    %455 = arith.mulf %452, %452 : vector<16x128xf32>
    %cst_171 = arith.constant dense<0.000000e+00> : vector<128xf32>
    %456 = vector.multi_reduction <add>, %455, %cst_171 [0] : vector<16x128xf32> to vector<128xf32>
    %457 = vector.shape_cast %456 : vector<128xf32> to vector<1x128xf32>
    %cst_172 = arith.constant 6.250000e-02 : f32
    %458 = vector.broadcast %cst_172 : f32 to vector<1x128xf32>
    %459 = arith.mulf %454, %458 : vector<1x128xf32>
    %cst_173 = arith.constant 6.250000e-02 : f32
    %460 = vector.broadcast %cst_173 : f32 to vector<1x128xf32>
    %461 = arith.mulf %457, %460 : vector<1x128xf32>
    %462 = arith.mulf %459, %459 : vector<1x128xf32>
    %463 = arith.subf %461, %462 : vector<1x128xf32>
    %cst_174 = arith.constant 0.000000e+00 : f32
    %464 = vector.broadcast %cst_174 : f32 to vector<1x128xf32>
    %465 = arith.maximumf %463, %464 : vector<1x128xf32>
    %cst_175 = arith.constant 9.99999974E-6 : f32
    %466 = vector.broadcast %cst_175 : f32 to vector<1x128xf32>
    %467 = arith.addf %465, %466 : vector<1x128xf32>
    %468 = math.rsqrt %467 : vector<1x128xf32>
    %c23 = arith.constant 23 : index
    %c0_176 = arith.constant 0 : index
    %469 = vector.load %arg3[%c23, %c0_176] : memref<29x128xf32, #tpu.memory_space<vmem>>, vector<1x128xf32>
    %470 = arith.mulf %468, %469 : vector<1x128xf32>
    %471 = vector.broadcast %459 : vector<1x128xf32> to vector<16x128xf32>
    %472 = arith.subf %452, %471 : vector<16x128xf32>
    %473 = vector.broadcast %470 : vector<1x128xf32> to vector<16x128xf32>
    %474 = arith.mulf %472, %473 : vector<16x128xf32>
    %c24_177 = arith.constant 24 : index
    %c0_178 = arith.constant 0 : index
    %475 = vector.load %arg3[%c24_177, %c0_178] : memref<29x128xf32, #tpu.memory_space<vmem>>, vector<1x128xf32>
    %476 = vector.broadcast %475 : vector<1x128xf32> to vector<16x128xf32>
    %477 = arith.addf %474, %476 : vector<16x128xf32>
    %cst_179 = arith.constant 0.000000e+00 : f32
    %478 = vector.broadcast %cst_179 : f32 to vector<16x128xf32>
    %479 = arith.maximumf %477, %478 : vector<16x128xf32>
    %480 = vector.shape_cast %479 : vector<16x128xf32> to vector<2x8x128xf32>
    %cst_180 = arith.constant 0.000000e+00 : f32
    %481 = vector.broadcast %cst_180 : f32 to vector<2x1x128xf32>
    %482 = tpu.concatenate %481, %480, %481 in 1 : vector<2x1x128xf32>, vector<2x8x128xf32>, vector<2x1x128xf32> -> vector<2x10x128xf32>
    %483 = vector.extract_strided_slice %482 {offsets = [0, 0, 0], sizes = [2, 8, 128], strides = [1, 1, 1]} : vector<2x10x128xf32> to vector<2x8x128xf32>
    %484 = vector.shape_cast %483 : vector<2x8x128xf32> to vector<16x128xf32>
    %c1512 = arith.constant 1512 : index
    %c0_181 = arith.constant 0 : index
    %485 = vector.load %arg2[%c1512, %c0_181] : memref<2024x128xbf16, #tpu.memory_space<vmem>>, vector<128x128xbf16>
    %486 = arith.truncf %484 : vector<16x128xf32> to vector<16x128xbf16>
    %cst_182 = arith.constant dense<0.000000e+00> : vector<16x128xf32>
    %487 = tpu.matmul %486, %485, %cst_182 {dimension_numbers = #tpu.dot_dimension_numbers<[1], [0], [0], [1], [0, 0, 1, 1], [], []>} : vector<16x128xbf16>, vector<128x128xbf16>, vector<16x128xf32> -> vector<16x128xf32>
    %488 = vector.extract_strided_slice %482 {offsets = [0, 1, 0], sizes = [2, 8, 128], strides = [1, 1, 1]} : vector<2x10x128xf32> to vector<2x8x128xf32>
    %489 = vector.shape_cast %488 : vector<2x8x128xf32> to vector<16x128xf32>
    %c1640 = arith.constant 1640 : index
    %c0_183 = arith.constant 0 : index
    %490 = vector.load %arg2[%c1640, %c0_183] : memref<2024x128xbf16, #tpu.memory_space<vmem>>, vector<128x128xbf16>
    %491 = arith.truncf %489 : vector<16x128xf32> to vector<16x128xbf16>
    %cst_184 = arith.constant dense<0.000000e+00> : vector<16x128xf32>
    %492 = tpu.matmul %491, %490, %cst_184 {dimension_numbers = #tpu.dot_dimension_numbers<[1], [0], [0], [1], [0, 0, 1, 1], [], []>} : vector<16x128xbf16>, vector<128x128xbf16>, vector<16x128xf32> -> vector<16x128xf32>
    %493 = arith.addf %487, %492 : vector<16x128xf32>
    %494 = vector.extract_strided_slice %482 {offsets = [0, 2, 0], sizes = [2, 8, 128], strides = [1, 1, 1]} : vector<2x10x128xf32> to vector<2x8x128xf32>
    %495 = vector.shape_cast %494 : vector<2x8x128xf32> to vector<16x128xf32>
    %c1768 = arith.constant 1768 : index
    %c0_185 = arith.constant 0 : index
    %496 = vector.load %arg2[%c1768, %c0_185] : memref<2024x128xbf16, #tpu.memory_space<vmem>>, vector<128x128xbf16>
    %497 = arith.truncf %495 : vector<16x128xf32> to vector<16x128xbf16>
    %cst_186 = arith.constant dense<0.000000e+00> : vector<16x128xf32>
    %498 = tpu.matmul %497, %496, %cst_186 {dimension_numbers = #tpu.dot_dimension_numbers<[1], [0], [0], [1], [0, 0, 1, 1], [], []>} : vector<16x128xbf16>, vector<128x128xbf16>, vector<16x128xf32> -> vector<16x128xf32>
    %499 = arith.addf %493, %498 : vector<16x128xf32>
    %c25 = arith.constant 25 : index
    %c0_187 = arith.constant 0 : index
    %500 = vector.load %arg3[%c25, %c0_187] : memref<29x128xf32, #tpu.memory_space<vmem>>, vector<1x128xf32>
    %501 = vector.broadcast %500 : vector<1x128xf32> to vector<16x128xf32>
    %502 = arith.addf %499, %501 : vector<16x128xf32>
    %cst_188 = arith.constant dense<0.000000e+00> : vector<128xf32>
    %503 = vector.multi_reduction <add>, %502, %cst_188 [0] : vector<16x128xf32> to vector<128xf32>
    %504 = vector.shape_cast %503 : vector<128xf32> to vector<1x128xf32>
    %505 = arith.mulf %502, %502 : vector<16x128xf32>
    %cst_189 = arith.constant dense<0.000000e+00> : vector<128xf32>
    %506 = vector.multi_reduction <add>, %505, %cst_189 [0] : vector<16x128xf32> to vector<128xf32>
    %507 = vector.shape_cast %506 : vector<128xf32> to vector<1x128xf32>
    %cst_190 = arith.constant 6.250000e-02 : f32
    %508 = vector.broadcast %cst_190 : f32 to vector<1x128xf32>
    %509 = arith.mulf %504, %508 : vector<1x128xf32>
    %cst_191 = arith.constant 6.250000e-02 : f32
    %510 = vector.broadcast %cst_191 : f32 to vector<1x128xf32>
    %511 = arith.mulf %507, %510 : vector<1x128xf32>
    %512 = arith.mulf %509, %509 : vector<1x128xf32>
    %513 = arith.subf %511, %512 : vector<1x128xf32>
    %cst_192 = arith.constant 0.000000e+00 : f32
    %514 = vector.broadcast %cst_192 : f32 to vector<1x128xf32>
    %515 = arith.maximumf %513, %514 : vector<1x128xf32>
    %cst_193 = arith.constant 9.99999974E-6 : f32
    %516 = vector.broadcast %cst_193 : f32 to vector<1x128xf32>
    %517 = arith.addf %515, %516 : vector<1x128xf32>
    %518 = math.rsqrt %517 : vector<1x128xf32>
    %c26 = arith.constant 26 : index
    %c0_194 = arith.constant 0 : index
    %519 = vector.load %arg3[%c26, %c0_194] : memref<29x128xf32, #tpu.memory_space<vmem>>, vector<1x128xf32>
    %520 = arith.mulf %518, %519 : vector<1x128xf32>
    %521 = vector.broadcast %509 : vector<1x128xf32> to vector<16x128xf32>
    %522 = arith.subf %502, %521 : vector<16x128xf32>
    %523 = vector.broadcast %520 : vector<1x128xf32> to vector<16x128xf32>
    %524 = arith.mulf %522, %523 : vector<16x128xf32>
    %c27 = arith.constant 27 : index
    %c0_195 = arith.constant 0 : index
    %525 = vector.load %arg3[%c27, %c0_195] : memref<29x128xf32, #tpu.memory_space<vmem>>, vector<1x128xf32>
    %526 = vector.broadcast %525 : vector<1x128xf32> to vector<16x128xf32>
    %527 = arith.addf %524, %526 : vector<16x128xf32>
    %528 = arith.addf %527, %429 : vector<16x128xf32>
    %cst_196 = arith.constant 0.000000e+00 : f32
    %529 = vector.broadcast %cst_196 : f32 to vector<16x128xf32>
    %530 = arith.maximumf %528, %529 : vector<16x128xf32>
    %531 = vector.shape_cast %530 : vector<16x128xf32> to vector<2x8x128xf32>
    %cst_197 = arith.constant dense<0.000000e+00> : vector<2x128xf32>
    %532 = vector.multi_reduction <add>, %531, %cst_197 [1] : vector<2x8x128xf32> to vector<2x128xf32>
    %cst_198 = arith.constant 8.000000e+00 : f32
    %533 = vector.broadcast %cst_198 : f32 to vector<2x128xf32>
    %534 = arith.divf %532, %533 : vector<2x128xf32>
    %c1896 = arith.constant 1896 : index
    %c0_199 = arith.constant 0 : index
    %535 = vector.load %arg2[%c1896, %c0_199] : memref<2024x128xbf16, #tpu.memory_space<vmem>>, vector<128x128xbf16>
    %536 = arith.truncf %534 : vector<2x128xf32> to vector<2x128xbf16>
    %cst_200 = arith.constant dense<0.000000e+00> : vector<2x128xf32>
    %537 = tpu.matmul %536, %535, %cst_200 {dimension_numbers = #tpu.dot_dimension_numbers<[1], [0], [0], [1], [0, 0, 1, 1], [], []>} : vector<2x128xbf16>, vector<128x128xbf16>, vector<2x128xf32> -> vector<2x128xf32>
    %c28 = arith.constant 28 : index
    %c0_201 = arith.constant 0 : index
    %538 = vector.load %arg3[%c28, %c0_201] : memref<29x128xf32, #tpu.memory_space<vmem>>, vector<1x128xf32>
    %539 = vector.broadcast %538 : vector<1x128xf32> to vector<2x128xf32>
    %540 = arith.addf %537, %539 : vector<2x128xf32>
    %c0_202 = arith.constant 0 : index
    %c0_203 = arith.constant 0 : index
    %541 = vector.load %arg4[%c0_202, %c0_203] : memref<2x128xf32, #tpu.memory_space<vmem>>, vector<2x128xf32>
    tpu.vector_store %arg4[%c0_202, %c0_203], %540 {strides = array<i32>} : memref<2x128xf32, #tpu.memory_space<vmem>>, vector<2x128xf32>,
    return
  }
  func.func @transform_0(%arg0: i32) -> (i32, i32, i32) {
    %c0_i32 = arith.constant 0 : i32
    %c0_i32_0 = arith.constant 0 : i32
    %c0_i32_1 = arith.constant 0 : i32
    %c0_i32_2 = arith.constant 0 : i32
    return %c0_i32, %c0_i32_0, %c0_i32_1 : i32, i32, i32
  }
  func.func @transform_1(%arg0: i32) -> (i32, i32) {
    %c0_i32 = arith.constant 0 : i32
    %c0_i32_0 = arith.constant 0 : i32
    %c0_i32_1 = arith.constant 0 : i32
    return %c0_i32, %c0_i32_0 : i32, i32
  }
  func.func @transform_2(%arg0: i32) -> (i32, i32) {
    %c0_i32 = arith.constant 0 : i32
    %c0_i32_0 = arith.constant 0 : i32
    %c0_i32_1 = arith.constant 0 : i32
    return %c0_i32, %c0_i32_0 : i32, i32
  }
  func.func @transform_3(%arg0: i32) -> (i32, i32) {
    %c0_i32 = arith.constant 0 : i32
    %c0_i32_0 = arith.constant 0 : i32
    %c0_i32_1 = arith.constant 0 : i32
    return %c0_i32, %c0_i32_0 : i32, i32
  }
}

</mosaic_0001>

<llo_original>
// kernel: encoder_forward.1
$region0: #{encoder_forward.1}
  #allocation0 [shape = 'u32[]', space=smem, size = 0x4, offset = 0x4, fixed_abs, tag = 'smem constant byte address 0x4 - core index']
  #allocation1 [shape = 'u32[144,128]{1,0:T(1,128)}', space=vmem, size = 0x12000, scoped, tag = 'internal scratch']
  #allocation2 [shape = 'f32[128,16]{1,0:T(8,128)}', space=vmem, size = 0x10000, scoped, tag = 'scratch operand']
  #allocation3 [shape = 'f32[64,32]{1,0:T(8,128)}', space=vmem, size = 0x8000, scoped, tag = 'scratch operand']
  #allocation4 [shape = 'f32[32,64]{1,0:T(8,128)}', space=vmem, size = 0x4000, scoped, tag = 'scratch operand']
  %s0 = inlined_call_operand.vmem [shape: f32[2,64,1], index: 0, kind: input, shape index: {}]
  %s1 = inlined_call_operand.vmem [shape: bf16[2024,128], index: 1, kind: input, shape index: {}]
  %s2 = inlined_call_operand.vmem [shape: f32[29,128], index: 2, kind: input, shape index: {}]
  %s3 = inlined_call_operand.vmem [shape: f32[2,128], index: 3, kind: output, shape index: {}]
  %s4 = sld [smem:[#allocation0]]
  $region22: #{encoder_forward.1} parent=0
    _
  %s6 = ssub.s32 1, %s4
  %s7 = scalar_select 0, %s6, %s4
  // Predicated region
  $region2: #{encoder_forward.1} parent=0 // pred_check
    _
  $region3: #{encoder_forward.1} parent=0 // pred_check_branch
    %9 = sbr.rel (0) target = $region5
  $region4: #{encoder_forward.1} parent=0 // pred_region
    _
  $region5: #{encoder_forward.1} parent=0 // pred_fallthru
    _
  // Predicated region
  $region6: #{encoder_forward.1} parent=0 // pred_check
    _
  $region7: #{encoder_forward.1} parent=0 // pred_check_branch
    %11 = sbr.rel (0) target = $region9
  $region8: #{encoder_forward.1} parent=0 // pred_region
    _
  $region9: #{encoder_forward.1} parent=0 // pred_fallthru
    _
  // Predicated region
  $region10: #{encoder_forward.1} parent=0 // pred_check
    _
  $region11: #{encoder_forward.1} parent=0 // pred_check_branch
    %13 = sbr.rel (0) target = $region13
  $region12: #{encoder_forward.1} parent=0 // pred_region
    _
  $region13: #{encoder_forward.1} parent=0 // pred_fallthru
    _
  %v15 = vld [vmem:[%s0] sm:$0xff]
  %v16 = vld [vmem:[%s0 + $0x8] sm:$0xff]
  %v17 = vld [vmem:[%s0 + $0x10] sm:$0xff]
  %v18 = vld [vmem:[%s0 + $0x18] sm:$0xff]
  %v19 = vld [vmem:[%s0 + $0x20] sm:$0xff]
  %v20 = vld [vmem:[%s0 + $0x28] sm:$0xff]
  %v21 = vld [vmem:[%s0 + $0x30] sm:$0xff]
  %v22 = vld [vmem:[%s0 + $0x38] sm:$0xff]
  %v23 = vld [vmem:[%s0 + $0x40] sm:$0xff]
  %v24 = vld [vmem:[%s0 + $0x48] sm:$0xff]
  %v25 = vld [vmem:[%s0 + $0x50] sm:$0xff]
  %v26 = vld [vmem:[%s0 + $0x58] sm:$0xff]
  %v27 = vld [vmem:[%s0 + $0x60] sm:$0xff]
  %v28 = vld [vmem:[%s0 + $0x68] sm:$0xff]
  %v29 = vld [vmem:[%s0 + $0x70] sm:$0xff]
  %v30 = vld [vmem:[%s0 + $0x78] sm:$0xff]
  %vm47 = vcmask 1040384
  %v48 = vrot.slane %v15, 7
  %v49 = vrot.slane %v16, 7
  %v50 = vsel %vm47, %v48, %v49
  %v51 = vrot.slane %v17, 7
  %v52 = vsel %vm47, %v49, %v51
  %v53 = vrot.slane %v18, 7
  %v54 = vsel %vm47, %v51, %v53
  %v55 = vrot.slane %v19, 7
  %v56 = vsel %vm47, %v53, %v55
  %v57 = vrot.slane %v20, 7
  %v58 = vsel %vm47, %v55, %v57
  %v59 = vrot.slane %v21, 7
  %v60 = vsel %vm47, %v57, %v59
  %v61 = vrot.slane %v22, 7
  %v62 = vsel %vm47, %v59, %v61
  %v63 = vrot.slane %v23, 7
  %v64 = vrot.slane %v24, 7
  %v65 = vsel %vm47, %v63, %v64
  %v66 = vrot.slane %v25, 7
  %v67 = vsel %vm47, %v64, %v66
  %v68 = vrot.slane %v26, 7
  %v69 = vsel %vm47, %v66, %v68
  %v70 = vrot.slane %v27, 7
  %v71 = vsel %vm47, %v68, %v70
  %v72 = vrot.slane %v28, 7
  %v73 = vsel %vm47, %v70, %v72
  %v74 = vrot.slane %v29, 7
  %v75 = vsel %vm47, %v72, %v74
  %v76 = vrot.slane %v30, 7
  %v77 = vsel %vm47, %v74, %v76
  %v82 = vsel %vm47, 0.0, %v48
  %v83 = vsel %vm47, 0.0, %v63
  %v84 = vsel %vm47, %v61, 0.0
  %v85 = vsel %vm47, %v76, 0.0
  %v86 = vld [vmem:[%s1] sm:$0x1]
  %v87 = vunpack.c.l.bf16 %v86
  %89 = vset.pattern.permute.xlu0 0
  %90 = vperm.xlu0 %89, %v82
  %v91 = vpop.permute.xlu0 %90
  %93 = vset.pattern.permute.xlu0 0
  %94 = vperm.xlu0 %93, %v50
  %v95 = vpop.permute.xlu0 %94
  %97 = vset.pattern.permute.xlu0 0
  %98 = vperm.xlu0 %97, %v52
  %v99 = vpop.permute.xlu0 %98
  %101 = vset.pattern.permute.xlu0 0
  %102 = vperm.xlu0 %101, %v54
  %v103 = vpop.permute.xlu0 %102
  %105 = vset.pattern.permute.xlu0 0
  %106 = vperm.xlu0 %105, %v56
  %v107 = vpop.permute.xlu0 %106
  %109 = vset.pattern.permute.xlu0 0
  %110 = vperm.xlu0 %109, %v58
  %v111 = vpop.permute.xlu0 %110
  %113 = vset.pattern.permute.xlu0 0
  %114 = vperm.xlu0 %113, %v60
  %v115 = vpop.permute.xlu0 %114
  %117 = vset.pattern.permute.xlu0 0
  %118 = vperm.xlu0 %117, %v62
  %v119 = vpop.permute.xlu0 %118
  %122 = vset.pattern.permute.xlu0 0
  %123 = vperm.xlu0 %122, %v83
  %v124 = vpop.permute.xlu0 %123
  %126 = vset.pattern.permute.xlu0 0
  %127 = vperm.xlu0 %126, %v65
  %v128 = vpop.permute.xlu0 %127
  %130 = vset.pattern.permute.xlu0 0
  %131 = vperm.xlu0 %130, %v67
  %v132 = vpop.permute.xlu0 %131
  %134 = vset.pattern.permute.xlu0 0
  %135 = vperm.xlu0 %134, %v69
  %v136 = vpop.permute.xlu0 %135
  %138 = vset.pattern.permute.xlu0 0
  %139 = vperm.xlu0 %138, %v71
  %v140 = vpop.permute.xlu0 %139
  %142 = vset.pattern.permute.xlu0 0
  %143 = vperm.xlu0 %142, %v73
  %v144 = vpop.permute.xlu0 %143
  %146 = vset.pattern.permute.xlu0 0
  %147 = vperm.xlu0 %146, %v75
  %v148 = vpop.permute.xlu0 %147
  %150 = vset.pattern.permute.xlu0 0
  %151 = vperm.xlu0 %150, %v77
  %v152 = vpop.permute.xlu0 %151
  %v154 = vlaneseq
  %v155 = vshrl.u32 %v154, 7
  %v156 = vsub.s32 0, %v155
  %v157 = vrot.slane %v87, %v156
  %v158 = vmul.f32 %v91, %v157
  %v159 = vmul.f32 %v95, %v157
  %v160 = vmul.f32 %v99, %v157
  %v161 = vmul.f32 %v103, %v157
  %v162 = vmul.f32 %v107, %v157
  %v163 = vmul.f32 %v111, %v157
  %v164 = vmul.f32 %v115, %v157
  %v165 = vmul.f32 %v119, %v157
  %v166 = vmul.f32 %v124, %v157
  %v167 = vmul.f32 %v128, %v157
  %v168 = vmul.f32 %v132, %v157
  %v169 = vmul.f32 %v136, %v157
  %v170 = vmul.f32 %v140, %v157
  %v171 = vmul.f32 %v144, %v157
  %v172 = vmul.f32 %v148, %v157
  %v173 = vmul.f32 %v152, %v157
  %vm176 = vcmask 1046528
  %v177 = vrot.slane %v82, 1
  %v178 = vrot.slane %v50, 1
  %v179 = vsel %vm176, %v177, %v178
  %v180 = vrot.slane %v52, 1
  %v181 = vsel %vm176, %v178, %v180
  %v182 = vrot.slane %v54, 1
  %v183 = vsel %vm176, %v180, %v182
  %v184 = vrot.slane %v56, 1
  %v185 = vsel %vm176, %v182, %v184
  %v186 = vrot.slane %v58, 1
  %v187 = vsel %vm176, %v184, %v186
  %v188 = vrot.slane %v60, 1
  %v189 = vsel %vm176, %v186, %v188
  %v190 = vrot.slane %v62, 1
  %v191 = vsel %vm176, %v188, %v190
  %v192 = vrot.slane %v84, 1
  %v193 = vsel %vm176, %v190, %v192
  %v194 = vrot.slane %v83, 1
  %v195 = vrot.slane %v65, 1
  %v196 = vsel %vm176, %v194, %v195
  %v197 = vrot.slane %v67, 1
  %v198 = vsel %vm176, %v195, %v197
  %v199 = vrot.slane %v69, 1
  %v200 = vsel %vm176, %v197, %v199
  %v201 = vrot.slane %v71, 1
  %v202 = vsel %vm176, %v199, %v201
  %v203 = vrot.slane %v73, 1
  %v204 = vsel %vm176, %v201, %v203
  %v205 = vrot.slane %v75, 1
  %v206 = vsel %vm176, %v203, %v205
  %v207 = vrot.slane %v77, 1
  %v208 = vsel %vm176, %v205, %v207
  %v209 = vrot.slane %v85, 1
  %v210 = vsel %vm176, %v207, %v209
  %211 = vset.pattern.permute.xlu0 0
  %212 = vperm.xlu0 %211, %v179
  %v213 = vpop.permute.xlu0 %212
  %215 = vset.pattern.permute.xlu0 0
  %216 = vperm.xlu0 %215, %v181
  %v217 = vpop.permute.xlu0 %216
  %219 = vset.pattern.permute.xlu0 0
  %220 = vperm.xlu0 %219, %v183
  %v221 = vpop.permute.xlu0 %220
  %223 = vset.pattern.permute.xlu0 0
  %224 = vperm.xlu0 %223, %v185
  %v225 = vpop.permute.xlu0 %224
  %227 = vset.pattern.permute.xlu0 0
  %228 = vperm.xlu0 %227, %v187
  %v229 = vpop.permute.xlu0 %228
  %231 = vset.pattern.permute.xlu0 0
  %232 = vperm.xlu0 %231, %v189
  %v233 = vpop.permute.xlu0 %232
  %235 = vset.pattern.permute.xlu0 0
  %236 = vperm.xlu0 %235, %v191
  %v237 = vpop.permute.xlu0 %236
  %239 = vset.pattern.permute.xlu0 0
  %240 = vperm.xlu0 %239, %v193
  %v241 = vpop.permute.xlu0 %240
  %243 = vset.pattern.permute.xlu0 0
  %244 = vperm.xlu0 %243, %v196
  %v245 = vpop.permute.xlu0 %244
  %247 = vset.pattern.permute.xlu0 0
  %248 = vperm.xlu0 %247, %v198
  %v249 = vpop.permute.xlu0 %248
  %251 = vset.pattern.permute.xlu0 0
  %252 = vperm.xlu0 %251, %v200
  %v253 = vpop.permute.xlu0 %252
  %255 = vset.pattern.permute.xlu0 0
  %256 = vperm.xlu0 %255, %v202
  %v257 = vpop.permute.xlu0 %256
  %259 = vset.pattern.permute.xlu0 0
  %260 = vperm.xlu0 %259, %v204
  %v261 = vpop.permute.xlu0 %260
  %263 = vset.pattern.permute.xlu0 0
  %264 = vperm.xlu0 %263, %v206
  %v265 = vpop.permute.xlu0 %264
  %267 = vset.pattern.permute.xlu0 0
  %268 = vperm.xlu0 %267, %v208
  %v269 = vpop.permute.xlu0 %268
  %271 = vset.pattern.permute.xlu0 0
  %272 = vperm.xlu0 %271, %v210
  %v273 = vpop.permute.xlu0 %272
  %v275 = vlaneseq
  %v276 = vshrl.u32 %v275, 7
  %v277 = vsub.s32 1, %v276
  %v278 = vrot.slane %v87, %v277
  %v279 = vmul.f32 %v213, %v278
  %v280 = vmul.f32 %v217, %v278
  %v281 = vmul.f32 %v221, %v278
  %v282 = vmul.f32 %v225, %v278
  %v283 = vmul.f32 %v229, %v278
  %v284 = vmul.f32 %v233, %v278
  %v285 = vmul.f32 %v237, %v278
  %v286 = vmul.f32 %v241, %v278
  %v287 = vmul.f32 %v245, %v278
  %v288 = vmul.f32 %v249, %v278
  %v289 = vmul.f32 %v253, %v278
  %v290 = vmul.f32 %v257, %v278
  %v291 = vmul.f32 %v261, %v278
  %v292 = vmul.f32 %v265, %v278
  %v293 = vmul.f32 %v269, %v278
  %v294 = vmul.f32 %v273, %v278
  %v295 = vadd.f32 %v158, %v279
  %v296 = vadd.f32 %v159, %v280
  %v297 = vadd.f32 %v160, %v281
  %v298 = vadd.f32 %v161, %v282
  %v299 = vadd.f32 %v162, %v283
  %v300 = vadd.f32 %v163, %v284
  %v301 = vadd.f32 %v164, %v285
  %v302 = vadd.f32 %v165, %v286
  %v303 = vadd.f32 %v166, %v287
  %v304 = vadd.f32 %v167, %v288
  %v305 = vadd.f32 %v168, %v289
  %v306 = vadd.f32 %v169, %v290
  %v307 = vadd.f32 %v170, %v291
  %v308 = vadd.f32 %v171, %v292
  %v309 = vadd.f32 %v172, %v293
  %v310 = vadd.f32 %v173, %v294
  %vm311 = vcmask 1045504
  %v312 = vrot.slane %v82, 2
  %v313 = vrot.slane %v50, 2
  %v314 = vsel %vm311, %v312, %v313
  %v315 = vrot.slane %v52, 2
  %v316 = vsel %vm311, %v313, %v315
  %v317 = vrot.slane %v54, 2
  %v318 = vsel %vm311, %v315, %v317
  %v319 = vrot.slane %v56, 2
  %v320 = vsel %vm311, %v317, %v319
  %v321 = vrot.slane %v58, 2
  %v322 = vsel %vm311, %v319, %v321
  %v323 = vrot.slane %v60, 2
  %v324 = vsel %vm311, %v321, %v323
  %v325 = vrot.slane %v62, 2
  %v326 = vsel %vm311, %v323, %v325
  %v327 = vrot.slane %v84, 2
  %v328 = vsel %vm311, %v325, %v327
  %v329 = vrot.slane %v83, 2
  %v330 = vrot.slane %v65, 2
  %v331 = vsel %vm311, %v329, %v330
  %v332 = vrot.slane %v67, 2
  %v333 = vsel %vm311, %v330, %v332
  %v334 = vrot.slane %v69, 2
  %v335 = vsel %vm311, %v332, %v334
  %v336 = vrot.slane %v71, 2
  %v337 = vsel %vm311, %v334, %v336
  %v338 = vrot.slane %v73, 2
  %v339 = vsel %vm311, %v336, %v338
  %v340 = vrot.slane %v75, 2
  %v341 = vsel %vm311, %v338, %v340
  %v342 = vrot.slane %v77, 2
  %v343 = vsel %vm311, %v340, %v342
  %v344 = vrot.slane %v85, 2
  %v345 = vsel %vm311, %v342, %v344
  %v346 = vld [vmem:[%s1] sm:$0x2]
  %v347 = vunpack.c.l.bf16 %v346
  %348 = vset.pattern.permute.xlu0 0
  %349 = vperm.xlu0 %348, %v314
  %v350 = vpop.permute.xlu0 %349
  %352 = vset.pattern.permute.xlu0 0
  %353 = vperm.xlu0 %352, %v316
  %v354 = vpop.permute.xlu0 %353
  %356 = vset.pattern.permute.xlu0 0
  %357 = vperm.xlu0 %356, %v318
  %v358 = vpop.permute.xlu0 %357
  %360 = vset.pattern.permute.xlu0 0
  %361 = vperm.xlu0 %360, %v320
  %v362 = vpop.permute.xlu0 %361
  %364 = vset.pattern.permute.xlu0 0
  %365 = vperm.xlu0 %364, %v322
  %v366 = vpop.permute.xlu0 %365
  %368 = vset.pattern.permute.xlu0 0
  %369 = vperm.xlu0 %368, %v324
  %v370 = vpop.permute.xlu0 %369
  %372 = vset.pattern.permute.xlu0 0
  %373 = vperm.xlu0 %372, %v326
  %v374 = vpop.permute.xlu0 %373
  %376 = vset.pattern.permute.xlu0 0
  %377 = vperm.xlu0 %376, %v328
  %v378 = vpop.permute.xlu0 %377
  %380 = vset.pattern.permute.xlu0 0
  %381 = vperm.xlu0 %380, %v331
  %v382 = vpop.permute.xlu0 %381
  %384 = vset.pattern.permute.xlu0 0
  %385 = vperm.xlu0 %384, %v333
  %v386 = vpop.permute.xlu0 %385
  %388 = vset.pattern.permute.xlu0 0
  %389 = vperm.xlu0 %388, %v335
  %v390 = vpop.permute.xlu0 %389
  %392 = vset.pattern.permute.xlu0 0
  %393 = vperm.xlu0 %392, %v337
  %v394 = vpop.permute.xlu0 %393
  %396 = vset.pattern.permute.xlu0 0
  %397 = vperm.xlu0 %396, %v339
  %v398 = vpop.permute.xlu0 %397
  %400 = vset.pattern.permute.xlu0 0
  %401 = vperm.xlu0 %400, %v341
  %v402 = vpop.permute.xlu0 %401
  %404 = vset.pattern.permute.xlu0 0
  %405 = vperm.xlu0 %404, %v343
  %v406 = vpop.permute.xlu0 %405
  %408 = vset.pattern.permute.xlu0 0
  %409 = vperm.xlu0 %408, %v345
  %v410 = vpop.permute.xlu0 %409
  %v412 = vlaneseq
  %v413 = vshrl.u32 %v412, 7
  %v414 = vsub.s32 2, %v413
  %v415 = vrot.slane %v347, %v414
  %v416 = vmul.f32 %v350, %v415
  %v417 = vmul.f32 %v354, %v415
  %v418 = vmul.f32 %v358, %v415
  %v419 = vmul.f32 %v362, %v415
  %v420 = vmul.f32 %v366, %v415
  %v421 = vmul.f32 %v370, %v415
  %v422 = vmul.f32 %v374, %v415
  %v423 = vmul.f32 %v378, %v415
  %v424 = vmul.f32 %v382, %v415
  %v425 = vmul.f32 %v386, %v415
  %v426 = vmul.f32 %v390, %v415
  %v427 = vmul.f32 %v394, %v415
  %v428 = vmul.f32 %v398, %v415
  %v429 = vmul.f32 %v402, %v415
  %v430 = vmul.f32 %v406, %v415
  %v431 = vmul.f32 %v410, %v415
  %v432 = vadd.f32 %v295, %v416
  %v433 = vadd.f32 %v296, %v417
  %v434 = vadd.f32 %v297, %v418
  %v435 = vadd.f32 %v298, %v419
  %v436 = vadd.f32 %v299, %v420
  %v437 = vadd.f32 %v300, %v421
  %v438 = vadd.f32 %v301, %v422
  %v439 = vadd.f32 %v302, %v423
  %v440 = vadd.f32 %v303, %v424
  %v441 = vadd.f32 %v304, %v425
  %v442 = vadd.f32 %v305, %v426
  %v443 = vadd.f32 %v306, %v427
  %v444 = vadd.f32 %v307, %v428
  %v445 = vadd.f32 %v308, %v429
  %v446 = vadd.f32 %v309, %v430
  %v447 = vadd.f32 %v310, %v431
  %v448 = vld [vmem:[%s2] sm:$0x1]
  %v449 = vlaneseq
  %v450 = vshrl.u32 %v449, 7
  %v451 = vsub.s32 0, %v450
  %v452 = vrot.slane %v448, %v451
  %v453 = vadd.f32 %v432, %v452
  %v454 = vadd.f32 %v433, %v452
  %v455 = vadd.f32 %v434, %v452
  %v456 = vadd.f32 %v435, %v452
  %v457 = vadd.f32 %v436, %v452
  %v458 = vadd.f32 %v437, %v452
  %v459 = vadd.f32 %v438, %v452
  %v460 = vadd.f32 %v439, %v452
  %v461 = vadd.f32 %v440, %v452
  %v462 = vadd.f32 %v441, %v452
  %v463 = vadd.f32 %v442, %v452
  %v464 = vadd.f32 %v443, %v452
  %v465 = vadd.f32 %v444, %v452
  %v466 = vadd.f32 %v445, %v452
  %v467 = vadd.f32 %v446, %v452
  %v468 = vadd.f32 %v447, %v452
  %v469 = vmax.f32 %v453, 0.0
  %v470 = vmax.f32 %v454, 0.0
  %v471 = vmax.f32 %v455, 0.0
  %v472 = vmax.f32 %v456, 0.0
  %v473 = vmax.f32 %v457, 0.0
  %v474 = vmax.f32 %v458, 0.0
  %v475 = vmax.f32 %v459, 0.0
  %v476 = vmax.f32 %v460, 0.0
  %v477 = vmax.f32 %v461, 0.0
  %v478 = vmax.f32 %v462, 0.0
  %v479 = vmax.f32 %v463, 0.0
  %v480 = vmax.f32 %v464, 0.0
  %v481 = vmax.f32 %v465, 0.0
  %v482 = vmax.f32 %v466, 0.0
  %v483 = vmax.f32 %v467, 0.0
  %v484 = vmax.f32 %v468, 0.0
  %v501 = vrot.slane %v469, 7
  %v502 = vrot.slane %v470, 7
  %v503 = vsel %vm47, %v501, %v502
  %v504 = vrot.slane %v471, 7
  %v505 = vsel %vm47, %v502, %v504
  %v506 = vrot.slane %v472, 7
  %v507 = vsel %vm47, %v504, %v506
  %v508 = vrot.slane %v473, 7
  %v509 = vsel %vm47, %v506, %v508
  %v510 = vrot.slane %v474, 7
  %v511 = vsel %vm47, %v508, %v510
  %v512 = vrot.slane %v475, 7
  %v513 = vsel %vm47, %v510, %v512
  %v514 = vrot.slane %v476, 7
  %v515 = vsel %vm47, %v512, %v514
  %v516 = vrot.slane %v477, 7
  %v517 = vrot.slane %v478, 7
  %v518 = vsel %vm47, %v516, %v517
  %v519 = vrot.slane %v479, 7
  %v520 = vsel %vm47, %v517, %v519
  %v521 = vrot.slane %v480, 7
  %v522 = vsel %vm47, %v519, %v521
  %v523 = vrot.slane %v481, 7
  %v524 = vsel %vm47, %v521, %v523
  %v525 = vrot.slane %v482, 7
  %v526 = vsel %vm47, %v523, %v525
  %v527 = vrot.slane %v483, 7
  %v528 = vsel %vm47, %v525, %v527
  %v529 = vrot.slane %v484, 7
  %v530 = vsel %vm47, %v527, %v529
  %v549 = vsel %vm47, 0.0, %v501
  %v550 = vsel %vm47, 0.0, %v516
  %v551 = vsel %vm47, %v514, 0.0
  %v552 = vsel %vm47, %v529, 0.0
  %v553 = vld [vmem:[%s1 + $0x4] sm:$0xf]
  %v554 = vld [vmem:[%s1 + $0x8] sm:$0xf]
  %v555 = vpack.c.bf16 %v503, %v549
  %v556 = vpack.c.bf16 %v507, %v505
  %v557 = vpack.c.bf16 %v511, %v509
  %v558 = vpack.c.bf16 %v515, %v513
  %v559 = vpack.c.bf16 %v518, %v550
  %v560 = vpack.c.bf16 %v522, %v520
  %v561 = vpack.c.bf16 %v526, %v524
  %v562 = vpack.c.bf16 %v530, %v528
  %v567 = vrot.slane %v549, 1
  %v568 = vrot.slane %v503, 1
  %v569 = vsel %vm176, %v567, %v568
  %v570 = vrot.slane %v505, 1
  %v571 = vsel %vm176, %v568, %v570
  %v572 = vrot.slane %v507, 1
  %v573 = vsel %vm176, %v570, %v572
  %v574 = vrot.slane %v509, 1
  %v575 = vsel %vm176, %v572, %v574
  %v576 = vrot.slane %v511, 1
  %v577 = vsel %vm176, %v574, %v576
  %v578 = vrot.slane %v513, 1
  %v579 = vsel %vm176, %v576, %v578
  %v580 = vrot.slane %v515, 1
  %v581 = vsel %vm176, %v578, %v580
  %v582 = vrot.slane %v551, 1
  %v583 = vsel %vm176, %v580, %v582
  %v584 = vrot.slane %v550, 1
  %v585 = vrot.slane %v518, 1
  %v586 = vsel %vm176, %v584, %v585
  %v587 = vrot.slane %v520, 1
  %v588 = vsel %vm176, %v585, %v587
  %v589 = vrot.slane %v522, 1
  %v590 = vsel %vm176, %v587, %v589
  %v591 = vrot.slane %v524, 1
  %v592 = vsel %vm176, %v589, %v591
  %v593 = vrot.slane %v526, 1
  %v594 = vsel %vm176, %v591, %v593
  %v595 = vrot.slane %v528, 1
  %v596 = vsel %vm176, %v593, %v595
  %v597 = vrot.slane %v530, 1
  %v598 = vsel %vm176, %v595, %v597
  %v599 = vrot.slane %v552, 1
  %v600 = vsel %vm176, %v597, %v599
  %v617 = vld [vmem:[%s1 + $0xc] sm:$0xf]
  %v618 = vld [vmem:[%s1 + $0x10] sm:$0xf]
  %v619 = vpack.c.bf16 %v571, %v569
  %v620 = vpack.c.bf16 %v575, %v573
  %v621 = vpack.c.bf16 %v579, %v577
  %v622 = vpack.c.bf16 %v583, %v581
  %v623 = vpack.c.bf16 %v588, %v586
  %v624 = vpack.c.bf16 %v592, %v590
  %v625 = vpack.c.bf16 %v596, %v594
  %v626 = vpack.c.bf16 %v600, %v598
  %v629 = vunpack.c.l.b16 %v617
  %v630 = vunpack.c.l.b16 %v618
  %v631 = vpack.c.b16 %v630, %v629
  %vm633 = vcmask 130048
  %v635 = vsel %vm633, %v619, 0
  %v638 = vsel %vm633, %v620, 0
  %v641 = vsel %vm633, %v621, 0
  %v644 = vsel %vm633, %v622, 0
  %v647 = vsel %vm633, %v623, 0
  %v650 = vsel %vm633, %v624, 0
  %v653 = vsel %vm633, %v625, 0
  %v656 = vsel %vm633, %v626, 0
  %658 = vmatprep.subr.bf16.mxu0 0
  %659 = vmatpush1.bf16.msra.mxu0 %v631
  %660 = vmatprep.subr.bf16.mxu0 0
  %661 = vmatpush1.bf16.msra.mxu0 0
  %662 = vmatprep.subr.bf16.mxu0 0
  %663 = vmatpush1.bf16.msra.mxu0 0
  %664 = vmatprep.subr.bf16.mxu0 0
  %665 = vmatpush1.bf16.msra.mxu0 0
  %666 = vmatprep.subr.bf16.mxu0 0
  %667 = vmatpush1.bf16.msra.mxu0 0
  %668 = vmatprep.subr.bf16.mxu0 0
  %669 = vmatpush1.bf16.msra.mxu0 0
  %670 = vmatprep.subr.bf16.mxu0 0
  %671 = vmatpush1.bf16.msra.mxu0 0
  %672 = vmatprep.subr.bf16.mxu0 0
  %673 = vmatpush1.bf16.msra.mxu0 0
  %674 = vmatprep.subr.bf16.mxu0 0
  %675 = vmatpush1.bf16.msra.mxu0 0
  %676 = vmatprep.subr.bf16.mxu0 0
  %677 = vmatpush1.bf16.msra.mxu0 0
  %678 = vmatprep.subr.bf16.mxu0 0
  %679 = vmatpush1.bf16.msra.mxu0 0
  %680 = vmatprep.subr.bf16.mxu0 0
  %681 = vmatpush1.bf16.msra.mxu0 0
  %682 = vmatprep.subr.bf16.mxu0 0
  %683 = vmatpush1.bf16.msra.mxu0 0
  %684 = vmatprep.subr.bf16.mxu0 0
  %685 = vmatpush1.bf16.msra.mxu0 0
  %686 = vmatprep.subr.bf16.mxu0 0
  %687 = vmatpush1.bf16.msra.mxu0 0
  %688 = vmatprep.subr.bf16.mxu0 0
  %689 = vmatpush1.bf16.msra.mxu0 0
  %690 = vmatprep.mubr.bf16.mxu0 0
  %691 = vmatmul.mubr.bf16.gmra.mrb[0].mxu0 %v635
  %v692 = vpop.f32.mrb[0].mxu0
  %v693 = vadd.f32 0.0, %v692
  %v694 = vpop.f32.mrb[0].mxu0
  %v695 = vpop.f32.mrb[0].mxu0
  %v696 = vadd.f32 0.0, %v695
  %v697 = vpop.f32.mrb[0].mxu0
  %698 = vmatprep.mubr.bf16.mxu0 0
  %699 = vmatmul.mubr.bf16.gmra.mrb[0].mxu0 %v638
  %v700 = vpop.f32.mrb[0].mxu0
  %v701 = vadd.f32 0.0, %v700
  %v702 = vpop.f32.mrb[0].mxu0
  %v703 = vpop.f32.mrb[0].mxu0
  %v704 = vadd.f32 0.0, %v703
  %v705 = vpop.f32.mrb[0].mxu0
  %706 = vmatprep.mubr.bf16.mxu0 0
  %707 = vmatmul.mubr.bf16.gmra.mrb[0].mxu0 %v641
  %v708 = vpop.f32.mrb[0].mxu0
  %v709 = vadd.f32 0.0, %v708
  %v710 = vpop.f32.mrb[0].mxu0
  %v711 = vpop.f32.mrb[0].mxu0
  %v712 = vadd.f32 0.0, %v711
  %v713 = vpop.f32.mrb[0].mxu0
  %714 = vmatprep.mubr.bf16.mxu0 0
  %715 = vmatmul.mubr.bf16.gmra.mrb[0].mxu0 %v644
  %v716 = vpop.f32.mrb[0].mxu0
  %v717 = vadd.f32 0.0, %v716
  %v718 = vpop.f32.mrb[0].mxu0
  %v719 = vpop.f32.mrb[0].mxu0
  %v720 = vadd.f32 0.0, %v719
  %v721 = vpop.f32.mrb[0].mxu0
  %722 = vmatprep.mubr.bf16.mxu0 0
  %723 = vmatmul.mubr.bf16.gmra.mrb[0].mxu0 %v647
  %v724 = vpop.f32.mrb[0].mxu0
  %v725 = vadd.f32 0.0, %v724
  %v726 = vpop.f32.mrb[0].mxu0
  %v727 = vpop.f32.mrb[0].mxu0
  %v728 = vadd.f32 0.0, %v727
  %v729 = vpop.f32.mrb[0].mxu0
  %730 = vmatprep.mubr.bf16.mxu0 0
  %731 = vmatmul.mubr.bf16.gmra.mrb[0].mxu0 %v650
  %v732 = vpop.f32.mrb[0].mxu0
  %v733 = vadd.f32 0.0, %v732
  %v734 = vpop.f32.mrb[0].mxu0
  %v735 = vpop.f32.mrb[0].mxu0
  %v736 = vadd.f32 0.0, %v735
  %v737 = vpop.f32.mrb[0].mxu0
  %738 = vmatprep.mubr.bf16.mxu0 0
  %739 = vmatmul.mubr.bf16.gmra.mrb[0].mxu0 %v653
  %v740 = vpop.f32.mrb[0].mxu0
  %v741 = vadd.f32 0.0, %v740
  %v742 = vpop.f32.mrb[0].mxu0
  %v743 = vpop.f32.mrb[0].mxu0
  %v744 = vadd.f32 0.0, %v743
  %v745 = vpop.f32.mrb[0].mxu0
  %746 = vmatprep.mubr.bf16.mxu0 0
  %747 = vmatmul.mubr.bf16.gmra.mrb[0].mxu0 %v656
  %v748 = vpop.f32.mrb[0].mxu0
  %v749 = vadd.f32 0.0, %v748
  %v750 = vpop.f32.mrb[0].mxu0
  %v751 = vpop.f32.mrb[0].mxu0
  %v752 = vadd.f32 0.0, %v751
  %v753 = vpop.f32.mrb[0].mxu0
  %754 = vdwg.mxu0
  %v757 = vunpack.c.l.b16 %v553
  %v758 = vunpack.c.l.b16 %v554
  %v759 = vpack.c.b16 %v758, %v757
  %v762 = vsel %vm633, %v555, 0
  %v765 = vsel %vm633, %v556, 0
  %v768 = vsel %vm633, %v557, 0
  %v771 = vsel %vm633, %v558, 0
  %v774 = vsel %vm633, %v559, 0
  %v777 = vsel %vm633, %v560, 0
  %v780 = vsel %vm633, %v561, 0
  %v783 = vsel %vm633, %v562, 0
  %785 = vmatprep.subr.bf16.mxu0 0
  %786 = vmatpush1.bf16.msra.mxu0 %v759
  %787 = vmatprep.subr.bf16.mxu0 0
  %788 = vmatpush1.bf16.msra.mxu0 0
  %789 = vmatprep.subr.bf16.mxu0 0
  %790 = vmatpush1.bf16.msra.mxu0 0
  %791 = vmatprep.subr.bf16.mxu0 0
  %792 = vmatpush1.bf16.msra.mxu0 0
  %793 = vmatprep.subr.bf16.mxu0 0
  %794 = vmatpush1.bf16.msra.mxu0 0
  %795 = vmatprep.subr.bf16.mxu0 0
  %796 = vmatpush1.bf16.msra.mxu0 0
  %797 = vmatprep.subr.bf16.mxu0 0
  %798 = vmatpush1.bf16.msra.mxu0 0
  %799 = vmatprep.subr.bf16.mxu0 0
  %800 = vmatpush1.bf16.msra.mxu0 0
  %801 = vmatprep.subr.bf16.mxu0 0
  %802 = vmatpush1.bf16.msra.mxu0 0
  %803 = vmatprep.subr.bf16.mxu0 0
  %804 = vmatpush1.bf16.msra.mxu0 0
  %805 = vmatprep.subr.bf16.mxu0 0
  %806 = vmatpush1.bf16.msra.mxu0 0
  %807 = vmatprep.subr.bf16.mxu0 0
  %808 = vmatpush1.bf16.msra.mxu0 0
  %809 = vmatprep.subr.bf16.mxu0 0
  %810 = vmatpush1.bf16.msra.mxu0 0
  %811 = vmatprep.subr.bf16.mxu0 0
  %812 = vmatpush1.bf16.msra.mxu0 0
  %813 = vmatprep.subr.bf16.mxu0 0
  %814 = vmatpush1.bf16.msra.mxu0 0
  %815 = vmatprep.subr.bf16.mxu0 0
  %816 = vmatpush1.bf16.msra.mxu0 0
  %817 = vmatprep.mubr.bf16.mxu0 0
  %818 = vmatmul.mubr.bf16.gmra.mrb[0].mxu0 %v762
  %v819 = vpop.f32.mrb[0].mxu0
  %v820 = vadd.f32 %v693, %v819
  %v821 = vpop.f32.mrb[0].mxu0
  %v822 = vpop.f32.mrb[0].mxu0
  %v823 = vadd.f32 %v696, %v822
  %v824 = vpop.f32.mrb[0].mxu0
  %825 = vmatprep.mubr.bf16.mxu0 0
  %826 = vmatmul.mubr.bf16.gmra.mrb[0].mxu0 %v765
  %v827 = vpop.f32.mrb[0].mxu0
  %v828 = vadd.f32 %v701, %v827
  %v829 = vpop.f32.mrb[0].mxu0
  %v830 = vpop.f32.mrb[0].mxu0
  %v831 = vadd.f32 %v704, %v830
  %v832 = vpop.f32.mrb[0].mxu0
  %833 = vmatprep.mubr.bf16.mxu0 0
  %834 = vmatmul.mubr.bf16.gmra.mrb[0].mxu0 %v768
  %v835 = vpop.f32.mrb[0].mxu0
  %v836 = vadd.f32 %v709, %v835
  %v837 = vpop.f32.mrb[0].mxu0
  %v838 = vpop.f32.mrb[0].mxu0
  %v839 = vadd.f32 %v712, %v838
  %v840 = vpop.f32.mrb[0].mxu0
  %841 = vmatprep.mubr.bf16.mxu0 0
  %842 = vmatmul.mubr.bf16.gmra.mrb[0].mxu0 %v771
  %v843 = vpop.f32.mrb[0].mxu0
  %v844 = vadd.f32 %v717, %v843
  %v845 = vpop.f32.mrb[0].mxu0
  %v846 = vpop.f32.mrb[0].mxu0
  %v847 = vadd.f32 %v720, %v846
  %v848 = vpop.f32.mrb[0].mxu0
  %849 = vmatprep.mubr.bf16.mxu0 0
  %850 = vmatmul.mubr.bf16.gmra.mrb[0].mxu0 %v774
  %v851 = vpop.f32.mrb[0].mxu0
  %v852 = vadd.f32 %v725, %v851
  %v853 = vpop.f32.mrb[0].mxu0
  %v854 = vpop.f32.mrb[0].mxu0
  %v855 = vadd.f32 %v728, %v854
  %v856 = vpop.f32.mrb[0].mxu0
  %857 = vmatprep.mubr.bf16.mxu0 0
  %858 = vmatmul.mubr.bf16.gmra.mrb[0].mxu0 %v777
  %v859 = vpop.f32.mrb[0].mxu0
  %v860 = vadd.f32 %v733, %v859
  %v861 = vpop.f32.mrb[0].mxu0
  %v862 = vpop.f32.mrb[0].mxu0
  %v863 = vadd.f32 %v736, %v862
  %v864 = vpop.f32.mrb[0].mxu0
  %865 = vmatprep.mubr.bf16.mxu0 0
  %866 = vmatmul.mubr.bf16.gmra.mrb[0].mxu0 %v780
  %v867 = vpop.f32.mrb[0].mxu0
  %v868 = vadd.f32 %v741, %v867
  %v869 = vpop.f32.mrb[0].mxu0
  %v870 = vpop.f32.mrb[0].mxu0
  %v871 = vadd.f32 %v744, %v870
  %v872 = vpop.f32.mrb[0].mxu0
  %873 = vmatprep.mubr.bf16.mxu0 0
  %874 = vmatmul.mubr.bf16.gmra.mrb[0].mxu0 %v783
  %v875 = vpop.f32.mrb[0].mxu0
  %v876 = vadd.f32 %v749, %v875
  %v877 = vpop.f32.mrb[0].mxu0
  %v878 = vpop.f32.mrb[0].mxu0
  %v879 = vadd.f32 %v752, %v878
  %v880 = vpop.f32.mrb[0].mxu0
  %881 = vdwg.mxu0
  %v882 = vrot.slane %v549, 2
  %v883 = vrot.slane %v503, 2
  %v884 = vsel %vm311, %v882, %v883
  %v885 = vrot.slane %v505, 2
  %v886 = vsel %vm311, %v883, %v885
  %v887 = vrot.slane %v507, 2
  %v888 = vsel %vm311, %v885, %v887
  %v889 = vrot.slane %v509, 2
  %v890 = vsel %vm311, %v887, %v889
  %v891 = vrot.slane %v511, 2
  %v892 = vsel %vm311, %v889, %v891
  %v893 = vrot.slane %v513, 2
  %v894 = vsel %vm311, %v891, %v893
  %v895 = vrot.slane %v515, 2
  %v896 = vsel %vm311, %v893, %v895
  %v897 = vrot.slane %v551, 2
  %v898 = vsel %vm311, %v895, %v897
  %v899 = vrot.slane %v550, 2
  %v900 = vrot.slane %v518, 2
  %v901 = vsel %vm311, %v899, %v900
  %v902 = vrot.slane %v520, 2
  %v903 = vsel %vm311, %v900, %v902
  %v904 = vrot.slane %v522, 2
  %v905 = vsel %vm311, %v902, %v904
  %v906 = vrot.slane %v524, 2
  %v907 = vsel %vm311, %v904, %v906
  %v908 = vrot.slane %v526, 2
  %v909 = vsel %vm311, %v906, %v908
  %v910 = vrot.slane %v528, 2
  %v911 = vsel %vm311, %v908, %v910
  %v912 = vrot.slane %v530, 2
  %v913 = vsel %vm311, %v910, %v912
  %v914 = vrot.slane %v552, 2
  %v915 = vsel %vm311, %v912, %v914
  %v932 = vld [vmem:[%s1 + $0x14] sm:$0xf]
  %v933 = vld [vmem:[%s1 + $0x18] sm:$0xf]
  %v934 = vpack.c.bf16 %v886, %v884
  %v935 = vpack.c.bf16 %v890, %v888
  %v936 = vpack.c.bf16 %v894, %v892
  %v937 = vpack.c.bf16 %v898, %v896
  %v938 = vpack.c.bf16 %v903, %v901
  %v939 = vpack.c.bf16 %v907, %v905
  %v940 = vpack.c.bf16 %v911, %v909
  %v941 = vpack.c.bf16 %v915, %v913
  %v944 = vunpack.c.l.b16 %v932
  %v945 = vunpack.c.l.b16 %v933
  %v946 = vpack.c.b16 %v945, %v944
  %v949 = vsel %vm633, %v934, 0
  %v952 = vsel %vm633, %v935, 0
  %v955 = vsel %vm633, %v936, 0
  %v958 = vsel %vm633, %v937, 0
  %v961 = vsel %vm633, %v938, 0
  %v964 = vsel %vm633, %v939, 0
  %v967 = vsel %vm633, %v940, 0
  %v970 = vsel %vm633, %v941, 0
  %972 = vmatprep.subr.bf16.mxu0 0
  %973 = vmatpush1.bf16.msra.mxu0 %v946
  %974 = vmatprep.subr.bf16.mxu0 0
  %975 = vmatpush1.bf16.msra.mxu0 0
  %976 = vmatprep.subr.bf16.mxu0 0
  %977 = vmatpush1.bf16.msra.mxu0 0
  %978 = vmatprep.subr.bf16.mxu0 0
  %979 = vmatpush1.bf16.msra.mxu0 0
  %980 = vmatprep.subr.bf16.mxu0 0
  %981 = vmatpush1.bf16.msra.mxu0 0
  %982 = vmatprep.subr.bf16.mxu0 0
  %983 = vmatpush1.bf16.msra.mxu0 0
  %984 = vmatprep.subr.bf16.mxu0 0
  %985 = vmatpush1.bf16.msra.mxu0 0
  %986 = vmatprep.subr.bf16.mxu0 0
  %987 = vmatpush1.bf16.msra.mxu0 0
  %988 = vmatprep.subr.bf16.mxu0 0
  %989 = vmatpush1.bf16.msra.mxu0 0
  %990 = vmatprep.subr.bf16.mxu0 0
  %991 = vmatpush1.bf16.msra.mxu0 0
  %992 = vmatprep.subr.bf16.mxu0 0
  %993 = vmatpush1.bf16.msra.mxu0 0
  %994 = vmatprep.subr.bf16.mxu0 0
  %995 = vmatpush1.bf16.msra.mxu0 0
  %996 = vmatprep.subr.bf16.mxu0 0
  %997 = vmatpush1.bf16.msra.mxu0 0
  %998 = vmatprep.subr.bf16.mxu0 0
  %999 = vmatpush1.bf16.msra.mxu0 0
  %1000 = vmatprep.subr.bf16.mxu0 0
  %1001 = vmatpush1.bf16.msra.mxu0 0
  %1002 = vmatprep.subr.bf16.mxu0 0
  %1003 = vmatpush1.bf16.msra.mxu0 0
  %1004 = vmatprep.mubr.bf16.mxu0 0
  %1005 = vmatmul.mubr.bf16.gmra.mrb[0].mxu0 %v949
  %v1006 = vpop.f32.mrb[0].mxu0
  %v1007 = vadd.f32 0.0, %v1006
  %v1008 = vpop.f32.mrb[0].mxu0
  %v1009 = vpop.f32.mrb[0].mxu0
  %v1010 = vadd.f32 0.0, %v1009
  %v1011 = vpop.f32.mrb[0].mxu0
  %1012 = vmatprep.mubr.bf16.mxu0 0
  %1013 = vmatmul.mubr.bf16.gmra.mrb[0].mxu0 %v952
  %v1014 = vpop.f32.mrb[0].mxu0
  %v1015 = vadd.f32 0.0, %v1014
  %v1016 = vpop.f32.mrb[0].mxu0
  %v1017 = vpop.f32.mrb[0].mxu0
  %v1018 = vadd.f32 0.0, %v1017
  %v1019 = vpop.f32.mrb[0].mxu0
  %1020 = vmatprep.mubr.bf16.mxu0 0
  %1021 = vmatmul.mubr.bf16.gmra.mrb[0].mxu0 %v955
  %v1022 = vpop.f32.mrb[0].mxu0
  %v1023 = vadd.f32 0.0, %v1022
  %v1024 = vpop.f32.mrb[0].mxu0
  %v1025 = vpop.f32.mrb[0].mxu0
  %v1026 = vadd.f32 0.0, %v1025
  %v1027 = vpop.f32.mrb[0].mxu0
  %1028 = vmatprep.mubr.bf16.mxu0 0
  %1029 = vmatmul.mubr.bf16.gmra.mrb[0].mxu0 %v958
  %v1030 = vpop.f32.mrb[0].mxu0
  %v1031 = vadd.f32 0.0, %v1030
  %v1032 = vpop.f32.mrb[0].mxu0
  %v1033 = vpop.f32.mrb[0].mxu0
  %v1034 = vadd.f32 0.0, %v1033
  %v1035 = vpop.f32.mrb[0].mxu0
  %1036 = vmatprep.mubr.bf16.mxu0 0
  %1037 = vmatmul.mubr.bf16.gmra.mrb[0].mxu0 %v961
  %v1038 = vpop.f32.mrb[0].mxu0
  %v1039 = vadd.f32 0.0, %v1038
  %v1040 = vpop.f32.mrb[0].mxu0
  %v1041 = vpop.f32.mrb[0].mxu0
  %v1042 = vadd.f32 0.0, %v1041
  %v1043 = vpop.f32.mrb[0].mxu0
  %1044 = vmatprep.mubr.bf16.mxu0 0
  %1045 = vmatmul.mubr.bf16.gmra.mrb[0].mxu0 %v964
  %v1046 = vpop.f32.mrb[0].mxu0
  %v1047 = vadd.f32 0.0, %v1046
  %v1048 = vpop.f32.mrb[0].mxu0
  %v1049 = vpop.f32.mrb[0].mxu0
  %v1050 = vadd.f32 0.0, %v1049
  %v1051 = vpop.f32.mrb[0].mxu0
  %1052 = vmatprep.mubr.bf16.mxu0 0
  %1053 = vmatmul.mubr.bf16.gmra.mrb[0].mxu0 %v967
  %v1054 = vpop.f32.mrb[0].mxu0
  %v1055 = vadd.f32 0.0, %v1054
  %v1056 = vpop.f32.mrb[0].mxu0
  %v1057 = vpop.f32.mrb[0].mxu0
  %v1058 = vadd.f32 0.0, %v1057
  %v1059 = vpop.f32.mrb[0].mxu0
  %1060 = vmatprep.mubr.bf16.mxu0 0
  %1061 = vmatmul.mubr.bf16.gmra.mrb[0].mxu0 %v970
  %v1062 = vpop.f32.mrb[0].mxu0
  %v1063 = vadd.f32 0.0, %v1062
  %v1064 = vpop.f32.mrb[0].mxu0
  %v1065 = vpop.f32.mrb[0].mxu0
  %v1066 = vadd.f32 0.0, %v1065
  %v1067 = vpop.f32.mrb[0].mxu0
  %1068 = vdwg.mxu0
  %v1069 = vadd.f32 %v820, %v1007
  %v1070 = vadd.f32 %v823, %v1010
  %v1071 = vadd.f32 %v828, %v1015
  %v1072 = vadd.f32 %v831, %v1018
  %v1073 = vadd.f32 %v836, %v1023
  %v1074 = vadd.f32 %v839, %v1026
  %v1075 = vadd.f32 %v844, %v1031
  %v1076 = vadd.f32 %v847, %v1034
  %v1077 = vadd.f32 %v852, %v1039
  %v1078 = vadd.f32 %v855, %v1042
  %v1079 = vadd.f32 %v860, %v1047
  %v1080 = vadd.f32 %v863, %v1050
  %v1081 = vadd.f32 %v868, %v1055
  %v1082 = vadd.f32 %v871, %v1058
  %v1083 = vadd.f32 %v876, %v1063
  %v1084 = vadd.f32 %v879, %v1066
  %v1085 = vld [vmem:[%s2 + $0x1] sm:$0x1]
  %v1086 = vlaneseq
  %v1087 = vshrl.u32 %v1086, 7
  %v1088 = vsub.s32 0, %v1087
  %v1089 = vrot.slane %v1085, %v1088
  %v1090 = vadd.f32 %v1069, %v1089
  %v1091 = vadd.f32 %v1070, %v1089
  %v1092 = vadd.f32 %v1071, %v1089
  %v1093 = vadd.f32 %v1072, %v1089
  %v1094 = vadd.f32 %v1073, %v1089
  %v1095 = vadd.f32 %v1074, %v1089
  %v1096 = vadd.f32 %v1075, %v1089
  %v1097 = vadd.f32 %v1076, %v1089
  %v1098 = vadd.f32 %v1077, %v1089
  %v1099 = vadd.f32 %v1078, %v1089
  %v1100 = vadd.f32 %v1079, %v1089
  %v1101 = vadd.f32 %v1080, %v1089
  %v1102 = vadd.f32 %v1081, %v1089
  %v1103 = vadd.f32 %v1082, %v1089
  %v1104 = vadd.f32 %v1083, %v1089
  %v1105 = vadd.f32 %v1084, %v1089
  %v1106 = vsel %vm633, %v1090, 0.0
  %v1107 = vsel %vm633, %v1091, 0.0
  %v1108 = vadd.f32 %v1106, %v1107
  %v1109 = vsel %vm633, %v1092, 0.0
  %v1110 = vadd.f32 %v1108, %v1109
  %v1111 = vsel %vm633, %v1093, 0.0
  %v1112 = vadd.f32 %v1110, %v1111
  %v1113 = vsel %vm633, %v1094, 0.0
  %v1114 = vadd.f32 %v1112, %v1113
  %v1115 = vsel %vm633, %v1095, 0.0
  %v1116 = vadd.f32 %v1114, %v1115
  %v1117 = vsel %vm633, %v1096, 0.0
  %v1118 = vadd.f32 %v1116, %v1117
  %v1119 = vsel %vm633, %v1097, 0.0
  %v1120 = vadd.f32 %v1118, %v1119
  %v1121 = vsel %vm633, %v1098, 0.0
  %v1122 = vadd.f32 %v1120, %v1121
  %v1123 = vsel %vm633, %v1099, 0.0
  %v1124 = vadd.f32 %v1122, %v1123
  %v1125 = vsel %vm633, %v1100, 0.0
  %v1126 = vadd.f32 %v1124, %v1125
  %v1127 = vsel %vm633, %v1101, 0.0
  %v1128 = vadd.f32 %v1126, %v1127
  %v1129 = vsel %vm633, %v1102, 0.0
  %v1130 = vadd.f32 %v1128, %v1129
  %v1131 = vsel %vm633, %v1103, 0.0
  %v1132 = vadd.f32 %v1130, %v1131
  %v1133 = vsel %vm633, %v1104, 0.0
  %v1134 = vadd.f32 %v1132, %v1133
  %v1135 = vsel %vm633, %v1105, 0.0
  %v1136 = vadd.f32 %v1134, %v1135
  %v1137 = vrot.slane %v1136, 4
  %v1138 = vadd.f32 %v1136, %v1137
  %v1139 = vrot.slane %v1138, 2
  %v1140 = vadd.f32 %v1138, %v1139
  %v1141 = vrot.slane %v1140, 1
  %v1142 = vadd.f32 %v1140, %v1141
  %v1143 = vmul.f32 %v1090, %v1090
  %v1144 = vmul.f32 %v1091, %v1091
  %v1145 = vmul.f32 %v1092, %v1092
  %v1146 = vmul.f32 %v1093, %v1093
  %v1147 = vmul.f32 %v1094, %v1094
  %v1148 = vmul.f32 %v1095, %v1095
  %v1149 = vmul.f32 %v1096, %v1096
  %v1150 = vmul.f32 %v1097, %v1097
  %v1151 = vmul.f32 %v1098, %v1098
  %v1152 = vmul.f32 %v1099, %v1099
  %v1153 = vmul.f32 %v1100, %v1100
  %v1154 = vmul.f32 %v1101, %v1101
  %v1155 = vmul.f32 %v1102, %v1102
  %v1156 = vmul.f32 %v1103, %v1103
  %v1157 = vmul.f32 %v1104, %v1104
  %v1158 = vmul.f32 %v1105, %v1105
  %v1159 = vsel %vm633, %v1143, 0.0
  %v1160 = vsel %vm633, %v1144, 0.0
  %v1161 = vadd.f32 %v1159, %v1160
  %v1162 = vsel %vm633, %v1145, 0.0
  %v1163 = vadd.f32 %v1161, %v1162
  %v1164 = vsel %vm633, %v1146, 0.0
  %v1165 = vadd.f32 %v1163, %v1164
  %v1166 = vsel %vm633, %v1147, 0.0
  %v1167 = vadd.f32 %v1165, %v1166
  %v1168 = vsel %vm633, %v1148, 0.0
  %v1169 = vadd.f32 %v1167, %v1168
  %v1170 = vsel %vm633, %v1149, 0.0
  %v1171 = vadd.f32 %v1169, %v1170
  %v1172 = vsel %vm633, %v1150, 0.0
  %v1173 = vadd.f32 %v1171, %v1172
  %v1174 = vsel %vm633, %v1151, 0.0
  %v1175 = vadd.f32 %v1173, %v1174
  %v1176 = vsel %vm633, %v1152, 0.0
  %v1177 = vadd.f32 %v1175, %v1176
  %v1178 = vsel %vm633, %v1153, 0.0
  %v1179 = vadd.f32 %v1177, %v1178
  %v1180 = vsel %vm633, %v1154, 0.0
  %v1181 = vadd.f32 %v1179, %v1180
  %v1182 = vsel %vm633, %v1155, 0.0
  %v1183 = vadd.f32 %v1181, %v1182
  %v1184 = vsel %vm633, %v1156, 0.0
  %v1185 = vadd.f32 %v1183, %v1184
  %v1186 = vsel %vm633, %v1157, 0.0
  %v1187 = vadd.f32 %v1185, %v1186
  %v1188 = vsel %vm633, %v1158, 0.0
  %v1189 = vadd.f32 %v1187, %v1188
  %v1190 = vrot.slane %v1189, 4
  %v1191 = vadd.f32 %v1189, %v1190
  %v1192 = vrot.slane %v1191, 2
  %v1193 = vadd.f32 %v1191, %v1192
  %v1194 = vrot.slane %v1193, 1
  %v1195 = vadd.f32 %v1193, %v1194
  %v1196 = vmul.f32 %v1142, 0.0078125
  %v1197 = vmul.f32 %v1195, 0.0078125
  %v1198 = vmul.f32 %v1196, %v1196
  %v1199 = vsub.f32 %v1197, %v1198
  %v1200 = vmax.f32 %v1199, 0.0
  %v1201 = vadd.f32 %v1200, 1e-05
  %v1202 = vrsqrt.pop %v1201
  %v1203 = vld [vmem:[%s2 + $0x2] sm:$0x1]
  %v1204 = vmul.f32 %v1202, %v1203
  %v1205 = vsub.f32 %v1090, %v1196
  %v1206 = vsub.f32 %v1091, %v1196
  %v1207 = vsub.f32 %v1092, %v1196
  %v1208 = vsub.f32 %v1093, %v1196
  %v1209 = vsub.f32 %v1094, %v1196
  %v1210 = vsub.f32 %v1095, %v1196
  %v1211 = vsub.f32 %v1096, %v1196
  %v1212 = vsub.f32 %v1097, %v1196
  %v1213 = vsub.f32 %v1098, %v1196
  %v1214 = vsub.f32 %v1099, %v1196
  %v1215 = vsub.f32 %v1100, %v1196
  %v1216 = vsub.f32 %v1101, %v1196
  %v1217 = vsub.f32 %v1102, %v1196
  %v1218 = vsub.f32 %v1103, %v1196
  %v1219 = vsub.f32 %v1104, %v1196
  %v1220 = vsub.f32 %v1105, %v1196
  %v1221 = vlaneseq
  %v1222 = vshrl.u32 %v1221, 7
  %v1223 = vsub.s32 0, %v1222
  %v1224 = vrot.slane %v1204, %v1223
  %v1225 = vmul.f32 %v1205, %v1224
  %v1226 = vmul.f32 %v1206, %v1224
  %v1227 = vmul.f32 %v1207, %v1224
  %v1228 = vmul.f32 %v1208, %v1224
  %v1229 = vmul.f32 %v1209, %v1224
  %v1230 = vmul.f32 %v1210, %v1224
  %v1231 = vmul.f32 %v1211, %v1224
  %v1232 = vmul.f32 %v1212, %v1224
  %v1233 = vmul.f32 %v1213, %v1224
  %v1234 = vmul.f32 %v1214, %v1224
  %v1235 = vmul.f32 %v1215, %v1224
  %v1236 = vmul.f32 %v1216, %v1224
  %v1237 = vmul.f32 %v1217, %v1224
  %v1238 = vmul.f32 %v1218, %v1224
  %v1239 = vmul.f32 %v1219, %v1224
  %v1240 = vmul.f32 %v1220, %v1224
  %v1241 = vld [vmem:[%s2 + $0x3] sm:$0x1]
  %v1242 = vlaneseq
  %v1243 = vshrl.u32 %v1242, 7
  %v1244 = vsub.s32 0, %v1243
  %v1245 = vrot.slane %v1241, %v1244
  %v1246 = vadd.f32 %v1225, %v1245
  %v1247 = vadd.f32 %v1226, %v1245
  %v1248 = vadd.f32 %v1227, %v1245
  %v1249 = vadd.f32 %v1228, %v1245
  %v1250 = vadd.f32 %v1229, %v1245
  %v1251 = vadd.f32 %v1230, %v1245
  %v1252 = vadd.f32 %v1231, %v1245
  %v1253 = vadd.f32 %v1232, %v1245
  %v1254 = vadd.f32 %v1233, %v1245
  %v1255 = vadd.f32 %v1234, %v1245
  %v1256 = vadd.f32 %v1235, %v1245
  %v1257 = vadd.f32 %v1236, %v1245
  %v1258 = vadd.f32 %v1237, %v1245
  %v1259 = vadd.f32 %v1238, %v1245
  %v1260 = vadd.f32 %v1239, %v1245
  %v1261 = vadd.f32 %v1240, %v1245
  %v1262 = vmax.f32 %v1246, 0.0
  %v1263 = vmax.f32 %v1247, 0.0
  %v1264 = vmax.f32 %v1248, 0.0
  %v1265 = vmax.f32 %v1249, 0.0
  %v1266 = vmax.f32 %v1250, 0.0
  %v1267 = vmax.f32 %v1251, 0.0
  %v1268 = vmax.f32 %v1252, 0.0
  %v1269 = vmax.f32 %v1253, 0.0
  %v1270 = vmax.f32 %v1254, 0.0
  %v1271 = vmax.f32 %v1255, 0.0
  %v1272 = vmax.f32 %v1256, 0.0
  %v1273 = vmax.f32 %v1257, 0.0
  %v1274 = vmax.f32 %v1258, 0.0
  %v1275 = vmax.f32 %v1259, 0.0
  %v1276 = vmax.f32 %v1260, 0.0
  %v1277 = vmax.f32 %v1261, 0.0
  %v1294 = vrot.slane %v1262, 7
  %v1295 = vrot.slane %v1263, 7
  %v1296 = vsel %vm47, %v1294, %v1295
  %v1297 = vrot.slane %v1264, 7
  %v1298 = vsel %vm47, %v1295, %v1297
  %v1299 = vrot.slane %v1265, 7
  %v1300 = vsel %vm47, %v1297, %v1299
  %v1301 = vrot.slane %v1266, 7
  %v1302 = vsel %vm47, %v1299, %v1301
  %v1303 = vrot.slane %v1267, 7
  %v1304 = vsel %vm47, %v1301, %v1303
  %v1305 = vrot.slane %v1268, 7
  %v1306 = vsel %vm47, %v1303, %v1305
  %v1307 = vrot.slane %v1269, 7
  %v1308 = vsel %vm47, %v1305, %v1307
  %v1309 = vrot.slane %v1270, 7
  %v1310 = vrot.slane %v1271, 7
  %v1311 = vsel %vm47, %v1309, %v1310
  %v1312 = vrot.slane %v1272, 7
  %v1313 = vsel %vm47, %v1310, %v1312
  %v1314 = vrot.slane %v1273, 7
  %v1315 = vsel %vm47, %v1312, %v1314
  %v1316 = vrot.slane %v1274, 7
  %v1317 = vsel %vm47, %v1314, %v1316
  %v1318 = vrot.slane %v1275, 7
  %v1319 = vsel %vm47, %v1316, %v1318
  %v1320 = vrot.slane %v1276, 7
  %v1321 = vsel %vm47, %v1318, %v1320
  %v1322 = vrot.slane %v1277, 7
  %v1323 = vsel %vm47, %v1320, %v1322
  %v1342 = vsel %vm47, 0.0, %v1294
  %v1343 = vsel %vm47, 0.0, %v1309
  %v1344 = vsel %vm47, %v1307, 0.0
  %v1345 = vsel %vm47, %v1322, 0.0
  %v1346 = vld [vmem:[%s1 + $0x1c] sm:$0xf]
  %v1347 = vld [vmem:[%s1 + $0x20] sm:$0xf]
  %v1348 = vpack.c.bf16 %v1296, %v1342
  %v1349 = vpack.c.bf16 %v1300, %v1298
  %v1350 = vpack.c.bf16 %v1304, %v1302
  %v1351 = vpack.c.bf16 %v1308, %v1306
  %v1352 = vpack.c.bf16 %v1311, %v1343
  %v1353 = vpack.c.bf16 %v1315, %v1313
  %v1354 = vpack.c.bf16 %v1319, %v1317
  %v1355 = vpack.c.bf16 %v1323, %v1321
  %v1360 = vrot.slane %v1342, 1
  %v1361 = vrot.slane %v1296, 1
  %v1362 = vsel %vm176, %v1360, %v1361
  %v1363 = vrot.slane %v1298, 1
  %v1364 = vsel %vm176, %v1361, %v1363
  %v1365 = vrot.slane %v1300, 1
  %v1366 = vsel %vm176, %v1363, %v1365
  %v1367 = vrot.slane %v1302, 1
  %v1368 = vsel %vm176, %v1365, %v1367
  %v1369 = vrot.slane %v1304, 1
  %v1370 = vsel %vm176, %v1367, %v1369
  %v1371 = vrot.slane %v1306, 1
  %v1372 = vsel %vm176, %v1369, %v1371
  %v1373 = vrot.slane %v1308, 1
  %v1374 = vsel %vm176, %v1371, %v1373
  %v1375 = vrot.slane %v1344, 1
  %v1376 = vsel %vm176, %v1373, %v1375
  %v1377 = vrot.slane %v1343, 1
  %v1378 = vrot.slane %v1311, 1
  %v1379 = vsel %vm176, %v1377, %v1378
  %v1380 = vrot.slane %v1313, 1
  %v1381 = vsel %vm176, %v1378, %v1380
  %v1382 = vrot.slane %v1315, 1
  %v1383 = vsel %vm176, %v1380, %v1382
  %v1384 = vrot.slane %v1317, 1
  %v1385 = vsel %vm176, %v1382, %v1384
  %v1386 = vrot.slane %v1319, 1
  %v1387 = vsel %vm176, %v1384, %v1386
  %v1388 = vrot.slane %v1321, 1
  %v1389 = vsel %vm176, %v1386, %v1388
  %v1390 = vrot.slane %v1323, 1
  %v1391 = vsel %vm176, %v1388, %v1390
  %v1392 = vrot.slane %v1345, 1
  %v1393 = vsel %vm176, %v1390, %v1392
  %v1410 = vld [vmem:[%s1 + $0x24] sm:$0xf]
  %v1411 = vld [vmem:[%s1 + $0x28] sm:$0xf]
  %v1412 = vpack.c.bf16 %v1364, %v1362
  %v1413 = vpack.c.bf16 %v1368, %v1366
  %v1414 = vpack.c.bf16 %v1372, %v1370
  %v1415 = vpack.c.bf16 %v1376, %v1374
  %v1416 = vpack.c.bf16 %v1381, %v1379
  %v1417 = vpack.c.bf16 %v1385, %v1383
  %v1418 = vpack.c.bf16 %v1389, %v1387
  %v1419 = vpack.c.bf16 %v1393, %v1391
  %v1422 = vunpack.c.l.b16 %v1410
  %v1423 = vunpack.c.l.b16 %v1411
  %v1424 = vpack.c.b16 %v1423, %v1422
  %v1427 = vsel %vm633, %v1412, 0
  %v1430 = vsel %vm633, %v1413, 0
  %v1433 = vsel %vm633, %v1414, 0
  %v1436 = vsel %vm633, %v1415, 0
  %v1439 = vsel %vm633, %v1416, 0
  %v1442 = vsel %vm633, %v1417, 0
  %v1445 = vsel %vm633, %v1418, 0
  %v1448 = vsel %vm633, %v1419, 0
  %1450 = vmatprep.subr.bf16.mxu0 0
  %1451 = vmatpush1.bf16.msra.mxu0 %v1424
  %1452 = vmatprep.subr.bf16.mxu0 0
  %1453 = vmatpush1.bf16.msra.mxu0 0
  %1454 = vmatprep.subr.bf16.mxu0 0
  %1455 = vmatpush1.bf16.msra.mxu0 0
  %1456 = vmatprep.subr.bf16.mxu0 0
  %1457 = vmatpush1.bf16.msra.mxu0 0
  %1458 = vmatprep.subr.bf16.mxu0 0
  %1459 = vmatpush1.bf16.msra.mxu0 0
  %1460 = vmatprep.subr.bf16.mxu0 0
  %1461 = vmatpush1.bf16.msra.mxu0 0
  %1462 = vmatprep.subr.bf16.mxu0 0
  %1463 = vmatpush1.bf16.msra.mxu0 0
  %1464 = vmatprep.subr.bf16.mxu0 0
  %1465 = vmatpush1.bf16.msra.mxu0 0
  %1466 = vmatprep.subr.bf16.mxu0 0
  %1467 = vmatpush1.bf16.msra.mxu0 0
  %1468 = vmatprep.subr.bf16.mxu0 0
  %1469 = vmatpush1.bf16.msra.mxu0 0
  %1470 = vmatprep.subr.bf16.mxu0 0
  %1471 = vmatpush1.bf16.msra.mxu0 0
  %1472 = vmatprep.subr.bf16.mxu0 0
  %1473 = vmatpush1.bf16.msra.mxu0 0
  %1474 = vmatprep.subr.bf16.mxu0 0
  %1475 = vmatpush1.bf16.msra.mxu0 0
  %1476 = vmatprep.subr.bf16.mxu0 0
  %1477 = vmatpush1.bf16.msra.mxu0 0
  %1478 = vmatprep.subr.bf16.mxu0 0
  %1479 = vmatpush1.bf16.msra.mxu0 0
  %1480 = vmatprep.subr.bf16.mxu0 0
  %1481 = vmatpush1.bf16.msra.mxu0 0
  %1482 = vmatprep.mubr.bf16.mxu0 0
  %1483 = vmatmul.mubr.bf16.gmra.mrb[0].mxu0 %v1427
  %v1484 = vpop.f32.mrb[0].mxu0
  %v1485 = vadd.f32 0.0, %v1484
  %v1486 = vpop.f32.mrb[0].mxu0
  %v1487 = vpop.f32.mrb[0].mxu0
  %v1488 = vadd.f32 0.0, %v1487
  %v1489 = vpop.f32.mrb[0].mxu0
  %1490 = vmatprep.mubr.bf16.mxu0 0
  %1491 = vmatmul.mubr.bf16.gmra.mrb[0].mxu0 %v1430
  %v1492 = vpop.f32.mrb[0].mxu0
  %v1493 = vadd.f32 0.0, %v1492
  %v1494 = vpop.f32.mrb[0].mxu0
  %v1495 = vpop.f32.mrb[0].mxu0
  %v1496 = vadd.f32 0.0, %v1495
  %v1497 = vpop.f32.mrb[0].mxu0
  %1498 = vmatprep.mubr.bf16.mxu0 0
  %1499 = vmatmul.mubr.bf16.gmra.mrb[0].mxu0 %v1433
  %v1500 = vpop.f32.mrb[0].mxu0
  %v1501 = vadd.f32 0.0, %v1500
  %v1502 = vpop.f32.mrb[0].mxu0
  %v1503 = vpop.f32.mrb[0].mxu0
  %v1504 = vadd.f32 0.0, %v1503
  %v1505 = vpop.f32.mrb[0].mxu0
  %1506 = vmatprep.mubr.bf16.mxu0 0
  %1507 = vmatmul.mubr.bf16.gmra.mrb[0].mxu0 %v1436
  %v1508 = vpop.f32.mrb[0].mxu0
  %v1509 = vadd.f32 0.0, %v1508
  %v1510 = vpop.f32.mrb[0].mxu0
  %v1511 = vpop.f32.mrb[0].mxu0
  %v1512 = vadd.f32 0.0, %v1511
  %v1513 = vpop.f32.mrb[0].mxu0
  %1514 = vmatprep.mubr.bf16.mxu0 0
  %1515 = vmatmul.mubr.bf16.gmra.mrb[0].mxu0 %v1439
  %v1516 = vpop.f32.mrb[0].mxu0
  %v1517 = vadd.f32 0.0, %v1516
  %v1518 = vpop.f32.mrb[0].mxu0
  %v1519 = vpop.f32.mrb[0].mxu0
  %v1520 = vadd.f32 0.0, %v1519
  %v1521 = vpop.f32.mrb[0].mxu0
  %1522 = vmatprep.mubr.bf16.mxu0 0
  %1523 = vmatmul.mubr.bf16.gmra.mrb[0].mxu0 %v1442
  %v1524 = vpop.f32.mrb[0].mxu0
  %v1525 = vadd.f32 0.0, %v1524
  %v1526 = vpop.f32.mrb[0].mxu0
  %v1527 = vpop.f32.mrb[0].mxu0
  %v1528 = vadd.f32 0.0, %v1527
  %v1529 = vpop.f32.mrb[0].mxu0
  %1530 = vmatprep.mubr.bf16.mxu0 0
  %1531 = vmatmul.mubr.bf16.gmra.mrb[0].mxu0 %v1445
  %v1532 = vpop.f32.mrb[0].mxu0
  %v1533 = vadd.f32 0.0, %v1532
  %v1534 = vpop.f32.mrb[0].mxu0
  %v1535 = vpop.f32.mrb[0].mxu0
  %v1536 = vadd.f32 0.0, %v1535
  %v1537 = vpop.f32.mrb[0].mxu0
  %1538 = vmatprep.mubr.bf16.mxu0 0
  %1539 = vmatmul.mubr.bf16.gmra.mrb[0].mxu0 %v1448
  %v1540 = vpop.f32.mrb[0].mxu0
  %v1541 = vadd.f32 0.0, %v1540
  %v1542 = vpop.f32.mrb[0].mxu0
  %v1543 = vpop.f32.mrb[0].mxu0
  %v1544 = vadd.f32 0.0, %v1543
  %v1545 = vpop.f32.mrb[0].mxu0
  %1546 = vdwg.mxu0
  %v1549 = vunpack.c.l.b16 %v1346
  %v1550 = vunpack.c.l.b16 %v1347
  %v1551 = vpack.c.b16 %v1550, %v1549
  %v1554 = vsel %vm633, %v1348, 0
  %v1557 = vsel %vm633, %v1349, 0
  %v1560 = vsel %vm633, %v1350, 0
  %v1563 = vsel %vm633, %v1351, 0
  %v1566 = vsel %vm633, %v1352, 0
  %v1569 = vsel %vm633, %v1353, 0
  %v1572 = vsel %vm633, %v1354, 0
  %v1575 = vsel %vm633, %v1355, 0
  %1577 = vmatprep.subr.bf16.mxu0 0
  %1578 = vmatpush1.bf16.msra.mxu0 %v1551
  %1579 = vmatprep.subr.bf16.mxu0 0
  %1580 = vmatpush1.bf16.msra.mxu0 0
  %1581 = vmatprep.subr.bf16.mxu0 0
  %1582 = vmatpush1.bf16.msra.mxu0 0
  %1583 = vmatprep.subr.bf16.mxu0 0
  %1584 = vmatpush1.bf16.msra.mxu0 0
  %1585 = vmatprep.subr.bf16.mxu0 0
  %1586 = vmatpush1.bf16.msra.mxu0 0
  %1587 = vmatprep.subr.bf16.mxu0 0
  %1588 = vmatpush1.bf16.msra.mxu0 0
  %1589 = vmatprep.subr.bf16.mxu0 0
  %1590 = vmatpush1.bf16.msra.mxu0 0
  %1591 = vmatprep.subr.bf16.mxu0 0
  %1592 = vmatpush1.bf16.msra.mxu0 0
  %1593 = vmatprep.subr.bf16.mxu0 0
  %1594 = vmatpush1.bf16.msra.mxu0 0
  %1595 = vmatprep.subr.bf16.mxu0 0
  %1596 = vmatpush1.bf16.msra.mxu0 0
  %1597 = vmatprep.subr.bf16.mxu0 0
  %1598 = vmatpush1.bf16.msra.mxu0 0
  %1599 = vmatprep.subr.bf16.mxu0 0
  %1600 = vmatpush1.bf16.msra.mxu0 0
  %1601 = vmatprep.subr.bf16.mxu0 0
  %1602 = vmatpush1.bf16.msra.mxu0 0
  %1603 = vmatprep.subr.bf16.mxu0 0
  %1604 = vmatpush1.bf16.msra.mxu0 0
  %1605 = vmatprep.subr.bf16.mxu0 0
  %1606 = vmatpush1.bf16.msra.mxu0 0
  %1607 = vmatprep.subr.bf16.mxu0 0
  %1608 = vmatpush1.bf16.msra.mxu0 0
  %1609 = vmatprep.mubr.bf16.mxu0 0
  %1610 = vmatmul.mubr.bf16.gmra.mrb[0].mxu0 %v1554
  %v1611 = vpop.f32.mrb[0].mxu0
  %v1612 = vadd.f32 %v1485, %v1611
  %v1613 = vpop.f32.mrb[0].mxu0
  %v1614 = vpop.f32.mrb[0].mxu0
  %v1615 = vadd.f32 %v1488, %v1614
  %v1616 = vpop.f32.mrb[0].mxu0
  %1617 = vmatprep.mubr.bf16.mxu0 0
  %1618 = vmatmul.mubr.bf16.gmra.mrb[0].mxu0 %v1557
  %v1619 = vpop.f32.mrb[0].mxu0
  %v1620 = vadd.f32 %v1493, %v1619
  %v1621 = vpop.f32.mrb[0].mxu0
  %v1622 = vpop.f32.mrb[0].mxu0
  %v1623 = vadd.f32 %v1496, %v1622
  %v1624 = vpop.f32.mrb[0].mxu0
  %1625 = vmatprep.mubr.bf16.mxu0 0
  %1626 = vmatmul.mubr.bf16.gmra.mrb[0].mxu0 %v1560
  %v1627 = vpop.f32.mrb[0].mxu0
  %v1628 = vadd.f32 %v1501, %v1627
  %v1629 = vpop.f32.mrb[0].mxu0
  %v1630 = vpop.f32.mrb[0].mxu0
  %v1631 = vadd.f32 %v1504, %v1630
  %v1632 = vpop.f32.mrb[0].mxu0
  %1633 = vmatprep.mubr.bf16.mxu0 0
  %1634 = vmatmul.mubr.bf16.gmra.mrb[0].mxu0 %v1563
  %v1635 = vpop.f32.mrb[0].mxu0
  %v1636 = vadd.f32 %v1509, %v1635
  %v1637 = vpop.f32.mrb[0].mxu0
  %v1638 = vpop.f32.mrb[0].mxu0
  %v1639 = vadd.f32 %v1512, %v1638
  %v1640 = vpop.f32.mrb[0].mxu0
  %1641 = vmatprep.mubr.bf16.mxu0 0
  %1642 = vmatmul.mubr.bf16.gmra.mrb[0].mxu0 %v1566
  %v1643 = vpop.f32.mrb[0].mxu0
  %v1644 = vadd.f32 %v1517, %v1643
  %v1645 = vpop.f32.mrb[0].mxu0
  %v1646 = vpop.f32.mrb[0].mxu0
  %v1647 = vadd.f32 %v1520, %v1646
  %v1648 = vpop.f32.mrb[0].mxu0
  %1649 = vmatprep.mubr.bf16.mxu0 0
  %1650 = vmatmul.mubr.bf16.gmra.mrb[0].mxu0 %v1569
  %v1651 = vpop.f32.mrb[0].mxu0
  %v1652 = vadd.f32 %v1525, %v1651
  %v1653 = vpop.f32.mrb[0].mxu0
  %v1654 = vpop.f32.mrb[0].mxu0
  %v1655 = vadd.f32 %v1528, %v1654
  %v1656 = vpop.f32.mrb[0].mxu0
  %1657 = vmatprep.mubr.bf16.mxu0 0
  %1658 = vmatmul.mubr.bf16.gmra.mrb[0].mxu0 %v1572
  %v1659 = vpop.f32.mrb[0].mxu0
  %v1660 = vadd.f32 %v1533, %v1659
  %v1661 = vpop.f32.mrb[0].mxu0
  %v1662 = vpop.f32.mrb[0].mxu0
  %v1663 = vadd.f32 %v1536, %v1662
  %v1664 = vpop.f32.mrb[0].mxu0
  %1665 = vmatprep.mubr.bf16.mxu0 0
  %1666 = vmatmul.mubr.bf16.gmra.mrb[0].mxu0 %v1575
  %v1667 = vpop.f32.mrb[0].mxu0
  %v1668 = vadd.f32 %v1541, %v1667
  %v1669 = vpop.f32.mrb[0].mxu0
  %v1670 = vpop.f32.mrb[0].mxu0
  %v1671 = vadd.f32 %v1544, %v1670
  %v1672 = vpop.f32.mrb[0].mxu0
  %1673 = vdwg.mxu0
  %v1674 = vrot.slane %v1342, 2
  %v1675 = vrot.slane %v1296, 2
  %v1676 = vsel %vm311, %v1674, %v1675
  %v1677 = vrot.slane %v1298, 2
  %v1678 = vsel %vm311, %v1675, %v1677
  %v1679 = vrot.slane %v1300, 2
  %v1680 = vsel %vm311, %v1677, %v1679
  %v1681 = vrot.slane %v1302, 2
  %v1682 = vsel %vm311, %v1679, %v1681
  %v1683 = vrot.slane %v1304, 2
  %v1684 = vsel %vm311, %v1681, %v1683
  %v1685 = vrot.slane %v1306, 2
  %v1686 = vsel %vm311, %v1683, %v1685
  %v1687 = vrot.slane %v1308, 2
  %v1688 = vsel %vm311, %v1685, %v1687
  %v1689 = vrot.slane %v1344, 2
  %v1690 = vsel %vm311, %v1687, %v1689
  %v1691 = vrot.slane %v1343, 2
  %v1692 = vrot.slane %v1311, 2
  %v1693 = vsel %vm311, %v1691, %v1692
  %v1694 = vrot.slane %v1313, 2
  %v1695 = vsel %vm311, %v1692, %v1694
  %v1696 = vrot.slane %v1315, 2
  %v1697 = vsel %vm311, %v1694, %v1696
  %v1698 = vrot.slane %v1317, 2
  %v1699 = vsel %vm311, %v1696, %v1698
  %v1700 = vrot.slane %v1319, 2
  %v1701 = vsel %vm311, %v1698, %v1700
  %v1702 = vrot.slane %v1321, 2
  %v1703 = vsel %vm311, %v1700, %v1702
  %v1704 = vrot.slane %v1323, 2
  %v1705 = vsel %vm311, %v1702, %v1704
  %v1706 = vrot.slane %v1345, 2
  %v1707 = vsel %vm311, %v1704, %v1706
  %v1724 = vld [vmem:[%s1 + $0x2c] sm:$0xf]
  %v1725 = vld [vmem:[%s1 + $0x30] sm:$0xf]
  %v1726 = vpack.c.bf16 %v1678, %v1676
  %v1727 = vpack.c.bf16 %v1682, %v1680
  %v1728 = vpack.c.bf16 %v1686, %v1684
  %v1729 = vpack.c.bf16 %v1690, %v1688
  %v1730 = vpack.c.bf16 %v1695, %v1693
  %v1731 = vpack.c.bf16 %v1699, %v1697
  %v1732 = vpack.c.bf16 %v1703, %v1701
  %v1733 = vpack.c.bf16 %v1707, %v1705
  %v1736 = vunpack.c.l.b16 %v1724
  %v1737 = vunpack.c.l.b16 %v1725
  %v1738 = vpack.c.b16 %v1737, %v1736
  %v1741 = vsel %vm633, %v1726, 0
  %v1744 = vsel %vm633, %v1727, 0
  %v1747 = vsel %vm633, %v1728, 0
  %v1750 = vsel %vm633, %v1729, 0
  %v1753 = vsel %vm633, %v1730, 0
  %v1756 = vsel %vm633, %v1731, 0
  %v1759 = vsel %vm633, %v1732, 0
  %v1762 = vsel %vm633, %v1733, 0
  %1764 = vmatprep.subr.bf16.mxu0 0
  %1765 = vmatpush1.bf16.msra.mxu0 %v1738
  %1766 = vmatprep.subr.bf16.mxu0 0
  %1767 = vmatpush1.bf16.msra.mxu0 0
  %1768 = vmatprep.subr.bf16.mxu0 0
  %1769 = vmatpush1.bf16.msra.mxu0 0
  %1770 = vmatprep.subr.bf16.mxu0 0
  %1771 = vmatpush1.bf16.msra.mxu0 0
  %1772 = vmatprep.subr.bf16.mxu0 0
  %1773 = vmatpush1.bf16.msra.mxu0 0
  %1774 = vmatprep.subr.bf16.mxu0 0
  %1775 = vmatpush1.bf16.msra.mxu0 0
  %1776 = vmatprep.subr.bf16.mxu0 0
  %1777 = vmatpush1.bf16.msra.mxu0 0
  %1778 = vmatprep.subr.bf16.mxu0 0
  %1779 = vmatpush1.bf16.msra.mxu0 0
  %1780 = vmatprep.subr.bf16.mxu0 0
  %1781 = vmatpush1.bf16.msra.mxu0 0
  %1782 = vmatprep.subr.bf16.mxu0 0
  %1783 = vmatpush1.bf16.msra.mxu0 0
  %1784 = vmatprep.subr.bf16.mxu0 0
  %1785 = vmatpush1.bf16.msra.mxu0 0
  %1786 = vmatprep.subr.bf16.mxu0 0
  %1787 = vmatpush1.bf16.msra.mxu0 0
  %1788 = vmatprep.subr.bf16.mxu0 0
  %1789 = vmatpush1.bf16.msra.mxu0 0
  %1790 = vmatprep.subr.bf16.mxu0 0
  %1791 = vmatpush1.bf16.msra.mxu0 0
  %1792 = vmatprep.subr.bf16.mxu0 0
  %1793 = vmatpush1.bf16.msra.mxu0 0
  %1794 = vmatprep.subr.bf16.mxu0 0
  %1795 = vmatpush1.bf16.msra.mxu0 0
  %1796 = vmatprep.mubr.bf16.mxu0 0
  %1797 = vmatmul.mubr.bf16.gmra.mrb[0].mxu0 %v1741
  %v1798 = vpop.f32.mrb[0].mxu0
  %v1799 = vadd.f32 0.0, %v1798
  %v1800 = vpop.f32.mrb[0].mxu0
  %v1801 = vpop.f32.mrb[0].mxu0
  %v1802 = vadd.f32 0.0, %v1801
  %v1803 = vpop.f32.mrb[0].mxu0
  %1804 = vmatprep.mubr.bf16.mxu0 0
  %1805 = vmatmul.mubr.bf16.gmra.mrb[0].mxu0 %v1744
  %v1806 = vpop.f32.mrb[0].mxu0
  %v1807 = vadd.f32 0.0, %v1806
  %v1808 = vpop.f32.mrb[0].mxu0
  %v1809 = vpop.f32.mrb[0].mxu0
  %v1810 = vadd.f32 0.0, %v1809
  %v1811 = vpop.f32.mrb[0].mxu0
  %1812 = vmatprep.mubr.bf16.mxu0 0
  %1813 = vmatmul.mubr.bf16.gmra.mrb[0].mxu0 %v1747
  %v1814 = vpop.f32.mrb[0].mxu0
  %v1815 = vadd.f32 0.0, %v1814
  %v1816 = vpop.f32.mrb[0].mxu0
  %v1817 = vpop.f32.mrb[0].mxu0
  %v1818 = vadd.f32 0.0, %v1817
  %v1819 = vpop.f32.mrb[0].mxu0
  %1820 = vmatprep.mubr.bf16.mxu0 0
  %1821 = vmatmul.mubr.bf16.gmra.mrb[0].mxu0 %v1750
  %v1822 = vpop.f32.mrb[0].mxu0
  %v1823 = vadd.f32 0.0, %v1822
  %v1824 = vpop.f32.mrb[0].mxu0
  %v1825 = vpop.f32.mrb[0].mxu0
  %v1826 = vadd.f32 0.0, %v1825
  %v1827 = vpop.f32.mrb[0].mxu0
  %1828 = vmatprep.mubr.bf16.mxu0 0
  %1829 = vmatmul.mubr.bf16.gmra.mrb[0].mxu0 %v1753
  %v1830 = vpop.f32.mrb[0].mxu0
  %v1831 = vadd.f32 0.0, %v1830
  %v1832 = vpop.f32.mrb[0].mxu0
  %v1833 = vpop.f32.mrb[0].mxu0
  %v1834 = vadd.f32 0.0, %v1833
  %v1835 = vpop.f32.mrb[0].mxu0
  %1836 = vmatprep.mubr.bf16.mxu0 0
  %1837 = vmatmul.mubr.bf16.gmra.mrb[0].mxu0 %v1756
  %v1838 = vpop.f32.mrb[0].mxu0
  %v1839 = vadd.f32 0.0, %v1838
  %v1840 = vpop.f32.mrb[0].mxu0
  %v1841 = vpop.f32.mrb[0].mxu0
  %v1842 = vadd.f32 0.0, %v1841
  %v1843 = vpop.f32.mrb[0].mxu0
  %1844 = vmatprep.mubr.bf16.mxu0 0
  %1845 = vmatmul.mubr.bf16.gmra.mrb[0].mxu0 %v1759
  %v1846 = vpop.f32.mrb[0].mxu0
  %v1847 = vadd.f32 0.0, %v1846
  %v1848 = vpop.f32.mrb[0].mxu0
  %v1849 = vpop.f32.mrb[0].mxu0
  %v1850 = vadd.f32 0.0, %v1849
  %v1851 = vpop.f32.mrb[0].mxu0
  %1852 = vmatprep.mubr.bf16.mxu0 0
  %1853 = vmatmul.mubr.bf16.gmra.mrb[0].mxu0 %v1762
  %v1854 = vpop.f32.mrb[0].mxu0
  %v1855 = vadd.f32 0.0, %v1854
  %v1856 = vpop.f32.mrb[0].mxu0
  %v1857 = vpop.f32.mrb[0].mxu0
  %v1858 = vadd.f32 0.0, %v1857
  %v1859 = vpop.f32.mrb[0].mxu0
  %1860 = vdwg.mxu0
  %v1861 = vadd.f32 %v1612, %v1799
  %v1862 = vadd.f32 %v1615, %v1802
  %v1863 = vadd.f32 %v1620, %v1807
  %v1864 = vadd.f32 %v1623, %v1810
  %v1865 = vadd.f32 %v1628, %v1815
  %v1866 = vadd.f32 %v1631, %v1818
  %v1867 = vadd.f32 %v1636, %v1823
  %v1868 = vadd.f32 %v1639, %v1826
  %v1869 = vadd.f32 %v1644, %v1831
  %v1870 = vadd.f32 %v1647, %v1834
  %v1871 = vadd.f32 %v1652, %v1839
  %v1872 = vadd.f32 %v1655, %v1842
  %v1873 = vadd.f32 %v1660, %v1847
  %v1874 = vadd.f32 %v1663, %v1850
  %v1875 = vadd.f32 %v1668, %v1855
  %v1876 = vadd.f32 %v1671, %v1858
  %v1877 = vld [vmem:[%s2 + $0x4] sm:$0x1]
  %v1878 = vlaneseq
  %v1879 = vshrl.u32 %v1878, 7
  %v1880 = vsub.s32 0, %v1879
  %v1881 = vrot.slane %v1877, %v1880
  %v1882 = vadd.f32 %v1861, %v1881
  %v1883 = vadd.f32 %v1862, %v1881
  %v1884 = vadd.f32 %v1863, %v1881
  %v1885 = vadd.f32 %v1864, %v1881
  %v1886 = vadd.f32 %v1865, %v1881
  %v1887 = vadd.f32 %v1866, %v1881
  %v1888 = vadd.f32 %v1867, %v1881
  %v1889 = vadd.f32 %v1868, %v1881
  %v1890 = vadd.f32 %v1869, %v1881
  %v1891 = vadd.f32 %v1870, %v1881
  %v1892 = vadd.f32 %v1871, %v1881
  %v1893 = vadd.f32 %v1872, %v1881
  %v1894 = vadd.f32 %v1873, %v1881
  %v1895 = vadd.f32 %v1874, %v1881
  %v1896 = vadd.f32 %v1875, %v1881
  %v1897 = vadd.f32 %v1876, %v1881
  %v1898 = vsel %vm633, %v1882, 0.0
  %v1899 = vsel %vm633, %v1883, 0.0
  %v1900 = vadd.f32 %v1898, %v1899
  %v1901 = vsel %vm633, %v1884, 0.0
  %v1902 = vadd.f32 %v1900, %v1901
  %v1903 = vsel %vm633, %v1885, 0.0
  %v1904 = vadd.f32 %v1902, %v1903
  %v1905 = vsel %vm633, %v1886, 0.0
  %v1906 = vadd.f32 %v1904, %v1905
  %v1907 = vsel %vm633, %v1887, 0.0
  %v1908 = vadd.f32 %v1906, %v1907
  %v1909 = vsel %vm633, %v1888, 0.0
  %v1910 = vadd.f32 %v1908, %v1909
  %v1911 = vsel %vm633, %v1889, 0.0
  %v1912 = vadd.f32 %v1910, %v1911
  %v1913 = vsel %vm633, %v1890, 0.0
  %v1914 = vadd.f32 %v1912, %v1913
  %v1915 = vsel %vm633, %v1891, 0.0
  %v1916 = vadd.f32 %v1914, %v1915
  %v1917 = vsel %vm633, %v1892, 0.0
  %v1918 = vadd.f32 %v1916, %v1917
  %v1919 = vsel %vm633, %v1893, 0.0
  %v1920 = vadd.f32 %v1918, %v1919
  %v1921 = vsel %vm633, %v1894, 0.0
  %v1922 = vadd.f32 %v1920, %v1921
  %v1923 = vsel %vm633, %v1895, 0.0
  %v1924 = vadd.f32 %v1922, %v1923
  %v1925 = vsel %vm633, %v1896, 0.0
  %v1926 = vadd.f32 %v1924, %v1925
  %v1927 = vsel %vm633, %v1897, 0.0
  %v1928 = vadd.f32 %v1926, %v1927
  %v1929 = vrot.slane %v1928, 4
  %v1930 = vadd.f32 %v1928, %v1929
  %v1931 = vrot.slane %v1930, 2
  %v1932 = vadd.f32 %v1930, %v1931
  %v1933 = vrot.slane %v1932, 1
  %v1934 = vadd.f32 %v1932, %v1933
  %v1935 = vmul.f32 %v1882, %v1882
  %v1936 = vmul.f32 %v1883, %v1883
  %v1937 = vmul.f32 %v1884, %v1884
  %v1938 = vmul.f32 %v1885, %v1885
  %v1939 = vmul.f32 %v1886, %v1886
  %v1940 = vmul.f32 %v1887, %v1887
  %v1941 = vmul.f32 %v1888, %v1888
  %v1942 = vmul.f32 %v1889, %v1889
  %v1943 = vmul.f32 %v1890, %v1890
  %v1944 = vmul.f32 %v1891, %v1891
  %v1945 = vmul.f32 %v1892, %v1892
  %v1946 = vmul.f32 %v1893, %v1893
  %v1947 = vmul.f32 %v1894, %v1894
  %v1948 = vmul.f32 %v1895, %v1895
  %v1949 = vmul.f32 %v1896, %v1896
  %v1950 = vmul.f32 %v1897, %v1897
  %v1951 = vsel %vm633, %v1935, 0.0
  %v1952 = vsel %vm633, %v1936, 0.0
  %v1953 = vadd.f32 %v1951, %v1952
  %v1954 = vsel %vm633, %v1937, 0.0
  %v1955 = vadd.f32 %v1953, %v1954
  %v1956 = vsel %vm633, %v1938, 0.0
  %v1957 = vadd.f32 %v1955, %v1956
  %v1958 = vsel %vm633, %v1939, 0.0
  %v1959 = vadd.f32 %v1957, %v1958
  %v1960 = vsel %vm633, %v1940, 0.0
  %v1961 = vadd.f32 %v1959, %v1960
  %v1962 = vsel %vm633, %v1941, 0.0
  %v1963 = vadd.f32 %v1961, %v1962
  %v1964 = vsel %vm633, %v1942, 0.0
  %v1965 = vadd.f32 %v1963, %v1964
  %v1966 = vsel %vm633, %v1943, 0.0
  %v1967 = vadd.f32 %v1965, %v1966
  %v1968 = vsel %vm633, %v1944, 0.0
  %v1969 = vadd.f32 %v1967, %v1968
  %v1970 = vsel %vm633, %v1945, 0.0
  %v1971 = vadd.f32 %v1969, %v1970
  %v1972 = vsel %vm633, %v1946, 0.0
  %v1973 = vadd.f32 %v1971, %v1972
  %v1974 = vsel %vm633, %v1947, 0.0
  %v1975 = vadd.f32 %v1973, %v1974
  %v1976 = vsel %vm633, %v1948, 0.0
  %v1977 = vadd.f32 %v1975, %v1976
  %v1978 = vsel %vm633, %v1949, 0.0
  %v1979 = vadd.f32 %v1977, %v1978
  %v1980 = vsel %vm633, %v1950, 0.0
  %v1981 = vadd.f32 %v1979, %v1980
  %v1982 = vrot.slane %v1981, 4
  %v1983 = vadd.f32 %v1981, %v1982
  %v1984 = vrot.slane %v1983, 2
  %v1985 = vadd.f32 %v1983, %v1984
  %v1986 = vrot.slane %v1985, 1
  %v1987 = vadd.f32 %v1985, %v1986
  %v1988 = vmul.f32 %v1934, 0.0078125
  %v1989 = vmul.f32 %v1987, 0.0078125
  %v1990 = vmul.f32 %v1988, %v1988
  %v1991 = vsub.f32 %v1989, %v1990
  %v1992 = vmax.f32 %v1991, 0.0
  %v1993 = vadd.f32 %v1992, 1e-05
  %v1994 = vrsqrt.pop %v1993
  %v1995 = vld [vmem:[%s2 + $0x5] sm:$0x1]
  %v1996 = vmul.f32 %v1994, %v1995
  %v1997 = vsub.f32 %v1882, %v1988
  %v1998 = vsub.f32 %v1883, %v1988
  %v1999 = vsub.f32 %v1884, %v1988
  %v2000 = vsub.f32 %v1885, %v1988
  %v2001 = vsub.f32 %v1886, %v1988
  %v2002 = vsub.f32 %v1887, %v1988
  %v2003 = vsub.f32 %v1888, %v1988
  %v2004 = vsub.f32 %v1889, %v1988
  %v2005 = vsub.f32 %v1890, %v1988
  %v2006 = vsub.f32 %v1891, %v1988
  %v2007 = vsub.f32 %v1892, %v1988
  %v2008 = vsub.f32 %v1893, %v1988
  %v2009 = vsub.f32 %v1894, %v1988
  %v2010 = vsub.f32 %v1895, %v1988
  %v2011 = vsub.f32 %v1896, %v1988
  %v2012 = vsub.f32 %v1897, %v1988
  %v2013 = vlaneseq
  %v2014 = vshrl.u32 %v2013, 7
  %v2015 = vsub.s32 0, %v2014
  %v2016 = vrot.slane %v1996, %v2015
  %v2017 = vmul.f32 %v1997, %v2016
  %v2018 = vmul.f32 %v1998, %v2016
  %v2019 = vmul.f32 %v1999, %v2016
  %v2020 = vmul.f32 %v2000, %v2016
  %v2021 = vmul.f32 %v2001, %v2016
  %v2022 = vmul.f32 %v2002, %v2016
  %v2023 = vmul.f32 %v2003, %v2016
  %v2024 = vmul.f32 %v2004, %v2016
  %v2025 = vmul.f32 %v2005, %v2016
  %v2026 = vmul.f32 %v2006, %v2016
  %v2027 = vmul.f32 %v2007, %v2016
  %v2028 = vmul.f32 %v2008, %v2016
  %v2029 = vmul.f32 %v2009, %v2016
  %v2030 = vmul.f32 %v2010, %v2016
  %v2031 = vmul.f32 %v2011, %v2016
  %v2032 = vmul.f32 %v2012, %v2016
  %v2033 = vld [vmem:[%s2 + $0x6] sm:$0x1]
  %v2034 = vlaneseq
  %v2035 = vshrl.u32 %v2034, 7
  %v2036 = vsub.s32 0, %v2035
  %v2037 = vrot.slane %v2033, %v2036
  %v2038 = vadd.f32 %v2017, %v2037
  %v2039 = vadd.f32 %v2018, %v2037
  %v2040 = vadd.f32 %v2019, %v2037
  %v2041 = vadd.f32 %v2020, %v2037
  %v2042 = vadd.f32 %v2021, %v2037
  %v2043 = vadd.f32 %v2022, %v2037
  %v2044 = vadd.f32 %v2023, %v2037
  %v2045 = vadd.f32 %v2024, %v2037
  %v2046 = vadd.f32 %v2025, %v2037
  %v2047 = vadd.f32 %v2026, %v2037
  %v2048 = vadd.f32 %v2027, %v2037
  %v2049 = vadd.f32 %v2028, %v2037
  %v2050 = vadd.f32 %v2029, %v2037
  %v2051 = vadd.f32 %v2030, %v2037
  %v2052 = vadd.f32 %v2031, %v2037
  %v2053 = vadd.f32 %v2032, %v2037
  %v2054 = vadd.f32 %v2038, %v469
  %v2055 = vadd.f32 %v2039, %v470
  %v2056 = vadd.f32 %v2040, %v471
  %v2057 = vadd.f32 %v2041, %v472
  %v2058 = vadd.f32 %v2042, %v473
  %v2059 = vadd.f32 %v2043, %v474
  %v2060 = vadd.f32 %v2044, %v475
  %v2061 = vadd.f32 %v2045, %v476
  %v2062 = vadd.f32 %v2046, %v477
  %v2063 = vadd.f32 %v2047, %v478
  %v2064 = vadd.f32 %v2048, %v479
  %v2065 = vadd.f32 %v2049, %v480
  %v2066 = vadd.f32 %v2050, %v481
  %v2067 = vadd.f32 %v2051, %v482
  %v2068 = vadd.f32 %v2052, %v483
  %v2069 = vadd.f32 %v2053, %v484
  %v2070 = vmax.f32 %v2054, 0.0
  %v2071 = vmax.f32 %v2055, 0.0
  %v2072 = vmax.f32 %v2056, 0.0
  %v2073 = vmax.f32 %v2057, 0.0
  %v2074 = vmax.f32 %v2058, 0.0
  %v2075 = vmax.f32 %v2059, 0.0
  %v2076 = vmax.f32 %v2060, 0.0
  %v2077 = vmax.f32 %v2061, 0.0
  %v2078 = vmax.f32 %v2062, 0.0
  %v2079 = vmax.f32 %v2063, 0.0
  %v2080 = vmax.f32 %v2064, 0.0
  %v2081 = vmax.f32 %v2065, 0.0
  %v2082 = vmax.f32 %v2066, 0.0
  %v2083 = vmax.f32 %v2067, 0.0
  %v2084 = vmax.f32 %v2068, 0.0
  %v2085 = vmax.f32 %v2069, 0.0
  %2086 = vst.msk [vmem:[#allocation2] sm:$0xff] %vm633, %v2070
  %2087 = vst.msk [vmem:[#allocation2 + $0x8] sm:$0xff] %vm633, %v2071
  %2088 = vst.msk [vmem:[#allocation2 + $0x10] sm:$0xff] %vm633, %v2072
  %2089 = vst.msk [vmem:[#allocation2 + $0x18] sm:$0xff] %vm633, %v2073
  %2090 = vst.msk [vmem:[#allocation2 + $0x20] sm:$0xff] %vm633, %v2074
  %2091 = vst.msk [vmem:[#allocation2 + $0x28] sm:$0xff] %vm633, %v2075
  %2092 = vst.msk [vmem:[#allocation2 + $0x30] sm:$0xff] %vm633, %v2076
  %2093 = vst.msk [vmem:[#allocation2 + $0x38] sm:$0xff] %vm633, %v2077
  %2094 = vst.msk [vmem:[#allocation2 + $0x40] sm:$0xff] %vm633, %v2078
  %2095 = vst.msk [vmem:[#allocation2 + $0x48] sm:$0xff] %vm633, %v2079
  %2096 = vst.msk [vmem:[#allocation2 + $0x50] sm:$0xff] %vm633, %v2080
  %2097 = vst.msk [vmem:[#allocation2 + $0x58] sm:$0xff] %vm633, %v2081
  %2098 = vst.msk [vmem:[#allocation2 + $0x60] sm:$0xff] %vm633, %v2082
  %2099 = vst.msk [vmem:[#allocation2 + $0x68] sm:$0xff] %vm633, %v2083
  %2100 = vst.msk [vmem:[#allocation2 + $0x70] sm:$0xff] %vm633, %v2084
  %2101 = vst.msk [vmem:[#allocation2 + $0x78] sm:$0xff] %vm633, %v2085
  %v2102 = vld [vmem:[#allocation2] ss:$2 sm:$0xff]
  %s2103 = scalar_lea.vmem [#allocation2], 16
  %v2104 = vld [vmem:[%s2103] ss:$2 sm:$0xff]
  %s2105 = scalar_lea.vmem [#allocation2], 32
  %v2106 = vld [vmem:[%s2105] ss:$2 sm:$0xff]
  %s2107 = scalar_lea.vmem [#allocation2], 48
  %v2108 = vld [vmem:[%s2107] ss:$2 sm:$0xff]
  %s2109 = scalar_lea.vmem [#allocation2], 64
  %v2110 = vld [vmem:[%s2109] ss:$2 sm:$0xff]
  %s2111 = scalar_lea.vmem [#allocation2], 80
  %v2112 = vld [vmem:[%s2111] ss:$2 sm:$0xff]
  %s2113 = scalar_lea.vmem [#allocation2], 96
  %v2114 = vld [vmem:[%s2113] ss:$2 sm:$0xff]
  %s2115 = scalar_lea.vmem [#allocation2], 112
  %v2116 = vld [vmem:[%s2115] ss:$2 sm:$0xff]
  %s2117 = scalar_lea.vmem [#allocation2], 1
  %v2118 = vld [vmem:[%s2117] ss:$2 sm:$0xff]
  %s2119 = scalar_lea.vmem [#allocation2], 17
  %v2120 = vld [vmem:[%s2119] ss:$2 sm:$0xff]
  %s2121 = scalar_lea.vmem [#allocation2], 33
  %v2122 = vld [vmem:[%s2121] ss:$2 sm:$0xff]
  %s2123 = scalar_lea.vmem [#allocation2], 49
  %v2124 = vld [vmem:[%s2123] ss:$2 sm:$0xff]
  %s2125 = scalar_lea.vmem [#allocation2], 65
  %v2126 = vld [vmem:[%s2125] ss:$2 sm:$0xff]
  %s2127 = scalar_lea.vmem [#allocation2], 81
  %v2128 = vld [vmem:[%s2127] ss:$2 sm:$0xff]
  %s2129 = scalar_lea.vmem [#allocation2], 97
  %v2130 = vld [vmem:[%s2129] ss:$2 sm:$0xff]
  %s2131 = scalar_lea.vmem [#allocation2], 113
  %v2132 = vld [vmem:[%s2131] ss:$2 sm:$0xff]
  %v2141 = vrot.slane %v2118, 7
  %v2142 = vrot.slane %v2120, 7
  %v2143 = vsel %vm47, %v2141, %v2142
  %v2144 = vrot.slane %v2122, 7
  %v2145 = vsel %vm47, %v2142, %v2144
  %v2146 = vrot.slane %v2124, 7
  %v2147 = vsel %vm47, %v2144, %v2146
  %v2148 = vrot.slane %v2126, 7
  %v2149 = vrot.slane %v2128, 7
  %v2150 = vsel %vm47, %v2148, %v2149
  %v2151 = vrot.slane %v2130, 7
  %v2152 = vsel %vm47, %v2149, %v2151
  %v2153 = vrot.slane %v2132, 7
  %v2154 = vsel %vm47, %v2151, %v2153
  %v2163 = vsel %vm47, 0.0, %v2141
  %v2164 = vsel %vm47, 0.0, %v2148
  %v2173 = vrot.slane %v2102, 1
  %v2174 = vrot.slane %v2104, 1
  %v2175 = vsel %vm176, %v2173, %v2174
  %v2176 = vrot.slane %v2106, 1
  %v2177 = vsel %vm176, %v2174, %v2176
  %v2178 = vrot.slane %v2108, 1
  %v2179 = vsel %vm176, %v2176, %v2178
  %v2180 = vrot.slane %v2110, 1
  %v2181 = vrot.slane %v2112, 1
  %v2182 = vsel %vm176, %v2180, %v2181
  %v2183 = vrot.slane %v2114, 1
  %v2184 = vsel %vm176, %v2181, %v2183
  %v2185 = vrot.slane %v2116, 1
  %v2186 = vsel %vm176, %v2183, %v2185
  %v2195 = vsel %vm176, %v2178, 0.0
  %v2196 = vsel %vm176, %v2185, 0.0
  %v2197 = vld [vmem:[%s1 + $0x34] sm:$0xf]
  %v2198 = vld [vmem:[%s1 + $0x38] sm:$0xf]
  %v2199 = vpack.c.bf16 %v2143, %v2163
  %v2200 = vpack.c.bf16 %v2147, %v2145
  %v2201 = vpack.c.bf16 %v2150, %v2164
  %v2202 = vpack.c.bf16 %v2154, %v2152
  %v2203 = vld [vmem:[%s1 + $0x3c] sm:$0xf]
  %v2204 = vld [vmem:[%s1 + $0x40] sm:$0xf]
  %v2205 = vpack.c.bf16 %v2104, %v2102
  %v2206 = vpack.c.bf16 %v2108, %v2106
  %v2207 = vpack.c.bf16 %v2112, %v2110
  %v2208 = vpack.c.bf16 %v2116, %v2114
  %v2211 = vunpack.c.l.b16 %v2203
  %v2212 = vunpack.c.l.b16 %v2204
  %v2213 = vpack.c.b16 %v2212, %v2211
  %v2216 = vsel %vm633, %v2205, 0
  %v2219 = vsel %vm633, %v2206, 0
  %v2222 = vsel %vm633, %v2207, 0
  %v2225 = vsel %vm633, %v2208, 0
  %2227 = vmatprep.subr.bf16.mxu0 0
  %2228 = vmatpush1.bf16.msra.mxu0 %v2213
  %2229 = vmatprep.subr.bf16.mxu0 0
  %2230 = vmatpush1.bf16.msra.mxu0 0
  %2231 = vmatprep.subr.bf16.mxu0 0
  %2232 = vmatpush1.bf16.msra.mxu0 0
  %2233 = vmatprep.subr.bf16.mxu0 0
  %2234 = vmatpush1.bf16.msra.mxu0 0
  %2235 = vmatprep.subr.bf16.mxu0 0
  %2236 = vmatpush1.bf16.msra.mxu0 0
  %2237 = vmatprep.subr.bf16.mxu0 0
  %2238 = vmatpush1.bf16.msra.mxu0 0
  %2239 = vmatprep.subr.bf16.mxu0 0
  %2240 = vmatpush1.bf16.msra.mxu0 0
  %2241 = vmatprep.subr.bf16.mxu0 0
  %2242 = vmatpush1.bf16.msra.mxu0 0
  %2243 = vmatprep.subr.bf16.mxu0 0
  %2244 = vmatpush1.bf16.msra.mxu0 0
  %2245 = vmatprep.subr.bf16.mxu0 0
  %2246 = vmatpush1.bf16.msra.mxu0 0
  %2247 = vmatprep.subr.bf16.mxu0 0
  %2248 = vmatpush1.bf16.msra.mxu0 0
  %2249 = vmatprep.subr.bf16.mxu0 0
  %2250 = vmatpush1.bf16.msra.mxu0 0
  %2251 = vmatprep.subr.bf16.mxu0 0
  %2252 = vmatpush1.bf16.msra.mxu0 0
  %2253 = vmatprep.subr.bf16.mxu0 0
  %2254 = vmatpush1.bf16.msra.mxu0 0
  %2255 = vmatprep.subr.bf16.mxu0 0
  %2256 = vmatpush1.bf16.msra.mxu0 0
  %2257 = vmatprep.subr.bf16.mxu0 0
  %2258 = vmatpush1.bf16.msra.mxu0 0
  %2259 = vmatprep.mubr.bf16.mxu0 0
  %2260 = vmatmul.mubr.bf16.gmra.mrb[0].mxu0 %v2216
  %v2261 = vpop.f32.mrb[0].mxu0
  %v2262 = vadd.f32 0.0, %v2261
  %v2263 = vpop.f32.mrb[0].mxu0
  %v2264 = vpop.f32.mrb[0].mxu0
  %v2265 = vadd.f32 0.0, %v2264
  %v2266 = vpop.f32.mrb[0].mxu0
  %2267 = vmatprep.mubr.bf16.mxu0 0
  %2268 = vmatmul.mubr.bf16.gmra.mrb[0].mxu0 %v2219
  %v2269 = vpop.f32.mrb[0].mxu0
  %v2270 = vadd.f32 0.0, %v2269
  %v2271 = vpop.f32.mrb[0].mxu0
  %v2272 = vpop.f32.mrb[0].mxu0
  %v2273 = vadd.f32 0.0, %v2272
  %v2274 = vpop.f32.mrb[0].mxu0
  %2275 = vmatprep.mubr.bf16.mxu0 0
  %2276 = vmatmul.mubr.bf16.gmra.mrb[0].mxu0 %v2222
  %v2277 = vpop.f32.mrb[0].mxu0
  %v2278 = vadd.f32 0.0, %v2277
  %v2279 = vpop.f32.mrb[0].mxu0
  %v2280 = vpop.f32.mrb[0].mxu0
  %v2281 = vadd.f32 0.0, %v2280
  %v2282 = vpop.f32.mrb[0].mxu0
  %2283 = vmatprep.mubr.bf16.mxu0 0
  %2284 = vmatmul.mubr.bf16.gmra.mrb[0].mxu0 %v2225
  %v2285 = vpop.f32.mrb[0].mxu0
  %v2286 = vadd.f32 0.0, %v2285
  %v2287 = vpop.f32.mrb[0].mxu0
  %v2288 = vpop.f32.mrb[0].mxu0
  %v2289 = vadd.f32 0.0, %v2288
  %v2290 = vpop.f32.mrb[0].mxu0
  %2291 = vdwg.mxu0
  %v2294 = vunpack.c.l.b16 %v2197
  %v2295 = vunpack.c.l.b16 %v2198
  %v2296 = vpack.c.b16 %v2295, %v2294
  %v2299 = vsel %vm633, %v2199, 0
  %v2302 = vsel %vm633, %v2200, 0
  %v2305 = vsel %vm633, %v2201, 0
  %v2308 = vsel %vm633, %v2202, 0
  %2310 = vmatprep.subr.bf16.mxu0 0
  %2311 = vmatpush1.bf16.msra.mxu0 %v2296
  %2312 = vmatprep.subr.bf16.mxu0 0
  %2313 = vmatpush1.bf16.msra.mxu0 0
  %2314 = vmatprep.subr.bf16.mxu0 0
  %2315 = vmatpush1.bf16.msra.mxu0 0
  %2316 = vmatprep.subr.bf16.mxu0 0
  %2317 = vmatpush1.bf16.msra.mxu0 0
  %2318 = vmatprep.subr.bf16.mxu0 0
  %2319 = vmatpush1.bf16.msra.mxu0 0
  %2320 = vmatprep.subr.bf16.mxu0 0
  %2321 = vmatpush1.bf16.msra.mxu0 0
  %2322 = vmatprep.subr.bf16.mxu0 0
  %2323 = vmatpush1.bf16.msra.mxu0 0
  %2324 = vmatprep.subr.bf16.mxu0 0
  %2325 = vmatpush1.bf16.msra.mxu0 0
  %2326 = vmatprep.subr.bf16.mxu0 0
  %2327 = vmatpush1.bf16.msra.mxu0 0
  %2328 = vmatprep.subr.bf16.mxu0 0
  %2329 = vmatpush1.bf16.msra.mxu0 0
  %2330 = vmatprep.subr.bf16.mxu0 0
  %2331 = vmatpush1.bf16.msra.mxu0 0
  %2332 = vmatprep.subr.bf16.mxu0 0
  %2333 = vmatpush1.bf16.msra.mxu0 0
  %2334 = vmatprep.subr.bf16.mxu0 0
  %2335 = vmatpush1.bf16.msra.mxu0 0
  %2336 = vmatprep.subr.bf16.mxu0 0
  %2337 = vmatpush1.bf16.msra.mxu0 0
  %2338 = vmatprep.subr.bf16.mxu0 0
  %2339 = vmatpush1.bf16.msra.mxu0 0
  %2340 = vmatprep.subr.bf16.mxu0 0
  %2341 = vmatpush1.bf16.msra.mxu0 0
  %2342 = vmatprep.mubr.bf16.mxu0 0
  %2343 = vmatmul.mubr.bf16.gmra.mrb[0].mxu0 %v2299
  %v2344 = vpop.f32.mrb[0].mxu0
  %v2345 = vadd.f32 %v2262, %v2344
  %v2346 = vpop.f32.mrb[0].mxu0
  %v2347 = vpop.f32.mrb[0].mxu0
  %v2348 = vadd.f32 %v2265, %v2347
  %v2349 = vpop.f32.mrb[0].mxu0
  %2350 = vmatprep.mubr.bf16.mxu0 0
  %2351 = vmatmul.mubr.bf16.gmra.mrb[0].mxu0 %v2302
  %v2352 = vpop.f32.mrb[0].mxu0
  %v2353 = vadd.f32 %v2270, %v2352
  %v2354 = vpop.f32.mrb[0].mxu0
  %v2355 = vpop.f32.mrb[0].mxu0
  %v2356 = vadd.f32 %v2273, %v2355
  %v2357 = vpop.f32.mrb[0].mxu0
  %2358 = vmatprep.mubr.bf16.mxu0 0
  %2359 = vmatmul.mubr.bf16.gmra.mrb[0].mxu0 %v2305
  %v2360 = vpop.f32.mrb[0].mxu0
  %v2361 = vadd.f32 %v2278, %v2360
  %v2362 = vpop.f32.mrb[0].mxu0
  %v2363 = vpop.f32.mrb[0].mxu0
  %v2364 = vadd.f32 %v2281, %v2363
  %v2365 = vpop.f32.mrb[0].mxu0
  %2366 = vmatprep.mubr.bf16.mxu0 0
  %2367 = vmatmul.mubr.bf16.gmra.mrb[0].mxu0 %v2308
  %v2368 = vpop.f32.mrb[0].mxu0
  %v2369 = vadd.f32 %v2286, %v2368
  %v2370 = vpop.f32.mrb[0].mxu0
  %v2371 = vpop.f32.mrb[0].mxu0
  %v2372 = vadd.f32 %v2289, %v2371
  %v2373 = vpop.f32.mrb[0].mxu0
  %2374 = vdwg.mxu0
  %v2375 = vld [vmem:[%s1 + $0x44] sm:$0xf]
  %v2376 = vld [vmem:[%s1 + $0x48] sm:$0xf]
  %v2377 = vpack.c.bf16 %v2120, %v2118
  %v2378 = vpack.c.bf16 %v2124, %v2122
  %v2379 = vpack.c.bf16 %v2128, %v2126
  %v2380 = vpack.c.bf16 %v2132, %v2130
  %v2383 = vunpack.c.l.b16 %v2375
  %v2384 = vunpack.c.l.b16 %v2376
  %v2385 = vpack.c.b16 %v2384, %v2383
  %v2388 = vsel %vm633, %v2377, 0
  %v2391 = vsel %vm633, %v2378, 0
  %v2394 = vsel %vm633, %v2379, 0
  %v2397 = vsel %vm633, %v2380, 0
  %2399 = vmatprep.subr.bf16.mxu0 0
  %2400 = vmatpush1.bf16.msra.mxu0 %v2385
  %2401 = vmatprep.subr.bf16.mxu0 0
  %2402 = vmatpush1.bf16.msra.mxu0 0
  %2403 = vmatprep.subr.bf16.mxu0 0
  %2404 = vmatpush1.bf16.msra.mxu0 0
  %2405 = vmatprep.subr.bf16.mxu0 0
  %2406 = vmatpush1.bf16.msra.mxu0 0
  %2407 = vmatprep.subr.bf16.mxu0 0
  %2408 = vmatpush1.bf16.msra.mxu0 0
  %2409 = vmatprep.subr.bf16.mxu0 0
  %2410 = vmatpush1.bf16.msra.mxu0 0
  %2411 = vmatprep.subr.bf16.mxu0 0
  %2412 = vmatpush1.bf16.msra.mxu0 0
  %2413 = vmatprep.subr.bf16.mxu0 0
  %2414 = vmatpush1.bf16.msra.mxu0 0
  %2415 = vmatprep.subr.bf16.mxu0 0
  %2416 = vmatpush1.bf16.msra.mxu0 0
  %2417 = vmatprep.subr.bf16.mxu0 0
  %2418 = vmatpush1.bf16.msra.mxu0 0
  %2419 = vmatprep.subr.bf16.mxu0 0
  %2420 = vmatpush1.bf16.msra.mxu0 0
  %2421 = vmatprep.subr.bf16.mxu0 0
  %2422 = vmatpush1.bf16.msra.mxu0 0
  %2423 = vmatprep.subr.bf16.mxu0 0
  %2424 = vmatpush1.bf16.msra.mxu0 0
  %2425 = vmatprep.subr.bf16.mxu0 0
  %2426 = vmatpush1.bf16.msra.mxu0 0
  %2427 = vmatprep.subr.bf16.mxu0 0
  %2428 = vmatpush1.bf16.msra.mxu0 0
  %2429 = vmatprep.subr.bf16.mxu0 0
  %2430 = vmatpush1.bf16.msra.mxu0 0
  %2431 = vmatprep.mubr.bf16.mxu0 0
  %2432 = vmatmul.mubr.bf16.gmra.mrb[0].mxu0 %v2388
  %v2433 = vpop.f32.mrb[0].mxu0
  %v2434 = vadd.f32 0.0, %v2433
  %v2435 = vpop.f32.mrb[0].mxu0
  %v2436 = vpop.f32.mrb[0].mxu0
  %v2437 = vadd.f32 0.0, %v2436
  %v2438 = vpop.f32.mrb[0].mxu0
  %2439 = vmatprep.mubr.bf16.mxu0 0
  %2440 = vmatmul.mubr.bf16.gmra.mrb[0].mxu0 %v2391
  %v2441 = vpop.f32.mrb[0].mxu0
  %v2442 = vadd.f32 0.0, %v2441
  %v2443 = vpop.f32.mrb[0].mxu0
  %v2444 = vpop.f32.mrb[0].mxu0
  %v2445 = vadd.f32 0.0, %v2444
  %v2446 = vpop.f32.mrb[0].mxu0
  %2447 = vmatprep.mubr.bf16.mxu0 0
  %2448 = vmatmul.mubr.bf16.gmra.mrb[0].mxu0 %v2394
  %v2449 = vpop.f32.mrb[0].mxu0
  %v2450 = vadd.f32 0.0, %v2449
  %v2451 = vpop.f32.mrb[0].mxu0
  %v2452 = vpop.f32.mrb[0].mxu0
  %v2453 = vadd.f32 0.0, %v2452
  %v2454 = vpop.f32.mrb[0].mxu0
  %2455 = vmatprep.mubr.bf16.mxu0 0
  %2456 = vmatmul.mubr.bf16.gmra.mrb[0].mxu0 %v2397
  %v2457 = vpop.f32.mrb[0].mxu0
  %v2458 = vadd.f32 0.0, %v2457
  %v2459 = vpop.f32.mrb[0].mxu0
  %v2460 = vpop.f32.mrb[0].mxu0
  %v2461 = vadd.f32 0.0, %v2460
  %v2462 = vpop.f32.mrb[0].mxu0
  %2463 = vdwg.mxu0
  %v2464 = vadd.f32 %v2345, %v2434
  %v2465 = vadd.f32 %v2348, %v2437
  %v2466 = vadd.f32 %v2353, %v2442
  %v2467 = vadd.f32 %v2356, %v2445
  %v2468 = vadd.f32 %v2361, %v2450
  %v2469 = vadd.f32 %v2364, %v2453
  %v2470 = vadd.f32 %v2369, %v2458
  %v2471 = vadd.f32 %v2372, %v2461
  %v2472 = vld [vmem:[%s1 + $0x4c] sm:$0xf]
  %v2473 = vld [vmem:[%s1 + $0x50] sm:$0xf]
  %v2474 = vpack.c.bf16 %v2177, %v2175
  %v2475 = vpack.c.bf16 %v2195, %v2179
  %v2476 = vpack.c.bf16 %v2184, %v2182
  %v2477 = vpack.c.bf16 %v2196, %v2186
  %v2480 = vunpack.c.l.b16 %v2472
  %v2481 = vunpack.c.l.b16 %v2473
  %v2482 = vpack.c.b16 %v2481, %v2480
  %v2485 = vsel %vm633, %v2474, 0
  %v2488 = vsel %vm633, %v2475, 0
  %v2491 = vsel %vm633, %v2476, 0
  %v2494 = vsel %vm633, %v2477, 0
  %2496 = vmatprep.subr.bf16.mxu0 0
  %2497 = vmatpush1.bf16.msra.mxu0 %v2482
  %2498 = vmatprep.subr.bf16.mxu0 0
  %2499 = vmatpush1.bf16.msra.mxu0 0
  %2500 = vmatprep.subr.bf16.mxu0 0
  %2501 = vmatpush1.bf16.msra.mxu0 0
  %2502 = vmatprep.subr.bf16.mxu0 0
  %2503 = vmatpush1.bf16.msra.mxu0 0
  %2504 = vmatprep.subr.bf16.mxu0 0
  %2505 = vmatpush1.bf16.msra.mxu0 0
  %2506 = vmatprep.subr.bf16.mxu0 0
  %2507 = vmatpush1.bf16.msra.mxu0 0
  %2508 = vmatprep.subr.bf16.mxu0 0
  %2509 = vmatpush1.bf16.msra.mxu0 0
  %2510 = vmatprep.subr.bf16.mxu0 0
  %2511 = vmatpush1.bf16.msra.mxu0 0
  %2512 = vmatprep.subr.bf16.mxu0 0
  %2513 = vmatpush1.bf16.msra.mxu0 0
  %2514 = vmatprep.subr.bf16.mxu0 0
  %2515 = vmatpush1.bf16.msra.mxu0 0
  %2516 = vmatprep.subr.bf16.mxu0 0
  %2517 = vmatpush1.bf16.msra.mxu0 0
  %2518 = vmatprep.subr.bf16.mxu0 0
  %2519 = vmatpush1.bf16.msra.mxu0 0
  %2520 = vmatprep.subr.bf16.mxu0 0
  %2521 = vmatpush1.bf16.msra.mxu0 0
  %2522 = vmatprep.subr.bf16.mxu0 0
  %2523 = vmatpush1.bf16.msra.mxu0 0
  %2524 = vmatprep.subr.bf16.mxu0 0
  %2525 = vmatpush1.bf16.msra.mxu0 0
  %2526 = vmatprep.subr.bf16.mxu0 0
  %2527 = vmatpush1.bf16.msra.mxu0 0
  %2528 = vmatprep.mubr.bf16.mxu0 0
  %2529 = vmatmul.mubr.bf16.gmra.mrb[0].mxu0 %v2485
  %v2530 = vpop.f32.mrb[0].mxu0
  %v2531 = vadd.f32 0.0, %v2530
  %v2532 = vpop.f32.mrb[0].mxu0
  %v2533 = vpop.f32.mrb[0].mxu0
  %v2534 = vadd.f32 0.0, %v2533
  %v2535 = vpop.f32.mrb[0].mxu0
  %2536 = vmatprep.mubr.bf16.mxu0 0
  %2537 = vmatmul.mubr.bf16.gmra.mrb[0].mxu0 %v2488
  %v2538 = vpop.f32.mrb[0].mxu0
  %v2539 = vadd.f32 0.0, %v2538
  %v2540 = vpop.f32.mrb[0].mxu0
  %v2541 = vpop.f32.mrb[0].mxu0
  %v2542 = vadd.f32 0.0, %v2541
  %v2543 = vpop.f32.mrb[0].mxu0
  %2544 = vmatprep.mubr.bf16.mxu0 0
  %2545 = vmatmul.mubr.bf16.gmra.mrb[0].mxu0 %v2491
  %v2546 = vpop.f32.mrb[0].mxu0
  %v2547 = vadd.f32 0.0, %v2546
  %v2548 = vpop.f32.mrb[0].mxu0
  %v2549 = vpop.f32.mrb[0].mxu0
  %v2550 = vadd.f32 0.0, %v2549
  %v2551 = vpop.f32.mrb[0].mxu0
  %2552 = vmatprep.mubr.bf16.mxu0 0
  %2553 = vmatmul.mubr.bf16.gmra.mrb[0].mxu0 %v2494
  %v2554 = vpop.f32.mrb[0].mxu0
  %v2555 = vadd.f32 0.0, %v2554
  %v2556 = vpop.f32.mrb[0].mxu0
  %v2557 = vpop.f32.mrb[0].mxu0
  %v2558 = vadd.f32 0.0, %v2557
  %v2559 = vpop.f32.mrb[0].mxu0
  %2560 = vdwg.mxu0
  %v2561 = vadd.f32 %v2464, %v2531
  %v2562 = vadd.f32 %v2465, %v2534
  %v2563 = vadd.f32 %v2466, %v2539
  %v2564 = vadd.f32 %v2467, %v2542
  %v2565 = vadd.f32 %v2468, %v2547
  %v2566 = vadd.f32 %v2469, %v2550
  %v2567 = vadd.f32 %v2470, %v2555
  %v2568 = vadd.f32 %v2471, %v2558
  %v2569 = vld [vmem:[%s2 + $0x7] sm:$0x1]
  %v2570 = vlaneseq
  %v2571 = vshrl.u32 %v2570, 7
  %v2572 = vsub.s32 0, %v2571
  %v2573 = vrot.slane %v2569, %v2572
  %v2574 = vadd.f32 %v2561, %v2573
  %v2575 = vadd.f32 %v2562, %v2573
  %v2576 = vadd.f32 %v2563, %v2573
  %v2577 = vadd.f32 %v2564, %v2573
  %v2578 = vadd.f32 %v2565, %v2573
  %v2579 = vadd.f32 %v2566, %v2573
  %v2580 = vadd.f32 %v2567, %v2573
  %v2581 = vadd.f32 %v2568, %v2573
  %v2590 = vrot.slane %v2574, 7
  %v2591 = vrot.slane %v2575, 7
  %v2592 = vsel %vm47, %v2590, %v2591
  %v2593 = vrot.slane %v2576, 7
  %v2594 = vsel %vm47, %v2591, %v2593
  %v2595 = vrot.slane %v2577, 7
  %v2596 = vsel %vm47, %v2593, %v2595
  %v2597 = vrot.slane %v2578, 7
  %v2598 = vrot.slane %v2579, 7
  %v2599 = vsel %vm47, %v2597, %v2598
  %v2600 = vrot.slane %v2580, 7
  %v2601 = vsel %vm47, %v2598, %v2600
  %v2602 = vrot.slane %v2581, 7
  %v2603 = vsel %vm47, %v2600, %v2602
  %v2614 = vsel %vm47, 0.0, %v2590
  %v2615 = vsel %vm47, 0.0, %v2597
  %v2616 = vsel %vm47, %v2595, 0.0
  %v2617 = vsel %vm47, %v2602, 0.0
  %v2618 = vld [vmem:[%s1 + $0x54] sm:$0xf]
  %v2619 = vld [vmem:[%s1 + $0x58] sm:$0xf]
  %v2620 = vld [vmem:[%s1 + $0x5c] sm:$0xf]
  %v2621 = vld [vmem:[%s1 + $0x60] sm:$0xf]
  %v2622 = vpack.c.bf16 %v2592, %v2614
  %v2623 = vpack.c.bf16 %v2596, %v2594
  %v2624 = vpack.c.bf16 %v2599, %v2615
  %v2625 = vpack.c.bf16 %v2603, %v2601
  %v2630 = vrot.slane %v2614, 1
  %v2631 = vrot.slane %v2592, 1
  %v2632 = vsel %vm176, %v2630, %v2631
  %v2633 = vrot.slane %v2594, 1
  %v2634 = vsel %vm176, %v2631, %v2633
  %v2635 = vrot.slane %v2596, 1
  %v2636 = vsel %vm176, %v2633, %v2635
  %v2637 = vrot.slane %v2616, 1
  %v2638 = vsel %vm176, %v2635, %v2637
  %v2639 = vrot.slane %v2615, 1
  %v2640 = vrot.slane %v2599, 1
  %v2641 = vsel %vm176, %v2639, %v2640
  %v2642 = vrot.slane %v2601, 1
  %v2643 = vsel %vm176, %v2640, %v2642
  %v2644 = vrot.slane %v2603, 1
  %v2645 = vsel %vm176, %v2642, %v2644
  %v2646 = vrot.slane %v2617, 1
  %v2647 = vsel %vm176, %v2644, %v2646
  %v2656 = vld [vmem:[%s1 + $0x64] sm:$0xf]
  %v2657 = vld [vmem:[%s1 + $0x68] sm:$0xf]
  %v2658 = vld [vmem:[%s1 + $0x6c] sm:$0xf]
  %v2659 = vld [vmem:[%s1 + $0x70] sm:$0xf]
  %v2660 = vpack.c.bf16 %v2634, %v2632
  %v2661 = vpack.c.bf16 %v2638, %v2636
  %v2662 = vpack.c.bf16 %v2643, %v2641
  %v2663 = vpack.c.bf16 %v2647, %v2645
  %v2668 = vunpack.c.l.b16 %v2656
  %v2669 = vunpack.c.l.b16 %v2657
  %v2670 = vunpack.c.l.b16 %v2658
  %v2671 = vunpack.c.l.b16 %v2659
  %v2672 = vpack.c.b16 %v2669, %v2668
  %v2673 = vpack.c.b16 %v2671, %v2670
  %vm2676 = vcmask 261120
  %v2678 = vsel %vm2676, %v2660, 0
  %v2681 = vsel %vm2676, %v2661, 0
  %v2684 = vsel %vm2676, %v2662, 0
  %v2687 = vsel %vm2676, %v2663, 0
  %2689 = vmatprep.subr.bf16.mxu0 0
  %2690 = vmatpush1.bf16.msra.mxu0 %v2672
  %2691 = vmatprep.subr.bf16.mxu0 0
  %2692 = vmatpush1.bf16.msra.mxu0 %v2673
  %2693 = vmatprep.subr.bf16.mxu0 0
  %2694 = vmatpush1.bf16.msra.mxu0 0
  %2695 = vmatprep.subr.bf16.mxu0 0
  %2696 = vmatpush1.bf16.msra.mxu0 0
  %2697 = vmatprep.subr.bf16.mxu0 0
  %2698 = vmatpush1.bf16.msra.mxu0 0
  %2699 = vmatprep.subr.bf16.mxu0 0
  %2700 = vmatpush1.bf16.msra.mxu0 0
  %2701 = vmatprep.subr.bf16.mxu0 0
  %2702 = vmatpush1.bf16.msra.mxu0 0
  %2703 = vmatprep.subr.bf16.mxu0 0
  %2704 = vmatpush1.bf16.msra.mxu0 0
  %2705 = vmatprep.subr.bf16.mxu0 0
  %2706 = vmatpush1.bf16.msra.mxu0 0
  %2707 = vmatprep.subr.bf16.mxu0 0
  %2708 = vmatpush1.bf16.msra.mxu0 0
  %2709 = vmatprep.subr.bf16.mxu0 0
  %2710 = vmatpush1.bf16.msra.mxu0 0
  %2711 = vmatprep.subr.bf16.mxu0 0
  %2712 = vmatpush1.bf16.msra.mxu0 0
  %2713 = vmatprep.subr.bf16.mxu0 0
  %2714 = vmatpush1.bf16.msra.mxu0 0
  %2715 = vmatprep.subr.bf16.mxu0 0
  %2716 = vmatpush1.bf16.msra.mxu0 0
  %2717 = vmatprep.subr.bf16.mxu0 0
  %2718 = vmatpush1.bf16.msra.mxu0 0
  %2719 = vmatprep.subr.bf16.mxu0 0
  %2720 = vmatpush1.bf16.msra.mxu0 0
  %2721 = vmatprep.mubr.bf16.mxu0 0
  %2722 = vmatmul.mubr.bf16.gmra.mrb[0].mxu0 %v2678
  %v2723 = vpop.f32.mrb[0].mxu0
  %v2724 = vadd.f32 0.0, %v2723
  %v2725 = vpop.f32.mrb[0].mxu0
  %v2726 = vpop.f32.mrb[0].mxu0
  %v2727 = vadd.f32 0.0, %v2726
  %v2728 = vpop.f32.mrb[0].mxu0
  %2729 = vmatprep.mubr.bf16.mxu0 0
  %2730 = vmatmul.mubr.bf16.gmra.mrb[0].mxu0 %v2681
  %v2731 = vpop.f32.mrb[0].mxu0
  %v2732 = vadd.f32 0.0, %v2731
  %v2733 = vpop.f32.mrb[0].mxu0
  %v2734 = vpop.f32.mrb[0].mxu0
  %v2735 = vadd.f32 0.0, %v2734
  %v2736 = vpop.f32.mrb[0].mxu0
  %2737 = vmatprep.mubr.bf16.mxu0 0
  %2738 = vmatmul.mubr.bf16.gmra.mrb[0].mxu0 %v2684
  %v2739 = vpop.f32.mrb[0].mxu0
  %v2740 = vadd.f32 0.0, %v2739
  %v2741 = vpop.f32.mrb[0].mxu0
  %v2742 = vpop.f32.mrb[0].mxu0
  %v2743 = vadd.f32 0.0, %v2742
  %v2744 = vpop.f32.mrb[0].mxu0
  %2745 = vmatprep.mubr.bf16.mxu0 0
  %2746 = vmatmul.mubr.bf16.gmra.mrb[0].mxu0 %v2687
  %v2747 = vpop.f32.mrb[0].mxu0
  %v2748 = vadd.f32 0.0, %v2747
  %v2749 = vpop.f32.mrb[0].mxu0
  %v2750 = vpop.f32.mrb[0].mxu0
  %v2751 = vadd.f32 0.0, %v2750
  %v2752 = vpop.f32.mrb[0].mxu0
  %2753 = vdwg.mxu0
  %v2758 = vunpack.c.l.b16 %v2618
  %v2759 = vunpack.c.l.b16 %v2619
  %v2760 = vunpack.c.l.b16 %v2620
  %v2761 = vunpack.c.l.b16 %v2621
  %v2762 = vpack.c.b16 %v2759, %v2758
  %v2763 = vpack.c.b16 %v2761, %v2760
  %v2767 = vsel %vm2676, %v2622, 0
  %v2770 = vsel %vm2676, %v2623, 0
  %v2773 = vsel %vm2676, %v2624, 0
  %v2776 = vsel %vm2676, %v2625, 0
  %2778 = vmatprep.subr.bf16.mxu0 0
  %2779 = vmatpush1.bf16.msra.mxu0 %v2762
  %2780 = vmatprep.subr.bf16.mxu0 0
  %2781 = vmatpush1.bf16.msra.mxu0 %v2763
  %2782 = vmatprep.subr.bf16.mxu0 0
  %2783 = vmatpush1.bf16.msra.mxu0 0
  %2784 = vmatprep.subr.bf16.mxu0 0
  %2785 = vmatpush1.bf16.msra.mxu0 0
  %2786 = vmatprep.subr.bf16.mxu0 0
  %2787 = vmatpush1.bf16.msra.mxu0 0
  %2788 = vmatprep.subr.bf16.mxu0 0
  %2789 = vmatpush1.bf16.msra.mxu0 0
  %2790 = vmatprep.subr.bf16.mxu0 0
  %2791 = vmatpush1.bf16.msra.mxu0 0
  %2792 = vmatprep.subr.bf16.mxu0 0
  %2793 = vmatpush1.bf16.msra.mxu0 0
  %2794 = vmatprep.subr.bf16.mxu0 0
  %2795 = vmatpush1.bf16.msra.mxu0 0
  %2796 = vmatprep.subr.bf16.mxu0 0
  %2797 = vmatpush1.bf16.msra.mxu0 0
  %2798 = vmatprep.subr.bf16.mxu0 0
  %2799 = vmatpush1.bf16.msra.mxu0 0
  %2800 = vmatprep.subr.bf16.mxu0 0
  %2801 = vmatpush1.bf16.msra.mxu0 0
  %2802 = vmatprep.subr.bf16.mxu0 0
  %2803 = vmatpush1.bf16.msra.mxu0 0
  %2804 = vmatprep.subr.bf16.mxu0 0
  %2805 = vmatpush1.bf16.msra.mxu0 0
  %2806 = vmatprep.subr.bf16.mxu0 0
  %2807 = vmatpush1.bf16.msra.mxu0 0
  %2808 = vmatprep.subr.bf16.mxu0 0
  %2809 = vmatpush1.bf16.msra.mxu0 0
  %2810 = vmatprep.mubr.bf16.mxu0 0
  %2811 = vmatmul.mubr.bf16.gmra.mrb[0].mxu0 %v2767
  %v2812 = vpop.f32.mrb[0].mxu0
  %v2813 = vadd.f32 %v2724, %v2812
  %v2814 = vpop.f32.mrb[0].mxu0
  %v2815 = vpop.f32.mrb[0].mxu0
  %v2816 = vadd.f32 %v2727, %v2815
  %v2817 = vpop.f32.mrb[0].mxu0
  %2818 = vmatprep.mubr.bf16.mxu0 0
  %2819 = vmatmul.mubr.bf16.gmra.mrb[0].mxu0 %v2770
  %v2820 = vpop.f32.mrb[0].mxu0
  %v2821 = vadd.f32 %v2732, %v2820
  %v2822 = vpop.f32.mrb[0].mxu0
  %v2823 = vpop.f32.mrb[0].mxu0
  %v2824 = vadd.f32 %v2735, %v2823
  %v2825 = vpop.f32.mrb[0].mxu0
  %2826 = vmatprep.mubr.bf16.mxu0 0
  %2827 = vmatmul.mubr.bf16.gmra.mrb[0].mxu0 %v2773
  %v2828 = vpop.f32.mrb[0].mxu0
  %v2829 = vadd.f32 %v2740, %v2828
  %v2830 = vpop.f32.mrb[0].mxu0
  %v2831 = vpop.f32.mrb[0].mxu0
  %v2832 = vadd.f32 %v2743, %v2831
  %v2833 = vpop.f32.mrb[0].mxu0
  %2834 = vmatprep.mubr.bf16.mxu0 0
  %2835 = vmatmul.mubr.bf16.gmra.mrb[0].mxu0 %v2776
  %v2836 = vpop.f32.mrb[0].mxu0
  %v2837 = vadd.f32 %v2748, %v2836
  %v2838 = vpop.f32.mrb[0].mxu0
  %v2839 = vpop.f32.mrb[0].mxu0
  %v2840 = vadd.f32 %v2751, %v2839
  %v2841 = vpop.f32.mrb[0].mxu0
  %2842 = vdwg.mxu0
  %v2843 = vrot.slane %v2614, 2
  %v2844 = vrot.slane %v2592, 2
  %v2845 = vsel %vm311, %v2843, %v2844
  %v2846 = vrot.slane %v2594, 2
  %v2847 = vsel %vm311, %v2844, %v2846
  %v2848 = vrot.slane %v2596, 2
  %v2849 = vsel %vm311, %v2846, %v2848
  %v2850 = vrot.slane %v2616, 2
  %v2851 = vsel %vm311, %v2848, %v2850
  %v2852 = vrot.slane %v2615, 2
  %v2853 = vrot.slane %v2599, 2
  %v2854 = vsel %vm311, %v2852, %v2853
  %v2855 = vrot.slane %v2601, 2
  %v2856 = vsel %vm311, %v2853, %v2855
  %v2857 = vrot.slane %v2603, 2
  %v2858 = vsel %vm311, %v2855, %v2857
  %v2859 = vrot.slane %v2617, 2
  %v2860 = vsel %vm311, %v2857, %v2859
  %v2869 = vld [vmem:[%s1 + $0x74] sm:$0xf]
  %v2870 = vld [vmem:[%s1 + $0x78] sm:$0xf]
  %v2871 = vld [vmem:[%s1 + $0x7c] sm:$0xf]
  %v2872 = vld [vmem:[%s1 + $0x80] sm:$0xf]
  %v2873 = vpack.c.bf16 %v2847, %v2845
  %v2874 = vpack.c.bf16 %v2851, %v2849
  %v2875 = vpack.c.bf16 %v2856, %v2854
  %v2876 = vpack.c.bf16 %v2860, %v2858
  %v2881 = vunpack.c.l.b16 %v2869
  %v2882 = vunpack.c.l.b16 %v2870
  %v2883 = vunpack.c.l.b16 %v2871
  %v2884 = vunpack.c.l.b16 %v2872
  %v2885 = vpack.c.b16 %v2882, %v2881
  %v2886 = vpack.c.b16 %v2884, %v2883
  %v2890 = vsel %vm2676, %v2873, 0
  %v2893 = vsel %vm2676, %v2874, 0
  %v2896 = vsel %vm2676, %v2875, 0
  %v2899 = vsel %vm2676, %v2876, 0
  %2901 = vmatprep.subr.bf16.mxu0 0
  %2902 = vmatpush1.bf16.msra.mxu0 %v2885
  %2903 = vmatprep.subr.bf16.mxu0 0
  %2904 = vmatpush1.bf16.msra.mxu0 %v2886
  %2905 = vmatprep.subr.bf16.mxu0 0
  %2906 = vmatpush1.bf16.msra.mxu0 0
  %2907 = vmatprep.subr.bf16.mxu0 0
  %2908 = vmatpush1.bf16.msra.mxu0 0
  %2909 = vmatprep.subr.bf16.mxu0 0
  %2910 = vmatpush1.bf16.msra.mxu0 0
  %2911 = vmatprep.subr.bf16.mxu0 0
  %2912 = vmatpush1.bf16.msra.mxu0 0
  %2913 = vmatprep.subr.bf16.mxu0 0
  %2914 = vmatpush1.bf16.msra.mxu0 0
  %2915 = vmatprep.subr.bf16.mxu0 0
  %2916 = vmatpush1.bf16.msra.mxu0 0
  %2917 = vmatprep.subr.bf16.mxu0 0
  %2918 = vmatpush1.bf16.msra.mxu0 0
  %2919 = vmatprep.subr.bf16.mxu0 0
  %2920 = vmatpush1.bf16.msra.mxu0 0
  %2921 = vmatprep.subr.bf16.mxu0 0
  %2922 = vmatpush1.bf16.msra.mxu0 0
  %2923 = vmatprep.subr.bf16.mxu0 0
  %2924 = vmatpush1.bf16.msra.mxu0 0
  %2925 = vmatprep.subr.bf16.mxu0 0
  %2926 = vmatpush1.bf16.msra.mxu0 0
  %2927 = vmatprep.subr.bf16.mxu0 0
  %2928 = vmatpush1.bf16.msra.mxu0 0
  %2929 = vmatprep.subr.bf16.mxu0 0
  %2930 = vmatpush1.bf16.msra.mxu0 0
  %2931 = vmatprep.subr.bf16.mxu0 0
  %2932 = vmatpush1.bf16.msra.mxu0 0
  %2933 = vmatprep.mubr.bf16.mxu0 0
  %2934 = vmatmul.mubr.bf16.gmra.mrb[0].mxu0 %v2890
  %v2935 = vpop.f32.mrb[0].mxu0
  %v2936 = vadd.f32 0.0, %v2935
  %v2937 = vpop.f32.mrb[0].mxu0
  %v2938 = vpop.f32.mrb[0].mxu0
  %v2939 = vadd.f32 0.0, %v2938
  %v2940 = vpop.f32.mrb[0].mxu0
  %2941 = vmatprep.mubr.bf16.mxu0 0
  %2942 = vmatmul.mubr.bf16.gmra.mrb[0].mxu0 %v2893
  %v2943 = vpop.f32.mrb[0].mxu0
  %v2944 = vadd.f32 0.0, %v2943
  %v2945 = vpop.f32.mrb[0].mxu0
  %v2946 = vpop.f32.mrb[0].mxu0
  %v2947 = vadd.f32 0.0, %v2946
  %v2948 = vpop.f32.mrb[0].mxu0
  %2949 = vmatprep.mubr.bf16.mxu0 0
  %2950 = vmatmul.mubr.bf16.gmra.mrb[0].mxu0 %v2896
  %v2951 = vpop.f32.mrb[0].mxu0
  %v2952 = vadd.f32 0.0, %v2951
  %v2953 = vpop.f32.mrb[0].mxu0
  %v2954 = vpop.f32.mrb[0].mxu0
  %v2955 = vadd.f32 0.0, %v2954
  %v2956 = vpop.f32.mrb[0].mxu0
  %2957 = vmatprep.mubr.bf16.mxu0 0
  %2958 = vmatmul.mubr.bf16.gmra.mrb[0].mxu0 %v2899
  %v2959 = vpop.f32.mrb[0].mxu0
  %v2960 = vadd.f32 0.0, %v2959
  %v2961 = vpop.f32.mrb[0].mxu0
  %v2962 = vpop.f32.mrb[0].mxu0
  %v2963 = vadd.f32 0.0, %v2962
  %v2964 = vpop.f32.mrb[0].mxu0
  %2965 = vdwg.mxu0
  %v2966 = vadd.f32 %v2813, %v2936
  %v2967 = vadd.f32 %v2816, %v2939
  %v2968 = vadd.f32 %v2821, %v2944
  %v2969 = vadd.f32 %v2824, %v2947
  %v2970 = vadd.f32 %v2829, %v2952
  %v2971 = vadd.f32 %v2832, %v2955
  %v2972 = vadd.f32 %v2837, %v2960
  %v2973 = vadd.f32 %v2840, %v2963
  %v2974 = vld [vmem:[%s2 + $0x8] sm:$0x1]
  %v2975 = vlaneseq
  %v2976 = vshrl.u32 %v2975, 7
  %v2977 = vsub.s32 0, %v2976
  %v2978 = vrot.slane %v2974, %v2977
  %v2979 = vadd.f32 %v2966, %v2978
  %v2980 = vadd.f32 %v2967, %v2978
  %v2981 = vadd.f32 %v2968, %v2978
  %v2982 = vadd.f32 %v2969, %v2978
  %v2983 = vadd.f32 %v2970, %v2978
  %v2984 = vadd.f32 %v2971, %v2978
  %v2985 = vadd.f32 %v2972, %v2978
  %v2986 = vadd.f32 %v2973, %v2978
  %v2987 = vsel %vm2676, %v2979, 0.0
  %v2988 = vsel %vm2676, %v2980, 0.0
  %v2989 = vadd.f32 %v2987, %v2988
  %v2990 = vsel %vm2676, %v2981, 0.0
  %v2991 = vadd.f32 %v2989, %v2990
  %v2992 = vsel %vm2676, %v2982, 0.0
  %v2993 = vadd.f32 %v2991, %v2992
  %v2994 = vsel %vm2676, %v2983, 0.0
  %v2995 = vadd.f32 %v2993, %v2994
  %v2996 = vsel %vm2676, %v2984, 0.0
  %v2997 = vadd.f32 %v2995, %v2996
  %v2998 = vsel %vm2676, %v2985, 0.0
  %v2999 = vadd.f32 %v2997, %v2998
  %v3000 = vsel %vm2676, %v2986, 0.0
  %v3001 = vadd.f32 %v2999, %v3000
  %v3002 = vrot.slane %v3001, 4
  %v3003 = vadd.f32 %v3001, %v3002
  %v3004 = vrot.slane %v3003, 2
  %v3005 = vadd.f32 %v3003, %v3004
  %v3006 = vrot.slane %v3005, 1
  %v3007 = vadd.f32 %v3005, %v3006
  %v3008 = vmul.f32 %v2979, %v2979
  %v3009 = vmul.f32 %v2980, %v2980
  %v3010 = vmul.f32 %v2981, %v2981
  %v3011 = vmul.f32 %v2982, %v2982
  %v3012 = vmul.f32 %v2983, %v2983
  %v3013 = vmul.f32 %v2984, %v2984
  %v3014 = vmul.f32 %v2985, %v2985
  %v3015 = vmul.f32 %v2986, %v2986
  %v3016 = vsel %vm2676, %v3008, 0.0
  %v3017 = vsel %vm2676, %v3009, 0.0
  %v3018 = vadd.f32 %v3016, %v3017
  %v3019 = vsel %vm2676, %v3010, 0.0
  %v3020 = vadd.f32 %v3018, %v3019
  %v3021 = vsel %vm2676, %v3011, 0.0
  %v3022 = vadd.f32 %v3020, %v3021
  %v3023 = vsel %vm2676, %v3012, 0.0
  %v3024 = vadd.f32 %v3022, %v3023
  %v3025 = vsel %vm2676, %v3013, 0.0
  %v3026 = vadd.f32 %v3024, %v3025
  %v3027 = vsel %vm2676, %v3014, 0.0
  %v3028 = vadd.f32 %v3026, %v3027
  %v3029 = vsel %vm2676, %v3015, 0.0
  %v3030 = vadd.f32 %v3028, %v3029
  %v3031 = vrot.slane %v3030, 4
  %v3032 = vadd.f32 %v3030, %v3031
  %v3033 = vrot.slane %v3032, 2
  %v3034 = vadd.f32 %v3032, %v3033
  %v3035 = vrot.slane %v3034, 1
  %v3036 = vadd.f32 %v3034, %v3035
  %v3037 = vmul.f32 %v3007, 0.015625
  %v3038 = vmul.f32 %v3036, 0.015625
  %v3039 = vmul.f32 %v3037, %v3037
  %v3040 = vsub.f32 %v3038, %v3039
  %v3041 = vmax.f32 %v3040, 0.0
  %v3042 = vadd.f32 %v3041, 1e-05
  %v3043 = vrsqrt.pop %v3042
  %v3044 = vld [vmem:[%s2 + $0x9] sm:$0x1]
  %v3045 = vmul.f32 %v3043, %v3044
  %v3046 = vsub.f32 %v2979, %v3037
  %v3047 = vsub.f32 %v2980, %v3037
  %v3048 = vsub.f32 %v2981, %v3037
  %v3049 = vsub.f32 %v2982, %v3037
  %v3050 = vsub.f32 %v2983, %v3037
  %v3051 = vsub.f32 %v2984, %v3037
  %v3052 = vsub.f32 %v2985, %v3037
  %v3053 = vsub.f32 %v2986, %v3037
  %v3054 = vlaneseq
  %v3055 = vshrl.u32 %v3054, 7
  %v3056 = vsub.s32 0, %v3055
  %v3057 = vrot.slane %v3045, %v3056
  %v3058 = vmul.f32 %v3046, %v3057
  %v3059 = vmul.f32 %v3047, %v3057
  %v3060 = vmul.f32 %v3048, %v3057
  %v3061 = vmul.f32 %v3049, %v3057
  %v3062 = vmul.f32 %v3050, %v3057
  %v3063 = vmul.f32 %v3051, %v3057
  %v3064 = vmul.f32 %v3052, %v3057
  %v3065 = vmul.f32 %v3053, %v3057
  %v3066 = vld [vmem:[%s2 + $0xa] sm:$0x1]
  %v3067 = vlaneseq
  %v3068 = vshrl.u32 %v3067, 7
  %v3069 = vsub.s32 0, %v3068
  %v3070 = vrot.slane %v3066, %v3069
  %v3071 = vadd.f32 %v3058, %v3070
  %v3072 = vadd.f32 %v3059, %v3070
  %v3073 = vadd.f32 %v3060, %v3070
  %v3074 = vadd.f32 %v3061, %v3070
  %v3075 = vadd.f32 %v3062, %v3070
  %v3076 = vadd.f32 %v3063, %v3070
  %v3077 = vadd.f32 %v3064, %v3070
  %v3078 = vadd.f32 %v3065, %v3070
  %v3079 = vmax.f32 %v3071, 0.0
  %v3080 = vmax.f32 %v3072, 0.0
  %v3081 = vmax.f32 %v3073, 0.0
  %v3082 = vmax.f32 %v3074, 0.0
  %v3083 = vmax.f32 %v3075, 0.0
  %v3084 = vmax.f32 %v3076, 0.0
  %v3085 = vmax.f32 %v3077, 0.0
  %v3086 = vmax.f32 %v3078, 0.0
  %v3095 = vrot.slane %v3079, 7
  %v3096 = vrot.slane %v3080, 7
  %v3097 = vsel %vm47, %v3095, %v3096
  %v3098 = vrot.slane %v3081, 7
  %v3099 = vsel %vm47, %v3096, %v3098
  %v3100 = vrot.slane %v3082, 7
  %v3101 = vsel %vm47, %v3098, %v3100
  %v3102 = vrot.slane %v3083, 7
  %v3103 = vrot.slane %v3084, 7
  %v3104 = vsel %vm47, %v3102, %v3103
  %v3105 = vrot.slane %v3085, 7
  %v3106 = vsel %vm47, %v3103, %v3105
  %v3107 = vrot.slane %v3086, 7
  %v3108 = vsel %vm47, %v3105, %v3107
  %v3119 = vsel %vm47, 0.0, %v3095
  %v3120 = vsel %vm47, 0.0, %v3102
  %v3121 = vsel %vm47, %v3100, 0.0
  %v3122 = vsel %vm47, %v3107, 0.0
  %v3123 = vld [vmem:[%s1 + $0x84] sm:$0xf]
  %v3124 = vld [vmem:[%s1 + $0x88] sm:$0xf]
  %v3125 = vld [vmem:[%s1 + $0x8c] sm:$0xf]
  %v3126 = vld [vmem:[%s1 + $0x90] sm:$0xf]
  %v3127 = vpack.c.bf16 %v3097, %v3119
  %v3128 = vpack.c.bf16 %v3101, %v3099
  %v3129 = vpack.c.bf16 %v3104, %v3120
  %v3130 = vpack.c.bf16 %v3108, %v3106
  %v3135 = vrot.slane %v3119, 1
  %v3136 = vrot.slane %v3097, 1
  %v3137 = vsel %vm176, %v3135, %v3136
  %v3138 = vrot.slane %v3099, 1
  %v3139 = vsel %vm176, %v3136, %v3138
  %v3140 = vrot.slane %v3101, 1
  %v3141 = vsel %vm176, %v3138, %v3140
  %v3142 = vrot.slane %v3121, 1
  %v3143 = vsel %vm176, %v3140, %v3142
  %v3144 = vrot.slane %v3120, 1
  %v3145 = vrot.slane %v3104, 1
  %v3146 = vsel %vm176, %v3144, %v3145
  %v3147 = vrot.slane %v3106, 1
  %v3148 = vsel %vm176, %v3145, %v3147
  %v3149 = vrot.slane %v3108, 1
  %v3150 = vsel %vm176, %v3147, %v3149
  %v3151 = vrot.slane %v3122, 1
  %v3152 = vsel %vm176, %v3149, %v3151
  %v3161 = vld [vmem:[%s1 + $0x94] sm:$0xf]
  %v3162 = vld [vmem:[%s1 + $0x98] sm:$0xf]
  %v3163 = vld [vmem:[%s1 + $0x9c] sm:$0xf]
  %v3164 = vld [vmem:[%s1 + $0xa0] sm:$0xf]
  %v3165 = vpack.c.bf16 %v3139, %v3137
  %v3166 = vpack.c.bf16 %v3143, %v3141
  %v3167 = vpack.c.bf16 %v3148, %v3146
  %v3168 = vpack.c.bf16 %v3152, %v3150
  %v3173 = vunpack.c.l.b16 %v3161
  %v3174 = vunpack.c.l.b16 %v3162
  %v3175 = vunpack.c.l.b16 %v3163
  %v3176 = vunpack.c.l.b16 %v3164
  %v3177 = vpack.c.b16 %v3174, %v3173
  %v3178 = vpack.c.b16 %v3176, %v3175
  %v3182 = vsel %vm2676, %v3165, 0
  %v3185 = vsel %vm2676, %v3166, 0
  %v3188 = vsel %vm2676, %v3167, 0
  %v3191 = vsel %vm2676, %v3168, 0
  %3193 = vmatprep.subr.bf16.mxu0 0
  %3194 = vmatpush1.bf16.msra.mxu0 %v3177
  %3195 = vmatprep.subr.bf16.mxu0 0
  %3196 = vmatpush1.bf16.msra.mxu0 %v3178
  %3197 = vmatprep.subr.bf16.mxu0 0
  %3198 = vmatpush1.bf16.msra.mxu0 0
  %3199 = vmatprep.subr.bf16.mxu0 0
  %3200 = vmatpush1.bf16.msra.mxu0 0
  %3201 = vmatprep.subr.bf16.mxu0 0
  %3202 = vmatpush1.bf16.msra.mxu0 0
  %3203 = vmatprep.subr.bf16.mxu0 0
  %3204 = vmatpush1.bf16.msra.mxu0 0
  %3205 = vmatprep.subr.bf16.mxu0 0
  %3206 = vmatpush1.bf16.msra.mxu0 0
  %3207 = vmatprep.subr.bf16.mxu0 0
  %3208 = vmatpush1.bf16.msra.mxu0 0
  %3209 = vmatprep.subr.bf16.mxu0 0
  %3210 = vmatpush1.bf16.msra.mxu0 0
  %3211 = vmatprep.subr.bf16.mxu0 0
  %3212 = vmatpush1.bf16.msra.mxu0 0
  %3213 = vmatprep.subr.bf16.mxu0 0
  %3214 = vmatpush1.bf16.msra.mxu0 0
  %3215 = vmatprep.subr.bf16.mxu0 0
  %3216 = vmatpush1.bf16.msra.mxu0 0
  %3217 = vmatprep.subr.bf16.mxu0 0
  %3218 = vmatpush1.bf16.msra.mxu0 0
  %3219 = vmatprep.subr.bf16.mxu0 0
  %3220 = vmatpush1.bf16.msra.mxu0 0
  %3221 = vmatprep.subr.bf16.mxu0 0
  %3222 = vmatpush1.bf16.msra.mxu0 0
  %3223 = vmatprep.subr.bf16.mxu0 0
  %3224 = vmatpush1.bf16.msra.mxu0 0
  %3225 = vmatprep.mubr.bf16.mxu0 0
  %3226 = vmatmul.mubr.bf16.gmra.mrb[0].mxu0 %v3182
  %v3227 = vpop.f32.mrb[0].mxu0
  %v3228 = vadd.f32 0.0, %v3227
  %v3229 = vpop.f32.mrb[0].mxu0
  %v3230 = vpop.f32.mrb[0].mxu0
  %v3231 = vadd.f32 0.0, %v3230
  %v3232 = vpop.f32.mrb[0].mxu0
  %3233 = vmatprep.mubr.bf16.mxu0 0
  %3234 = vmatmul.mubr.bf16.gmra.mrb[0].mxu0 %v3185
  %v3235 = vpop.f32.mrb[0].mxu0
  %v3236 = vadd.f32 0.0, %v3235
  %v3237 = vpop.f32.mrb[0].mxu0
  %v3238 = vpop.f32.mrb[0].mxu0
  %v3239 = vadd.f32 0.0, %v3238
  %v3240 = vpop.f32.mrb[0].mxu0
  %3241 = vmatprep.mubr.bf16.mxu0 0
  %3242 = vmatmul.mubr.bf16.gmra.mrb[0].mxu0 %v3188
  %v3243 = vpop.f32.mrb[0].mxu0
  %v3244 = vadd.f32 0.0, %v3243
  %v3245 = vpop.f32.mrb[0].mxu0
  %v3246 = vpop.f32.mrb[0].mxu0
  %v3247 = vadd.f32 0.0, %v3246
  %v3248 = vpop.f32.mrb[0].mxu0
  %3249 = vmatprep.mubr.bf16.mxu0 0
  %3250 = vmatmul.mubr.bf16.gmra.mrb[0].mxu0 %v3191
  %v3251 = vpop.f32.mrb[0].mxu0
  %v3252 = vadd.f32 0.0, %v3251
  %v3253 = vpop.f32.mrb[0].mxu0
  %v3254 = vpop.f32.mrb[0].mxu0
  %v3255 = vadd.f32 0.0, %v3254
  %v3256 = vpop.f32.mrb[0].mxu0
  %3257 = vdwg.mxu0
  %v3262 = vunpack.c.l.b16 %v3123
  %v3263 = vunpack.c.l.b16 %v3124
  %v3264 = vunpack.c.l.b16 %v3125
  %v3265 = vunpack.c.l.b16 %v3126
  %v3266 = vpack.c.b16 %v3263, %v3262
  %v3267 = vpack.c.b16 %v3265, %v3264
  %v3271 = vsel %vm2676, %v3127, 0
  %v3274 = vsel %vm2676, %v3128, 0
  %v3277 = vsel %vm2676, %v3129, 0
  %v3280 = vsel %vm2676, %v3130, 0
  %3282 = vmatprep.subr.bf16.mxu0 0
  %3283 = vmatpush1.bf16.msra.mxu0 %v3266
  %3284 = vmatprep.subr.bf16.mxu0 0
  %3285 = vmatpush1.bf16.msra.mxu0 %v3267
  %3286 = vmatprep.subr.bf16.mxu0 0
  %3287 = vmatpush1.bf16.msra.mxu0 0
  %3288 = vmatprep.subr.bf16.mxu0 0
  %3289 = vmatpush1.bf16.msra.mxu0 0
  %3290 = vmatprep.subr.bf16.mxu0 0
  %3291 = vmatpush1.bf16.msra.mxu0 0
  %3292 = vmatprep.subr.bf16.mxu0 0
  %3293 = vmatpush1.bf16.msra.mxu0 0
  %3294 = vmatprep.subr.bf16.mxu0 0
  %3295 = vmatpush1.bf16.msra.mxu0 0
  %3296 = vmatprep.subr.bf16.mxu0 0
  %3297 = vmatpush1.bf16.msra.mxu0 0
  %3298 = vmatprep.subr.bf16.mxu0 0
  %3299 = vmatpush1.bf16.msra.mxu0 0
  %3300 = vmatprep.subr.bf16.mxu0 0
  %3301 = vmatpush1.bf16.msra.mxu0 0
  %3302 = vmatprep.subr.bf16.mxu0 0
  %3303 = vmatpush1.bf16.msra.mxu0 0
  %3304 = vmatprep.subr.bf16.mxu0 0
  %3305 = vmatpush1.bf16.msra.mxu0 0
  %3306 = vmatprep.subr.bf16.mxu0 0
  %3307 = vmatpush1.bf16.msra.mxu0 0
  %3308 = vmatprep.subr.bf16.mxu0 0
  %3309 = vmatpush1.bf16.msra.mxu0 0
  %3310 = vmatprep.subr.bf16.mxu0 0
  %3311 = vmatpush1.bf16.msra.mxu0 0
  %3312 = vmatprep.subr.bf16.mxu0 0
  %3313 = vmatpush1.bf16.msra.mxu0 0
  %3314 = vmatprep.mubr.bf16.mxu0 0
  %3315 = vmatmul.mubr.bf16.gmra.mrb[0].mxu0 %v3271
  %v3316 = vpop.f32.mrb[0].mxu0
  %v3317 = vadd.f32 %v3228, %v3316
  %v3318 = vpop.f32.mrb[0].mxu0
  %v3319 = vpop.f32.mrb[0].mxu0
  %v3320 = vadd.f32 %v3231, %v3319
  %v3321 = vpop.f32.mrb[0].mxu0
  %3322 = vmatprep.mubr.bf16.mxu0 0
  %3323 = vmatmul.mubr.bf16.gmra.mrb[0].mxu0 %v3274
  %v3324 = vpop.f32.mrb[0].mxu0
  %v3325 = vadd.f32 %v3236, %v3324
  %v3326 = vpop.f32.mrb[0].mxu0
  %v3327 = vpop.f32.mrb[0].mxu0
  %v3328 = vadd.f32 %v3239, %v3327
  %v3329 = vpop.f32.mrb[0].mxu0
  %3330 = vmatprep.mubr.bf16.mxu0 0
  %3331 = vmatmul.mubr.bf16.gmra.mrb[0].mxu0 %v3277
  %v3332 = vpop.f32.mrb[0].mxu0
  %v3333 = vadd.f32 %v3244, %v3332
  %v3334 = vpop.f32.mrb[0].mxu0
  %v3335 = vpop.f32.mrb[0].mxu0
  %v3336 = vadd.f32 %v3247, %v3335
  %v3337 = vpop.f32.mrb[0].mxu0
  %3338 = vmatprep.mubr.bf16.mxu0 0
  %3339 = vmatmul.mubr.bf16.gmra.mrb[0].mxu0 %v3280
  %v3340 = vpop.f32.mrb[0].mxu0
  %v3341 = vadd.f32 %v3252, %v3340
  %v3342 = vpop.f32.mrb[0].mxu0
  %v3343 = vpop.f32.mrb[0].mxu0
  %v3344 = vadd.f32 %v3255, %v3343
  %v3345 = vpop.f32.mrb[0].mxu0
  %3346 = vdwg.mxu0
  %v3347 = vrot.slane %v3119, 2
  %v3348 = vrot.slane %v3097, 2
  %v3349 = vsel %vm311, %v3347, %v3348
  %v3350 = vrot.slane %v3099, 2
  %v3351 = vsel %vm311, %v3348, %v3350
  %v3352 = vrot.slane %v3101, 2
  %v3353 = vsel %vm311, %v3350, %v3352
  %v3354 = vrot.slane %v3121, 2
  %v3355 = vsel %vm311, %v3352, %v3354
  %v3356 = vrot.slane %v3120, 2
  %v3357 = vrot.slane %v3104, 2
  %v3358 = vsel %vm311, %v3356, %v3357
  %v3359 = vrot.slane %v3106, 2
  %v3360 = vsel %vm311, %v3357, %v3359
  %v3361 = vrot.slane %v3108, 2
  %v3362 = vsel %vm311, %v3359, %v3361
  %v3363 = vrot.slane %v3122, 2
  %v3364 = vsel %vm311, %v3361, %v3363
  %v3373 = vld [vmem:[%s1 + $0xa4] sm:$0xf]
  %v3374 = vld [vmem:[%s1 + $0xa8] sm:$0xf]
  %v3375 = vld [vmem:[%s1 + $0xac] sm:$0xf]
  %v3376 = vld [vmem:[%s1 + $0xb0] sm:$0xf]
  %v3377 = vpack.c.bf16 %v3351, %v3349
  %v3378 = vpack.c.bf16 %v3355, %v3353
  %v3379 = vpack.c.bf16 %v3360, %v3358
  %v3380 = vpack.c.bf16 %v3364, %v3362
  %v3385 = vunpack.c.l.b16 %v3373
  %v3386 = vunpack.c.l.b16 %v3374
  %v3387 = vunpack.c.l.b16 %v3375
  %v3388 = vunpack.c.l.b16 %v3376
  %v3389 = vpack.c.b16 %v3386, %v3385
  %v3390 = vpack.c.b16 %v3388, %v3387
  %v3394 = vsel %vm2676, %v3377, 0
  %v3397 = vsel %vm2676, %v3378, 0
  %v3400 = vsel %vm2676, %v3379, 0
  %v3403 = vsel %vm2676, %v3380, 0
  %3405 = vmatprep.subr.bf16.mxu0 0
  %3406 = vmatpush1.bf16.msra.mxu0 %v3389
  %3407 = vmatprep.subr.bf16.mxu0 0
  %3408 = vmatpush1.bf16.msra.mxu0 %v3390
  %3409 = vmatprep.subr.bf16.mxu0 0
  %3410 = vmatpush1.bf16.msra.mxu0 0
  %3411 = vmatprep.subr.bf16.mxu0 0
  %3412 = vmatpush1.bf16.msra.mxu0 0
  %3413 = vmatprep.subr.bf16.mxu0 0
  %3414 = vmatpush1.bf16.msra.mxu0 0
  %3415 = vmatprep.subr.bf16.mxu0 0
  %3416 = vmatpush1.bf16.msra.mxu0 0
  %3417 = vmatprep.subr.bf16.mxu0 0
  %3418 = vmatpush1.bf16.msra.mxu0 0
  %3419 = vmatprep.subr.bf16.mxu0 0
  %3420 = vmatpush1.bf16.msra.mxu0 0
  %3421 = vmatprep.subr.bf16.mxu0 0
  %3422 = vmatpush1.bf16.msra.mxu0 0
  %3423 = vmatprep.subr.bf16.mxu0 0
  %3424 = vmatpush1.bf16.msra.mxu0 0
  %3425 = vmatprep.subr.bf16.mxu0 0
  %3426 = vmatpush1.bf16.msra.mxu0 0
  %3427 = vmatprep.subr.bf16.mxu0 0
  %3428 = vmatpush1.bf16.msra.mxu0 0
  %3429 = vmatprep.subr.bf16.mxu0 0
  %3430 = vmatpush1.bf16.msra.mxu0 0
  %3431 = vmatprep.subr.bf16.mxu0 0
  %3432 = vmatpush1.bf16.msra.mxu0 0
  %3433 = vmatprep.subr.bf16.mxu0 0
  %3434 = vmatpush1.bf16.msra.mxu0 0
  %3435 = vmatprep.subr.bf16.mxu0 0
  %3436 = vmatpush1.bf16.msra.mxu0 0
  %3437 = vmatprep.mubr.bf16.mxu0 0
  %3438 = vmatmul.mubr.bf16.gmra.mrb[0].mxu0 %v3394
  %v3439 = vpop.f32.mrb[0].mxu0
  %v3440 = vadd.f32 0.0, %v3439
  %v3441 = vpop.f32.mrb[0].mxu0
  %v3442 = vpop.f32.mrb[0].mxu0
  %v3443 = vadd.f32 0.0, %v3442
  %v3444 = vpop.f32.mrb[0].mxu0
  %3445 = vmatprep.mubr.bf16.mxu0 0
  %3446 = vmatmul.mubr.bf16.gmra.mrb[0].mxu0 %v3397
  %v3447 = vpop.f32.mrb[0].mxu0
  %v3448 = vadd.f32 0.0, %v3447
  %v3449 = vpop.f32.mrb[0].mxu0
  %v3450 = vpop.f32.mrb[0].mxu0
  %v3451 = vadd.f32 0.0, %v3450
  %v3452 = vpop.f32.mrb[0].mxu0
  %3453 = vmatprep.mubr.bf16.mxu0 0
  %3454 = vmatmul.mubr.bf16.gmra.mrb[0].mxu0 %v3400
  %v3455 = vpop.f32.mrb[0].mxu0
  %v3456 = vadd.f32 0.0, %v3455
  %v3457 = vpop.f32.mrb[0].mxu0
  %v3458 = vpop.f32.mrb[0].mxu0
  %v3459 = vadd.f32 0.0, %v3458
  %v3460 = vpop.f32.mrb[0].mxu0
  %3461 = vmatprep.mubr.bf16.mxu0 0
  %3462 = vmatmul.mubr.bf16.gmra.mrb[0].mxu0 %v3403
  %v3463 = vpop.f32.mrb[0].mxu0
  %v3464 = vadd.f32 0.0, %v3463
  %v3465 = vpop.f32.mrb[0].mxu0
  %v3466 = vpop.f32.mrb[0].mxu0
  %v3467 = vadd.f32 0.0, %v3466
  %v3468 = vpop.f32.mrb[0].mxu0
  %3469 = vdwg.mxu0
  %v3470 = vadd.f32 %v3317, %v3440
  %v3471 = vadd.f32 %v3320, %v3443
  %v3472 = vadd.f32 %v3325, %v3448
  %v3473 = vadd.f32 %v3328, %v3451
  %v3474 = vadd.f32 %v3333, %v3456
  %v3475 = vadd.f32 %v3336, %v3459
  %v3476 = vadd.f32 %v3341, %v3464
  %v3477 = vadd.f32 %v3344, %v3467
  %v3478 = vld [vmem:[%s2 + $0xb] sm:$0x1]
  %v3479 = vlaneseq
  %v3480 = vshrl.u32 %v3479, 7
  %v3481 = vsub.s32 0, %v3480
  %v3482 = vrot.slane %v3478, %v3481
  %v3483 = vadd.f32 %v3470, %v3482
  %v3484 = vadd.f32 %v3471, %v3482
  %v3485 = vadd.f32 %v3472, %v3482
  %v3486 = vadd.f32 %v3473, %v3482
  %v3487 = vadd.f32 %v3474, %v3482
  %v3488 = vadd.f32 %v3475, %v3482
  %v3489 = vadd.f32 %v3476, %v3482
  %v3490 = vadd.f32 %v3477, %v3482
  %v3491 = vsel %vm2676, %v3483, 0.0
  %v3492 = vsel %vm2676, %v3484, 0.0
  %v3493 = vadd.f32 %v3491, %v3492
  %v3494 = vsel %vm2676, %v3485, 0.0
  %v3495 = vadd.f32 %v3493, %v3494
  %v3496 = vsel %vm2676, %v3486, 0.0
  %v3497 = vadd.f32 %v3495, %v3496
  %v3498 = vsel %vm2676, %v3487, 0.0
  %v3499 = vadd.f32 %v3497, %v3498
  %v3500 = vsel %vm2676, %v3488, 0.0
  %v3501 = vadd.f32 %v3499, %v3500
  %v3502 = vsel %vm2676, %v3489, 0.0
  %v3503 = vadd.f32 %v3501, %v3502
  %v3504 = vsel %vm2676, %v3490, 0.0
  %v3505 = vadd.f32 %v3503, %v3504
  %v3506 = vrot.slane %v3505, 4
  %v3507 = vadd.f32 %v3505, %v3506
  %v3508 = vrot.slane %v3507, 2
  %v3509 = vadd.f32 %v3507, %v3508
  %v3510 = vrot.slane %v3509, 1
  %v3511 = vadd.f32 %v3509, %v3510
  %v3512 = vmul.f32 %v3483, %v3483
  %v3513 = vmul.f32 %v3484, %v3484
  %v3514 = vmul.f32 %v3485, %v3485
  %v3515 = vmul.f32 %v3486, %v3486
  %v3516 = vmul.f32 %v3487, %v3487
  %v3517 = vmul.f32 %v3488, %v3488
  %v3518 = vmul.f32 %v3489, %v3489
  %v3519 = vmul.f32 %v3490, %v3490
  %v3520 = vsel %vm2676, %v3512, 0.0
  %v3521 = vsel %vm2676, %v3513, 0.0
  %v3522 = vadd.f32 %v3520, %v3521
  %v3523 = vsel %vm2676, %v3514, 0.0
  %v3524 = vadd.f32 %v3522, %v3523
  %v3525 = vsel %vm2676, %v3515, 0.0
  %v3526 = vadd.f32 %v3524, %v3525
  %v3527 = vsel %vm2676, %v3516, 0.0
  %v3528 = vadd.f32 %v3526, %v3527
  %v3529 = vsel %vm2676, %v3517, 0.0
  %v3530 = vadd.f32 %v3528, %v3529
  %v3531 = vsel %vm2676, %v3518, 0.0
  %v3532 = vadd.f32 %v3530, %v3531
  %v3533 = vsel %vm2676, %v3519, 0.0
  %v3534 = vadd.f32 %v3532, %v3533
  %v3535 = vrot.slane %v3534, 4
  %v3536 = vadd.f32 %v3534, %v3535
  %v3537 = vrot.slane %v3536, 2
  %v3538 = vadd.f32 %v3536, %v3537
  %v3539 = vrot.slane %v3538, 1
  %v3540 = vadd.f32 %v3538, %v3539
  %v3541 = vmul.f32 %v3511, 0.015625
  %v3542 = vmul.f32 %v3540, 0.015625
  %v3543 = vmul.f32 %v3541, %v3541
  %v3544 = vsub.f32 %v3542, %v3543
  %v3545 = vmax.f32 %v3544, 0.0
  %v3546 = vadd.f32 %v3545, 1e-05
  %v3547 = vrsqrt.pop %v3546
  %v3548 = vld [vmem:[%s2 + $0xc] sm:$0x1]
  %v3549 = vmul.f32 %v3547, %v3548
  %v3550 = vsub.f32 %v3483, %v3541
  %v3551 = vsub.f32 %v3484, %v3541
  %v3552 = vsub.f32 %v3485, %v3541
  %v3553 = vsub.f32 %v3486, %v3541
  %v3554 = vsub.f32 %v3487, %v3541
  %v3555 = vsub.f32 %v3488, %v3541
  %v3556 = vsub.f32 %v3489, %v3541
  %v3557 = vsub.f32 %v3490, %v3541
  %v3558 = vlaneseq
  %v3559 = vshrl.u32 %v3558, 7
  %v3560 = vsub.s32 0, %v3559
  %v3561 = vrot.slane %v3549, %v3560
  %v3562 = vmul.f32 %v3550, %v3561
  %v3563 = vmul.f32 %v3551, %v3561
  %v3564 = vmul.f32 %v3552, %v3561
  %v3565 = vmul.f32 %v3553, %v3561
  %v3566 = vmul.f32 %v3554, %v3561
  %v3567 = vmul.f32 %v3555, %v3561
  %v3568 = vmul.f32 %v3556, %v3561
  %v3569 = vmul.f32 %v3557, %v3561
  %v3570 = vld [vmem:[%s2 + $0xd] sm:$0x1]
  %v3571 = vlaneseq
  %v3572 = vshrl.u32 %v3571, 7
  %v3573 = vsub.s32 0, %v3572
  %v3574 = vrot.slane %v3570, %v3573
  %v3575 = vadd.f32 %v3562, %v3574
  %v3576 = vadd.f32 %v3563, %v3574
  %v3577 = vadd.f32 %v3564, %v3574
  %v3578 = vadd.f32 %v3565, %v3574
  %v3579 = vadd.f32 %v3566, %v3574
  %v3580 = vadd.f32 %v3567, %v3574
  %v3581 = vadd.f32 %v3568, %v3574
  %v3582 = vadd.f32 %v3569, %v3574
  %v3583 = vadd.f32 %v3575, %v2574
  %v3584 = vadd.f32 %v3576, %v2575
  %v3585 = vadd.f32 %v3577, %v2576
  %v3586 = vadd.f32 %v3578, %v2577
  %v3587 = vadd.f32 %v3579, %v2578
  %v3588 = vadd.f32 %v3580, %v2579
  %v3589 = vadd.f32 %v3581, %v2580
  %v3590 = vadd.f32 %v3582, %v2581
  %v3591 = vmax.f32 %v3583, 0.0
  %v3592 = vmax.f32 %v3584, 0.0
  %v3593 = vmax.f32 %v3585, 0.0
  %v3594 = vmax.f32 %v3586, 0.0
  %v3595 = vmax.f32 %v3587, 0.0
  %v3596 = vmax.f32 %v3588, 0.0
  %v3597 = vmax.f32 %v3589, 0.0
  %v3598 = vmax.f32 %v3590, 0.0
  %3599 = vst.msk [vmem:[#allocation3] sm:$0xff] %vm2676, %v3591
  %3600 = vst.msk [vmem:[#allocation3 + $0x8] sm:$0xff] %vm2676, %v3592
  %3601 = vst.msk [vmem:[#allocation3 + $0x10] sm:$0xff] %vm2676, %v3593
  %3602 = vst.msk [vmem:[#allocation3 + $0x18] sm:$0xff] %vm2676, %v3594
  %3603 = vst.msk [vmem:[#allocation3 + $0x20] sm:$0xff] %vm2676, %v3595
  %3604 = vst.msk [vmem:[#allocation3 + $0x28] sm:$0xff] %vm2676, %v3596
  %3605 = vst.msk [vmem:[#allocation3 + $0x30] sm:$0xff] %vm2676, %v3597
  %3606 = vst.msk [vmem:[#allocation3 + $0x38] sm:$0xff] %vm2676, %v3598
  %v3607 = vld [vmem:[#allocation3] ss:$2 sm:$0xff]
  %s3608 = scalar_lea.vmem [#allocation3], 16
  %v3609 = vld [vmem:[%s3608] ss:$2 sm:$0xff]
  %s3610 = scalar_lea.vmem [#allocation3], 32
  %v3611 = vld [vmem:[%s3610] ss:$2 sm:$0xff]
  %s3612 = scalar_lea.vmem [#allocation3], 48
  %v3613 = vld [vmem:[%s3612] ss:$2 sm:$0xff]
  %s3614 = scalar_lea.vmem [#allocation3], 1
  %v3615 = vld [vmem:[%s3614] ss:$2 sm:$0xff]
  %s3616 = scalar_lea.vmem [#allocation3], 17
  %v3617 = vld [vmem:[%s3616] ss:$2 sm:$0xff]
  %s3618 = scalar_lea.vmem [#allocation3], 33
  %v3619 = vld [vmem:[%s3618] ss:$2 sm:$0xff]
  %s3620 = scalar_lea.vmem [#allocation3], 49
  %v3621 = vld [vmem:[%s3620] ss:$2 sm:$0xff]
  %v3626 = vrot.slane %v3615, 7
  %v3627 = vrot.slane %v3617, 7
  %v3628 = vsel %vm47, %v3626, %v3627
  %v3629 = vrot.slane %v3619, 7
  %v3630 = vrot.slane %v3621, 7
  %v3631 = vsel %vm47, %v3629, %v3630
  %v3636 = vsel %vm47, 0.0, %v3626
  %v3637 = vsel %vm47, 0.0, %v3629
  %v3642 = vrot.slane %v3607, 1
  %v3643 = vrot.slane %v3609, 1
  %v3644 = vsel %vm176, %v3642, %v3643
  %v3645 = vrot.slane %v3611, 1
  %v3646 = vrot.slane %v3613, 1
  %v3647 = vsel %vm176, %v3645, %v3646
  %v3652 = vsel %vm176, %v3643, 0.0
  %v3653 = vsel %vm176, %v3646, 0.0
  %v3654 = vld [vmem:[%s1 + $0xb4] sm:$0xf]
  %v3655 = vld [vmem:[%s1 + $0xb8] sm:$0xf]
  %v3656 = vld [vmem:[%s1 + $0xbc] sm:$0xf]
  %v3657 = vld [vmem:[%s1 + $0xc0] sm:$0xf]
  %v3658 = vpack.c.bf16 %v3628, %v3636
  %v3659 = vpack.c.bf16 %v3631, %v3637
  %v3660 = vld [vmem:[%s1 + $0xc4] sm:$0xf]
  %v3661 = vld [vmem:[%s1 + $0xc8] sm:$0xf]
  %v3662 = vld [vmem:[%s1 + $0xcc] sm:$0xf]
  %v3663 = vld [vmem:[%s1 + $0xd0] sm:$0xf]
  %v3664 = vpack.c.bf16 %v3609, %v3607
  %v3665 = vpack.c.bf16 %v3613, %v3611
  %v3670 = vunpack.c.l.b16 %v3660
  %v3671 = vunpack.c.l.b16 %v3661
  %v3672 = vunpack.c.l.b16 %v3662
  %v3673 = vunpack.c.l.b16 %v3663
  %v3674 = vpack.c.b16 %v3671, %v3670
  %v3675 = vpack.c.b16 %v3673, %v3672
  %v3679 = vsel %vm2676, %v3664, 0
  %v3682 = vsel %vm2676, %v3665, 0
  %3684 = vmatprep.subr.bf16.mxu0 0
  %3685 = vmatpush1.bf16.msra.mxu0 %v3674
  %3686 = vmatprep.subr.bf16.mxu0 0
  %3687 = vmatpush1.bf16.msra.mxu0 %v3675
  %3688 = vmatprep.subr.bf16.mxu0 0
  %3689 = vmatpush1.bf16.msra.mxu0 0
  %3690 = vmatprep.subr.bf16.mxu0 0
  %3691 = vmatpush1.bf16.msra.mxu0 0
  %3692 = vmatprep.subr.bf16.mxu0 0
  %3693 = vmatpush1.bf16.msra.mxu0 0
  %3694 = vmatprep.subr.bf16.mxu0 0
  %3695 = vmatpush1.bf16.msra.mxu0 0
  %3696 = vmatprep.subr.bf16.mxu0 0
  %3697 = vmatpush1.bf16.msra.mxu0 0
  %3698 = vmatprep.subr.bf16.mxu0 0
  %3699 = vmatpush1.bf16.msra.mxu0 0
  %3700 = vmatprep.subr.bf16.mxu0 0
  %3701 = vmatpush1.bf16.msra.mxu0 0
  %3702 = vmatprep.subr.bf16.mxu0 0
  %3703 = vmatpush1.bf16.msra.mxu0 0
  %3704 = vmatprep.subr.bf16.mxu0 0
  %3705 = vmatpush1.bf16.msra.mxu0 0
  %3706 = vmatprep.subr.bf16.mxu0 0
  %3707 = vmatpush1.bf16.msra.mxu0 0
  %3708 = vmatprep.subr.bf16.mxu0 0
  %3709 = vmatpush1.bf16.msra.mxu0 0
  %3710 = vmatprep.subr.bf16.mxu0 0
  %3711 = vmatpush1.bf16.msra.mxu0 0
  %3712 = vmatprep.subr.bf16.mxu0 0
  %3713 = vmatpush1.bf16.msra.mxu0 0
  %3714 = vmatprep.subr.bf16.mxu0 0
  %3715 = vmatpush1.bf16.msra.mxu0 0
  %3716 = vmatprep.mubr.bf16.mxu0 0
  %3717 = vmatmul.mubr.bf16.gmra.mrb[0].mxu0 %v3679
  %v3718 = vpop.f32.mrb[0].mxu0
  %v3719 = vadd.f32 0.0, %v3718
  %v3720 = vpop.f32.mrb[0].mxu0
  %v3721 = vpop.f32.mrb[0].mxu0
  %v3722 = vadd.f32 0.0, %v3721
  %v3723 = vpop.f32.mrb[0].mxu0
  %3724 = vmatprep.mubr.bf16.mxu0 0
  %3725 = vmatmul.mubr.bf16.gmra.mrb[0].mxu0 %v3682
  %v3726 = vpop.f32.mrb[0].mxu0
  %v3727 = vadd.f32 0.0, %v3726
  %v3728 = vpop.f32.mrb[0].mxu0
  %v3729 = vpop.f32.mrb[0].mxu0
  %v3730 = vadd.f32 0.0, %v3729
  %v3731 = vpop.f32.mrb[0].mxu0
  %3732 = vdwg.mxu0
  %v3737 = vunpack.c.l.b16 %v3654
  %v3738 = vunpack.c.l.b16 %v3655
  %v3739 = vunpack.c.l.b16 %v3656
  %v3740 = vunpack.c.l.b16 %v3657
  %v3741 = vpack.c.b16 %v3738, %v3737
  %v3742 = vpack.c.b16 %v3740, %v3739
  %v3746 = vsel %vm2676, %v3658, 0
  %v3749 = vsel %vm2676, %v3659, 0
  %3751 = vmatprep.subr.bf16.mxu0 0
  %3752 = vmatpush1.bf16.msra.mxu0 %v3741
  %3753 = vmatprep.subr.bf16.mxu0 0
  %3754 = vmatpush1.bf16.msra.mxu0 %v3742
  %3755 = vmatprep.subr.bf16.mxu0 0
  %3756 = vmatpush1.bf16.msra.mxu0 0
  %3757 = vmatprep.subr.bf16.mxu0 0
  %3758 = vmatpush1.bf16.msra.mxu0 0
  %3759 = vmatprep.subr.bf16.mxu0 0
  %3760 = vmatpush1.bf16.msra.mxu0 0
  %3761 = vmatprep.subr.bf16.mxu0 0
  %3762 = vmatpush1.bf16.msra.mxu0 0
  %3763 = vmatprep.subr.bf16.mxu0 0
  %3764 = vmatpush1.bf16.msra.mxu0 0
  %3765 = vmatprep.subr.bf16.mxu0 0
  %3766 = vmatpush1.bf16.msra.mxu0 0
  %3767 = vmatprep.subr.bf16.mxu0 0
  %3768 = vmatpush1.bf16.msra.mxu0 0
  %3769 = vmatprep.subr.bf16.mxu0 0
  %3770 = vmatpush1.bf16.msra.mxu0 0
  %3771 = vmatprep.subr.bf16.mxu0 0
  %3772 = vmatpush1.bf16.msra.mxu0 0
  %3773 = vmatprep.subr.bf16.mxu0 0
  %3774 = vmatpush1.bf16.msra.mxu0 0
  %3775 = vmatprep.subr.bf16.mxu0 0
  %3776 = vmatpush1.bf16.msra.mxu0 0
  %3777 = vmatprep.subr.bf16.mxu0 0
  %3778 = vmatpush1.bf16.msra.mxu0 0
  %3779 = vmatprep.subr.bf16.mxu0 0
  %3780 = vmatpush1.bf16.msra.mxu0 0
  %3781 = vmatprep.subr.bf16.mxu0 0
  %3782 = vmatpush1.bf16.msra.mxu0 0
  %3783 = vmatprep.mubr.bf16.mxu0 0
  %3784 = vmatmul.mubr.bf16.gmra.mrb[0].mxu0 %v3746
  %v3785 = vpop.f32.mrb[0].mxu0
  %v3786 = vadd.f32 %v3719, %v3785
  %v3787 = vpop.f32.mrb[0].mxu0
  %v3788 = vpop.f32.mrb[0].mxu0
  %v3789 = vadd.f32 %v3722, %v3788
  %v3790 = vpop.f32.mrb[0].mxu0
  %3791 = vmatprep.mubr.bf16.mxu0 0
  %3792 = vmatmul.mubr.bf16.gmra.mrb[0].mxu0 %v3749
  %v3793 = vpop.f32.mrb[0].mxu0
  %v3794 = vadd.f32 %v3727, %v3793
  %v3795 = vpop.f32.mrb[0].mxu0
  %v3796 = vpop.f32.mrb[0].mxu0
  %v3797 = vadd.f32 %v3730, %v3796
  %v3798 = vpop.f32.mrb[0].mxu0
  %3799 = vdwg.mxu0
  %v3800 = vld [vmem:[%s1 + $0xd4] sm:$0xf]
  %v3801 = vld [vmem:[%s1 + $0xd8] sm:$0xf]
  %v3802 = vld [vmem:[%s1 + $0xdc] sm:$0xf]
  %v3803 = vld [vmem:[%s1 + $0xe0] sm:$0xf]
  %v3804 = vpack.c.bf16 %v3617, %v3615
  %v3805 = vpack.c.bf16 %v3621, %v3619
  %v3810 = vunpack.c.l.b16 %v3800
  %v3811 = vunpack.c.l.b16 %v3801
  %v3812 = vunpack.c.l.b16 %v3802
  %v3813 = vunpack.c.l.b16 %v3803
  %v3814 = vpack.c.b16 %v3811, %v3810
  %v3815 = vpack.c.b16 %v3813, %v3812
  %v3819 = vsel %vm2676, %v3804, 0
  %v3822 = vsel %vm2676, %v3805, 0
  %3824 = vmatprep.subr.bf16.mxu0 0
  %3825 = vmatpush1.bf16.msra.mxu0 %v3814
  %3826 = vmatprep.subr.bf16.mxu0 0
  %3827 = vmatpush1.bf16.msra.mxu0 %v3815
  %3828 = vmatprep.subr.bf16.mxu0 0
  %3829 = vmatpush1.bf16.msra.mxu0 0
  %3830 = vmatprep.subr.bf16.mxu0 0
  %3831 = vmatpush1.bf16.msra.mxu0 0
  %3832 = vmatprep.subr.bf16.mxu0 0
  %3833 = vmatpush1.bf16.msra.mxu0 0
  %3834 = vmatprep.subr.bf16.mxu0 0
  %3835 = vmatpush1.bf16.msra.mxu0 0
  %3836 = vmatprep.subr.bf16.mxu0 0
  %3837 = vmatpush1.bf16.msra.mxu0 0
  %3838 = vmatprep.subr.bf16.mxu0 0
  %3839 = vmatpush1.bf16.msra.mxu0 0
  %3840 = vmatprep.subr.bf16.mxu0 0
  %3841 = vmatpush1.bf16.msra.mxu0 0
  %3842 = vmatprep.subr.bf16.mxu0 0
  %3843 = vmatpush1.bf16.msra.mxu0 0
  %3844 = vmatprep.subr.bf16.mxu0 0
  %3845 = vmatpush1.bf16.msra.mxu0 0
  %3846 = vmatprep.subr.bf16.mxu0 0
  %3847 = vmatpush1.bf16.msra.mxu0 0
  %3848 = vmatprep.subr.bf16.mxu0 0
  %3849 = vmatpush1.bf16.msra.mxu0 0
  %3850 = vmatprep.subr.bf16.mxu0 0
  %3851 = vmatpush1.bf16.msra.mxu0 0
  %3852 = vmatprep.subr.bf16.mxu0 0
  %3853 = vmatpush1.bf16.msra.mxu0 0
  %3854 = vmatprep.subr.bf16.mxu0 0
  %3855 = vmatpush1.bf16.msra.mxu0 0
  %3856 = vmatprep.mubr.bf16.mxu0 0
  %3857 = vmatmul.mubr.bf16.gmra.mrb[0].mxu0 %v3819
  %v3858 = vpop.f32.mrb[0].mxu0
  %v3859 = vadd.f32 0.0, %v3858
  %v3860 = vpop.f32.mrb[0].mxu0
  %v3861 = vpop.f32.mrb[0].mxu0
  %v3862 = vadd.f32 0.0, %v3861
  %v3863 = vpop.f32.mrb[0].mxu0
  %3864 = vmatprep.mubr.bf16.mxu0 0
  %3865 = vmatmul.mubr.bf16.gmra.mrb[0].mxu0 %v3822
  %v3866 = vpop.f32.mrb[0].mxu0
  %v3867 = vadd.f32 0.0, %v3866
  %v3868 = vpop.f32.mrb[0].mxu0
  %v3869 = vpop.f32.mrb[0].mxu0
  %v3870 = vadd.f32 0.0, %v3869
  %v3871 = vpop.f32.mrb[0].mxu0
  %3872 = vdwg.mxu0
  %v3873 = vadd.f32 %v3786, %v3859
  %v3874 = vadd.f32 %v3789, %v3862
  %v3875 = vadd.f32 %v3794, %v3867
  %v3876 = vadd.f32 %v3797, %v3870
  %v3877 = vld [vmem:[%s1 + $0xe4] sm:$0xf]
  %v3878 = vld [vmem:[%s1 + $0xe8] sm:$0xf]
  %v3879 = vld [vmem:[%s1 + $0xec] sm:$0xf]
  %v3880 = vld [vmem:[%s1 + $0xf0] sm:$0xf]
  %v3881 = vpack.c.bf16 %v3652, %v3644
  %v3882 = vpack.c.bf16 %v3653, %v3647
  %v3887 = vunpack.c.l.b16 %v3877
  %v3888 = vunpack.c.l.b16 %v3878
  %v3889 = vunpack.c.l.b16 %v3879
  %v3890 = vunpack.c.l.b16 %v3880
  %v3891 = vpack.c.b16 %v3888, %v3887
  %v3892 = vpack.c.b16 %v3890, %v3889
  %v3896 = vsel %vm2676, %v3881, 0
  %v3899 = vsel %vm2676, %v3882, 0
  %3901 = vmatprep.subr.bf16.mxu0 0
  %3902 = vmatpush1.bf16.msra.mxu0 %v3891
  %3903 = vmatprep.subr.bf16.mxu0 0
  %3904 = vmatpush1.bf16.msra.mxu0 %v3892
  %3905 = vmatprep.subr.bf16.mxu0 0
  %3906 = vmatpush1.bf16.msra.mxu0 0
  %3907 = vmatprep.subr.bf16.mxu0 0
  %3908 = vmatpush1.bf16.msra.mxu0 0
  %3909 = vmatprep.subr.bf16.mxu0 0
  %3910 = vmatpush1.bf16.msra.mxu0 0
  %3911 = vmatprep.subr.bf16.mxu0 0
  %3912 = vmatpush1.bf16.msra.mxu0 0
  %3913 = vmatprep.subr.bf16.mxu0 0
  %3914 = vmatpush1.bf16.msra.mxu0 0
  %3915 = vmatprep.subr.bf16.mxu0 0
  %3916 = vmatpush1.bf16.msra.mxu0 0
  %3917 = vmatprep.subr.bf16.mxu0 0
  %3918 = vmatpush1.bf16.msra.mxu0 0
  %3919 = vmatprep.subr.bf16.mxu0 0
  %3920 = vmatpush1.bf16.msra.mxu0 0
  %3921 = vmatprep.subr.bf16.mxu0 0
  %3922 = vmatpush1.bf16.msra.mxu0 0
  %3923 = vmatprep.subr.bf16.mxu0 0
  %3924 = vmatpush1.bf16.msra.mxu0 0
  %3925 = vmatprep.subr.bf16.mxu0 0
  %3926 = vmatpush1.bf16.msra.mxu0 0
  %3927 = vmatprep.subr.bf16.mxu0 0
  %3928 = vmatpush1.bf16.msra.mxu0 0
  %3929 = vmatprep.subr.bf16.mxu0 0
  %3930 = vmatpush1.bf16.msra.mxu0 0
  %3931 = vmatprep.subr.bf16.mxu0 0
  %3932 = vmatpush1.bf16.msra.mxu0 0
  %3933 = vmatprep.mubr.bf16.mxu0 0
  %3934 = vmatmul.mubr.bf16.gmra.mrb[0].mxu0 %v3896
  %v3935 = vpop.f32.mrb[0].mxu0
  %v3936 = vadd.f32 0.0, %v3935
  %v3937 = vpop.f32.mrb[0].mxu0
  %v3938 = vpop.f32.mrb[0].mxu0
  %v3939 = vadd.f32 0.0, %v3938
  %v3940 = vpop.f32.mrb[0].mxu0
  %3941 = vmatprep.mubr.bf16.mxu0 0
  %3942 = vmatmul.mubr.bf16.gmra.mrb[0].mxu0 %v3899
  %v3943 = vpop.f32.mrb[0].mxu0
  %v3944 = vadd.f32 0.0, %v3943
  %v3945 = vpop.f32.mrb[0].mxu0
  %v3946 = vpop.f32.mrb[0].mxu0
  %v3947 = vadd.f32 0.0, %v3946
  %v3948 = vpop.f32.mrb[0].mxu0
  %3949 = vdwg.mxu0
  %v3950 = vadd.f32 %v3873, %v3936
  %v3951 = vadd.f32 %v3874, %v3939
  %v3952 = vadd.f32 %v3875, %v3944
  %v3953 = vadd.f32 %v3876, %v3947
  %v3954 = vld [vmem:[%s2 + $0xe] sm:$0x1]
  %v3955 = vlaneseq
  %v3956 = vshrl.u32 %v3955, 7
  %v3957 = vsub.s32 0, %v3956
  %v3958 = vrot.slane %v3954, %v3957
  %v3959 = vadd.f32 %v3950, %v3958
  %v3960 = vadd.f32 %v3951, %v3958
  %v3961 = vadd.f32 %v3952, %v3958
  %v3962 = vadd.f32 %v3953, %v3958
  %v3967 = vrot.slane %v3959, 7
  %v3968 = vrot.slane %v3960, 7
  %v3969 = vsel %vm47, %v3967, %v3968
  %v3970 = vrot.slane %v3961, 7
  %v3971 = vrot.slane %v3962, 7
  %v3972 = vsel %vm47, %v3970, %v3971
  %v3979 = vsel %vm47, 0.0, %v3967
  %v3980 = vsel %vm47, 0.0, %v3970
  %v3981 = vsel %vm47, %v3968, 0.0
  %v3982 = vsel %vm47, %v3971, 0.0
  %v3983 = vld [vmem:[%s1 + $0xf4] sm:$0xf]
  %v3984 = vld [vmem:[%s1 + $0xf8] sm:$0xf]
  %v3985 = vld [vmem:[%s1 + $0xfc] sm:$0xf]
  %v3986 = vld [vmem:[%s1 + $0x100] sm:$0xf]
  %v3987 = vld [vmem:[%s1 + $0x104] sm:$0xf]
  %v3988 = vld [vmem:[%s1 + $0x108] sm:$0xf]
  %v3989 = vld [vmem:[%s1 + $0x10c] sm:$0xf]
  %v3990 = vld [vmem:[%s1 + $0x110] sm:$0xf]
  %v3991 = vpack.c.bf16 %v3969, %v3979
  %v3992 = vpack.c.bf16 %v3972, %v3980
  %v3997 = vrot.slane %v3979, 1
  %v3998 = vrot.slane %v3969, 1
  %v3999 = vsel %vm176, %v3997, %v3998
  %v4000 = vrot.slane %v3981, 1
  %v4001 = vsel %vm176, %v3998, %v4000
  %v4002 = vrot.slane %v3980, 1
  %v4003 = vrot.slane %v3972, 1
  %v4004 = vsel %vm176, %v4002, %v4003
  %v4005 = vrot.slane %v3982, 1
  %v4006 = vsel %vm176, %v4003, %v4005
  %v4011 = vld [vmem:[%s1 + $0x114] sm:$0xf]
  %v4012 = vld [vmem:[%s1 + $0x118] sm:$0xf]
  %v4013 = vld [vmem:[%s1 + $0x11c] sm:$0xf]
  %v4014 = vld [vmem:[%s1 + $0x120] sm:$0xf]
  %v4015 = vld [vmem:[%s1 + $0x124] sm:$0xf]
  %v4016 = vld [vmem:[%s1 + $0x128] sm:$0xf]
  %v4017 = vld [vmem:[%s1 + $0x12c] sm:$0xf]
  %v4018 = vld [vmem:[%s1 + $0x130] sm:$0xf]
  %v4019 = vpack.c.bf16 %v4001, %v3999
  %v4020 = vpack.c.bf16 %v4006, %v4004
  %v4029 = vunpack.c.l.b16 %v4011
  %v4030 = vunpack.c.l.b16 %v4012
  %v4031 = vunpack.c.l.b16 %v4013
  %v4032 = vunpack.c.l.b16 %v4014
  %v4033 = vunpack.c.l.b16 %v4015
  %v4034 = vunpack.c.l.b16 %v4016
  %v4035 = vunpack.c.l.b16 %v4017
  %v4036 = vunpack.c.l.b16 %v4018
  %v4037 = vpack.c.b16 %v4030, %v4029
  %v4038 = vpack.c.b16 %v4032, %v4031
  %v4039 = vpack.c.b16 %v4034, %v4033
  %v4040 = vpack.c.b16 %v4036, %v4035
  %vm4045 = vcmask 523264
  %v4047 = vsel %vm4045, %v4019, 0
  %v4050 = vsel %vm4045, %v4020, 0
  %4052 = vmatprep.subr.bf16.mxu0 0
  %4053 = vmatpush1.bf16.msra.mxu0 %v4037
  %4054 = vmatprep.subr.bf16.mxu0 0
  %4055 = vmatpush1.bf16.msra.mxu0 %v4038
  %4056 = vmatprep.subr.bf16.mxu0 0
  %4057 = vmatpush1.bf16.msra.mxu0 %v4039
  %4058 = vmatprep.subr.bf16.mxu0 0
  %4059 = vmatpush1.bf16.msra.mxu0 %v4040
  %4060 = vmatprep.subr.bf16.mxu0 0
  %4061 = vmatpush1.bf16.msra.mxu0 0
  %4062 = vmatprep.subr.bf16.mxu0 0
  %4063 = vmatpush1.bf16.msra.mxu0 0
  %4064 = vmatprep.subr.bf16.mxu0 0
  %4065 = vmatpush1.bf16.msra.mxu0 0
  %4066 = vmatprep.subr.bf16.mxu0 0
  %4067 = vmatpush1.bf16.msra.mxu0 0
  %4068 = vmatprep.subr.bf16.mxu0 0
  %4069 = vmatpush1.bf16.msra.mxu0 0
  %4070 = vmatprep.subr.bf16.mxu0 0
  %4071 = vmatpush1.bf16.msra.mxu0 0
  %4072 = vmatprep.subr.bf16.mxu0 0
  %4073 = vmatpush1.bf16.msra.mxu0 0
  %4074 = vmatprep.subr.bf16.mxu0 0
  %4075 = vmatpush1.bf16.msra.mxu0 0
  %4076 = vmatprep.subr.bf16.mxu0 0
  %4077 = vmatpush1.bf16.msra.mxu0 0
  %4078 = vmatprep.subr.bf16.mxu0 0
  %4079 = vmatpush1.bf16.msra.mxu0 0
  %4080 = vmatprep.subr.bf16.mxu0 0
  %4081 = vmatpush1.bf16.msra.mxu0 0
  %4082 = vmatprep.subr.bf16.mxu0 0
  %4083 = vmatpush1.bf16.msra.mxu0 0
  %4084 = vmatprep.mubr.bf16.mxu0 0
  %4085 = vmatmul.mubr.bf16.gmra.mrb[0].mxu0 %v4047
  %v4086 = vpop.f32.mrb[0].mxu0
  %v4087 = vadd.f32 0.0, %v4086
  %v4088 = vpop.f32.mrb[0].mxu0
  %v4089 = vpop.f32.mrb[0].mxu0
  %v4090 = vadd.f32 0.0, %v4089
  %v4091 = vpop.f32.mrb[0].mxu0
  %4092 = vmatprep.mubr.bf16.mxu0 0
  %4093 = vmatmul.mubr.bf16.gmra.mrb[0].mxu0 %v4050
  %v4094 = vpop.f32.mrb[0].mxu0
  %v4095 = vadd.f32 0.0, %v4094
  %v4096 = vpop.f32.mrb[0].mxu0
  %v4097 = vpop.f32.mrb[0].mxu0
  %v4098 = vadd.f32 0.0, %v4097
  %v4099 = vpop.f32.mrb[0].mxu0
  %4100 = vdwg.mxu0
  %v4109 = vunpack.c.l.b16 %v3983
  %v4110 = vunpack.c.l.b16 %v3984
  %v4111 = vunpack.c.l.b16 %v3985
  %v4112 = vunpack.c.l.b16 %v3986
  %v4113 = vunpack.c.l.b16 %v3987
  %v4114 = vunpack.c.l.b16 %v3988
  %v4115 = vunpack.c.l.b16 %v3989
  %v4116 = vunpack.c.l.b16 %v3990
  %v4117 = vpack.c.b16 %v4110, %v4109
  %v4118 = vpack.c.b16 %v4112, %v4111
  %v4119 = vpack.c.b16 %v4114, %v4113
  %v4120 = vpack.c.b16 %v4116, %v4115
  %v4126 = vsel %vm4045, %v3991, 0
  %v4129 = vsel %vm4045, %v3992, 0
  %4131 = vmatprep.subr.bf16.mxu0 0
  %4132 = vmatpush1.bf16.msra.mxu0 %v4117
  %4133 = vmatprep.subr.bf16.mxu0 0
  %4134 = vmatpush1.bf16.msra.mxu0 %v4118
  %4135 = vmatprep.subr.bf16.mxu0 0
  %4136 = vmatpush1.bf16.msra.mxu0 %v4119
  %4137 = vmatprep.subr.bf16.mxu0 0
  %4138 = vmatpush1.bf16.msra.mxu0 %v4120
  %4139 = vmatprep.subr.bf16.mxu0 0
  %4140 = vmatpush1.bf16.msra.mxu0 0
  %4141 = vmatprep.subr.bf16.mxu0 0
  %4142 = vmatpush1.bf16.msra.mxu0 0
  %4143 = vmatprep.subr.bf16.mxu0 0
  %4144 = vmatpush1.bf16.msra.mxu0 0
  %4145 = vmatprep.subr.bf16.mxu0 0
  %4146 = vmatpush1.bf16.msra.mxu0 0
  %4147 = vmatprep.subr.bf16.mxu0 0
  %4148 = vmatpush1.bf16.msra.mxu0 0
  %4149 = vmatprep.subr.bf16.mxu0 0
  %4150 = vmatpush1.bf16.msra.mxu0 0
  %4151 = vmatprep.subr.bf16.mxu0 0
  %4152 = vmatpush1.bf16.msra.mxu0 0
  %4153 = vmatprep.subr.bf16.mxu0 0
  %4154 = vmatpush1.bf16.msra.mxu0 0
  %4155 = vmatprep.subr.bf16.mxu0 0
  %4156 = vmatpush1.bf16.msra.mxu0 0
  %4157 = vmatprep.subr.bf16.mxu0 0
  %4158 = vmatpush1.bf16.msra.mxu0 0
  %4159 = vmatprep.subr.bf16.mxu0 0
  %4160 = vmatpush1.bf16.msra.mxu0 0
  %4161 = vmatprep.subr.bf16.mxu0 0
  %4162 = vmatpush1.bf16.msra.mxu0 0
  %4163 = vmatprep.mubr.bf16.mxu0 0
  %4164 = vmatmul.mubr.bf16.gmra.mrb[0].mxu0 %v4126
  %v4165 = vpop.f32.mrb[0].mxu0
  %v4166 = vadd.f32 %v4087, %v4165
  %v4167 = vpop.f32.mrb[0].mxu0
  %v4168 = vpop.f32.mrb[0].mxu0
  %v4169 = vadd.f32 %v4090, %v4168
  %v4170 = vpop.f32.mrb[0].mxu0
  %4171 = vmatprep.mubr.bf16.mxu0 0
  %4172 = vmatmul.mubr.bf16.gmra.mrb[0].mxu0 %v4129
  %v4173 = vpop.f32.mrb[0].mxu0
  %v4174 = vadd.f32 %v4095, %v4173
  %v4175 = vpop.f32.mrb[0].mxu0
  %v4176 = vpop.f32.mrb[0].mxu0
  %v4177 = vadd.f32 %v4098, %v4176
  %v4178 = vpop.f32.mrb[0].mxu0
  %4179 = vdwg.mxu0
  %v4180 = vrot.slane %v3979, 2
  %v4181 = vrot.slane %v3969, 2
  %v4182 = vsel %vm311, %v4180, %v4181
  %v4183 = vrot.slane %v3981, 2
  %v4184 = vsel %vm311, %v4181, %v4183
  %v4185 = vrot.slane %v3980, 2
  %v4186 = vrot.slane %v3972, 2
  %v4187 = vsel %vm311, %v4185, %v4186
  %v4188 = vrot.slane %v3982, 2
  %v4189 = vsel %vm311, %v4186, %v4188
  %v4194 = vld [vmem:[%s1 + $0x134] sm:$0xf]
  %v4195 = vld [vmem:[%s1 + $0x138] sm:$0xf]
  %v4196 = vld [vmem:[%s1 + $0x13c] sm:$0xf]
  %v4197 = vld [vmem:[%s1 + $0x140] sm:$0xf]
  %v4198 = vld [vmem:[%s1 + $0x144] sm:$0xf]
  %v4199 = vld [vmem:[%s1 + $0x148] sm:$0xf]
  %v4200 = vld [vmem:[%s1 + $0x14c] sm:$0xf]
  %v4201 = vld [vmem:[%s1 + $0x150] sm:$0xf]
  %v4202 = vpack.c.bf16 %v4184, %v4182
  %v4203 = vpack.c.bf16 %v4189, %v4187
  %v4212 = vunpack.c.l.b16 %v4194
  %v4213 = vunpack.c.l.b16 %v4195
  %v4214 = vunpack.c.l.b16 %v4196
  %v4215 = vunpack.c.l.b16 %v4197
  %v4216 = vunpack.c.l.b16 %v4198
  %v4217 = vunpack.c.l.b16 %v4199
  %v4218 = vunpack.c.l.b16 %v4200
  %v4219 = vunpack.c.l.b16 %v4201
  %v4220 = vpack.c.b16 %v4213, %v4212
  %v4221 = vpack.c.b16 %v4215, %v4214
  %v4222 = vpack.c.b16 %v4217, %v4216
  %v4223 = vpack.c.b16 %v4219, %v4218
  %v4229 = vsel %vm4045, %v4202, 0
  %v4232 = vsel %vm4045, %v4203, 0
  %4234 = vmatprep.subr.bf16.mxu0 0
  %4235 = vmatpush1.bf16.msra.mxu0 %v4220
  %4236 = vmatprep.subr.bf16.mxu0 0
  %4237 = vmatpush1.bf16.msra.mxu0 %v4221
  %4238 = vmatprep.subr.bf16.mxu0 0
  %4239 = vmatpush1.bf16.msra.mxu0 %v4222
  %4240 = vmatprep.subr.bf16.mxu0 0
  %4241 = vmatpush1.bf16.msra.mxu0 %v4223
  %4242 = vmatprep.subr.bf16.mxu0 0
  %4243 = vmatpush1.bf16.msra.mxu0 0
  %4244 = vmatprep.subr.bf16.mxu0 0
  %4245 = vmatpush1.bf16.msra.mxu0 0
  %4246 = vmatprep.subr.bf16.mxu0 0
  %4247 = vmatpush1.bf16.msra.mxu0 0
  %4248 = vmatprep.subr.bf16.mxu0 0
  %4249 = vmatpush1.bf16.msra.mxu0 0
  %4250 = vmatprep.subr.bf16.mxu0 0
  %4251 = vmatpush1.bf16.msra.mxu0 0
  %4252 = vmatprep.subr.bf16.mxu0 0
  %4253 = vmatpush1.bf16.msra.mxu0 0
  %4254 = vmatprep.subr.bf16.mxu0 0
  %4255 = vmatpush1.bf16.msra.mxu0 0
  %4256 = vmatprep.subr.bf16.mxu0 0
  %4257 = vmatpush1.bf16.msra.mxu0 0
  %4258 = vmatprep.subr.bf16.mxu0 0
  %4259 = vmatpush1.bf16.msra.mxu0 0
  %4260 = vmatprep.subr.bf16.mxu0 0
  %4261 = vmatpush1.bf16.msra.mxu0 0
  %4262 = vmatprep.subr.bf16.mxu0 0
  %4263 = vmatpush1.bf16.msra.mxu0 0
  %4264 = vmatprep.subr.bf16.mxu0 0
  %4265 = vmatpush1.bf16.msra.mxu0 0
  %4266 = vmatprep.mubr.bf16.mxu0 0
  %4267 = vmatmul.mubr.bf16.gmra.mrb[0].mxu0 %v4229
  %v4268 = vpop.f32.mrb[0].mxu0
  %v4269 = vadd.f32 0.0, %v4268
  %v4270 = vpop.f32.mrb[0].mxu0
  %v4271 = vpop.f32.mrb[0].mxu0
  %v4272 = vadd.f32 0.0, %v4271
  %v4273 = vpop.f32.mrb[0].mxu0
  %4274 = vmatprep.mubr.bf16.mxu0 0
  %4275 = vmatmul.mubr.bf16.gmra.mrb[0].mxu0 %v4232
  %v4276 = vpop.f32.mrb[0].mxu0
  %v4277 = vadd.f32 0.0, %v4276
  %v4278 = vpop.f32.mrb[0].mxu0
  %v4279 = vpop.f32.mrb[0].mxu0
  %v4280 = vadd.f32 0.0, %v4279
  %v4281 = vpop.f32.mrb[0].mxu0
  %4282 = vdwg.mxu0
  %v4283 = vadd.f32 %v4166, %v4269
  %v4284 = vadd.f32 %v4169, %v4272
  %v4285 = vadd.f32 %v4174, %v4277
  %v4286 = vadd.f32 %v4177, %v4280
  %v4287 = vld [vmem:[%s2 + $0xf] sm:$0x1]
  %v4288 = vlaneseq
  %v4289 = vshrl.u32 %v4288, 7
  %v4290 = vsub.s32 0, %v4289
  %v4291 = vrot.slane %v4287, %v4290
  %v4292 = vadd.f32 %v4283, %v4291
  %v4293 = vadd.f32 %v4284, %v4291
  %v4294 = vadd.f32 %v4285, %v4291
  %v4295 = vadd.f32 %v4286, %v4291
  %v4296 = vsel %vm4045, %v4292, 0.0
  %v4297 = vsel %vm4045, %v4293, 0.0
  %v4298 = vadd.f32 %v4296, %v4297
  %v4299 = vsel %vm4045, %v4294, 0.0
  %v4300 = vadd.f32 %v4298, %v4299
  %v4301 = vsel %vm4045, %v4295, 0.0
  %v4302 = vadd.f32 %v4300, %v4301
  %v4303 = vrot.slane %v4302, 4
  %v4304 = vadd.f32 %v4302, %v4303
  %v4305 = vrot.slane %v4304, 2
  %v4306 = vadd.f32 %v4304, %v4305
  %v4307 = vrot.slane %v4306, 1
  %v4308 = vadd.f32 %v4306, %v4307
  %v4309 = vmul.f32 %v4292, %v4292
  %v4310 = vmul.f32 %v4293, %v4293
  %v4311 = vmul.f32 %v4294, %v4294
  %v4312 = vmul.f32 %v4295, %v4295
  %v4313 = vsel %vm4045, %v4309, 0.0
  %v4314 = vsel %vm4045, %v4310, 0.0
  %v4315 = vadd.f32 %v4313, %v4314
  %v4316 = vsel %vm4045, %v4311, 0.0
  %v4317 = vadd.f32 %v4315, %v4316
  %v4318 = vsel %vm4045, %v4312, 0.0
  %v4319 = vadd.f32 %v4317, %v4318
  %v4320 = vrot.slane %v4319, 4
  %v4321 = vadd.f32 %v4319, %v4320
  %v4322 = vrot.slane %v4321, 2
  %v4323 = vadd.f32 %v4321, %v4322
  %v4324 = vrot.slane %v4323, 1
  %v4325 = vadd.f32 %v4323, %v4324
  %v4326 = vmul.f32 %v4308, 0.03125
  %v4327 = vmul.f32 %v4325, 0.03125
  %v4328 = vmul.f32 %v4326, %v4326
  %v4329 = vsub.f32 %v4327, %v4328
  %v4330 = vmax.f32 %v4329, 0.0
  %v4331 = vadd.f32 %v4330, 1e-05
  %v4332 = vrsqrt.pop %v4331
  %v4333 = vld [vmem:[%s2 + $0x10] sm:$0x1]
  %v4334 = vmul.f32 %v4332, %v4333
  %v4335 = vsub.f32 %v4292, %v4326
  %v4336 = vsub.f32 %v4293, %v4326
  %v4337 = vsub.f32 %v4294, %v4326
  %v4338 = vsub.f32 %v4295, %v4326
  %v4339 = vlaneseq
  %v4340 = vshrl.u32 %v4339, 7
  %v4341 = vsub.s32 0, %v4340
  %v4342 = vrot.slane %v4334, %v4341
  %v4343 = vmul.f32 %v4335, %v4342
  %v4344 = vmul.f32 %v4336, %v4342
  %v4345 = vmul.f32 %v4337, %v4342
  %v4346 = vmul.f32 %v4338, %v4342
  %v4347 = vld [vmem:[%s2 + $0x11] sm:$0x1]
  %v4348 = vlaneseq
  %v4349 = vshrl.u32 %v4348, 7
  %v4350 = vsub.s32 0, %v4349
  %v4351 = vrot.slane %v4347, %v4350
  %v4352 = vadd.f32 %v4343, %v4351
  %v4353 = vadd.f32 %v4344, %v4351
  %v4354 = vadd.f32 %v4345, %v4351
  %v4355 = vadd.f32 %v4346, %v4351
  %v4356 = vmax.f32 %v4352, 0.0
  %v4357 = vmax.f32 %v4353, 0.0
  %v4358 = vmax.f32 %v4354, 0.0
  %v4359 = vmax.f32 %v4355, 0.0
  %v4364 = vrot.slane %v4356, 7
  %v4365 = vrot.slane %v4357, 7
  %v4366 = vsel %vm47, %v4364, %v4365
  %v4367 = vrot.slane %v4358, 7
  %v4368 = vrot.slane %v4359, 7
  %v4369 = vsel %vm47, %v4367, %v4368
  %v4376 = vsel %vm47, 0.0, %v4364
  %v4377 = vsel %vm47, 0.0, %v4367
  %v4378 = vsel %vm47, %v4365, 0.0
  %v4379 = vsel %vm47, %v4368, 0.0
  %v4380 = vld [vmem:[%s1 + $0x154] sm:$0xf]
  %v4381 = vld [vmem:[%s1 + $0x158] sm:$0xf]
  %v4382 = vld [vmem:[%s1 + $0x15c] sm:$0xf]
  %v4383 = vld [vmem:[%s1 + $0x160] sm:$0xf]
  %v4384 = vld [vmem:[%s1 + $0x164] sm:$0xf]
  %v4385 = vld [vmem:[%s1 + $0x168] sm:$0xf]
  %v4386 = vld [vmem:[%s1 + $0x16c] sm:$0xf]
  %v4387 = vld [vmem:[%s1 + $0x170] sm:$0xf]
  %v4388 = vpack.c.bf16 %v4366, %v4376
  %v4389 = vpack.c.bf16 %v4369, %v4377
  %v4394 = vrot.slane %v4376, 1
  %v4395 = vrot.slane %v4366, 1
  %v4396 = vsel %vm176, %v4394, %v4395
  %v4397 = vrot.slane %v4378, 1
  %v4398 = vsel %vm176, %v4395, %v4397
  %v4399 = vrot.slane %v4377, 1
  %v4400 = vrot.slane %v4369, 1
  %v4401 = vsel %vm176, %v4399, %v4400
  %v4402 = vrot.slane %v4379, 1
  %v4403 = vsel %vm176, %v4400, %v4402
  %v4408 = vld [vmem:[%s1 + $0x174] sm:$0xf]
  %v4409 = vld [vmem:[%s1 + $0x178] sm:$0xf]
  %v4410 = vld [vmem:[%s1 + $0x17c] sm:$0xf]
  %v4411 = vld [vmem:[%s1 + $0x180] sm:$0xf]
  %v4412 = vld [vmem:[%s1 + $0x184] sm:$0xf]
  %v4413 = vld [vmem:[%s1 + $0x188] sm:$0xf]
  %v4414 = vld [vmem:[%s1 + $0x18c] sm:$0xf]
  %v4415 = vld [vmem:[%s1 + $0x190] sm:$0xf]
  %v4416 = vpack.c.bf16 %v4398, %v4396
  %v4417 = vpack.c.bf16 %v4403, %v4401
  %v4426 = vunpack.c.l.b16 %v4408
  %v4427 = vunpack.c.l.b16 %v4409
  %v4428 = vunpack.c.l.b16 %v4410
  %v4429 = vunpack.c.l.b16 %v4411
  %v4430 = vunpack.c.l.b16 %v4412
  %v4431 = vunpack.c.l.b16 %v4413
  %v4432 = vunpack.c.l.b16 %v4414
  %v4433 = vunpack.c.l.b16 %v4415
  %v4434 = vpack.c.b16 %v4427, %v4426
  %v4435 = vpack.c.b16 %v4429, %v4428
  %v4436 = vpack.c.b16 %v4431, %v4430
  %v4437 = vpack.c.b16 %v4433, %v4432
  %v4443 = vsel %vm4045, %v4416, 0
  %v4446 = vsel %vm4045, %v4417, 0
  %4448 = vmatprep.subr.bf16.mxu0 0
  %4449 = vmatpush1.bf16.msra.mxu0 %v4434
  %4450 = vmatprep.subr.bf16.mxu0 0
  %4451 = vmatpush1.bf16.msra.mxu0 %v4435
  %4452 = vmatprep.subr.bf16.mxu0 0
  %4453 = vmatpush1.bf16.msra.mxu0 %v4436
  %4454 = vmatprep.subr.bf16.mxu0 0
  %4455 = vmatpush1.bf16.msra.mxu0 %v4437
  %4456 = vmatprep.subr.bf16.mxu0 0
  %4457 = vmatpush1.bf16.msra.mxu0 0
  %4458 = vmatprep.subr.bf16.mxu0 0
  %4459 = vmatpush1.bf16.msra.mxu0 0
  %4460 = vmatprep.subr.bf16.mxu0 0
  %4461 = vmatpush1.bf16.msra.mxu0 0
  %4462 = vmatprep.subr.bf16.mxu0 0
  %4463 = vmatpush1.bf16.msra.mxu0 0
  %4464 = vmatprep.subr.bf16.mxu0 0
  %4465 = vmatpush1.bf16.msra.mxu0 0
  %4466 = vmatprep.subr.bf16.mxu0 0
  %4467 = vmatpush1.bf16.msra.mxu0 0
  %4468 = vmatprep.subr.bf16.mxu0 0
  %4469 = vmatpush1.bf16.msra.mxu0 0
  %4470 = vmatprep.subr.bf16.mxu0 0
  %4471 = vmatpush1.bf16.msra.mxu0 0
  %4472 = vmatprep.subr.bf16.mxu0 0
  %4473 = vmatpush1.bf16.msra.mxu0 0
  %4474 = vmatprep.subr.bf16.mxu0 0
  %4475 = vmatpush1.bf16.msra.mxu0 0
  %4476 = vmatprep.subr.bf16.mxu0 0
  %4477 = vmatpush1.bf16.msra.mxu0 0
  %4478 = vmatprep.subr.bf16.mxu0 0
  %4479 = vmatpush1.bf16.msra.mxu0 0
  %4480 = vmatprep.mubr.bf16.mxu0 0
  %4481 = vmatmul.mubr.bf16.gmra.mrb[0].mxu0 %v4443
  %v4482 = vpop.f32.mrb[0].mxu0
  %v4483 = vadd.f32 0.0, %v4482
  %v4484 = vpop.f32.mrb[0].mxu0
  %v4485 = vpop.f32.mrb[0].mxu0
  %v4486 = vadd.f32 0.0, %v4485
  %v4487 = vpop.f32.mrb[0].mxu0
  %4488 = vmatprep.mubr.bf16.mxu0 0
  %4489 = vmatmul.mubr.bf16.gmra.mrb[0].mxu0 %v4446
  %v4490 = vpop.f32.mrb[0].mxu0
  %v4491 = vadd.f32 0.0, %v4490
  %v4492 = vpop.f32.mrb[0].mxu0
  %v4493 = vpop.f32.mrb[0].mxu0
  %v4494 = vadd.f32 0.0, %v4493
  %v4495 = vpop.f32.mrb[0].mxu0
  %4496 = vdwg.mxu0
  %v4505 = vunpack.c.l.b16 %v4380
  %v4506 = vunpack.c.l.b16 %v4381
  %v4507 = vunpack.c.l.b16 %v4382
  %v4508 = vunpack.c.l.b16 %v4383
  %v4509 = vunpack.c.l.b16 %v4384
  %v4510 = vunpack.c.l.b16 %v4385
  %v4511 = vunpack.c.l.b16 %v4386
  %v4512 = vunpack.c.l.b16 %v4387
  %v4513 = vpack.c.b16 %v4506, %v4505
  %v4514 = vpack.c.b16 %v4508, %v4507
  %v4515 = vpack.c.b16 %v4510, %v4509
  %v4516 = vpack.c.b16 %v4512, %v4511
  %v4522 = vsel %vm4045, %v4388, 0
  %v4525 = vsel %vm4045, %v4389, 0
  %4527 = vmatprep.subr.bf16.mxu0 0
  %4528 = vmatpush1.bf16.msra.mxu0 %v4513
  %4529 = vmatprep.subr.bf16.mxu0 0
  %4530 = vmatpush1.bf16.msra.mxu0 %v4514
  %4531 = vmatprep.subr.bf16.mxu0 0
  %4532 = vmatpush1.bf16.msra.mxu0 %v4515
  %4533 = vmatprep.subr.bf16.mxu0 0
  %4534 = vmatpush1.bf16.msra.mxu0 %v4516
  %4535 = vmatprep.subr.bf16.mxu0 0
  %4536 = vmatpush1.bf16.msra.mxu0 0
  %4537 = vmatprep.subr.bf16.mxu0 0
  %4538 = vmatpush1.bf16.msra.mxu0 0
  %4539 = vmatprep.subr.bf16.mxu0 0
  %4540 = vmatpush1.bf16.msra.mxu0 0
  %4541 = vmatprep.subr.bf16.mxu0 0
  %4542 = vmatpush1.bf16.msra.mxu0 0
  %4543 = vmatprep.subr.bf16.mxu0 0
  %4544 = vmatpush1.bf16.msra.mxu0 0
  %4545 = vmatprep.subr.bf16.mxu0 0
  %4546 = vmatpush1.bf16.msra.mxu0 0
  %4547 = vmatprep.subr.bf16.mxu0 0
  %4548 = vmatpush1.bf16.msra.mxu0 0
  %4549 = vmatprep.subr.bf16.mxu0 0
  %4550 = vmatpush1.bf16.msra.mxu0 0
  %4551 = vmatprep.subr.bf16.mxu0 0
  %4552 = vmatpush1.bf16.msra.mxu0 0
  %4553 = vmatprep.subr.bf16.mxu0 0
  %4554 = vmatpush1.bf16.msra.mxu0 0
  %4555 = vmatprep.subr.bf16.mxu0 0
  %4556 = vmatpush1.bf16.msra.mxu0 0
  %4557 = vmatprep.subr.bf16.mxu0 0
  %4558 = vmatpush1.bf16.msra.mxu0 0
  %4559 = vmatprep.mubr.bf16.mxu0 0
  %4560 = vmatmul.mubr.bf16.gmra.mrb[0].mxu0 %v4522
  %v4561 = vpop.f32.mrb[0].mxu0
  %v4562 = vadd.f32 %v4483, %v4561
  %v4563 = vpop.f32.mrb[0].mxu0
  %v4564 = vpop.f32.mrb[0].mxu0
  %v4565 = vadd.f32 %v4486, %v4564
  %v4566 = vpop.f32.mrb[0].mxu0
  %4567 = vmatprep.mubr.bf16.mxu0 0
  %4568 = vmatmul.mubr.bf16.gmra.mrb[0].mxu0 %v4525
  %v4569 = vpop.f32.mrb[0].mxu0
  %v4570 = vadd.f32 %v4491, %v4569
  %v4571 = vpop.f32.mrb[0].mxu0
  %v4572 = vpop.f32.mrb[0].mxu0
  %v4573 = vadd.f32 %v4494, %v4572
  %v4574 = vpop.f32.mrb[0].mxu0
  %4575 = vdwg.mxu0
  %v4576 = vrot.slane %v4376, 2
  %v4577 = vrot.slane %v4366, 2
  %v4578 = vsel %vm311, %v4576, %v4577
  %v4579 = vrot.slane %v4378, 2
  %v4580 = vsel %vm311, %v4577, %v4579
  %v4581 = vrot.slane %v4377, 2
  %v4582 = vrot.slane %v4369, 2
  %v4583 = vsel %vm311, %v4581, %v4582
  %v4584 = vrot.slane %v4379, 2
  %v4585 = vsel %vm311, %v4582, %v4584
  %v4590 = vld [vmem:[%s1 + $0x194] sm:$0xf]
  %v4591 = vld [vmem:[%s1 + $0x198] sm:$0xf]
  %v4592 = vld [vmem:[%s1 + $0x19c] sm:$0xf]
  %v4593 = vld [vmem:[%s1 + $0x1a0] sm:$0xf]
  %v4594 = vld [vmem:[%s1 + $0x1a4] sm:$0xf]
  %v4595 = vld [vmem:[%s1 + $0x1a8] sm:$0xf]
  %v4596 = vld [vmem:[%s1 + $0x1ac] sm:$0xf]
  %v4597 = vld [vmem:[%s1 + $0x1b0] sm:$0xf]
  %v4598 = vpack.c.bf16 %v4580, %v4578
  %v4599 = vpack.c.bf16 %v4585, %v4583
  %v4608 = vunpack.c.l.b16 %v4590
  %v4609 = vunpack.c.l.b16 %v4591
  %v4610 = vunpack.c.l.b16 %v4592
  %v4611 = vunpack.c.l.b16 %v4593
  %v4612 = vunpack.c.l.b16 %v4594
  %v4613 = vunpack.c.l.b16 %v4595
  %v4614 = vunpack.c.l.b16 %v4596
  %v4615 = vunpack.c.l.b16 %v4597
  %v4616 = vpack.c.b16 %v4609, %v4608
  %v4617 = vpack.c.b16 %v4611, %v4610
  %v4618 = vpack.c.b16 %v4613, %v4612
  %v4619 = vpack.c.b16 %v4615, %v4614
  %v4625 = vsel %vm4045, %v4598, 0
  %v4628 = vsel %vm4045, %v4599, 0
  %4630 = vmatprep.subr.bf16.mxu0 0
  %4631 = vmatpush1.bf16.msra.mxu0 %v4616
  %4632 = vmatprep.subr.bf16.mxu0 0
  %4633 = vmatpush1.bf16.msra.mxu0 %v4617
  %4634 = vmatprep.subr.bf16.mxu0 0
  %4635 = vmatpush1.bf16.msra.mxu0 %v4618
  %4636 = vmatprep.subr.bf16.mxu0 0
  %4637 = vmatpush1.bf16.msra.mxu0 %v4619
  %4638 = vmatprep.subr.bf16.mxu0 0
  %4639 = vmatpush1.bf16.msra.mxu0 0
  %4640 = vmatprep.subr.bf16.mxu0 0
  %4641 = vmatpush1.bf16.msra.mxu0 0
  %4642 = vmatprep.subr.bf16.mxu0 0
  %4643 = vmatpush1.bf16.msra.mxu0 0
  %4644 = vmatprep.subr.bf16.mxu0 0
  %4645 = vmatpush1.bf16.msra.mxu0 0
  %4646 = vmatprep.subr.bf16.mxu0 0
  %4647 = vmatpush1.bf16.msra.mxu0 0
  %4648 = vmatprep.subr.bf16.mxu0 0
  %4649 = vmatpush1.bf16.msra.mxu0 0
  %4650 = vmatprep.subr.bf16.mxu0 0
  %4651 = vmatpush1.bf16.msra.mxu0 0
  %4652 = vmatprep.subr.bf16.mxu0 0
  %4653 = vmatpush1.bf16.msra.mxu0 0
  %4654 = vmatprep.subr.bf16.mxu0 0
  %4655 = vmatpush1.bf16.msra.mxu0 0
  %4656 = vmatprep.subr.bf16.mxu0 0
  %4657 = vmatpush1.bf16.msra.mxu0 0
  %4658 = vmatprep.subr.bf16.mxu0 0
  %4659 = vmatpush1.bf16.msra.mxu0 0
  %4660 = vmatprep.subr.bf16.mxu0 0
  %4661 = vmatpush1.bf16.msra.mxu0 0
  %4662 = vmatprep.mubr.bf16.mxu0 0
  %4663 = vmatmul.mubr.bf16.gmra.mrb[0].mxu0 %v4625
  %v4664 = vpop.f32.mrb[0].mxu0
  %v4665 = vadd.f32 0.0, %v4664
  %v4666 = vpop.f32.mrb[0].mxu0
  %v4667 = vpop.f32.mrb[0].mxu0
  %v4668 = vadd.f32 0.0, %v4667
  %v4669 = vpop.f32.mrb[0].mxu0
  %4670 = vmatprep.mubr.bf16.mxu0 0
  %4671 = vmatmul.mubr.bf16.gmra.mrb[0].mxu0 %v4628
  %v4672 = vpop.f32.mrb[0].mxu0
  %v4673 = vadd.f32 0.0, %v4672
  %v4674 = vpop.f32.mrb[0].mxu0
  %v4675 = vpop.f32.mrb[0].mxu0
  %v4676 = vadd.f32 0.0, %v4675
  %v4677 = vpop.f32.mrb[0].mxu0
  %4678 = vdwg.mxu0
  %v4679 = vadd.f32 %v4562, %v4665
  %v4680 = vadd.f32 %v4565, %v4668
  %v4681 = vadd.f32 %v4570, %v4673
  %v4682 = vadd.f32 %v4573, %v4676
  %v4683 = vld [vmem:[%s2 + $0x12] sm:$0x1]
  %v4684 = vlaneseq
  %v4685 = vshrl.u32 %v4684, 7
  %v4686 = vsub.s32 0, %v4685
  %v4687 = vrot.slane %v4683, %v4686
  %v4688 = vadd.f32 %v4679, %v4687
  %v4689 = vadd.f32 %v4680, %v4687
  %v4690 = vadd.f32 %v4681, %v4687
  %v4691 = vadd.f32 %v4682, %v4687
  %v4692 = vsel %vm4045, %v4688, 0.0
  %v4693 = vsel %vm4045, %v4689, 0.0
  %v4694 = vadd.f32 %v4692, %v4693
  %v4695 = vsel %vm4045, %v4690, 0.0
  %v4696 = vadd.f32 %v4694, %v4695
  %v4697 = vsel %vm4045, %v4691, 0.0
  %v4698 = vadd.f32 %v4696, %v4697
  %v4699 = vrot.slane %v4698, 4
  %v4700 = vadd.f32 %v4698, %v4699
  %v4701 = vrot.slane %v4700, 2
  %v4702 = vadd.f32 %v4700, %v4701
  %v4703 = vrot.slane %v4702, 1
  %v4704 = vadd.f32 %v4702, %v4703
  %v4705 = vmul.f32 %v4688, %v4688
  %v4706 = vmul.f32 %v4689, %v4689
  %v4707 = vmul.f32 %v4690, %v4690
  %v4708 = vmul.f32 %v4691, %v4691
  %v4709 = vsel %vm4045, %v4705, 0.0
  %v4710 = vsel %vm4045, %v4706, 0.0
  %v4711 = vadd.f32 %v4709, %v4710
  %v4712 = vsel %vm4045, %v4707, 0.0
  %v4713 = vadd.f32 %v4711, %v4712
  %v4714 = vsel %vm4045, %v4708, 0.0
  %v4715 = vadd.f32 %v4713, %v4714
  %v4716 = vrot.slane %v4715, 4
  %v4717 = vadd.f32 %v4715, %v4716
  %v4718 = vrot.slane %v4717, 2
  %v4719 = vadd.f32 %v4717, %v4718
  %v4720 = vrot.slane %v4719, 1
  %v4721 = vadd.f32 %v4719, %v4720
  %v4722 = vmul.f32 %v4704, 0.03125
  %v4723 = vmul.f32 %v4721, 0.03125
  %v4724 = vmul.f32 %v4722, %v4722
  %v4725 = vsub.f32 %v4723, %v4724
  %v4726 = vmax.f32 %v4725, 0.0
  %v4727 = vadd.f32 %v4726, 1e-05
  %v4728 = vrsqrt.pop %v4727
  %v4729 = vld [vmem:[%s2 + $0x13] sm:$0x1]
  %v4730 = vmul.f32 %v4728, %v4729
  %v4731 = vsub.f32 %v4688, %v4722
  %v4732 = vsub.f32 %v4689, %v4722
  %v4733 = vsub.f32 %v4690, %v4722
  %v4734 = vsub.f32 %v4691, %v4722
  %v4735 = vlaneseq
  %v4736 = vshrl.u32 %v4735, 7
  %v4737 = vsub.s32 0, %v4736
  %v4738 = vrot.slane %v4730, %v4737
  %v4739 = vmul.f32 %v4731, %v4738
  %v4740 = vmul.f32 %v4732, %v4738
  %v4741 = vmul.f32 %v4733, %v4738
  %v4742 = vmul.f32 %v4734, %v4738
  %v4743 = vld [vmem:[%s2 + $0x14] sm:$0x1]
  %v4744 = vlaneseq
  %v4745 = vshrl.u32 %v4744, 7
  %v4746 = vsub.s32 0, %v4745
  %v4747 = vrot.slane %v4743, %v4746
  %v4748 = vadd.f32 %v4739, %v4747
  %v4749 = vadd.f32 %v4740, %v4747
  %v4750 = vadd.f32 %v4741, %v4747
  %v4751 = vadd.f32 %v4742, %v4747
  %v4752 = vadd.f32 %v4748, %v3959
  %v4753 = vadd.f32 %v4749, %v3960
  %v4754 = vadd.f32 %v4750, %v3961
  %v4755 = vadd.f32 %v4751, %v3962
  %v4756 = vmax.f32 %v4752, 0.0
  %v4757 = vmax.f32 %v4753, 0.0
  %v4758 = vmax.f32 %v4754, 0.0
  %v4759 = vmax.f32 %v4755, 0.0
  %4760 = vst.msk [vmem:[#allocation4] sm:$0xff] %vm4045, %v4756
  %4761 = vst.msk [vmem:[#allocation4 + $0x8] sm:$0xff] %vm4045, %v4757
  %4762 = vst.msk [vmem:[#allocation4 + $0x10] sm:$0xff] %vm4045, %v4758
  %4763 = vst.msk [vmem:[#allocation4 + $0x18] sm:$0xff] %vm4045, %v4759
  %v4764 = vld [vmem:[#allocation4] ss:$2 sm:$0xff]
  %s4765 = scalar_lea.vmem [#allocation4], 16
  %v4766 = vld [vmem:[%s4765] ss:$2 sm:$0xff]
  %s4767 = scalar_lea.vmem [#allocation4], 1
  %v4768 = vld [vmem:[%s4767] ss:$2 sm:$0xff]
  %s4769 = scalar_lea.vmem [#allocation4], 17
  %v4770 = vld [vmem:[%s4769] ss:$2 sm:$0xff]
  %v4773 = vrot.slane %v4768, 7
  %v4774 = vrot.slane %v4770, 7
  %v4777 = vsel %vm47, 0.0, %v4773
  %v4778 = vsel %vm47, 0.0, %v4774
  %v4781 = vrot.slane %v4764, 1
  %v4782 = vrot.slane %v4766, 1
  %v4785 = vsel %vm176, %v4781, 0.0
  %v4786 = vsel %vm176, %v4782, 0.0
  %v4787 = vld [vmem:[%s1 + $0x1b4] sm:$0xf]
  %v4788 = vld [vmem:[%s1 + $0x1b8] sm:$0xf]
  %v4789 = vld [vmem:[%s1 + $0x1bc] sm:$0xf]
  %v4790 = vld [vmem:[%s1 + $0x1c0] sm:$0xf]
  %v4791 = vld [vmem:[%s1 + $0x1c4] sm:$0xf]
  %v4792 = vld [vmem:[%s1 + $0x1c8] sm:$0xf]
  %v4793 = vld [vmem:[%s1 + $0x1cc] sm:$0xf]
  %v4794 = vld [vmem:[%s1 + $0x1d0] sm:$0xf]
  %v4795 = vpack.c.bf16 %v4778, %v4777
  %v4796 = vld [vmem:[%s1 + $0x1d4] sm:$0xf]
  %v4797 = vld [vmem:[%s1 + $0x1d8] sm:$0xf]
  %v4798 = vld [vmem:[%s1 + $0x1dc] sm:$0xf]
  %v4799 = vld [vmem:[%s1 + $0x1e0] sm:$0xf]
  %v4800 = vld [vmem:[%s1 + $0x1e4] sm:$0xf]
  %v4801 = vld [vmem:[%s1 + $0x1e8] sm:$0xf]
  %v4802 = vld [vmem:[%s1 + $0x1ec] sm:$0xf]
  %v4803 = vld [vmem:[%s1 + $0x1f0] sm:$0xf]
  %v4804 = vpack.c.bf16 %v4766, %v4764
  %v4813 = vunpack.c.l.b16 %v4796
  %v4814 = vunpack.c.l.b16 %v4797
  %v4815 = vunpack.c.l.b16 %v4798
  %v4816 = vunpack.c.l.b16 %v4799
  %v4817 = vunpack.c.l.b16 %v4800
  %v4818 = vunpack.c.l.b16 %v4801
  %v4819 = vunpack.c.l.b16 %v4802
  %v4820 = vunpack.c.l.b16 %v4803
  %v4821 = vpack.c.b16 %v4814, %v4813
  %v4822 = vpack.c.b16 %v4816, %v4815
  %v4823 = vpack.c.b16 %v4818, %v4817
  %v4824 = vpack.c.b16 %v4820, %v4819
  %v4830 = vsel %vm4045, %v4804, 0
  %4832 = vmatprep.subr.bf16.mxu0 0
  %4833 = vmatpush1.bf16.msra.mxu0 %v4821
  %4834 = vmatprep.subr.bf16.mxu0 0
  %4835 = vmatpush1.bf16.msra.mxu0 %v4822
  %4836 = vmatprep.subr.bf16.mxu0 0
  %4837 = vmatpush1.bf16.msra.mxu0 %v4823
  %4838 = vmatprep.subr.bf16.mxu0 0
  %4839 = vmatpush1.bf16.msra.mxu0 %v4824
  %4840 = vmatprep.subr.bf16.mxu0 0
  %4841 = vmatpush1.bf16.msra.mxu0 0
  %4842 = vmatprep.subr.bf16.mxu0 0
  %4843 = vmatpush1.bf16.msra.mxu0 0
  %4844 = vmatprep.subr.bf16.mxu0 0
  %4845 = vmatpush1.bf16.msra.mxu0 0
  %4846 = vmatprep.subr.bf16.mxu0 0
  %4847 = vmatpush1.bf16.msra.mxu0 0
  %4848 = vmatprep.subr.bf16.mxu0 0
  %4849 = vmatpush1.bf16.msra.mxu0 0
  %4850 = vmatprep.subr.bf16.mxu0 0
  %4851 = vmatpush1.bf16.msra.mxu0 0
  %4852 = vmatprep.subr.bf16.mxu0 0
  %4853 = vmatpush1.bf16.msra.mxu0 0
  %4854 = vmatprep.subr.bf16.mxu0 0
  %4855 = vmatpush1.bf16.msra.mxu0 0
  %4856 = vmatprep.subr.bf16.mxu0 0
  %4857 = vmatpush1.bf16.msra.mxu0 0
  %4858 = vmatprep.subr.bf16.mxu0 0
  %4859 = vmatpush1.bf16.msra.mxu0 0
  %4860 = vmatprep.subr.bf16.mxu0 0
  %4861 = vmatpush1.bf16.msra.mxu0 0
  %4862 = vmatprep.subr.bf16.mxu0 0
  %4863 = vmatpush1.bf16.msra.mxu0 0
  %4864 = vmatprep.mubr.bf16.mxu0 0
  %4865 = vmatmul.mubr.bf16.gmra.mrb[0].mxu0 %v4830
  %v4866 = vpop.f32.mrb[0].mxu0
  %v4867 = vadd.f32 0.0, %v4866
  %v4868 = vpop.f32.mrb[0].mxu0
  %v4869 = vpop.f32.mrb[0].mxu0
  %v4870 = vadd.f32 0.0, %v4869
  %v4871 = vpop.f32.mrb[0].mxu0
  %4872 = vdwg.mxu0
  %v4881 = vunpack.c.l.b16 %v4787
  %v4882 = vunpack.c.l.b16 %v4788
  %v4883 = vunpack.c.l.b16 %v4789
  %v4884 = vunpack.c.l.b16 %v4790
  %v4885 = vunpack.c.l.b16 %v4791
  %v4886 = vunpack.c.l.b16 %v4792
  %v4887 = vunpack.c.l.b16 %v4793
  %v4888 = vunpack.c.l.b16 %v4794
  %v4889 = vpack.c.b16 %v4882, %v4881
  %v4890 = vpack.c.b16 %v4884, %v4883
  %v4891 = vpack.c.b16 %v4886, %v4885
  %v4892 = vpack.c.b16 %v4888, %v4887
  %v4898 = vsel %vm4045, %v4795, 0
  %4900 = vmatprep.subr.bf16.mxu0 0
  %4901 = vmatpush1.bf16.msra.mxu0 %v4889
  %4902 = vmatprep.subr.bf16.mxu0 0
  %4903 = vmatpush1.bf16.msra.mxu0 %v4890
  %4904 = vmatprep.subr.bf16.mxu0 0
  %4905 = vmatpush1.bf16.msra.mxu0 %v4891
  %4906 = vmatprep.subr.bf16.mxu0 0
  %4907 = vmatpush1.bf16.msra.mxu0 %v4892
  %4908 = vmatprep.subr.bf16.mxu0 0
  %4909 = vmatpush1.bf16.msra.mxu0 0
  %4910 = vmatprep.subr.bf16.mxu0 0
  %4911 = vmatpush1.bf16.msra.mxu0 0
  %4912 = vmatprep.subr.bf16.mxu0 0
  %4913 = vmatpush1.bf16.msra.mxu0 0
  %4914 = vmatprep.subr.bf16.mxu0 0
  %4915 = vmatpush1.bf16.msra.mxu0 0
  %4916 = vmatprep.subr.bf16.mxu0 0
  %4917 = vmatpush1.bf16.msra.mxu0 0
  %4918 = vmatprep.subr.bf16.mxu0 0
  %4919 = vmatpush1.bf16.msra.mxu0 0
  %4920 = vmatprep.subr.bf16.mxu0 0
  %4921 = vmatpush1.bf16.msra.mxu0 0
  %4922 = vmatprep.subr.bf16.mxu0 0
  %4923 = vmatpush1.bf16.msra.mxu0 0
  %4924 = vmatprep.subr.bf16.mxu0 0
  %4925 = vmatpush1.bf16.msra.mxu0 0
  %4926 = vmatprep.subr.bf16.mxu0 0
  %4927 = vmatpush1.bf16.msra.mxu0 0
  %4928 = vmatprep.subr.bf16.mxu0 0
  %4929 = vmatpush1.bf16.msra.mxu0 0
  %4930 = vmatprep.subr.bf16.mxu0 0
  %4931 = vmatpush1.bf16.msra.mxu0 0
  %4932 = vmatprep.mubr.bf16.mxu0 0
  %4933 = vmatmul.mubr.bf16.gmra.mrb[0].mxu0 %v4898
  %v4934 = vpop.f32.mrb[0].mxu0
  %v4935 = vadd.f32 %v4867, %v4934
  %v4936 = vpop.f32.mrb[0].mxu0
  %v4937 = vpop.f32.mrb[0].mxu0
  %v4938 = vadd.f32 %v4870, %v4937
  %v4939 = vpop.f32.mrb[0].mxu0
  %4940 = vdwg.mxu0
  %v4941 = vld [vmem:[%s1 + $0x1f4] sm:$0xf]
  %v4942 = vld [vmem:[%s1 + $0x1f8] sm:$0xf]
  %v4943 = vld [vmem:[%s1 + $0x1fc] sm:$0xf]
  %v4944 = vld [vmem:[%s1 + $0x200] sm:$0xf]
  %v4945 = vld [vmem:[%s1 + $0x204] sm:$0xf]
  %v4946 = vld [vmem:[%s1 + $0x208] sm:$0xf]
  %v4947 = vld [vmem:[%s1 + $0x20c] sm:$0xf]
  %v4948 = vld [vmem:[%s1 + $0x210] sm:$0xf]
  %v4949 = vpack.c.bf16 %v4770, %v4768
  %v4958 = vunpack.c.l.b16 %v4941
  %v4959 = vunpack.c.l.b16 %v4942
  %v4960 = vunpack.c.l.b16 %v4943
  %v4961 = vunpack.c.l.b16 %v4944
  %v4962 = vunpack.c.l.b16 %v4945
  %v4963 = vunpack.c.l.b16 %v4946
  %v4964 = vunpack.c.l.b16 %v4947
  %v4965 = vunpack.c.l.b16 %v4948
  %v4966 = vpack.c.b16 %v4959, %v4958
  %v4967 = vpack.c.b16 %v4961, %v4960
  %v4968 = vpack.c.b16 %v4963, %v4962
  %v4969 = vpack.c.b16 %v4965, %v4964
  %v4975 = vsel %vm4045, %v4949, 0
  %4977 = vmatprep.subr.bf16.mxu0 0
  %4978 = vmatpush1.bf16.msra.mxu0 %v4966
  %4979 = vmatprep.subr.bf16.mxu0 0
  %4980 = vmatpush1.bf16.msra.mxu0 %v4967
  %4981 = vmatprep.subr.bf16.mxu0 0
  %4982 = vmatpush1.bf16.msra.mxu0 %v4968
  %4983 = vmatprep.subr.bf16.mxu0 0
  %4984 = vmatpush1.bf16.msra.mxu0 %v4969
  %4985 = vmatprep.subr.bf16.mxu0 0
  %4986 = vmatpush1.bf16.msra.mxu0 0
  %4987 = vmatprep.subr.bf16.mxu0 0
  %4988 = vmatpush1.bf16.msra.mxu0 0
  %4989 = vmatprep.subr.bf16.mxu0 0
  %4990 = vmatpush1.bf16.msra.mxu0 0
  %4991 = vmatprep.subr.bf16.mxu0 0
  %4992 = vmatpush1.bf16.msra.mxu0 0
  %4993 = vmatprep.subr.bf16.mxu0 0
  %4994 = vmatpush1.bf16.msra.mxu0 0
  %4995 = vmatprep.subr.bf16.mxu0 0
  %4996 = vmatpush1.bf16.msra.mxu0 0
  %4997 = vmatprep.subr.bf16.mxu0 0
  %4998 = vmatpush1.bf16.msra.mxu0 0
  %4999 = vmatprep.subr.bf16.mxu0 0
  %5000 = vmatpush1.bf16.msra.mxu0 0
  %5001 = vmatprep.subr.bf16.mxu0 0
  %5002 = vmatpush1.bf16.msra.mxu0 0
  %5003 = vmatprep.subr.bf16.mxu0 0
  %5004 = vmatpush1.bf16.msra.mxu0 0
  %5005 = vmatprep.subr.bf16.mxu0 0
  %5006 = vmatpush1.bf16.msra.mxu0 0
  %5007 = vmatprep.subr.bf16.mxu0 0
  %5008 = vmatpush1.bf16.msra.mxu0 0
  %5009 = vmatprep.mubr.bf16.mxu0 0
  %5010 = vmatmul.mubr.bf16.gmra.mrb[0].mxu0 %v4975
  %v5011 = vpop.f32.mrb[0].mxu0
  %v5012 = vadd.f32 0.0, %v5011
  %v5013 = vpop.f32.mrb[0].mxu0
  %v5014 = vpop.f32.mrb[0].mxu0
  %v5015 = vadd.f32 0.0, %v5014
  %v5016 = vpop.f32.mrb[0].mxu0
  %5017 = vdwg.mxu0
  %v5018 = vadd.f32 %v4935, %v5012
  %v5019 = vadd.f32 %v4938, %v5015
  %v5020 = vld [vmem:[%s1 + $0x214] sm:$0xf]
  %v5021 = vld [vmem:[%s1 + $0x218] sm:$0xf]
  %v5022 = vld [vmem:[%s1 + $0x21c] sm:$0xf]
  %v5023 = vld [vmem:[%s1 + $0x220] sm:$0xf]
  %v5024 = vld [vmem:[%s1 + $0x224] sm:$0xf]
  %v5025 = vld [vmem:[%s1 + $0x228] sm:$0xf]
  %v5026 = vld [vmem:[%s1 + $0x22c] sm:$0xf]
  %v5027 = vld [vmem:[%s1 + $0x230] sm:$0xf]
  %v5028 = vpack.c.bf16 %v4786, %v4785
  %v5037 = vunpack.c.l.b16 %v5020
  %v5038 = vunpack.c.l.b16 %v5021
  %v5039 = vunpack.c.l.b16 %v5022
  %v5040 = vunpack.c.l.b16 %v5023
  %v5041 = vunpack.c.l.b16 %v5024
  %v5042 = vunpack.c.l.b16 %v5025
  %v5043 = vunpack.c.l.b16 %v5026
  %v5044 = vunpack.c.l.b16 %v5027
  %v5045 = vpack.c.b16 %v5038, %v5037
  %v5046 = vpack.c.b16 %v5040, %v5039
  %v5047 = vpack.c.b16 %v5042, %v5041
  %v5048 = vpack.c.b16 %v5044, %v5043
  %v5054 = vsel %vm4045, %v5028, 0
  %5056 = vmatprep.subr.bf16.mxu0 0
  %5057 = vmatpush1.bf16.msra.mxu0 %v5045
  %5058 = vmatprep.subr.bf16.mxu0 0
  %5059 = vmatpush1.bf16.msra.mxu0 %v5046
  %5060 = vmatprep.subr.bf16.mxu0 0
  %5061 = vmatpush1.bf16.msra.mxu0 %v5047
  %5062 = vmatprep.subr.bf16.mxu0 0
  %5063 = vmatpush1.bf16.msra.mxu0 %v5048
  %5064 = vmatprep.subr.bf16.mxu0 0
  %5065 = vmatpush1.bf16.msra.mxu0 0
  %5066 = vmatprep.subr.bf16.mxu0 0
  %5067 = vmatpush1.bf16.msra.mxu0 0
  %5068 = vmatprep.subr.bf16.mxu0 0
  %5069 = vmatpush1.bf16.msra.mxu0 0
  %5070 = vmatprep.subr.bf16.mxu0 0
  %5071 = vmatpush1.bf16.msra.mxu0 0
  %5072 = vmatprep.subr.bf16.mxu0 0
  %5073 = vmatpush1.bf16.msra.mxu0 0
  %5074 = vmatprep.subr.bf16.mxu0 0
  %5075 = vmatpush1.bf16.msra.mxu0 0
  %5076 = vmatprep.subr.bf16.mxu0 0
  %5077 = vmatpush1.bf16.msra.mxu0 0
  %5078 = vmatprep.subr.bf16.mxu0 0
  %5079 = vmatpush1.bf16.msra.mxu0 0
  %5080 = vmatprep.subr.bf16.mxu0 0
  %5081 = vmatpush1.bf16.msra.mxu0 0
  %5082 = vmatprep.subr.bf16.mxu0 0
  %5083 = vmatpush1.bf16.msra.mxu0 0
  %5084 = vmatprep.subr.bf16.mxu0 0
  %5085 = vmatpush1.bf16.msra.mxu0 0
  %5086 = vmatprep.subr.bf16.mxu0 0
  %5087 = vmatpush1.bf16.msra.mxu0 0
  %5088 = vmatprep.mubr.bf16.mxu0 0
  %5089 = vmatmul.mubr.bf16.gmra.mrb[0].mxu0 %v5054
  %v5090 = vpop.f32.mrb[0].mxu0
  %v5091 = vadd.f32 0.0, %v5090
  %v5092 = vpop.f32.mrb[0].mxu0
  %v5093 = vpop.f32.mrb[0].mxu0
  %v5094 = vadd.f32 0.0, %v5093
  %v5095 = vpop.f32.mrb[0].mxu0
  %5096 = vdwg.mxu0
  %v5097 = vadd.f32 %v5018, %v5091
  %v5098 = vadd.f32 %v5019, %v5094
  %v5099 = vld [vmem:[%s2 + $0x15] sm:$0x1]
  %v5100 = vlaneseq
  %v5101 = vshrl.u32 %v5100, 7
  %v5102 = vsub.s32 0, %v5101
  %v5103 = vrot.slane %v5099, %v5102
  %v5104 = vadd.f32 %v5097, %v5103
  %v5105 = vadd.f32 %v5098, %v5103
  %v5108 = vrot.slane %v5104, 7
  %v5109 = vrot.slane %v5105, 7
  %v5112 = vsel %vm47, 0.0, %v5108
  %v5113 = vsel %vm47, 0.0, %v5109
  %v5114 = vsel %vm47, %v5108, 0.0
  %v5115 = vsel %vm47, %v5109, 0.0
  %v5116 = vld [vmem:[%s1 + $0x234] sm:$0xf]
  %v5117 = vld [vmem:[%s1 + $0x238] sm:$0xf]
  %v5118 = vld [vmem:[%s1 + $0x23c] sm:$0xf]
  %v5119 = vld [vmem:[%s1 + $0x240] sm:$0xf]
  %v5120 = vld [vmem:[%s1 + $0x244] sm:$0xf]
  %v5121 = vld [vmem:[%s1 + $0x248] sm:$0xf]
  %v5122 = vld [vmem:[%s1 + $0x24c] sm:$0xf]
  %v5123 = vld [vmem:[%s1 + $0x250] sm:$0xf]
  %v5124 = vld [vmem:[%s1 + $0x254] sm:$0xf]
  %v5125 = vld [vmem:[%s1 + $0x258] sm:$0xf]
  %v5126 = vld [vmem:[%s1 + $0x25c] sm:$0xf]
  %v5127 = vld [vmem:[%s1 + $0x260] sm:$0xf]
  %v5128 = vld [vmem:[%s1 + $0x264] sm:$0xf]
  %v5129 = vld [vmem:[%s1 + $0x268] sm:$0xf]
  %v5130 = vld [vmem:[%s1 + $0x26c] sm:$0xf]
  %v5131 = vld [vmem:[%s1 + $0x270] sm:$0xf]
  %v5132 = vpack.c.bf16 %v5113, %v5112
  %v5137 = vrot.slane %v5112, 1
  %v5138 = vrot.slane %v5114, 1
  %v5139 = vsel %vm176, %v5137, %v5138
  %v5140 = vrot.slane %v5113, 1
  %v5141 = vrot.slane %v5115, 1
  %v5142 = vsel %vm176, %v5140, %v5141
  %v5145 = vld [vmem:[%s1 + $0x274] sm:$0xf]
  %v5146 = vld [vmem:[%s1 + $0x278] sm:$0xf]
  %v5147 = vld [vmem:[%s1 + $0x27c] sm:$0xf]
  %v5148 = vld [vmem:[%s1 + $0x280] sm:$0xf]
  %v5149 = vld [vmem:[%s1 + $0x284] sm:$0xf]
  %v5150 = vld [vmem:[%s1 + $0x288] sm:$0xf]
  %v5151 = vld [vmem:[%s1 + $0x28c] sm:$0xf]
  %v5152 = vld [vmem:[%s1 + $0x290] sm:$0xf]
  %v5153 = vld [vmem:[%s1 + $0x294] sm:$0xf]
  %v5154 = vld [vmem:[%s1 + $0x298] sm:$0xf]
  %v5155 = vld [vmem:[%s1 + $0x29c] sm:$0xf]
  %v5156 = vld [vmem:[%s1 + $0x2a0] sm:$0xf]
  %v5157 = vld [vmem:[%s1 + $0x2a4] sm:$0xf]
  %v5158 = vld [vmem:[%s1 + $0x2a8] sm:$0xf]
  %v5159 = vld [vmem:[%s1 + $0x2ac] sm:$0xf]
  %v5160 = vld [vmem:[%s1 + $0x2b0] sm:$0xf]
  %v5161 = vpack.c.bf16 %v5142, %v5139
  %v5178 = vunpack.c.l.b16 %v5145
  %v5179 = vunpack.c.l.b16 %v5146
  %v5180 = vunpack.c.l.b16 %v5147
  %v5181 = vunpack.c.l.b16 %v5148
  %v5182 = vunpack.c.l.b16 %v5149
  %v5183 = vunpack.c.l.b16 %v5150
  %v5184 = vunpack.c.l.b16 %v5151
  %v5185 = vunpack.c.l.b16 %v5152
  %v5186 = vunpack.c.l.b16 %v5153
  %v5187 = vunpack.c.l.b16 %v5154
  %v5188 = vunpack.c.l.b16 %v5155
  %v5189 = vunpack.c.l.b16 %v5156
  %v5190 = vunpack.c.l.b16 %v5157
  %v5191 = vunpack.c.l.b16 %v5158
  %v5192 = vunpack.c.l.b16 %v5159
  %v5193 = vunpack.c.l.b16 %v5160
  %v5194 = vpack.c.b16 %v5179, %v5178
  %v5195 = vpack.c.b16 %v5181, %v5180
  %v5196 = vpack.c.b16 %v5183, %v5182
  %v5197 = vpack.c.b16 %v5185, %v5184
  %v5198 = vpack.c.b16 %v5187, %v5186
  %v5199 = vpack.c.b16 %v5189, %v5188
  %v5200 = vpack.c.b16 %v5191, %v5190
  %v5201 = vpack.c.b16 %v5193, %v5192
  %5210 = vmatprep.subr.bf16.mxu0 0
  %5211 = vmatpush1.bf16.msra.mxu0 %v5194
  %5212 = vmatprep.subr.bf16.mxu0 0
  %5213 = vmatpush1.bf16.msra.mxu0 %v5195
  %5214 = vmatprep.subr.bf16.mxu0 0
  %5215 = vmatpush1.bf16.msra.mxu0 %v5196
  %5216 = vmatprep.subr.bf16.mxu0 0
  %5217 = vmatpush1.bf16.msra.mxu0 %v5197
  %5218 = vmatprep.subr.bf16.mxu0 0
  %5219 = vmatpush1.bf16.msra.mxu0 %v5198
  %5220 = vmatprep.subr.bf16.mxu0 0
  %5221 = vmatpush1.bf16.msra.mxu0 %v5199
  %5222 = vmatprep.subr.bf16.mxu0 0
  %5223 = vmatpush1.bf16.msra.mxu0 %v5200
  %5224 = vmatprep.subr.bf16.mxu0 0
  %5225 = vmatpush1.bf16.msra.mxu0 %v5201
  %5226 = vmatprep.subr.bf16.mxu0 0
  %5227 = vmatpush1.bf16.msra.mxu0 0
  %5228 = vmatprep.subr.bf16.mxu0 0
  %5229 = vmatpush1.bf16.msra.mxu0 0
  %5230 = vmatprep.subr.bf16.mxu0 0
  %5231 = vmatpush1.bf16.msra.mxu0 0
  %5232 = vmatprep.subr.bf16.mxu0 0
  %5233 = vmatpush1.bf16.msra.mxu0 0
  %5234 = vmatprep.subr.bf16.mxu0 0
  %5235 = vmatpush1.bf16.msra.mxu0 0
  %5236 = vmatprep.subr.bf16.mxu0 0
  %5237 = vmatpush1.bf16.msra.mxu0 0
  %5238 = vmatprep.subr.bf16.mxu0 0
  %5239 = vmatpush1.bf16.msra.mxu0 0
  %5240 = vmatprep.subr.bf16.mxu0 0
  %5241 = vmatpush1.bf16.msra.mxu0 0
  %5242 = vmatprep.mubr.bf16.mxu0 0
  %5243 = vmatmul.mubr.bf16.gmra.mrb[0].mxu0 %v5161
  %v5244 = vpop.f32.mrb[0].mxu0
  %v5245 = vadd.f32 0.0, %v5244
  %v5246 = vpop.f32.mrb[0].mxu0
  %v5247 = vpop.f32.mrb[0].mxu0
  %v5248 = vadd.f32 0.0, %v5247
  %v5249 = vpop.f32.mrb[0].mxu0
  %5250 = vdwg.mxu0
  %v5267 = vunpack.c.l.b16 %v5116
  %v5268 = vunpack.c.l.b16 %v5117
  %v5269 = vunpack.c.l.b16 %v5118
  %v5270 = vunpack.c.l.b16 %v5119
  %v5271 = vunpack.c.l.b16 %v5120
  %v5272 = vunpack.c.l.b16 %v5121
  %v5273 = vunpack.c.l.b16 %v5122
  %v5274 = vunpack.c.l.b16 %v5123
  %v5275 = vunpack.c.l.b16 %v5124
  %v5276 = vunpack.c.l.b16 %v5125
  %v5277 = vunpack.c.l.b16 %v5126
  %v5278 = vunpack.c.l.b16 %v5127
  %v5279 = vunpack.c.l.b16 %v5128
  %v5280 = vunpack.c.l.b16 %v5129
  %v5281 = vunpack.c.l.b16 %v5130
  %v5282 = vunpack.c.l.b16 %v5131
  %v5283 = vpack.c.b16 %v5268, %v5267
  %v5284 = vpack.c.b16 %v5270, %v5269
  %v5285 = vpack.c.b16 %v5272, %v5271
  %v5286 = vpack.c.b16 %v5274, %v5273
  %v5287 = vpack.c.b16 %v5276, %v5275
  %v5288 = vpack.c.b16 %v5278, %v5277
  %v5289 = vpack.c.b16 %v5280, %v5279
  %v5290 = vpack.c.b16 %v5282, %v5281
  %5299 = vmatprep.subr.bf16.mxu0 0
  %5300 = vmatpush1.bf16.msra.mxu0 %v5283
  %5301 = vmatprep.subr.bf16.mxu0 0
  %5302 = vmatpush1.bf16.msra.mxu0 %v5284
  %5303 = vmatprep.subr.bf16.mxu0 0
  %5304 = vmatpush1.bf16.msra.mxu0 %v5285
  %5305 = vmatprep.subr.bf16.mxu0 0
  %5306 = vmatpush1.bf16.msra.mxu0 %v5286
  %5307 = vmatprep.subr.bf16.mxu0 0
  %5308 = vmatpush1.bf16.msra.mxu0 %v5287
  %5309 = vmatprep.subr.bf16.mxu0 0
  %5310 = vmatpush1.bf16.msra.mxu0 %v5288
  %5311 = vmatprep.subr.bf16.mxu0 0
  %5312 = vmatpush1.bf16.msra.mxu0 %v5289
  %5313 = vmatprep.subr.bf16.mxu0 0
  %5314 = vmatpush1.bf16.msra.mxu0 %v5290
  %5315 = vmatprep.subr.bf16.mxu0 0
  %5316 = vmatpush1.bf16.msra.mxu0 0
  %5317 = vmatprep.subr.bf16.mxu0 0
  %5318 = vmatpush1.bf16.msra.mxu0 0
  %5319 = vmatprep.subr.bf16.mxu0 0
  %5320 = vmatpush1.bf16.msra.mxu0 0
  %5321 = vmatprep.subr.bf16.mxu0 0
  %5322 = vmatpush1.bf16.msra.mxu0 0
  %5323 = vmatprep.subr.bf16.mxu0 0
  %5324 = vmatpush1.bf16.msra.mxu0 0
  %5325 = vmatprep.subr.bf16.mxu0 0
  %5326 = vmatpush1.bf16.msra.mxu0 0
  %5327 = vmatprep.subr.bf16.mxu0 0
  %5328 = vmatpush1.bf16.msra.mxu0 0
  %5329 = vmatprep.subr.bf16.mxu0 0
  %5330 = vmatpush1.bf16.msra.mxu0 0
  %5331 = vmatprep.mubr.bf16.mxu0 0
  %5332 = vmatmul.mubr.bf16.gmra.mrb[0].mxu0 %v5132
  %v5333 = vpop.f32.mrb[0].mxu0
  %v5334 = vadd.f32 %v5245, %v5333
  %v5335 = vpop.f32.mrb[0].mxu0
  %v5336 = vpop.f32.mrb[0].mxu0
  %v5337 = vadd.f32 %v5248, %v5336
  %v5338 = vpop.f32.mrb[0].mxu0
  %5339 = vdwg.mxu0
  %v5340 = vrot.slane %v5112, 2
  %v5341 = vrot.slane %v5114, 2
  %v5342 = vsel %vm311, %v5340, %v5341
  %v5343 = vrot.slane %v5113, 2
  %v5344 = vrot.slane %v5115, 2
  %v5345 = vsel %vm311, %v5343, %v5344
  %v5348 = vld [vmem:[%s1 + $0x2b4] sm:$0xf]
  %v5349 = vld [vmem:[%s1 + $0x2b8] sm:$0xf]
  %v5350 = vld [vmem:[%s1 + $0x2bc] sm:$0xf]
  %v5351 = vld [vmem:[%s1 + $0x2c0] sm:$0xf]
  %v5352 = vld [vmem:[%s1 + $0x2c4] sm:$0xf]
  %v5353 = vld [vmem:[%s1 + $0x2c8] sm:$0xf]
  %v5354 = vld [vmem:[%s1 + $0x2cc] sm:$0xf]
  %v5355 = vld [vmem:[%s1 + $0x2d0] sm:$0xf]
  %v5356 = vld [vmem:[%s1 + $0x2d4] sm:$0xf]
  %v5357 = vld [vmem:[%s1 + $0x2d8] sm:$0xf]
  %v5358 = vld [vmem:[%s1 + $0x2dc] sm:$0xf]
  %v5359 = vld [vmem:[%s1 + $0x2e0] sm:$0xf]
  %v5360 = vld [vmem:[%s1 + $0x2e4] sm:$0xf]
  %v5361 = vld [vmem:[%s1 + $0x2e8] sm:$0xf]
  %v5362 = vld [vmem:[%s1 + $0x2ec] sm:$0xf]
  %v5363 = vld [vmem:[%s1 + $0x2f0] sm:$0xf]
  %v5364 = vpack.c.bf16 %v5345, %v5342
  %v5381 = vunpack.c.l.b16 %v5348
  %v5382 = vunpack.c.l.b16 %v5349
  %v5383 = vunpack.c.l.b16 %v5350
  %v5384 = vunpack.c.l.b16 %v5351
  %v5385 = vunpack.c.l.b16 %v5352
  %v5386 = vunpack.c.l.b16 %v5353
  %v5387 = vunpack.c.l.b16 %v5354
  %v5388 = vunpack.c.l.b16 %v5355
  %v5389 = vunpack.c.l.b16 %v5356
  %v5390 = vunpack.c.l.b16 %v5357
  %v5391 = vunpack.c.l.b16 %v5358
  %v5392 = vunpack.c.l.b16 %v5359
  %v5393 = vunpack.c.l.b16 %v5360
  %v5394 = vunpack.c.l.b16 %v5361
  %v5395 = vunpack.c.l.b16 %v5362
  %v5396 = vunpack.c.l.b16 %v5363
  %v5397 = vpack.c.b16 %v5382, %v5381
  %v5398 = vpack.c.b16 %v5384, %v5383
  %v5399 = vpack.c.b16 %v5386, %v5385
  %v5400 = vpack.c.b16 %v5388, %v5387
  %v5401 = vpack.c.b16 %v5390, %v5389
  %v5402 = vpack.c.b16 %v5392, %v5391
  %v5403 = vpack.c.b16 %v5394, %v5393
  %v5404 = vpack.c.b16 %v5396, %v5395
  %5413 = vmatprep.subr.bf16.mxu0 0
  %5414 = vmatpush1.bf16.msra.mxu0 %v5397
  %5415 = vmatprep.subr.bf16.mxu0 0
  %5416 = vmatpush1.bf16.msra.mxu0 %v5398
  %5417 = vmatprep.subr.bf16.mxu0 0
  %5418 = vmatpush1.bf16.msra.mxu0 %v5399
  %5419 = vmatprep.subr.bf16.mxu0 0
  %5420 = vmatpush1.bf16.msra.mxu0 %v5400
  %5421 = vmatprep.subr.bf16.mxu0 0
  %5422 = vmatpush1.bf16.msra.mxu0 %v5401
  %5423 = vmatprep.subr.bf16.mxu0 0
  %5424 = vmatpush1.bf16.msra.mxu0 %v5402
  %5425 = vmatprep.subr.bf16.mxu0 0
  %5426 = vmatpush1.bf16.msra.mxu0 %v5403
  %5427 = vmatprep.subr.bf16.mxu0 0
  %5428 = vmatpush1.bf16.msra.mxu0 %v5404
  %5429 = vmatprep.subr.bf16.mxu0 0
  %5430 = vmatpush1.bf16.msra.mxu0 0
  %5431 = vmatprep.subr.bf16.mxu0 0
  %5432 = vmatpush1.bf16.msra.mxu0 0
  %5433 = vmatprep.subr.bf16.mxu0 0
  %5434 = vmatpush1.bf16.msra.mxu0 0
  %5435 = vmatprep.subr.bf16.mxu0 0
  %5436 = vmatpush1.bf16.msra.mxu0 0
  %5437 = vmatprep.subr.bf16.mxu0 0
  %5438 = vmatpush1.bf16.msra.mxu0 0
  %5439 = vmatprep.subr.bf16.mxu0 0
  %5440 = vmatpush1.bf16.msra.mxu0 0
  %5441 = vmatprep.subr.bf16.mxu0 0
  %5442 = vmatpush1.bf16.msra.mxu0 0
  %5443 = vmatprep.subr.bf16.mxu0 0
  %5444 = vmatpush1.bf16.msra.mxu0 0
  %5445 = vmatprep.mubr.bf16.mxu0 0
  %5446 = vmatmul.mubr.bf16.gmra.mrb[0].mxu0 %v5364
  %v5447 = vpop.f32.mrb[0].mxu0
  %v5448 = vadd.f32 0.0, %v5447
  %v5449 = vpop.f32.mrb[0].mxu0
  %v5450 = vpop.f32.mrb[0].mxu0
  %v5451 = vadd.f32 0.0, %v5450
  %v5452 = vpop.f32.mrb[0].mxu0
  %5453 = vdwg.mxu0
  %v5454 = vadd.f32 %v5334, %v5448
  %v5455 = vadd.f32 %v5337, %v5451
  %v5456 = vld [vmem:[%s2 + $0x16] sm:$0x1]
  %v5457 = vlaneseq
  %v5458 = vshrl.u32 %v5457, 7
  %v5459 = vsub.s32 0, %v5458
  %v5460 = vrot.slane %v5456, %v5459
  %v5461 = vadd.f32 %v5454, %v5460
  %v5462 = vadd.f32 %v5455, %v5460
  %v5463 = vadd.f32 %v5461, %v5462
  %v5464 = vrot.slane %v5463, 4
  %v5465 = vadd.f32 %v5463, %v5464
  %v5466 = vrot.slane %v5465, 2
  %v5467 = vadd.f32 %v5465, %v5466
  %v5468 = vrot.slane %v5467, 1
  %v5469 = vadd.f32 %v5467, %v5468
  %v5470 = vmul.f32 %v5461, %v5461
  %v5471 = vmul.f32 %v5462, %v5462
  %v5472 = vadd.f32 %v5470, %v5471
  %v5473 = vrot.slane %v5472, 4
  %v5474 = vadd.f32 %v5472, %v5473
  %v5475 = vrot.slane %v5474, 2
  %v5476 = vadd.f32 %v5474, %v5475
  %v5477 = vrot.slane %v5476, 1
  %v5478 = vadd.f32 %v5476, %v5477
  %v5479 = vmul.f32 %v5469, 0.0625
  %v5480 = vmul.f32 %v5478, 0.0625
  %v5481 = vmul.f32 %v5479, %v5479
  %v5482 = vsub.f32 %v5480, %v5481
  %v5483 = vmax.f32 %v5482, 0.0
  %v5484 = vadd.f32 %v5483, 1e-05
  %v5485 = vrsqrt.pop %v5484
  %v5486 = vld [vmem:[%s2 + $0x17] sm:$0x1]
  %v5487 = vmul.f32 %v5485, %v5486
  %v5488 = vsub.f32 %v5461, %v5479
  %v5489 = vsub.f32 %v5462, %v5479
  %v5490 = vlaneseq
  %v5491 = vshrl.u32 %v5490, 7
  %v5492 = vsub.s32 0, %v5491
  %v5493 = vrot.slane %v5487, %v5492
  %v5494 = vmul.f32 %v5488, %v5493
  %v5495 = vmul.f32 %v5489, %v5493
  %v5496 = vld [vmem:[%s2 + $0x18] sm:$0x1]
  %v5497 = vlaneseq
  %v5498 = vshrl.u32 %v5497, 7
  %v5499 = vsub.s32 0, %v5498
  %v5500 = vrot.slane %v5496, %v5499
  %v5501 = vadd.f32 %v5494, %v5500
  %v5502 = vadd.f32 %v5495, %v5500
  %v5503 = vmax.f32 %v5501, 0.0
  %v5504 = vmax.f32 %v5502, 0.0
  %v5507 = vrot.slane %v5503, 7
  %v5508 = vrot.slane %v5504, 7
  %v5511 = vsel %vm47, 0.0, %v5507
  %v5512 = vsel %vm47, 0.0, %v5508
  %v5513 = vsel %vm47, %v5507, 0.0
  %v5514 = vsel %vm47, %v5508, 0.0
  %v5515 = vld [vmem:[%s1 + $0x2f4] sm:$0xf]
  %v5516 = vld [vmem:[%s1 + $0x2f8] sm:$0xf]
  %v5517 = vld [vmem:[%s1 + $0x2fc] sm:$0xf]
  %v5518 = vld [vmem:[%s1 + $0x300] sm:$0xf]
  %v5519 = vld [vmem:[%s1 + $0x304] sm:$0xf]
  %v5520 = vld [vmem:[%s1 + $0x308] sm:$0xf]
  %v5521 = vld [vmem:[%s1 + $0x30c] sm:$0xf]
  %v5522 = vld [vmem:[%s1 + $0x310] sm:$0xf]
  %v5523 = vld [vmem:[%s1 + $0x314] sm:$0xf]
  %v5524 = vld [vmem:[%s1 + $0x318] sm:$0xf]
  %v5525 = vld [vmem:[%s1 + $0x31c] sm:$0xf]
  %v5526 = vld [vmem:[%s1 + $0x320] sm:$0xf]
  %v5527 = vld [vmem:[%s1 + $0x324] sm:$0xf]
  %v5528 = vld [vmem:[%s1 + $0x328] sm:$0xf]
  %v5529 = vld [vmem:[%s1 + $0x32c] sm:$0xf]
  %v5530 = vld [vmem:[%s1 + $0x330] sm:$0xf]
  %v5531 = vpack.c.bf16 %v5512, %v5511
  %v5536 = vrot.slane %v5511, 1
  %v5537 = vrot.slane %v5513, 1
  %v5538 = vsel %vm176, %v5536, %v5537
  %v5539 = vrot.slane %v5512, 1
  %v5540 = vrot.slane %v5514, 1
  %v5541 = vsel %vm176, %v5539, %v5540
  %v5544 = vld [vmem:[%s1 + $0x334] sm:$0xf]
  %v5545 = vld [vmem:[%s1 + $0x338] sm:$0xf]
  %v5546 = vld [vmem:[%s1 + $0x33c] sm:$0xf]
  %v5547 = vld [vmem:[%s1 + $0x340] sm:$0xf]
  %v5548 = vld [vmem:[%s1 + $0x344] sm:$0xf]
  %v5549 = vld [vmem:[%s1 + $0x348] sm:$0xf]
  %v5550 = vld [vmem:[%s1 + $0x34c] sm:$0xf]
  %v5551 = vld [vmem:[%s1 + $0x350] sm:$0xf]
  %v5552 = vld [vmem:[%s1 + $0x354] sm:$0xf]
  %v5553 = vld [vmem:[%s1 + $0x358] sm:$0xf]
  %v5554 = vld [vmem:[%s1 + $0x35c] sm:$0xf]
  %v5555 = vld [vmem:[%s1 + $0x360] sm:$0xf]
  %v5556 = vld [vmem:[%s1 + $0x364] sm:$0xf]
  %v5557 = vld [vmem:[%s1 + $0x368] sm:$0xf]
  %v5558 = vld [vmem:[%s1 + $0x36c] sm:$0xf]
  %v5559 = vld [vmem:[%s1 + $0x370] sm:$0xf]
  %v5560 = vpack.c.bf16 %v5541, %v5538
  %v5577 = vunpack.c.l.b16 %v5544
  %v5578 = vunpack.c.l.b16 %v5545
  %v5579 = vunpack.c.l.b16 %v5546
  %v5580 = vunpack.c.l.b16 %v5547
  %v5581 = vunpack.c.l.b16 %v5548
  %v5582 = vunpack.c.l.b16 %v5549
  %v5583 = vunpack.c.l.b16 %v5550
  %v5584 = vunpack.c.l.b16 %v5551
  %v5585 = vunpack.c.l.b16 %v5552
  %v5586 = vunpack.c.l.b16 %v5553
  %v5587 = vunpack.c.l.b16 %v5554
  %v5588 = vunpack.c.l.b16 %v5555
  %v5589 = vunpack.c.l.b16 %v5556
  %v5590 = vunpack.c.l.b16 %v5557
  %v5591 = vunpack.c.l.b16 %v5558
  %v5592 = vunpack.c.l.b16 %v5559
  %v5593 = vpack.c.b16 %v5578, %v5577
  %v5594 = vpack.c.b16 %v5580, %v5579
  %v5595 = vpack.c.b16 %v5582, %v5581
  %v5596 = vpack.c.b16 %v5584, %v5583
  %v5597 = vpack.c.b16 %v5586, %v5585
  %v5598 = vpack.c.b16 %v5588, %v5587
  %v5599 = vpack.c.b16 %v5590, %v5589
  %v5600 = vpack.c.b16 %v5592, %v5591
  %5609 = vmatprep.subr.bf16.mxu0 0
  %5610 = vmatpush1.bf16.msra.mxu0 %v5593
  %5611 = vmatprep.subr.bf16.mxu0 0
  %5612 = vmatpush1.bf16.msra.mxu0 %v5594
  %5613 = vmatprep.subr.bf16.mxu0 0
  %5614 = vmatpush1.bf16.msra.mxu0 %v5595
  %5615 = vmatprep.subr.bf16.mxu0 0
  %5616 = vmatpush1.bf16.msra.mxu0 %v5596
  %5617 = vmatprep.subr.bf16.mxu0 0
  %5618 = vmatpush1.bf16.msra.mxu0 %v5597
  %5619 = vmatprep.subr.bf16.mxu0 0
  %5620 = vmatpush1.bf16.msra.mxu0 %v5598
  %5621 = vmatprep.subr.bf16.mxu0 0
  %5622 = vmatpush1.bf16.msra.mxu0 %v5599
  %5623 = vmatprep.subr.bf16.mxu0 0
  %5624 = vmatpush1.bf16.msra.mxu0 %v5600
  %5625 = vmatprep.subr.bf16.mxu0 0
  %5626 = vmatpush1.bf16.msra.mxu0 0
  %5627 = vmatprep.subr.bf16.mxu0 0
  %5628 = vmatpush1.bf16.msra.mxu0 0
  %5629 = vmatprep.subr.bf16.mxu0 0
  %5630 = vmatpush1.bf16.msra.mxu0 0
  %5631 = vmatprep.subr.bf16.mxu0 0
  %5632 = vmatpush1.bf16.msra.mxu0 0
  %5633 = vmatprep.subr.bf16.mxu0 0
  %5634 = vmatpush1.bf16.msra.mxu0 0
  %5635 = vmatprep.subr.bf16.mxu0 0
  %5636 = vmatpush1.bf16.msra.mxu0 0
  %5637 = vmatprep.subr.bf16.mxu0 0
  %5638 = vmatpush1.bf16.msra.mxu0 0
  %5639 = vmatprep.subr.bf16.mxu0 0
  %5640 = vmatpush1.bf16.msra.mxu0 0
  %5641 = vmatprep.mubr.bf16.mxu0 0
  %5642 = vmatmul.mubr.bf16.gmra.mrb[0].mxu0 %v5560
  %v5643 = vpop.f32.mrb[0].mxu0
  %v5644 = vadd.f32 0.0, %v5643
  %v5645 = vpop.f32.mrb[0].mxu0
  %v5646 = vpop.f32.mrb[0].mxu0
  %v5647 = vadd.f32 0.0, %v5646
  %v5648 = vpop.f32.mrb[0].mxu0
  %5649 = vdwg.mxu0
  %v5666 = vunpack.c.l.b16 %v5515
  %v5667 = vunpack.c.l.b16 %v5516
  %v5668 = vunpack.c.l.b16 %v5517
  %v5669 = vunpack.c.l.b16 %v5518
  %v5670 = vunpack.c.l.b16 %v5519
  %v5671 = vunpack.c.l.b16 %v5520
  %v5672 = vunpack.c.l.b16 %v5521
  %v5673 = vunpack.c.l.b16 %v5522
  %v5674 = vunpack.c.l.b16 %v5523
  %v5675 = vunpack.c.l.b16 %v5524
  %v5676 = vunpack.c.l.b16 %v5525
  %v5677 = vunpack.c.l.b16 %v5526
  %v5678 = vunpack.c.l.b16 %v5527
  %v5679 = vunpack.c.l.b16 %v5528
  %v5680 = vunpack.c.l.b16 %v5529
  %v5681 = vunpack.c.l.b16 %v5530
  %v5682 = vpack.c.b16 %v5667, %v5666
  %v5683 = vpack.c.b16 %v5669, %v5668
  %v5684 = vpack.c.b16 %v5671, %v5670
  %v5685 = vpack.c.b16 %v5673, %v5672
  %v5686 = vpack.c.b16 %v5675, %v5674
  %v5687 = vpack.c.b16 %v5677, %v5676
  %v5688 = vpack.c.b16 %v5679, %v5678
  %v5689 = vpack.c.b16 %v5681, %v5680
  %5698 = vmatprep.subr.bf16.mxu0 0
  %5699 = vmatpush1.bf16.msra.mxu0 %v5682
  %5700 = vmatprep.subr.bf16.mxu0 0
  %5701 = vmatpush1.bf16.msra.mxu0 %v5683
  %5702 = vmatprep.subr.bf16.mxu0 0
  %5703 = vmatpush1.bf16.msra.mxu0 %v5684
  %5704 = vmatprep.subr.bf16.mxu0 0
  %5705 = vmatpush1.bf16.msra.mxu0 %v5685
  %5706 = vmatprep.subr.bf16.mxu0 0
  %5707 = vmatpush1.bf16.msra.mxu0 %v5686
  %5708 = vmatprep.subr.bf16.mxu0 0
  %5709 = vmatpush1.bf16.msra.mxu0 %v5687
  %5710 = vmatprep.subr.bf16.mxu0 0
  %5711 = vmatpush1.bf16.msra.mxu0 %v5688
  %5712 = vmatprep.subr.bf16.mxu0 0
  %5713 = vmatpush1.bf16.msra.mxu0 %v5689
  %5714 = vmatprep.subr.bf16.mxu0 0
  %5715 = vmatpush1.bf16.msra.mxu0 0
  %5716 = vmatprep.subr.bf16.mxu0 0
  %5717 = vmatpush1.bf16.msra.mxu0 0
  %5718 = vmatprep.subr.bf16.mxu0 0
  %5719 = vmatpush1.bf16.msra.mxu0 0
  %5720 = vmatprep.subr.bf16.mxu0 0
  %5721 = vmatpush1.bf16.msra.mxu0 0
  %5722 = vmatprep.subr.bf16.mxu0 0
  %5723 = vmatpush1.bf16.msra.mxu0 0
  %5724 = vmatprep.subr.bf16.mxu0 0
  %5725 = vmatpush1.bf16.msra.mxu0 0
  %5726 = vmatprep.subr.bf16.mxu0 0
  %5727 = vmatpush1.bf16.msra.mxu0 0
  %5728 = vmatprep.subr.bf16.mxu0 0
  %5729 = vmatpush1.bf16.msra.mxu0 0
  %5730 = vmatprep.mubr.bf16.mxu0 0
  %5731 = vmatmul.mubr.bf16.gmra.mrb[0].mxu0 %v5531
  %v5732 = vpop.f32.mrb[0].mxu0
  %v5733 = vadd.f32 %v5644, %v5732
  %v5734 = vpop.f32.mrb[0].mxu0
  %v5735 = vpop.f32.mrb[0].mxu0
  %v5736 = vadd.f32 %v5647, %v5735
  %v5737 = vpop.f32.mrb[0].mxu0
  %5738 = vdwg.mxu0
  %v5739 = vrot.slane %v5511, 2
  %v5740 = vrot.slane %v5513, 2
  %v5741 = vsel %vm311, %v5739, %v5740
  %v5742 = vrot.slane %v5512, 2
  %v5743 = vrot.slane %v5514, 2
  %v5744 = vsel %vm311, %v5742, %v5743
  %v5747 = vld [vmem:[%s1 + $0x374] sm:$0xf]
  %v5748 = vld [vmem:[%s1 + $0x378] sm:$0xf]
  %v5749 = vld [vmem:[%s1 + $0x37c] sm:$0xf]
  %v5750 = vld [vmem:[%s1 + $0x380] sm:$0xf]
  %v5751 = vld [vmem:[%s1 + $0x384] sm:$0xf]
  %v5752 = vld [vmem:[%s1 + $0x388] sm:$0xf]
  %v5753 = vld [vmem:[%s1 + $0x38c] sm:$0xf]
  %v5754 = vld [vmem:[%s1 + $0x390] sm:$0xf]
  %v5755 = vld [vmem:[%s1 + $0x394] sm:$0xf]
  %v5756 = vld [vmem:[%s1 + $0x398] sm:$0xf]
  %v5757 = vld [vmem:[%s1 + $0x39c] sm:$0xf]
  %v5758 = vld [vmem:[%s1 + $0x3a0] sm:$0xf]
  %v5759 = vld [vmem:[%s1 + $0x3a4] sm:$0xf]
  %v5760 = vld [vmem:[%s1 + $0x3a8] sm:$0xf]
  %v5761 = vld [vmem:[%s1 + $0x3ac] sm:$0xf]
  %v5762 = vld [vmem:[%s1 + $0x3b0] sm:$0xf]
  %v5763 = vpack.c.bf16 %v5744, %v5741
  %v5780 = vunpack.c.l.b16 %v5747
  %v5781 = vunpack.c.l.b16 %v5748
  %v5782 = vunpack.c.l.b16 %v5749
  %v5783 = vunpack.c.l.b16 %v5750
  %v5784 = vunpack.c.l.b16 %v5751
  %v5785 = vunpack.c.l.b16 %v5752
  %v5786 = vunpack.c.l.b16 %v5753
  %v5787 = vunpack.c.l.b16 %v5754
  %v5788 = vunpack.c.l.b16 %v5755
  %v5789 = vunpack.c.l.b16 %v5756
  %v5790 = vunpack.c.l.b16 %v5757
  %v5791 = vunpack.c.l.b16 %v5758
  %v5792 = vunpack.c.l.b16 %v5759
  %v5793 = vunpack.c.l.b16 %v5760
  %v5794 = vunpack.c.l.b16 %v5761
  %v5795 = vunpack.c.l.b16 %v5762
  %v5796 = vpack.c.b16 %v5781, %v5780
  %v5797 = vpack.c.b16 %v5783, %v5782
  %v5798 = vpack.c.b16 %v5785, %v5784
  %v5799 = vpack.c.b16 %v5787, %v5786
  %v5800 = vpack.c.b16 %v5789, %v5788
  %v5801 = vpack.c.b16 %v5791, %v5790
  %v5802 = vpack.c.b16 %v5793, %v5792
  %v5803 = vpack.c.b16 %v5795, %v5794
  %5812 = vmatprep.subr.bf16.mxu0 0
  %5813 = vmatpush1.bf16.msra.mxu0 %v5796
  %5814 = vmatprep.subr.bf16.mxu0 0
  %5815 = vmatpush1.bf16.msra.mxu0 %v5797
  %5816 = vmatprep.subr.bf16.mxu0 0
  %5817 = vmatpush1.bf16.msra.mxu0 %v5798
  %5818 = vmatprep.subr.bf16.mxu0 0
  %5819 = vmatpush1.bf16.msra.mxu0 %v5799
  %5820 = vmatprep.subr.bf16.mxu0 0
  %5821 = vmatpush1.bf16.msra.mxu0 %v5800
  %5822 = vmatprep.subr.bf16.mxu0 0
  %5823 = vmatpush1.bf16.msra.mxu0 %v5801
  %5824 = vmatprep.subr.bf16.mxu0 0
  %5825 = vmatpush1.bf16.msra.mxu0 %v5802
  %5826 = vmatprep.subr.bf16.mxu0 0
  %5827 = vmatpush1.bf16.msra.mxu0 %v5803
  %5828 = vmatprep.subr.bf16.mxu0 0
  %5829 = vmatpush1.bf16.msra.mxu0 0
  %5830 = vmatprep.subr.bf16.mxu0 0
  %5831 = vmatpush1.bf16.msra.mxu0 0
  %5832 = vmatprep.subr.bf16.mxu0 0
  %5833 = vmatpush1.bf16.msra.mxu0 0
  %5834 = vmatprep.subr.bf16.mxu0 0
  %5835 = vmatpush1.bf16.msra.mxu0 0
  %5836 = vmatprep.subr.bf16.mxu0 0
  %5837 = vmatpush1.bf16.msra.mxu0 0
  %5838 = vmatprep.subr.bf16.mxu0 0
  %5839 = vmatpush1.bf16.msra.mxu0 0
  %5840 = vmatprep.subr.bf16.mxu0 0
  %5841 = vmatpush1.bf16.msra.mxu0 0
  %5842 = vmatprep.subr.bf16.mxu0 0
  %5843 = vmatpush1.bf16.msra.mxu0 0
  %5844 = vmatprep.mubr.bf16.mxu0 0
  %5845 = vmatmul.mubr.bf16.gmra.mrb[0].mxu0 %v5763
  %v5846 = vpop.f32.mrb[0].mxu0
  %v5847 = vadd.f32 0.0, %v5846
  %v5848 = vpop.f32.mrb[0].mxu0
  %v5849 = vpop.f32.mrb[0].mxu0
  %v5850 = vadd.f32 0.0, %v5849
  %v5851 = vpop.f32.mrb[0].mxu0
  %5852 = vdwg.mxu0
  %v5853 = vadd.f32 %v5733, %v5847
  %v5854 = vadd.f32 %v5736, %v5850
  %v5855 = vld [vmem:[%s2 + $0x19] sm:$0x1]
  %v5856 = vlaneseq
  %v5857 = vshrl.u32 %v5856, 7
  %v5858 = vsub.s32 0, %v5857
  %v5859 = vrot.slane %v5855, %v5858
  %v5860 = vadd.f32 %v5853, %v5859
  %v5861 = vadd.f32 %v5854, %v5859
  %v5862 = vadd.f32 %v5860, %v5861
  %v5863 = vrot.slane %v5862, 4
  %v5864 = vadd.f32 %v5862, %v5863
  %v5865 = vrot.slane %v5864, 2
  %v5866 = vadd.f32 %v5864, %v5865
  %v5867 = vrot.slane %v5866, 1
  %v5868 = vadd.f32 %v5866, %v5867
  %v5869 = vmul.f32 %v5860, %v5860
  %v5870 = vmul.f32 %v5861, %v5861
  %v5871 = vadd.f32 %v5869, %v5870
  %v5872 = vrot.slane %v5871, 4
  %v5873 = vadd.f32 %v5871, %v5872
  %v5874 = vrot.slane %v5873, 2
  %v5875 = vadd.f32 %v5873, %v5874
  %v5876 = vrot.slane %v5875, 1
  %v5877 = vadd.f32 %v5875, %v5876
  %v5878 = vmul.f32 %v5868, 0.0625
  %v5879 = vmul.f32 %v5877, 0.0625
  %v5880 = vmul.f32 %v5878, %v5878
  %v5881 = vsub.f32 %v5879, %v5880
  %v5882 = vmax.f32 %v5881, 0.0
  %v5883 = vadd.f32 %v5882, 1e-05
  %v5884 = vrsqrt.pop %v5883
  %v5885 = vld [vmem:[%s2 + $0x1a] sm:$0x1]
  %v5886 = vmul.f32 %v5884, %v5885
  %v5887 = vsub.f32 %v5860, %v5878
  %v5888 = vsub.f32 %v5861, %v5878
  %v5889 = vlaneseq
  %v5890 = vshrl.u32 %v5889, 7
  %v5891 = vsub.s32 0, %v5890
  %v5892 = vrot.slane %v5886, %v5891
  %v5893 = vmul.f32 %v5887, %v5892
  %v5894 = vmul.f32 %v5888, %v5892
  %v5895 = vld [vmem:[%s2 + $0x1b] sm:$0x1]
  %v5896 = vlaneseq
  %v5897 = vshrl.u32 %v5896, 7
  %v5898 = vsub.s32 0, %v5897
  %v5899 = vrot.slane %v5895, %v5898
  %v5900 = vadd.f32 %v5893, %v5899
  %v5901 = vadd.f32 %v5894, %v5899
  %v5902 = vadd.f32 %v5900, %v5104
  %v5903 = vadd.f32 %v5901, %v5105
  %v5904 = vmax.f32 %v5902, 0.0
  %v5905 = vmax.f32 %v5903, 0.0
  %v5906 = vrot.slane %v5904, 4
  %v5907 = vadd.f32 %v5904, %v5906
  %v5908 = vrot.slane %v5907, 2
  %v5909 = vadd.f32 %v5907, %v5908
  %v5910 = vrot.slane %v5909, 1
  %v5911 = vadd.f32 %v5909, %v5910
  %v5912 = vrot.slane %v5905, 4
  %v5913 = vadd.f32 %v5905, %v5912
  %v5914 = vrot.slane %v5913, 2
  %v5915 = vadd.f32 %v5913, %v5914
  %v5916 = vrot.slane %v5915, 1
  %v5917 = vadd.f32 %v5915, %v5916
  %v5918 = vrcp.pop 8.0
  %v5919 = vmul.f32 %v5911, %v5918
  %v5920 = vmul.f32 %v5917, %v5918
  %v5921 = vld [vmem:[%s1 + $0x3b4] sm:$0xf]
  %v5922 = vld [vmem:[%s1 + $0x3b8] sm:$0xf]
  %v5923 = vld [vmem:[%s1 + $0x3bc] sm:$0xf]
  %v5924 = vld [vmem:[%s1 + $0x3c0] sm:$0xf]
  %v5925 = vld [vmem:[%s1 + $0x3c4] sm:$0xf]
  %v5926 = vld [vmem:[%s1 + $0x3c8] sm:$0xf]
  %v5927 = vld [vmem:[%s1 + $0x3cc] sm:$0xf]
  %v5928 = vld [vmem:[%s1 + $0x3d0] sm:$0xf]
  %v5929 = vld [vmem:[%s1 + $0x3d4] sm:$0xf]
  %v5930 = vld [vmem:[%s1 + $0x3d8] sm:$0xf]
  %v5931 = vld [vmem:[%s1 + $0x3dc] sm:$0xf]
  %v5932 = vld [vmem:[%s1 + $0x3e0] sm:$0xf]
  %v5933 = vld [vmem:[%s1 + $0x3e4] sm:$0xf]
  %v5934 = vld [vmem:[%s1 + $0x3e8] sm:$0xf]
  %v5935 = vld [vmem:[%s1 + $0x3ec] sm:$0xf]
  %v5936 = vld [vmem:[%s1 + $0x3f0] sm:$0xf]
  %v5937 = vpack.c.bf16 %v5919, %v5919
  %v5938 = vpack.c.bf16 %v5920, %v5920
  %v5939 = vld [vmem:[%s2 + $0x1c] sm:$0x1]
  %v5940 = vlaneseq
  %v5941 = vshrl.u32 %v5940, 7
  %v5942 = vsub.s32 0, %v5941
  %v5943 = vrot.slane %v5939, %v5942
  %v5946 = vunpack.c.l.b16 %v5937
  %v5947 = vunpack.c.l.b16 %v5938
  %vm5948 = vcmask 1041409
  %v5949 = vsel %vm5948, %v5947, %v5946
  %v5950 = vpack.c.b16 %v5949, %v5949
  %v5968 = vunpack.c.l.b16 %v5921
  %v5969 = vunpack.c.l.b16 %v5922
  %v5970 = vunpack.c.l.b16 %v5923
  %v5971 = vunpack.c.l.b16 %v5924
  %v5972 = vunpack.c.l.b16 %v5925
  %v5973 = vunpack.c.l.b16 %v5926
  %v5974 = vunpack.c.l.b16 %v5927
  %v5975 = vunpack.c.l.b16 %v5928
  %v5976 = vunpack.c.l.b16 %v5929
  %v5977 = vunpack.c.l.b16 %v5930
  %v5978 = vunpack.c.l.b16 %v5931
  %v5979 = vunpack.c.l.b16 %v5932
  %v5980 = vunpack.c.l.b16 %v5933
  %v5981 = vunpack.c.l.b16 %v5934
  %v5982 = vunpack.c.l.b16 %v5935
  %v5983 = vunpack.c.l.b16 %v5936
  %v5984 = vpack.c.b16 %v5969, %v5968
  %v5985 = vpack.c.b16 %v5971, %v5970
  %v5986 = vpack.c.b16 %v5973, %v5972
  %v5987 = vpack.c.b16 %v5975, %v5974
  %v5988 = vpack.c.b16 %v5977, %v5976
  %v5989 = vpack.c.b16 %v5979, %v5978
  %v5990 = vpack.c.b16 %v5981, %v5980
  %v5991 = vpack.c.b16 %v5983, %v5982
  %6000 = vmatprep.subr.bf16.mxu0 0
  %6001 = vmatpush1.bf16.msra.mxu0 %v5984
  %6002 = vmatprep.subr.bf16.mxu0 0
  %6003 = vmatpush1.bf16.msra.mxu0 %v5985
  %6004 = vmatprep.subr.bf16.mxu0 0
  %6005 = vmatpush1.bf16.msra.mxu0 %v5986
  %6006 = vmatprep.subr.bf16.mxu0 0
  %6007 = vmatpush1.bf16.msra.mxu0 %v5987
  %6008 = vmatprep.subr.bf16.mxu0 0
  %6009 = vmatpush1.bf16.msra.mxu0 %v5988
  %6010 = vmatprep.subr.bf16.mxu0 0
  %6011 = vmatpush1.bf16.msra.mxu0 %v5989
  %6012 = vmatprep.subr.bf16.mxu0 0
  %6013 = vmatpush1.bf16.msra.mxu0 %v5990
  %6014 = vmatprep.subr.bf16.mxu0 0
  %6015 = vmatpush1.bf16.msra.mxu0 %v5991
  %6016 = vmatprep.subr.bf16.mxu0 0
  %6017 = vmatpush1.bf16.msra.mxu0 0
  %6018 = vmatprep.subr.bf16.mxu0 0
  %6019 = vmatpush1.bf16.msra.mxu0 0
  %6020 = vmatprep.subr.bf16.mxu0 0
  %6021 = vmatpush1.bf16.msra.mxu0 0
  %6022 = vmatprep.subr.bf16.mxu0 0
  %6023 = vmatpush1.bf16.msra.mxu0 0
  %6024 = vmatprep.subr.bf16.mxu0 0
  %6025 = vmatpush1.bf16.msra.mxu0 0
  %6026 = vmatprep.subr.bf16.mxu0 0
  %6027 = vmatpush1.bf16.msra.mxu0 0
  %6028 = vmatprep.subr.bf16.mxu0 0
  %6029 = vmatpush1.bf16.msra.mxu0 0
  %6030 = vmatprep.subr.bf16.mxu0 0
  %6031 = vmatpush1.bf16.msra.mxu0 0
  %6032 = vmatprep.mubr.bf16.mxu0 0
  %6033 = vmatmul.mubr.bf16.gmra.mrb[0].mxu0 %v5950
  %v6034 = vpop.f32.mrb[0].mxu0
  %v6035 = vadd.f32 %v5943, %v6034
  %v6036 = vpop.f32.mrb[0].mxu0
  %v6037 = vpop.f32.mrb[0].mxu0
  %v6038 = vpop.f32.mrb[0].mxu0
  %6039 = vdwg.mxu0
  %6040 = vst [vmem:[%s3] sm:$0x3] %v6035
  // Predicated region
  $region14: #{encoder_forward.1} parent=0 // pred_check
    _
  $region15: #{encoder_forward.1} parent=0 // pred_check_branch
    %6042 = sbr.rel (0) target = $region17
  $region16: #{encoder_forward.1} parent=0 // pred_region
    _
  $region17: #{encoder_forward.1} parent=0 // pred_fallthru
    _
  // Predicated region
  $region18: #{encoder_forward.1} parent=0 // pred_check
    _
  $region19: #{encoder_forward.1} parent=0 // pred_check_branch
    %6044 = sbr.rel (0) target = $region21
  $region20: #{encoder_forward.1} parent=0 // pred_region
    _
  $region21: #{encoder_forward.1} parent=0 // pred_fallthru
    _

</llo_original>
